<compile_context>
chip_gen: v7x
topology: tpu7x:2x2x1
jax: 0.10.0
libtpu: 0.0.40
codegen_flags: <defaults>
</compile_context>

<pallas_src>
import functools

import jax
import jax.numpy as jnp
from jax.experimental import pallas as pl
from jax.experimental.pallas import tpu as pltpu

# (Cin, Cout, k, stride, pad, activation)
LAYER_CFG = [
    (3,   16,  3, 2, 1, "relu"),
    (16,  32,  3, 2, 1, "relu"),
    (32,  64,  3, 2, 1, "relu"),
    (64,  128, 3, 2, 1, "relu"),
    (128, 256, 3, 2, 1, "relu"),
    (256, 256, 3, 1, 1, "relu"),
    (256, 512, 1, 1, 0, "relu"),
    (512, 15,  1, 1, 0, "sigmoid"),
]
BN_EPS = 1e-5
VMEM_LIMIT = 32 * 1024 * 1024  # safe on v5e/v6e (128 MiB) and v7x (64 MiB)


def _round_up(x, m):
    return ((x + m - 1) // m) * m


def _pick_tile_m(m, max_tile=512):
    """Largest M tile (<= max_tile) that evenly divides m."""
    for cand in (512, 256, 128, 64, 32, 16, 8):
        if cand <= max_tile and m % cand == 0:
            return cand
    return None


# ---------------------------------------------------------------------------
# Pallas kernel: fused  out = act((patches @ W) * scale + bias), tiled over M
# ---------------------------------------------------------------------------
def _fused_matmul_bn_act_kernel(p_ref, w_ref, s_ref, b_ref, o_ref, *, act):
    y = jnp.dot(p_ref[...], w_ref[...], preferred_element_type=jnp.float32)
    y = y * s_ref[...] + b_ref[...]
    if act == "relu":
        y = jnp.maximum(y, 0.0)
    else:  # sigmoid
        y = jax.nn.sigmoid(y)
    o_ref[...] = y.astype(o_ref.dtype)


def fused_matmul_bn_act(patches, weight, scale, bias, act,
                        out_dtype=jnp.bfloat16):
    """patches: (M, K) bf16, weight: (K, C) bf16, scale/bias: (1, C) f32."""
    M, K = patches.shape
    C = weight.shape[1]

    TM = _pick_tile_m(M)
    Mp = M
    if TM is None:                       # ragged M: pad rows only (cheap)
        Mp = _round_up(M, 16)
        patches = jnp.pad(patches, ((0, Mp - M), (0, 0)))
        TM = _pick_tile_m(Mp)

    kernel = functools.partial(_fused_matmul_bn_act_kernel, act=act)
    out = pl.pallas_call(
        kernel,
        out_shape=jax.ShapeDtypeStruct((Mp, C), out_dtype),
        grid=(Mp // TM,),
        in_specs=[
            pl.BlockSpec((TM, K), lambda i: (i, 0)),   # patches tile
            pl.BlockSpec((K, C), lambda i: (0, 0)),    # weight (resident)
            pl.BlockSpec((1, C), lambda i: (0, 0)),    # folded BN scale
            pl.BlockSpec((1, C), lambda i: (0, 0)),    # folded BN bias
        ],
        out_specs=pl.BlockSpec((TM, C), lambda i: (i, 0)),
        compiler_params=pltpu.CompilerParams(
            dimension_semantics=("parallel",),         # v7x megacore sharding
            vmem_limit_bytes=VMEM_LIMIT),
    )(patches, weight, scale, bias)
    if Mp != M:
        out = out[:M]
    return out


# ---------------------------------------------------------------------------
# Fused tail: layers 6-8 (3x3 conv on 2x2 map + two 1x1 convs + sigmoid)
# All weights (< 2 MiB bf16) stay resident in VMEM; one launch, no HBM
# round trips for the tiny intermediate activations.
# ---------------------------------------------------------------------------
def _tail_kernel(p_ref, w6_ref, s6_ref, b6_ref, w7_ref, s7_ref, b7_ref,
                 w8_ref, s8_ref, b8_ref, o_ref):
    y = jnp.dot(p_ref[...], w6_ref[...], preferred_element_type=jnp.float32)
    y = jnp.maximum(y * s6_ref[...] + b6_ref[...], 0.0)
    y = jnp.dot(y.astype(jnp.bfloat16), w7_ref[...],
                preferred_element_type=jnp.float32)
    y = jnp.maximum(y * s7_ref[...] + b7_ref[...], 0.0)
    y = jnp.dot(y.astype(jnp.bfloat16), w8_ref[...],
                preferred_element_type=jnp.float32)
    y = y * s8_ref[...] + b8_ref[...]
    o_ref[...] = jax.nn.sigmoid(y)


def fused_tail(p6, layer6, layer7, layer8):
    (w6, s6, b6), (w7, s7, b7), (w8, s8, b8) = layer6, layer7, layer8
    M = p6.shape[0]
    C_out = w8.shape[1]

    def full(shape):
        return pl.BlockSpec(shape, lambda i: (0,) * len(shape))

    return pl.pallas_call(
        _tail_kernel,
        out_shape=jax.ShapeDtypeStruct((M, C_out), jnp.float32),
        grid=(1,),
        in_specs=[
            full(p6.shape),
            full(w6.shape), full(s6.shape), full(b6.shape),
            full(w7.shape), full(s7.shape), full(b7.shape),
            full(w8.shape), full(s8.shape), full(b8.shape),
        ],
        out_specs=full((M, C_out)),
        compiler_params=pltpu.CompilerParams(
            dimension_semantics=("arbitrary",),
            vmem_limit_bytes=VMEM_LIMIT),
    )(p6, w6, s6, b6, w7, s7, b7, w8, s8, b8)


# ---------------------------------------------------------------------------
# Plain-JAX glue: im2col and per-layer parameter folding (done once)
# ---------------------------------------------------------------------------
def _im2col(x_nhwc, k, stride, pad):
    N, H, W, C = x_nhwc.shape
    Ho = (H + 2 * pad - k) // stride + 1
    Wo = (W + 2 * pad - k) // stride + 1
    if k == 1 and stride == 1 and pad == 0:
        return x_nhwc.reshape(N * H * W, C), Ho, Wo
    xp = jnp.pad(x_nhwc, ((0, 0), (pad, pad), (pad, pad), (0, 0)))
    cols = []
    for kh in range(k):
        for kw in range(k):
            cols.append(xp[:, kh:kh + stride * (Ho - 1) + 1:stride,
                              kw:kw + stride * (Wo - 1) + 1:stride, :])
    patches = jnp.concatenate(cols, axis=-1).reshape(N * Ho * Wo, k * k * C)
    return patches, Ho, Wo


def prepare_params(params):
    """Fold conv-bias + BN (eval mode) into scale/bias; reshape+cast weights once."""
    prepared = []
    for (w, cb, gamma, beta, rmean, rvar), (cin, cout, k, _, _, _) in zip(
            params, LAYER_CFG):
        # (Cout, Cin, KH, KW) -> (KH, KW, Cin, Cout) -> (K, Cout), matches
        # the (kh, kw, cin) im2col column order.
        w_mat = jnp.transpose(w, (2, 3, 1, 0)).reshape(k * k * cin, cout)
        bn_scale = gamma / jnp.sqrt(rvar + BN_EPS)
        eff_scale = bn_scale.reshape(1, cout).astype(jnp.float32)
        eff_bias = ((cb - rmean) * bn_scale + beta).reshape(1, cout)
        prepared.append((w_mat.astype(jnp.bfloat16), eff_scale,
                         eff_bias.astype(jnp.float32)))
    return tuple(prepared)


def kpnet_forward(x_nchw, prepared):
    N = x_nchw.shape[0]
    x = jnp.transpose(x_nchw, (0, 2, 3, 1)).astype(jnp.bfloat16)  # NCHW->NHWC

    # Layers 1-5: one tiled fused matmul+BN+ReLU kernel per layer.
    for li in range(5):
        _, cout, k, s, p, act = LAYER_CFG[li]
        w_mat, sc, bi = prepared[li]
        patches, Ho, Wo = _im2col(x, k, s, p)
        y = fused_matmul_bn_act(patches, w_mat, sc, bi, act)
        x = y.reshape(N, Ho, Wo, cout)

    # Layers 6-8: single fused tail kernel (three chained matmuls).
    _, _, k6, s6, pad6, _ = LAYER_CFG[5]
    patches6, Ho, Wo = _im2col(x, k6, s6, pad6)
    out = fused_tail(patches6, prepared[5], prepared[6], prepared[7])
    out = out.reshape(N, Ho, Wo, LAYER_CFG[7][1])
    return jnp.transpose(out, (0, 3, 1, 2))                      # NHWC->NCHW


# ---------------------------------------------------------------------------
# Deterministic synthetic parameters (He-style conv init; eval-mode BN stats)
# ---------------------------------------------------------------------------
def init_params(key):
    params = []
    for (cin, cout, k, _, _, _) in LAYER_CFG:
        key, k1, k2, k3, k4, k5, k6 = jax.random.split(key, 7)
        fan_in = cin * k * k
        w = jax.random.normal(k1, (cout, cin, k, k), jnp.float32) * jnp.sqrt(
            2.0 / fan_in)
        cb = 0.05 * jax.random.normal(k2, (cout,), jnp.float32)
        gamma = 1.0 + 0.1 * jax.random.normal(k3, (cout,), jnp.float32)
        beta = 0.1 * jax.random.normal(k4, (cout,), jnp.float32)
        rmean = 0.1 * jax.random.normal(k5, (cout,), jnp.float32)
        rvar = 1.0 + 0.1 * jnp.abs(jax.random.normal(k6, (cout,), jnp.float32))
        params.append((w, cb, gamma, beta, rmean, rvar))
    return params


# ---------------------------------------------------------------------------
# Pure-JAX references
# ---------------------------------------------------------------------------
def _apply_bn_act(y, cb, gamma, beta, rmean, rvar, act):
    y = y + cb[None, :, None, None]
    y = (y - rmean[None, :, None, None]) / jnp.sqrt(
        rvar[None, :, None, None] + BN_EPS)
    y = y * gamma[None, :, None, None] + beta[None, :, None, None]
    return jnp.maximum(y, 0.0) if act == "relu" else jax.nn.sigmoid(y)


def ref_forward_f32(x_nchw, params):
    x = x_nchw
    for (w, cb, gamma, beta, rmean, rvar), (_, _, k, s, p, act) in zip(
            params, LAYER_CFG):
        y = jax.lax.conv_general_dilated(
            x, w, window_strides=(s, s), padding=[(p, p), (p, p)],
            dimension_numbers=("NCHW", "OIHW", "NCHW"),
            precision=jax.lax.Precision.HIGHEST)
        x = _apply_bn_act(y, cb, gamma, beta, rmean, rvar, act)
    return x


def ref_forward_bf16(x_nchw, params):
    """Mirrors the kernel's precision: bf16 conv inputs, f32 accumulation,
    f32 BN/activation, bf16 inter-layer activations."""
    x = x_nchw
    n_layers = len(LAYER_CFG)
    for idx, (lp, cfg) in enumerate(zip(params, LAYER_CFG)):
        w, cb, gamma, beta, rmean, rvar = lp
        _, _, k, s, p, act = cfg
        y = jax.lax.conv_general_dilated(
            x.astype(jnp.bfloat16), w.astype(jnp.bfloat16),
            window_strides=(s, s), padding=[(p, p), (p, p)],
            dimension_numbers=("NCHW", "OIHW", "NCHW"),
            preferred_element_type=jnp.float32)
        y = _apply_bn_act(y, cb, gamma, beta, rmean, rvar, act)
        x = y if idx == n_layers - 1 else y.astype(jnp.bfloat16)
    return x


if __name__ == "__main__":
    key = jax.random.PRNGKey(0)
    kx, kp = jax.random.split(key)

    # batch=2, RGB, 64x64 (5 stride-2 convs -> 2x2 spatial output)
    x = jax.random.normal(kx, (2, 3, 64, 64), jnp.float32)
    params = init_params(kp)
    prepared = prepare_params(params)

    fwd = jax.jit(kpnet_forward)
    out = jax.block_until_ready(fwd(x, prepared))
    assert out.shape == (2, 15, 2, 2), out.shape

    # Tight check against a precision-matched (bf16 inputs, f32 accum) reference.
    ref_match = jax.block_until_ready(ref_forward_bf16(x, params))
    err_match = float(jnp.max(jnp.abs(out - ref_match)))
    assert err_match < 1e-2, f"bf16-matched reference mismatch: {err_match}"

    # Loose check against the full-precision f32 reference (bf16 MXU inputs).
    ref_full = jax.block_until_ready(ref_forward_f32(x, params))
    err_full = float(jnp.max(jnp.abs(out - ref_full)))
    assert err_full < 5e-2, f"f32 reference mismatch: {err_full}"

    print("KERNEL_OK")
</pallas_src>

<mosaic_0001>
module attributes {stable_mosaic.version = 11 : i64} {
  func.func @_fused_matmul_bn_act_kernel(%arg0: i32, %arg1: memref<512x27xbf16, #tpu.memory_space<vmem>>, %arg2: memref<27x16xbf16, #tpu.memory_space<vmem>>, %arg3: memref<1x16xf32, #tpu.memory_space<vmem>>, %arg4: memref<1x16xf32, #tpu.memory_space<vmem>>, %arg5: memref<512x16xbf16, #tpu.memory_space<vmem>>) attributes {dimension_semantics = [#tpu.dimension_semantics<parallel>], iteration_bounds = array<i64: 4>, scalar_prefetch = 0 : i64, scratch_operands = 0 : i64, tpu.core_type = #tpu.core_type<tc>, window_params = [{transform_indices = @transform_0, window_bounds = array<i64: 512, 27>}, {pipeline_mode = #tpu.pipeline_mode<synchronous>, transform_indices = @transform_1, window_bounds = array<i64: 27, 16>}, {pipeline_mode = #tpu.pipeline_mode<synchronous>, transform_indices = @transform_2, window_bounds = array<i64: 1, 16>}, {pipeline_mode = #tpu.pipeline_mode<synchronous>, transform_indices = @transform_3, window_bounds = array<i64: 1, 16>}, {transform_indices = @transform_4, window_bounds = array<i64: 512, 16>}]} {
    %c0 = arith.constant 0 : index
    %c0_0 = arith.constant 0 : index
    %0 = vector.load %arg1[%c0, %c0_0] : memref<512x27xbf16, #tpu.memory_space<vmem>>, vector<512x27xbf16>
    %c0_1 = arith.constant 0 : index
    %c0_2 = arith.constant 0 : index
    %1 = vector.load %arg2[%c0_1, %c0_2] : memref<27x16xbf16, #tpu.memory_space<vmem>>, vector<27x16xbf16>
    %cst = arith.constant dense<0.000000e+00> : vector<512x16xf32>
    %2 = tpu.matmul %0, %1, %cst {dimension_numbers = #tpu.dot_dimension_numbers<[1], [0], [0], [1], [0, 0, 1, 1], [], []>} : vector<512x27xbf16>, vector<27x16xbf16>, vector<512x16xf32> -> vector<512x16xf32>
    %c0_3 = arith.constant 0 : index
    %c0_4 = arith.constant 0 : index
    %3 = vector.load %arg3[%c0_3, %c0_4] : memref<1x16xf32, #tpu.memory_space<vmem>>, vector<1x16xf32>
    %4 = vector.broadcast %3 : vector<1x16xf32> to vector<512x16xf32>
    %5 = arith.mulf %2, %4 : vector<512x16xf32>
    %c0_5 = arith.constant 0 : index
    %c0_6 = arith.constant 0 : index
    %6 = vector.load %arg4[%c0_5, %c0_6] : memref<1x16xf32, #tpu.memory_space<vmem>>, vector<1x16xf32>
    %7 = vector.broadcast %6 : vector<1x16xf32> to vector<512x16xf32>
    %8 = arith.addf %5, %7 : vector<512x16xf32>
    %cst_7 = arith.constant 0.000000e+00 : f32
    %9 = vector.broadcast %cst_7 : f32 to vector<512x16xf32>
    %10 = arith.maximumf %8, %9 : vector<512x16xf32>
    %11 = arith.truncf %10 : vector<512x16xf32> to vector<512x16xbf16>
    %c0_8 = arith.constant 0 : index
    %c0_9 = arith.constant 0 : index
    %12 = vector.load %arg5[%c0_8, %c0_9] : memref<512x16xbf16, #tpu.memory_space<vmem>>, vector<512x16xbf16>
    tpu.vector_store %arg5[%c0_8, %c0_9], %11 {strides = array<i32>} : memref<512x16xbf16, #tpu.memory_space<vmem>>, vector<512x16xbf16>,
    return
  }
  func.func @transform_0(%arg0: i32) -> (i32, i32) {
    %c0_i32 = arith.constant 0 : i32
    %c0_i32_0 = arith.constant 0 : i32
    return %arg0, %c0_i32 : i32, i32
  }
  func.func @transform_1(%arg0: i32) -> (i32, i32) {
    %c0_i32 = arith.constant 0 : i32
    %c0_i32_0 = arith.constant 0 : i32
    %c0_i32_1 = arith.constant 0 : i32
    return %c0_i32, %c0_i32_0 : i32, i32
  }
  func.func @transform_2(%arg0: i32) -> (i32, i32) {
    %c0_i32 = arith.constant 0 : i32
    %c0_i32_0 = arith.constant 0 : i32
    %c0_i32_1 = arith.constant 0 : i32
    return %c0_i32, %c0_i32_0 : i32, i32
  }
  func.func @transform_3(%arg0: i32) -> (i32, i32) {
    %c0_i32 = arith.constant 0 : i32
    %c0_i32_0 = arith.constant 0 : i32
    %c0_i32_1 = arith.constant 0 : i32
    return %c0_i32, %c0_i32_0 : i32, i32
  }
  func.func @transform_4(%arg0: i32) -> (i32, i32) {
    %c0_i32 = arith.constant 0 : i32
    %c0_i32_0 = arith.constant 0 : i32
    return %arg0, %c0_i32 : i32, i32
  }
}

module attributes {stable_mosaic.version = 11 : i64} {
  func.func @_fused_matmul_bn_act_kernel(%arg0: i32, %arg1: memref<512x144xbf16, #tpu.memory_space<vmem>>, %arg2: memref<144x32xbf16, #tpu.memory_space<vmem>>, %arg3: memref<1x32xf32, #tpu.memory_space<vmem>>, %arg4: memref<1x32xf32, #tpu.memory_space<vmem>>, %arg5: memref<512x32xbf16, #tpu.memory_space<vmem>>) attributes {dimension_semantics = [#tpu.dimension_semantics<parallel>], iteration_bounds = array<i64: 1>, scalar_prefetch = 0 : i64, scratch_operands = 0 : i64, tpu.core_type = #tpu.core_type<tc>, window_params = [{transform_indices = @transform_0, window_bounds = array<i64: 512, 144>}, {pipeline_mode = #tpu.pipeline_mode<synchronous>, transform_indices = @transform_1, window_bounds = array<i64: 144, 32>}, {pipeline_mode = #tpu.pipeline_mode<synchronous>, transform_indices = @transform_2, window_bounds = array<i64: 1, 32>}, {pipeline_mode = #tpu.pipeline_mode<synchronous>, transform_indices = @transform_3, window_bounds = array<i64: 1, 32>}, {transform_indices = @transform_4, window_bounds = array<i64: 512, 32>}]} {
    %c0 = arith.constant 0 : index
    %c0_0 = arith.constant 0 : index
    %0 = vector.load %arg1[%c0, %c0_0] : memref<512x144xbf16, #tpu.memory_space<vmem>>, vector<512x144xbf16>
    %c0_1 = arith.constant 0 : index
    %c0_2 = arith.constant 0 : index
    %1 = vector.load %arg2[%c0_1, %c0_2] : memref<144x32xbf16, #tpu.memory_space<vmem>>, vector<144x32xbf16>
    %cst = arith.constant dense<0.000000e+00> : vector<512x32xf32>
    %2 = tpu.matmul %0, %1, %cst {dimension_numbers = #tpu.dot_dimension_numbers<[1], [0], [0], [1], [0, 0, 1, 1], [], []>} : vector<512x144xbf16>, vector<144x32xbf16>, vector<512x32xf32> -> vector<512x32xf32>
    %c0_3 = arith.constant 0 : index
    %c0_4 = arith.constant 0 : index
    %3 = vector.load %arg3[%c0_3, %c0_4] : memref<1x32xf32, #tpu.memory_space<vmem>>, vector<1x32xf32>
    %4 = vector.broadcast %3 : vector<1x32xf32> to vector<512x32xf32>
    %5 = arith.mulf %2, %4 : vector<512x32xf32>
    %c0_5 = arith.constant 0 : index
    %c0_6 = arith.constant 0 : index
    %6 = vector.load %arg4[%c0_5, %c0_6] : memref<1x32xf32, #tpu.memory_space<vmem>>, vector<1x32xf32>
    %7 = vector.broadcast %6 : vector<1x32xf32> to vector<512x32xf32>
    %8 = arith.addf %5, %7 : vector<512x32xf32>
    %cst_7 = arith.constant 0.000000e+00 : f32
    %9 = vector.broadcast %cst_7 : f32 to vector<512x32xf32>
    %10 = arith.maximumf %8, %9 : vector<512x32xf32>
    %11 = arith.truncf %10 : vector<512x32xf32> to vector<512x32xbf16>
    %c0_8 = arith.constant 0 : index
    %c0_9 = arith.constant 0 : index
    %12 = vector.load %arg5[%c0_8, %c0_9] : memref<512x32xbf16, #tpu.memory_space<vmem>>, vector<512x32xbf16>
    tpu.vector_store %arg5[%c0_8, %c0_9], %11 {strides = array<i32>} : memref<512x32xbf16, #tpu.memory_space<vmem>>, vector<512x32xbf16>,
    return
  }
  func.func @transform_0(%arg0: i32) -> (i32, i32) {
    %c0_i32 = arith.constant 0 : i32
    %c0_i32_0 = arith.constant 0 : i32
    return %arg0, %c0_i32 : i32, i32
  }
  func.func @transform_1(%arg0: i32) -> (i32, i32) {
    %c0_i32 = arith.constant 0 : i32
    %c0_i32_0 = arith.constant 0 : i32
    %c0_i32_1 = arith.constant 0 : i32
    return %c0_i32, %c0_i32_0 : i32, i32
  }
  func.func @transform_2(%arg0: i32) -> (i32, i32) {
    %c0_i32 = arith.constant 0 : i32
    %c0_i32_0 = arith.constant 0 : i32
    %c0_i32_1 = arith.constant 0 : i32
    return %c0_i32, %c0_i32_0 : i32, i32
  }
  func.func @transform_3(%arg0: i32) -> (i32, i32) {
    %c0_i32 = arith.constant 0 : i32
    %c0_i32_0 = arith.constant 0 : i32
    %c0_i32_1 = arith.constant 0 : i32
    return %c0_i32, %c0_i32_0 : i32, i32
  }
  func.func @transform_4(%arg0: i32) -> (i32, i32) {
    %c0_i32 = arith.constant 0 : i32
    %c0_i32_0 = arith.constant 0 : i32
    return %arg0, %c0_i32 : i32, i32
  }
}

module attributes {stable_mosaic.version = 11 : i64} {
  func.func @_fused_matmul_bn_act_kernel(%arg0: i32, %arg1: memref<128x288xbf16, #tpu.memory_space<vmem>>, %arg2: memref<288x64xbf16, #tpu.memory_space<vmem>>, %arg3: memref<1x64xf32, #tpu.memory_space<vmem>>, %arg4: memref<1x64xf32, #tpu.memory_space<vmem>>, %arg5: memref<128x64xbf16, #tpu.memory_space<vmem>>) attributes {dimension_semantics = [#tpu.dimension_semantics<parallel>], iteration_bounds = array<i64: 1>, scalar_prefetch = 0 : i64, scratch_operands = 0 : i64, tpu.core_type = #tpu.core_type<tc>, window_params = [{transform_indices = @transform_0, window_bounds = array<i64: 128, 288>}, {pipeline_mode = #tpu.pipeline_mode<synchronous>, transform_indices = @transform_1, window_bounds = array<i64: 288, 64>}, {pipeline_mode = #tpu.pipeline_mode<synchronous>, transform_indices = @transform_2, window_bounds = array<i64: 1, 64>}, {pipeline_mode = #tpu.pipeline_mode<synchronous>, transform_indices = @transform_3, window_bounds = array<i64: 1, 64>}, {transform_indices = @transform_4, window_bounds = array<i64: 128, 64>}]} {
    %c0 = arith.constant 0 : index
    %c0_0 = arith.constant 0 : index
    %0 = vector.load %arg1[%c0, %c0_0] : memref<128x288xbf16, #tpu.memory_space<vmem>>, vector<128x288xbf16>
    %c0_1 = arith.constant 0 : index
    %c0_2 = arith.constant 0 : index
    %1 = vector.load %arg2[%c0_1, %c0_2] : memref<288x64xbf16, #tpu.memory_space<vmem>>, vector<288x64xbf16>
    %cst = arith.constant dense<0.000000e+00> : vector<128x64xf32>
    %2 = tpu.matmul %0, %1, %cst {dimension_numbers = #tpu.dot_dimension_numbers<[1], [0], [0], [1], [0, 0, 1, 1], [], []>} : vector<128x288xbf16>, vector<288x64xbf16>, vector<128x64xf32> -> vector<128x64xf32>
    %c0_3 = arith.constant 0 : index
    %c0_4 = arith.constant 0 : index
    %3 = vector.load %arg3[%c0_3, %c0_4] : memref<1x64xf32, #tpu.memory_space<vmem>>, vector<1x64xf32>
    %4 = vector.broadcast %3 : vector<1x64xf32> to vector<128x64xf32>
    %5 = arith.mulf %2, %4 : vector<128x64xf32>
    %c0_5 = arith.constant 0 : index
    %c0_6 = arith.constant 0 : index
    %6 = vector.load %arg4[%c0_5, %c0_6] : memref<1x64xf32, #tpu.memory_space<vmem>>, vector<1x64xf32>
    %7 = vector.broadcast %6 : vector<1x64xf32> to vector<128x64xf32>
    %8 = arith.addf %5, %7 : vector<128x64xf32>
    %cst_7 = arith.constant 0.000000e+00 : f32
    %9 = vector.broadcast %cst_7 : f32 to vector<128x64xf32>
    %10 = arith.maximumf %8, %9 : vector<128x64xf32>
    %11 = arith.truncf %10 : vector<128x64xf32> to vector<128x64xbf16>
    %c0_8 = arith.constant 0 : index
    %c0_9 = arith.constant 0 : index
    %12 = vector.load %arg5[%c0_8, %c0_9] : memref<128x64xbf16, #tpu.memory_space<vmem>>, vector<128x64xbf16>
    tpu.vector_store %arg5[%c0_8, %c0_9], %11 {strides = array<i32>} : memref<128x64xbf16, #tpu.memory_space<vmem>>, vector<128x64xbf16>,
    return
  }
  func.func @transform_0(%arg0: i32) -> (i32, i32) {
    %c0_i32 = arith.constant 0 : i32
    %c0_i32_0 = arith.constant 0 : i32
    return %arg0, %c0_i32 : i32, i32
  }
  func.func @transform_1(%arg0: i32) -> (i32, i32) {
    %c0_i32 = arith.constant 0 : i32
    %c0_i32_0 = arith.constant 0 : i32
    %c0_i32_1 = arith.constant 0 : i32
    return %c0_i32, %c0_i32_0 : i32, i32
  }
  func.func @transform_2(%arg0: i32) -> (i32, i32) {
    %c0_i32 = arith.constant 0 : i32
    %c0_i32_0 = arith.constant 0 : i32
    %c0_i32_1 = arith.constant 0 : i32
    return %c0_i32, %c0_i32_0 : i32, i32
  }
  func.func @transform_3(%arg0: i32) -> (i32, i32) {
    %c0_i32 = arith.constant 0 : i32
    %c0_i32_0 = arith.constant 0 : i32
    %c0_i32_1 = arith.constant 0 : i32
    return %c0_i32, %c0_i32_0 : i32, i32
  }
  func.func @transform_4(%arg0: i32) -> (i32, i32) {
    %c0_i32 = arith.constant 0 : i32
    %c0_i32_0 = arith.constant 0 : i32
    return %arg0, %c0_i32 : i32, i32
  }
}

module attributes {stable_mosaic.version = 11 : i64} {
  func.func @_fused_matmul_bn_act_kernel(%arg0: i32, %arg1: memref<32x576xbf16, #tpu.memory_space<vmem>>, %arg2: memref<576x128xbf16, #tpu.memory_space<vmem>>, %arg3: memref<1x128xf32, #tpu.memory_space<vmem>>, %arg4: memref<1x128xf32, #tpu.memory_space<vmem>>, %arg5: memref<32x128xbf16, #tpu.memory_space<vmem>>) attributes {dimension_semantics = [#tpu.dimension_semantics<parallel>], iteration_bounds = array<i64: 1>, scalar_prefetch = 0 : i64, scratch_operands = 0 : i64, tpu.core_type = #tpu.core_type<tc>, window_params = [{transform_indices = @transform_0, window_bounds = array<i64: 32, 576>}, {pipeline_mode = #tpu.pipeline_mode<synchronous>, transform_indices = @transform_1, window_bounds = array<i64: 576, 128>}, {pipeline_mode = #tpu.pipeline_mode<synchronous>, transform_indices = @transform_2, window_bounds = array<i64: 1, 128>}, {pipeline_mode = #tpu.pipeline_mode<synchronous>, transform_indices = @transform_3, window_bounds = array<i64: 1, 128>}, {transform_indices = @transform_4, window_bounds = array<i64: 32, 128>}]} {
    %c0 = arith.constant 0 : index
    %c0_0 = arith.constant 0 : index
    %0 = vector.load %arg1[%c0, %c0_0] : memref<32x576xbf16, #tpu.memory_space<vmem>>, vector<32x576xbf16>
    %c0_1 = arith.constant 0 : index
    %c0_2 = arith.constant 0 : index
    %1 = vector.load %arg2[%c0_1, %c0_2] : memref<576x128xbf16, #tpu.memory_space<vmem>>, vector<576x128xbf16>
    %cst = arith.constant dense<0.000000e+00> : vector<32x128xf32>
    %2 = tpu.matmul %0, %1, %cst {dimension_numbers = #tpu.dot_dimension_numbers<[1], [0], [0], [1], [0, 0, 1, 1], [], []>} : vector<32x576xbf16>, vector<576x128xbf16>, vector<32x128xf32> -> vector<32x128xf32>
    %c0_3 = arith.constant 0 : index
    %c0_4 = arith.constant 0 : index
    %3 = vector.load %arg3[%c0_3, %c0_4] : memref<1x128xf32, #tpu.memory_space<vmem>>, vector<1x128xf32>
    %4 = vector.broadcast %3 : vector<1x128xf32> to vector<32x128xf32>
    %5 = arith.mulf %2, %4 : vector<32x128xf32>
    %c0_5 = arith.constant 0 : index
    %c0_6 = arith.constant 0 : index
    %6 = vector.load %arg4[%c0_5, %c0_6] : memref<1x128xf32, #tpu.memory_space<vmem>>, vector<1x128xf32>
    %7 = vector.broadcast %6 : vector<1x128xf32> to vector<32x128xf32>
    %8 = arith.addf %5, %7 : vector<32x128xf32>
    %cst_7 = arith.constant 0.000000e+00 : f32
    %9 = vector.broadcast %cst_7 : f32 to vector<32x128xf32>
    %10 = arith.maximumf %8, %9 : vector<32x128xf32>
    %11 = arith.truncf %10 : vector<32x128xf32> to vector<32x128xbf16>
    %c0_8 = arith.constant 0 : index
    %c0_9 = arith.constant 0 : index
    %12 = vector.load %arg5[%c0_8, %c0_9] : memref<32x128xbf16, #tpu.memory_space<vmem>>, vector<32x128xbf16>
    tpu.vector_store %arg5[%c0_8, %c0_9], %11 {strides = array<i32>} : memref<32x128xbf16, #tpu.memory_space<vmem>>, vector<32x128xbf16>,
    return
  }
  func.func @transform_0(%arg0: i32) -> (i32, i32) {
    %c0_i32 = arith.constant 0 : i32
    %c0_i32_0 = arith.constant 0 : i32
    return %arg0, %c0_i32 : i32, i32
  }
  func.func @transform_1(%arg0: i32) -> (i32, i32) {
    %c0_i32 = arith.constant 0 : i32
    %c0_i32_0 = arith.constant 0 : i32
    %c0_i32_1 = arith.constant 0 : i32
    return %c0_i32, %c0_i32_0 : i32, i32
  }
  func.func @transform_2(%arg0: i32) -> (i32, i32) {
    %c0_i32 = arith.constant 0 : i32
    %c0_i32_0 = arith.constant 0 : i32
    %c0_i32_1 = arith.constant 0 : i32
    return %c0_i32, %c0_i32_0 : i32, i32
  }
  func.func @transform_3(%arg0: i32) -> (i32, i32) {
    %c0_i32 = arith.constant 0 : i32
    %c0_i32_0 = arith.constant 0 : i32
    %c0_i32_1 = arith.constant 0 : i32
    return %c0_i32, %c0_i32_0 : i32, i32
  }
  func.func @transform_4(%arg0: i32) -> (i32, i32) {
    %c0_i32 = arith.constant 0 : i32
    %c0_i32_0 = arith.constant 0 : i32
    return %arg0, %c0_i32 : i32, i32
  }
}

module attributes {stable_mosaic.version = 11 : i64} {
  func.func @_fused_matmul_bn_act_kernel(%arg0: i32, %arg1: memref<8x1152xbf16, #tpu.memory_space<vmem>>, %arg2: memref<1152x256xbf16, #tpu.memory_space<vmem>>, %arg3: memref<1x256xf32, #tpu.memory_space<vmem>>, %arg4: memref<1x256xf32, #tpu.memory_space<vmem>>, %arg5: memref<8x256xbf16, #tpu.memory_space<vmem>>) attributes {dimension_semantics = [#tpu.dimension_semantics<parallel>], iteration_bounds = array<i64: 1>, scalar_prefetch = 0 : i64, scratch_operands = 0 : i64, tpu.core_type = #tpu.core_type<tc>, window_params = [{transform_indices = @transform_0, window_bounds = array<i64: 8, 1152>}, {pipeline_mode = #tpu.pipeline_mode<synchronous>, transform_indices = @transform_1, window_bounds = array<i64: 1152, 256>}, {pipeline_mode = #tpu.pipeline_mode<synchronous>, transform_indices = @transform_2, window_bounds = array<i64: 1, 256>}, {pipeline_mode = #tpu.pipeline_mode<synchronous>, transform_indices = @transform_3, window_bounds = array<i64: 1, 256>}, {transform_indices = @transform_4, window_bounds = array<i64: 8, 256>}]} {
    %c0 = arith.constant 0 : index
    %c0_0 = arith.constant 0 : index
    %0 = vector.load %arg1[%c0, %c0_0] : memref<8x1152xbf16, #tpu.memory_space<vmem>>, vector<8x1152xbf16>
    %c0_1 = arith.constant 0 : index
    %c0_2 = arith.constant 0 : index
    %1 = vector.load %arg2[%c0_1, %c0_2] : memref<1152x256xbf16, #tpu.memory_space<vmem>>, vector<1152x256xbf16>
    %cst = arith.constant dense<0.000000e+00> : vector<8x256xf32>
    %2 = tpu.matmul %0, %1, %cst {dimension_numbers = #tpu.dot_dimension_numbers<[1], [0], [0], [1], [0, 0, 1, 1], [], []>} : vector<8x1152xbf16>, vector<1152x256xbf16>, vector<8x256xf32> -> vector<8x256xf32>
    %c0_3 = arith.constant 0 : index
    %c0_4 = arith.constant 0 : index
    %3 = vector.load %arg3[%c0_3, %c0_4] : memref<1x256xf32, #tpu.memory_space<vmem>>, vector<1x256xf32>
    %4 = vector.broadcast %3 : vector<1x256xf32> to vector<8x256xf32>
    %5 = arith.mulf %2, %4 : vector<8x256xf32>
    %c0_5 = arith.constant 0 : index
    %c0_6 = arith.constant 0 : index
    %6 = vector.load %arg4[%c0_5, %c0_6] : memref<1x256xf32, #tpu.memory_space<vmem>>, vector<1x256xf32>
    %7 = vector.broadcast %6 : vector<1x256xf32> to vector<8x256xf32>
    %8 = arith.addf %5, %7 : vector<8x256xf32>
    %cst_7 = arith.constant 0.000000e+00 : f32
    %9 = vector.broadcast %cst_7 : f32 to vector<8x256xf32>
    %10 = arith.maximumf %8, %9 : vector<8x256xf32>
    %11 = arith.truncf %10 : vector<8x256xf32> to vector<8x256xbf16>
    %c0_8 = arith.constant 0 : index
    %c0_9 = arith.constant 0 : index
    %12 = vector.load %arg5[%c0_8, %c0_9] : memref<8x256xbf16, #tpu.memory_space<vmem>>, vector<8x256xbf16>
    tpu.vector_store %arg5[%c0_8, %c0_9], %11 {strides = array<i32>} : memref<8x256xbf16, #tpu.memory_space<vmem>>, vector<8x256xbf16>,
    return
  }
  func.func @transform_0(%arg0: i32) -> (i32, i32) {
    %c0_i32 = arith.constant 0 : i32
    %c0_i32_0 = arith.constant 0 : i32
    return %arg0, %c0_i32 : i32, i32
  }
  func.func @transform_1(%arg0: i32) -> (i32, i32) {
    %c0_i32 = arith.constant 0 : i32
    %c0_i32_0 = arith.constant 0 : i32
    %c0_i32_1 = arith.constant 0 : i32
    return %c0_i32, %c0_i32_0 : i32, i32
  }
  func.func @transform_2(%arg0: i32) -> (i32, i32) {
    %c0_i32 = arith.constant 0 : i32
    %c0_i32_0 = arith.constant 0 : i32
    %c0_i32_1 = arith.constant 0 : i32
    return %c0_i32, %c0_i32_0 : i32, i32
  }
  func.func @transform_3(%arg0: i32) -> (i32, i32) {
    %c0_i32 = arith.constant 0 : i32
    %c0_i32_0 = arith.constant 0 : i32
    %c0_i32_1 = arith.constant 0 : i32
    return %c0_i32, %c0_i32_0 : i32, i32
  }
  func.func @transform_4(%arg0: i32) -> (i32, i32) {
    %c0_i32 = arith.constant 0 : i32
    %c0_i32_0 = arith.constant 0 : i32
    return %arg0, %c0_i32 : i32, i32
  }
}

module attributes {stable_mosaic.version = 11 : i64} {
  func.func @_tail_kernel(%arg0: i32, %arg1: memref<8x2304xbf16, #tpu.memory_space<vmem>>, %arg2: memref<2304x256xbf16, #tpu.memory_space<vmem>>, %arg3: memref<1x256xf32, #tpu.memory_space<vmem>>, %arg4: memref<1x256xf32, #tpu.memory_space<vmem>>, %arg5: memref<256x512xbf16, #tpu.memory_space<vmem>>, %arg6: memref<1x512xf32, #tpu.memory_space<vmem>>, %arg7: memref<1x512xf32, #tpu.memory_space<vmem>>, %arg8: memref<512x15xbf16, #tpu.memory_space<vmem>>, %arg9: memref<1x15xf32, #tpu.memory_space<vmem>>, %arg10: memref<1x15xf32, #tpu.memory_space<vmem>>, %arg11: memref<8x15xf32, #tpu.memory_space<vmem>>) attributes {dimension_semantics = [#tpu.dimension_semantics<arbitrary>], iteration_bounds = array<i64: 1>, scalar_prefetch = 0 : i64, scratch_operands = 0 : i64, tpu.core_type = #tpu.core_type<tc>, window_params = [{pipeline_mode = #tpu.pipeline_mode<synchronous>, transform_indices = @transform_0, window_bounds = array<i64: 8, 2304>}, {pipeline_mode = #tpu.pipeline_mode<synchronous>, transform_indices = @transform_1, window_bounds = array<i64: 2304, 256>}, {pipeline_mode = #tpu.pipeline_mode<synchronous>, transform_indices = @transform_2, window_bounds = array<i64: 1, 256>}, {pipeline_mode = #tpu.pipeline_mode<synchronous>, transform_indices = @transform_3, window_bounds = array<i64: 1, 256>}, {pipeline_mode = #tpu.pipeline_mode<synchronous>, transform_indices = @transform_4, window_bounds = array<i64: 256, 512>}, {pipeline_mode = #tpu.pipeline_mode<synchronous>, transform_indices = @transform_5, window_bounds = array<i64: 1, 512>}, {pipeline_mode = #tpu.pipeline_mode<synchronous>, transform_indices = @transform_6, window_bounds = array<i64: 1, 512>}, {pipeline_mode = #tpu.pipeline_mode<synchronous>, transform_indices = @transform_7, window_bounds = array<i64: 512, 15>}, {pipeline_mode = #tpu.pipeline_mode<synchronous>, transform_indices = @transform_8, window_bounds = array<i64: 1, 15>}, {pipeline_mode = #tpu.pipeline_mode<synchronous>, transform_indices = @transform_9, window_bounds = array<i64: 1, 15>}, {pipeline_mode = #tpu.pipeline_mode<synchronous>, transform_indices = @transform_10, window_bounds = array<i64: 8, 15>}]} {
    %c0 = arith.constant 0 : index
    %c0_0 = arith.constant 0 : index
    %0 = vector.load %arg1[%c0, %c0_0] : memref<8x2304xbf16, #tpu.memory_space<vmem>>, vector<8x2304xbf16>
    %c0_1 = arith.constant 0 : index
    %c0_2 = arith.constant 0 : index
    %1 = vector.load %arg2[%c0_1, %c0_2] : memref<2304x256xbf16, #tpu.memory_space<vmem>>, vector<2304x256xbf16>
    %cst = arith.constant dense<0.000000e+00> : vector<8x256xf32>
    %2 = tpu.matmul %0, %1, %cst {dimension_numbers = #tpu.dot_dimension_numbers<[1], [0], [0], [1], [0, 0, 1, 1], [], []>} : vector<8x2304xbf16>, vector<2304x256xbf16>, vector<8x256xf32> -> vector<8x256xf32>
    %c0_3 = arith.constant 0 : index
    %c0_4 = arith.constant 0 : index
    %3 = vector.load %arg3[%c0_3, %c0_4] : memref<1x256xf32, #tpu.memory_space<vmem>>, vector<1x256xf32>
    %4 = vector.broadcast %3 : vector<1x256xf32> to vector<8x256xf32>
    %5 = arith.mulf %2, %4 : vector<8x256xf32>
    %c0_5 = arith.constant 0 : index
    %c0_6 = arith.constant 0 : index
    %6 = vector.load %arg4[%c0_5, %c0_6] : memref<1x256xf32, #tpu.memory_space<vmem>>, vector<1x256xf32>
    %7 = vector.broadcast %6 : vector<1x256xf32> to vector<8x256xf32>
    %8 = arith.addf %5, %7 : vector<8x256xf32>
    %cst_7 = arith.constant 0.000000e+00 : f32
    %9 = vector.broadcast %cst_7 : f32 to vector<8x256xf32>
    %10 = arith.maximumf %8, %9 : vector<8x256xf32>
    %11 = arith.truncf %10 : vector<8x256xf32> to vector<8x256xbf16>
    %c0_8 = arith.constant 0 : index
    %c0_9 = arith.constant 0 : index
    %12 = vector.load %arg5[%c0_8, %c0_9] : memref<256x512xbf16, #tpu.memory_space<vmem>>, vector<256x512xbf16>
    %cst_10 = arith.constant dense<0.000000e+00> : vector<8x512xf32>
    %13 = tpu.matmul %11, %12, %cst_10 {dimension_numbers = #tpu.dot_dimension_numbers<[1], [0], [0], [1], [0, 0, 1, 1], [], []>} : vector<8x256xbf16>, vector<256x512xbf16>, vector<8x512xf32> -> vector<8x512xf32>
    %c0_11 = arith.constant 0 : index
    %c0_12 = arith.constant 0 : index
    %14 = vector.load %arg6[%c0_11, %c0_12] : memref<1x512xf32, #tpu.memory_space<vmem>>, vector<1x512xf32>
    %15 = vector.broadcast %14 : vector<1x512xf32> to vector<8x512xf32>
    %16 = arith.mulf %13, %15 : vector<8x512xf32>
    %c0_13 = arith.constant 0 : index
    %c0_14 = arith.constant 0 : index
    %17 = vector.load %arg7[%c0_13, %c0_14] : memref<1x512xf32, #tpu.memory_space<vmem>>, vector<1x512xf32>
    %18 = vector.broadcast %17 : vector<1x512xf32> to vector<8x512xf32>
    %19 = arith.addf %16, %18 : vector<8x512xf32>
    %cst_15 = arith.constant 0.000000e+00 : f32
    %20 = vector.broadcast %cst_15 : f32 to vector<8x512xf32>
    %21 = arith.maximumf %19, %20 : vector<8x512xf32>
    %22 = arith.truncf %21 : vector<8x512xf32> to vector<8x512xbf16>
    %c0_16 = arith.constant 0 : index
    %c0_17 = arith.constant 0 : index
    %23 = vector.load %arg8[%c0_16, %c0_17] : memref<512x15xbf16, #tpu.memory_space<vmem>>, vector<512x15xbf16>
    %cst_18 = arith.constant dense<0.000000e+00> : vector<8x15xf32>
    %24 = tpu.matmul %22, %23, %cst_18 {dimension_numbers = #tpu.dot_dimension_numbers<[1], [0], [0], [1], [0, 0, 1, 1], [], []>} : vector<8x512xbf16>, vector<512x15xbf16>, vector<8x15xf32> -> vector<8x15xf32>
    %c0_19 = arith.constant 0 : index
    %c0_20 = arith.constant 0 : index
    %25 = vector.load %arg9[%c0_19, %c0_20] : memref<1x15xf32, #tpu.memory_space<vmem>>, vector<1x15xf32>
    %26 = vector.broadcast %25 : vector<1x15xf32> to vector<8x15xf32>
    %27 = arith.mulf %24, %26 : vector<8x15xf32>
    %c0_21 = arith.constant 0 : index
    %c0_22 = arith.constant 0 : index
    %28 = vector.load %arg10[%c0_21, %c0_22] : memref<1x15xf32, #tpu.memory_space<vmem>>, vector<1x15xf32>
    %29 = vector.broadcast %28 : vector<1x15xf32> to vector<8x15xf32>
    %30 = arith.addf %27, %29 : vector<8x15xf32>
    %31 = arith.negf %30 : vector<8x15xf32>
    %32 = math.exp %31 : vector<8x15xf32>
    %cst_23 = arith.constant 1.000000e+00 : f32
    %33 = vector.broadcast %cst_23 : f32 to vector<8x15xf32>
    %34 = arith.addf %33, %32 : vector<8x15xf32>
    %35 = arith.divf %33, %34 : vector<8x15xf32>
    %c0_24 = arith.constant 0 : index
    %c0_25 = arith.constant 0 : index
    %36 = vector.load %arg11[%c0_24, %c0_25] : memref<8x15xf32, #tpu.memory_space<vmem>>, vector<8x15xf32>
    tpu.vector_store %arg11[%c0_24, %c0_25], %35 {strides = array<i32>} : memref<8x15xf32, #tpu.memory_space<vmem>>, vector<8x15xf32>,
    return
  }
  func.func @transform_0(%arg0: i32) -> (i32, i32) {
    %c0_i32 = arith.constant 0 : i32
    %c0_i32_0 = arith.constant 0 : i32
    %c0_i32_1 = arith.constant 0 : i32
    return %c0_i32, %c0_i32_0 : i32, i32
  }
  func.func @transform_1(%arg0: i32) -> (i32, i32) {
    %c0_i32 = arith.constant 0 : i32
    %c0_i32_0 = arith.constant 0 : i32
    %c0_i32_1 = arith.constant 0 : i32
    return %c0_i32, %c0_i32_0 : i32, i32
  }
  func.func @transform_2(%arg0: i32) -> (i32, i32) {
    %c0_i32 = arith.constant 0 : i32
    %c0_i32_0 = arith.constant 0 : i32
    %c0_i32_1 = arith.constant 0 : i32
    return %c0_i32, %c0_i32_0 : i32, i32
  }
  func.func @transform_3(%arg0: i32) -> (i32, i32) {
    %c0_i32 = arith.constant 0 : i32
    %c0_i32_0 = arith.constant 0 : i32
    %c0_i32_1 = arith.constant 0 : i32
    return %c0_i32, %c0_i32_0 : i32, i32
  }
  func.func @transform_4(%arg0: i32) -> (i32, i32) {
    %c0_i32 = arith.constant 0 : i32
    %c0_i32_0 = arith.constant 0 : i32
    %c0_i32_1 = arith.constant 0 : i32
    return %c0_i32, %c0_i32_0 : i32, i32
  }
  func.func @transform_5(%arg0: i32) -> (i32, i32) {
    %c0_i32 = arith.constant 0 : i32
    %c0_i32_0 = arith.constant 0 : i32
    %c0_i32_1 = arith.constant 0 : i32
    return %c0_i32, %c0_i32_0 : i32, i32
  }
  func.func @transform_6(%arg0: i32) -> (i32, i32) {
    %c0_i32 = arith.constant 0 : i32
    %c0_i32_0 = arith.constant 0 : i32
    %c0_i32_1 = arith.constant 0 : i32
    return %c0_i32, %c0_i32_0 : i32, i32
  }
  func.func @transform_7(%arg0: i32) -> (i32, i32) {
    %c0_i32 = arith.constant 0 : i32
    %c0_i32_0 = arith.constant 0 : i32
    %c0_i32_1 = arith.constant 0 : i32
    return %c0_i32, %c0_i32_0 : i32, i32
  }
  func.func @transform_8(%arg0: i32) -> (i32, i32) {
    %c0_i32 = arith.constant 0 : i32
    %c0_i32_0 = arith.constant 0 : i32
    %c0_i32_1 = arith.constant 0 : i32
    return %c0_i32, %c0_i32_0 : i32, i32
  }
  func.func @transform_9(%arg0: i32) -> (i32, i32) {
    %c0_i32 = arith.constant 0 : i32
    %c0_i32_0 = arith.constant 0 : i32
    %c0_i32_1 = arith.constant 0 : i32
    return %c0_i32, %c0_i32_0 : i32, i32
  }
  func.func @transform_10(%arg0: i32) -> (i32, i32) {
    %c0_i32 = arith.constant 0 : i32
    %c0_i32_0 = arith.constant 0 : i32
    %c0_i32_1 = arith.constant 0 : i32
    return %c0_i32, %c0_i32_0 : i32, i32
  }
}

</mosaic_0001>

<llo_original>
// kernel: kpnet_forward.6
$region0: #{kpnet_forward.6}
  #allocation0 [shape = 'u32[]', space=smem, size = 0x4, offset = 0x4, fixed_abs, tag = 'smem constant byte address 0x4 - core index']
  #allocation1 [shape = 'u32[144,128]{1,0:T(1,128)}', space=vmem, size = 0x12000, scoped, tag = 'internal scratch']
  %s0 = inlined_call_operand.vmem [shape: bf16[2048,27], index: 0, kind: input, shape index: {}]
  %s1 = inlined_call_operand.vmem [shape: bf16[27,16], index: 1, kind: input, shape index: {}]
  %s2 = inlined_call_operand.vmem [shape: f32[1,16], index: 2, kind: input, shape index: {}]
  %s3 = inlined_call_operand.vmem [shape: f32[1,16], index: 3, kind: input, shape index: {}]
  %s4 = inlined_call_operand.vmem [shape: bf16[2048,16], index: 4, kind: output, shape index: {}]
  %s5 = sld [smem:[#allocation0]]
  $region49: #{kpnet_forward.6} parent=0
    _
  %s7 = ssub.s32 1, %s5
  %s8 = scalar_select 0, %s7, %s5
  loop: start=0, step=1, limit=6
  $region2: #{kpnet_forward.6} parent=0 // loop_pre_header
    _
  $region3: #{kpnet_forward.6} parent=0 // loop_header
    %s10 = sphi 0, %s14
    %p11 = scmp.ge.s32.totalorder %s10, 6
    %s20 = sphi 0, %s22
    %s23 = sphi 0, %s20
    %s24 = sphi 0, %s23
    %s40 = sphi 0, %s24
    %s44 = sphi 0, %s44
    %s46 = sphi 0, %s44
    %s47 = sphi 0, %s46
    %s61 = sphi 0, %s47
    %s65 = sphi 0, %s65
    %s67 = sphi 0, %s65
    %s68 = sphi 0, %s67
    %s82 = sphi 0, %s68
    %s86 = sphi 0, %s86
    %s88 = sphi 0, %s86
    %s89 = sphi 0, %s88
    %s103 = sphi 0, %s89
    %s109 = sphi 0, %s111
    %s112 = sphi 0, %s109
    %s113 = sphi 0, %s112
    %s129 = sphi 0, %s113
  $region4: #{kpnet_forward.6} parent=0 // loop_header_branch
    %13 = sbr.rel (%p11) target = $region8
  $region5: #{kpnet_forward.6} parent=0 // loop_body
    %s15 = ssub.s32 %s10, 1
    %s16 = ssub.s32 %s10, 2
    %s17 = sadd.s32 %s10, 1
    %s18 = ssub.s32 %s10, %s17
    %p19 = scmp.eq.s32.totalorder %s18, 0
    %s21 = sadd.s32 %s20, 1
    %s22 = scalar_select %p19, %s20, %s21
    %p25 = pneg %p19
    %p26 = scmp.eq.s32.totalorder %s10, 3
    %p27 = por %p25, %p26
    %p28 = scmp.ne.s32.totalorder %s20, %s23
    %p29 = scmp.eq.s32.totalorder %s10, 0
    %p30 = por %p28, %p29
    %p31 = scmp.ne.s32.totalorder %s20, %s23
    %p32 = scmp.eq.s32.totalorder %s15, 3
    %p33 = por %p31, %p32
    %p34 = scmp.ne.s32.totalorder %s23, %s24
    %p35 = scmp.eq.s32.totalorder %s15, 0
    %p36 = por %p34, %p35
    %p37 = scmp.ne.s32.totalorder %s23, %s24
    %p38 = scmp.eq.s32.totalorder %s16, 3
    %p39 = por %p37, %p38
    %p41 = scmp.ne.s32.totalorder %s24, %s40
    %p42 = scmp.eq.s32.totalorder %s16, 0
    %p43 = por %p41, %p42
    %s45 = sadd.s32 %s44, 1
    %p48 = scmp.eq.s32.totalorder %s10, 3
    %p49 = scmp.ne.s32.totalorder %s44, %s46
    %p50 = scmp.eq.s32.totalorder %s10, 0
    %p51 = por %p49, %p50
    %p52 = scmp.ne.s32.totalorder %s44, %s46
    %p53 = scmp.eq.s32.totalorder %s15, 3
    %p54 = por %p52, %p53
    %p55 = scmp.ne.s32.totalorder %s46, %s47
    %p56 = scmp.eq.s32.totalorder %s15, 0
    %p57 = por %p55, %p56
    %p58 = scmp.ne.s32.totalorder %s46, %s47
    %p59 = scmp.eq.s32.totalorder %s16, 3
    %p60 = por %p58, %p59
    %p62 = scmp.ne.s32.totalorder %s47, %s61
    %p63 = scmp.eq.s32.totalorder %s16, 0
    %p64 = por %p62, %p63
    %s66 = sadd.s32 %s65, 1
    %p69 = scmp.eq.s32.totalorder %s10, 3
    %p70 = scmp.ne.s32.totalorder %s65, %s67
    %p71 = scmp.eq.s32.totalorder %s10, 0
    %p72 = por %p70, %p71
    %p73 = scmp.ne.s32.totalorder %s65, %s67
    %p74 = scmp.eq.s32.totalorder %s15, 3
    %p75 = por %p73, %p74
    %p76 = scmp.ne.s32.totalorder %s67, %s68
    %p77 = scmp.eq.s32.totalorder %s15, 0
    %p78 = por %p76, %p77
    %p79 = scmp.ne.s32.totalorder %s67, %s68
    %p80 = scmp.eq.s32.totalorder %s16, 3
    %p81 = por %p79, %p80
    %p83 = scmp.ne.s32.totalorder %s68, %s82
    %p84 = scmp.eq.s32.totalorder %s16, 0
    %p85 = por %p83, %p84
    %s87 = sadd.s32 %s86, 1
    %p90 = scmp.eq.s32.totalorder %s10, 3
    %p91 = scmp.ne.s32.totalorder %s86, %s88
    %p92 = scmp.eq.s32.totalorder %s10, 0
    %p93 = por %p91, %p92
    %p94 = scmp.ne.s32.totalorder %s86, %s88
    %p95 = scmp.eq.s32.totalorder %s15, 3
    %p96 = por %p94, %p95
    %p97 = scmp.ne.s32.totalorder %s88, %s89
    %p98 = scmp.eq.s32.totalorder %s15, 0
    %p99 = por %p97, %p98
    %p100 = scmp.ne.s32.totalorder %s88, %s89
    %p101 = scmp.eq.s32.totalorder %s16, 3
    %p102 = por %p100, %p101
    %p104 = scmp.ne.s32.totalorder %s89, %s103
    %p105 = scmp.eq.s32.totalorder %s16, 0
    %p106 = por %p104, %p105
    %s107 = ssub.s32 %s10, %s17
    %p108 = scmp.eq.s32.totalorder %s107, 0
    %s110 = sadd.s32 %s109, 1
    %s111 = scalar_select %p108, %s109, %s110
    %p114 = pneg %p108
    %p115 = scmp.eq.s32.totalorder %s10, 3
    %p116 = por %p114, %p115
    %p117 = scmp.ne.s32.totalorder %s109, %s112
    %p118 = scmp.eq.s32.totalorder %s10, 0
    %p119 = por %p117, %p118
    %p120 = scmp.ne.s32.totalorder %s109, %s112
    %p121 = scmp.eq.s32.totalorder %s15, 3
    %p122 = por %p120, %p121
    %p123 = scmp.ne.s32.totalorder %s112, %s113
    %p124 = scmp.eq.s32.totalorder %s15, 0
    %p125 = por %p123, %p124
    %p126 = scmp.ne.s32.totalorder %s112, %s113
    %p127 = scmp.eq.s32.totalorder %s16, 3
    %p128 = por %p126, %p127
    %p130 = scmp.ne.s32.totalorder %s113, %s129
    %p131 = scmp.eq.s32.totalorder %s16, 0
    %p132 = por %p130, %p131
    %p133 = scmp.le.s32.totalorder 1, %s10
    %p134 = scmp.lt.s32.totalorder %s10, 5
    %p135 = pnand %p133, %p134
    %p136 = pneg %p135
    // Predicated region
    $region9: #{kpnet_forward.6} parent=5 // pred_check
      _
    $region10: #{kpnet_forward.6} parent=5 // pred_check_branch
      %138 = sbr.rel (%p135) target = $region12
    $region11: #{kpnet_forward.6} parent=5 // pred_region
      %s139 = ssub.s32 %s10, 1
      // Predicated region
      $region13: #{kpnet_forward.6} parent=11 // pred_check
        %p140 = pneg %p57
      $region14: #{kpnet_forward.6} parent=11 // pred_check_branch
        %142 = sbr.rel (%p140) target = $region16
      $region15: #{kpnet_forward.6} parent=11 // pred_region
        _
      $region16: #{kpnet_forward.6} parent=11 // pred_fallthru
        _
      // Predicated region
      $region17: #{kpnet_forward.6} parent=11 // pred_check
        %p143 = pneg %p78
      $region18: #{kpnet_forward.6} parent=11 // pred_check_branch
        %145 = sbr.rel (%p143) target = $region20
      $region19: #{kpnet_forward.6} parent=11 // pred_region
        _
      $region20: #{kpnet_forward.6} parent=11 // pred_fallthru
        _
      // Predicated region
      $region21: #{kpnet_forward.6} parent=11 // pred_check
        %p146 = pneg %p99
      $region22: #{kpnet_forward.6} parent=11 // pred_check_branch
        %148 = sbr.rel (%p146) target = $region24
      $region23: #{kpnet_forward.6} parent=11 // pred_region
        _
      $region24: #{kpnet_forward.6} parent=11 // pred_fallthru
        _
    $region12: #{kpnet_forward.6} parent=5 // pred_fallthru
      _
    %p149 = scmp.lt.s32.totalorder %s10, 4
    // Predicated region
    $region25: #{kpnet_forward.6} parent=5 // pred_check
      %p150 = pneg %p149
    $region26: #{kpnet_forward.6} parent=5 // pred_check_branch
      %152 = sbr.rel (%p150) target = $region28
    $region27: #{kpnet_forward.6} parent=5 // pred_region
      // Predicated region
      $region29: #{kpnet_forward.6} parent=27 // pred_check
        %p153 = pneg %p30
      $region30: #{kpnet_forward.6} parent=27 // pred_check_branch
        %155 = sbr.rel (%p153) target = $region32
      $region31: #{kpnet_forward.6} parent=27 // pred_region
        %s156 = smul.u32 64, %s10
        %p157 = scmp.lt.s32.totalorder %s156, 255
        %s158 = scalar_select %p157, %s156, 255
        %s159 = smul.addr %s158, 4
        %s160 = scalar_lea.vmem %s0, %s159
        %s161 = smul.u32 64, %s10
      $region32: #{kpnet_forward.6} parent=27 // pred_fallthru
        _
    $region28: #{kpnet_forward.6} parent=5 // pred_fallthru
      _
    %p162 = scmp.le.s32.totalorder 1, %s10
    %p163 = scmp.lt.s32.totalorder %s10, 5
    %p164 = pnand %p162, %p163
    %p165 = pneg %p164
    // Predicated region
    $region33: #{kpnet_forward.6} parent=5 // pred_check
      _
    $region34: #{kpnet_forward.6} parent=5 // pred_check_branch
      %167 = sbr.rel (%p164) target = $region36
    $region35: #{kpnet_forward.6} parent=5 // pred_region
      %s168 = ssub.s32 %s10, 1
      %s169 = smul.u32 64, %s15
      %p170 = scmp.lt.s32.totalorder %s169, 255
      %s171 = scalar_select %p170, %s169, 255
      %s172 = smul.addr %s171, 4
      %s173 = scalar_lea.vmem %s0, %s172
      %p174 = pneg %p36
      %p175 = pneg %p33
      %p176 = pneg %p57
      %p177 = pneg %p54
      %p178 = pneg %p78
      %p179 = pneg %p75
      %p180 = pneg %p99
      %p181 = pneg %p96
      %p182 = pneg %p125
      %p183 = pneg %p122
      %s184 = smul.u32 64, %s15
      %p185 = scmp.lt.s32.totalorder %s184, 255
      %s186 = scalar_select %p185, %s184, 255
      %s187 = smul.addr %s186, 4
      %s188 = scalar_lea.vmem %s4, %s187
      %s189 = smul.u32 64, %s15
      %p190 = scmp.lt.s32.totalorder %s189, 255
      %s191 = scalar_select %p190, %s189, 255
      %s192 = smul.addr %s191, 4
      %s193 = scalar_lea.vmem %s0, %s192
      %s194 = smul.u32 64, %s15
      %s195 = smul.u32 64, %s15
      %p196 = scmp.lt.s32.totalorder %s195, 255
      %s197 = scalar_select %p196, %s195, 255
      %s198 = smul.addr %s197, 4
      %s199 = scalar_lea.vmem %s4, %s198
      %s200 = smul.u32 64, %s15
      %v202 = vld [vmem:[%s193] sm:$0xf]
      %v203 = vld [vmem:[%s193 + $0x4] sm:$0xf]
      %v204 = vld [vmem:[%s193 + $0x8] sm:$0xf]
      %v205 = vld [vmem:[%s193 + $0xc] sm:$0xf]
      %v206 = vld [vmem:[%s193 + $0x10] sm:$0xf]
      %v207 = vld [vmem:[%s193 + $0x14] sm:$0xf]
      %v208 = vld [vmem:[%s193 + $0x18] sm:$0xf]
      %v209 = vld [vmem:[%s193 + $0x1c] sm:$0xf]
      %v210 = vld [vmem:[%s193 + $0x20] sm:$0xf]
      %v211 = vld [vmem:[%s193 + $0x24] sm:$0xf]
      %v212 = vld [vmem:[%s193 + $0x28] sm:$0xf]
      %v213 = vld [vmem:[%s193 + $0x2c] sm:$0xf]
      %v214 = vld [vmem:[%s193 + $0x30] sm:$0xf]
      %v215 = vld [vmem:[%s193 + $0x34] sm:$0xf]
      %v216 = vld [vmem:[%s193 + $0x38] sm:$0xf]
      %v217 = vld [vmem:[%s193 + $0x3c] sm:$0xf]
      %v218 = vld [vmem:[%s193 + $0x40] sm:$0xf]
      %v219 = vld [vmem:[%s193 + $0x44] sm:$0xf]
      %v220 = vld [vmem:[%s193 + $0x48] sm:$0xf]
      %v221 = vld [vmem:[%s193 + $0x4c] sm:$0xf]
      %v222 = vld [vmem:[%s193 + $0x50] sm:$0xf]
      %v223 = vld [vmem:[%s193 + $0x54] sm:$0xf]
      %v224 = vld [vmem:[%s193 + $0x58] sm:$0xf]
      %v225 = vld [vmem:[%s193 + $0x5c] sm:$0xf]
      %v226 = vld [vmem:[%s193 + $0x60] sm:$0xf]
      %v227 = vld [vmem:[%s193 + $0x64] sm:$0xf]
      %v228 = vld [vmem:[%s193 + $0x68] sm:$0xf]
      %v229 = vld [vmem:[%s193 + $0x6c] sm:$0xf]
      %v230 = vld [vmem:[%s193 + $0x70] sm:$0xf]
      %v231 = vld [vmem:[%s193 + $0x74] sm:$0xf]
      %v232 = vld [vmem:[%s193 + $0x78] sm:$0xf]
      %v233 = vld [vmem:[%s193 + $0x7c] sm:$0xf]
      %v234 = vld [vmem:[%s193 + $0x80] sm:$0xf]
      %v235 = vld [vmem:[%s193 + $0x84] sm:$0xf]
      %v236 = vld [vmem:[%s193 + $0x88] sm:$0xf]
      %v237 = vld [vmem:[%s193 + $0x8c] sm:$0xf]
      %v238 = vld [vmem:[%s193 + $0x90] sm:$0xf]
      %v239 = vld [vmem:[%s193 + $0x94] sm:$0xf]
      %v240 = vld [vmem:[%s193 + $0x98] sm:$0xf]
      %v241 = vld [vmem:[%s193 + $0x9c] sm:$0xf]
      %v242 = vld [vmem:[%s193 + $0xa0] sm:$0xf]
      %v243 = vld [vmem:[%s193 + $0xa4] sm:$0xf]
      %v244 = vld [vmem:[%s193 + $0xa8] sm:$0xf]
      %v245 = vld [vmem:[%s193 + $0xac] sm:$0xf]
      %v246 = vld [vmem:[%s193 + $0xb0] sm:$0xf]
      %v247 = vld [vmem:[%s193 + $0xb4] sm:$0xf]
      %v248 = vld [vmem:[%s193 + $0xb8] sm:$0xf]
      %v249 = vld [vmem:[%s193 + $0xbc] sm:$0xf]
      %v250 = vld [vmem:[%s193 + $0xc0] sm:$0xf]
      %v251 = vld [vmem:[%s193 + $0xc4] sm:$0xf]
      %v252 = vld [vmem:[%s193 + $0xc8] sm:$0xf]
      %v253 = vld [vmem:[%s193 + $0xcc] sm:$0xf]
      %v254 = vld [vmem:[%s193 + $0xd0] sm:$0xf]
      %v255 = vld [vmem:[%s193 + $0xd4] sm:$0xf]
      %v256 = vld [vmem:[%s193 + $0xd8] sm:$0xf]
      %v257 = vld [vmem:[%s193 + $0xdc] sm:$0xf]
      %v258 = vld [vmem:[%s193 + $0xe0] sm:$0xf]
      %v259 = vld [vmem:[%s193 + $0xe4] sm:$0xf]
      %v260 = vld [vmem:[%s193 + $0xe8] sm:$0xf]
      %v261 = vld [vmem:[%s193 + $0xec] sm:$0xf]
      %v262 = vld [vmem:[%s193 + $0xf0] sm:$0xf]
      %v263 = vld [vmem:[%s193 + $0xf4] sm:$0xf]
      %v264 = vld [vmem:[%s193 + $0xf8] sm:$0xf]
      %v265 = vld [vmem:[%s193 + $0xfc] sm:$0xf]
      %v266 = vld [vmem:[%s1] sm:$0xf]
      %v267 = vld [vmem:[%s1 + $0x4] sm:$0xf]
      %v268 = vld [vmem:[%s1 + $0x8] sm:$0xf]
      %v269 = vld [vmem:[%s1 + $0xc] sm:$0x3]
      %v334 = vunpack.c.l.b16 %v202
      %v335 = vunpack.c.l.b16 %v203
      %v336 = vunpack.c.l.b16 %v204
      %v337 = vunpack.c.l.b16 %v205
      %v338 = vunpack.c.l.b16 %v206
      %v339 = vunpack.c.l.b16 %v207
      %v340 = vunpack.c.l.b16 %v208
      %v341 = vunpack.c.l.b16 %v209
      %v342 = vunpack.c.l.b16 %v210
      %v343 = vunpack.c.l.b16 %v211
      %v344 = vunpack.c.l.b16 %v212
      %v345 = vunpack.c.l.b16 %v213
      %v346 = vunpack.c.l.b16 %v214
      %v347 = vunpack.c.l.b16 %v215
      %v348 = vunpack.c.l.b16 %v216
      %v349 = vunpack.c.l.b16 %v217
      %v350 = vunpack.c.l.b16 %v218
      %v351 = vunpack.c.l.b16 %v219
      %v352 = vunpack.c.l.b16 %v220
      %v353 = vunpack.c.l.b16 %v221
      %v354 = vunpack.c.l.b16 %v222
      %v355 = vunpack.c.l.b16 %v223
      %v356 = vunpack.c.l.b16 %v224
      %v357 = vunpack.c.l.b16 %v225
      %v358 = vunpack.c.l.b16 %v226
      %v359 = vunpack.c.l.b16 %v227
      %v360 = vunpack.c.l.b16 %v228
      %v361 = vunpack.c.l.b16 %v229
      %v362 = vunpack.c.l.b16 %v230
      %v363 = vunpack.c.l.b16 %v231
      %v364 = vunpack.c.l.b16 %v232
      %v365 = vunpack.c.l.b16 %v233
      %v366 = vunpack.c.l.b16 %v234
      %v367 = vunpack.c.l.b16 %v235
      %v368 = vunpack.c.l.b16 %v236
      %v369 = vunpack.c.l.b16 %v237
      %v370 = vunpack.c.l.b16 %v238
      %v371 = vunpack.c.l.b16 %v239
      %v372 = vunpack.c.l.b16 %v240
      %v373 = vunpack.c.l.b16 %v241
      %v374 = vunpack.c.l.b16 %v242
      %v375 = vunpack.c.l.b16 %v243
      %v376 = vunpack.c.l.b16 %v244
      %v377 = vunpack.c.l.b16 %v245
      %v378 = vunpack.c.l.b16 %v246
      %v379 = vunpack.c.l.b16 %v247
      %v380 = vunpack.c.l.b16 %v248
      %v381 = vunpack.c.l.b16 %v249
      %v382 = vunpack.c.l.b16 %v250
      %v383 = vunpack.c.l.b16 %v251
      %v384 = vunpack.c.l.b16 %v252
      %v385 = vunpack.c.l.b16 %v253
      %v386 = vunpack.c.l.b16 %v254
      %v387 = vunpack.c.l.b16 %v255
      %v388 = vunpack.c.l.b16 %v256
      %v389 = vunpack.c.l.b16 %v257
      %v390 = vunpack.c.l.b16 %v258
      %v391 = vunpack.c.l.b16 %v259
      %v392 = vunpack.c.l.b16 %v260
      %v393 = vunpack.c.l.b16 %v261
      %v394 = vunpack.c.l.b16 %v262
      %v395 = vunpack.c.l.b16 %v263
      %v396 = vunpack.c.l.b16 %v264
      %v397 = vunpack.c.l.b16 %v265
      %v398 = vpack.c.b16 %v335, %v334
      %v399 = vpack.c.b16 %v337, %v336
      %v400 = vpack.c.b16 %v339, %v338
      %v401 = vpack.c.b16 %v341, %v340
      %v402 = vpack.c.b16 %v343, %v342
      %v403 = vpack.c.b16 %v345, %v344
      %v404 = vpack.c.b16 %v347, %v346
      %v405 = vpack.c.b16 %v349, %v348
      %v406 = vpack.c.b16 %v351, %v350
      %v407 = vpack.c.b16 %v353, %v352
      %v408 = vpack.c.b16 %v355, %v354
      %v409 = vpack.c.b16 %v357, %v356
      %v410 = vpack.c.b16 %v359, %v358
      %v411 = vpack.c.b16 %v361, %v360
      %v412 = vpack.c.b16 %v363, %v362
      %v413 = vpack.c.b16 %v365, %v364
      %v414 = vpack.c.b16 %v367, %v366
      %v415 = vpack.c.b16 %v369, %v368
      %v416 = vpack.c.b16 %v371, %v370
      %v417 = vpack.c.b16 %v373, %v372
      %v418 = vpack.c.b16 %v375, %v374
      %v419 = vpack.c.b16 %v377, %v376
      %v420 = vpack.c.b16 %v379, %v378
      %v421 = vpack.c.b16 %v381, %v380
      %v422 = vpack.c.b16 %v383, %v382
      %v423 = vpack.c.b16 %v385, %v384
      %v424 = vpack.c.b16 %v387, %v386
      %v425 = vpack.c.b16 %v389, %v388
      %v426 = vpack.c.b16 %v391, %v390
      %v427 = vpack.c.b16 %v393, %v392
      %v428 = vpack.c.b16 %v395, %v394
      %v429 = vpack.c.b16 %v397, %v396
      %v434 = vunpack.c.l.b16 %v266
      %v435 = vunpack.c.l.b16 %v267
      %v436 = vunpack.c.l.b16 %v268
      %v437 = vunpack.c.l.b16 %v269
      %v438 = vpack.c.b16 %v435, %v434
      %v439 = vpack.c.b16 %v437, %v436
      %vm441 = vcmask 220160
      %v443 = vsel %vm441, %v398, 0
      %v446 = vsel %vm441, %v399, 0
      %v449 = vsel %vm441, %v400, 0
      %v452 = vsel %vm441, %v401, 0
      %v455 = vsel %vm441, %v402, 0
      %v458 = vsel %vm441, %v403, 0
      %v461 = vsel %vm441, %v404, 0
      %v464 = vsel %vm441, %v405, 0
      %v467 = vsel %vm441, %v406, 0
      %v470 = vsel %vm441, %v407, 0
      %v473 = vsel %vm441, %v408, 0
      %v476 = vsel %vm441, %v409, 0
      %v479 = vsel %vm441, %v410, 0
      %v482 = vsel %vm441, %v411, 0
      %v485 = vsel %vm441, %v412, 0
      %v488 = vsel %vm441, %v413, 0
      %v491 = vsel %vm441, %v414, 0
      %v494 = vsel %vm441, %v415, 0
      %v497 = vsel %vm441, %v416, 0
      %v500 = vsel %vm441, %v417, 0
      %v503 = vsel %vm441, %v418, 0
      %v506 = vsel %vm441, %v419, 0
      %v509 = vsel %vm441, %v420, 0
      %v512 = vsel %vm441, %v421, 0
      %v515 = vsel %vm441, %v422, 0
      %v518 = vsel %vm441, %v423, 0
      %v521 = vsel %vm441, %v424, 0
      %v524 = vsel %vm441, %v425, 0
      %v527 = vsel %vm441, %v426, 0
      %v530 = vsel %vm441, %v427, 0
      %v533 = vsel %vm441, %v428, 0
      %v536 = vsel %vm441, %v429, 0
      %vm538 = vcmask 1044480
      %vm539 = vcmask 1045504
      %v540 = vsel %vm538, 4294967295, 65535
      %v541 = vsel %vm539, %v540, 0
      %v543 = vand.u32 %v439, %v541
      %545 = vmatprep.subr.bf16.mxu0 0
      %546 = vmatpush1.bf16.msra.mxu0 %v438
      %547 = vmatprep.subr.bf16.mxu0 0
      %548 = vmatpush1.bf16.msra.mxu0 %v543
      %549 = vmatprep.subr.bf16.mxu0 0
      %550 = vmatpush1.bf16.msra.mxu0 0
      %551 = vmatprep.subr.bf16.mxu0 0
      %552 = vmatpush1.bf16.msra.mxu0 0
      %553 = vmatprep.subr.bf16.mxu0 0
      %554 = vmatpush1.bf16.msra.mxu0 0
      %555 = vmatprep.subr.bf16.mxu0 0
      %556 = vmatpush1.bf16.msra.mxu0 0
      %557 = vmatprep.subr.bf16.mxu0 0
      %558 = vmatpush1.bf16.msra.mxu0 0
      %559 = vmatprep.subr.bf16.mxu0 0
      %560 = vmatpush1.bf16.msra.mxu0 0
      %561 = vmatprep.subr.bf16.mxu0 0
      %562 = vmatpush1.bf16.msra.mxu0 0
      %563 = vmatprep.subr.bf16.mxu0 0
      %564 = vmatpush1.bf16.msra.mxu0 0
      %565 = vmatprep.subr.bf16.mxu0 0
      %566 = vmatpush1.bf16.msra.mxu0 0
      %567 = vmatprep.subr.bf16.mxu0 0
      %568 = vmatpush1.bf16.msra.mxu0 0
      %569 = vmatprep.subr.bf16.mxu0 0
      %570 = vmatpush1.bf16.msra.mxu0 0
      %571 = vmatprep.subr.bf16.mxu0 0
      %572 = vmatpush1.bf16.msra.mxu0 0
      %573 = vmatprep.subr.bf16.mxu0 0
      %574 = vmatpush1.bf16.msra.mxu0 0
      %575 = vmatprep.subr.bf16.mxu0 0
      %576 = vmatpush1.bf16.msra.mxu0 0
      %577 = vmatprep.mubr.bf16.mxu0 0
      %578 = vmatmul.mubr.bf16.gmra.mrb[0].mxu0 %v443
      %v579 = vpop.f32.mrb[0].mxu0
      %v580 = vadd.f32 0.0, %v579
      %v581 = vpop.f32.mrb[0].mxu0
      %v582 = vpop.f32.mrb[0].mxu0
      %v583 = vadd.f32 0.0, %v582
      %v584 = vpop.f32.mrb[0].mxu0
      %585 = vmatprep.mubr.bf16.mxu0 0
      %586 = vmatmul.mubr.bf16.gmra.mrb[0].mxu0 %v446
      %v587 = vpop.f32.mrb[0].mxu0
      %v588 = vadd.f32 0.0, %v587
      %v589 = vpop.f32.mrb[0].mxu0
      %v590 = vpop.f32.mrb[0].mxu0
      %v591 = vadd.f32 0.0, %v590
      %v592 = vpop.f32.mrb[0].mxu0
      %593 = vmatprep.mubr.bf16.mxu0 0
      %594 = vmatmul.mubr.bf16.gmra.mrb[0].mxu0 %v449
      %v595 = vpop.f32.mrb[0].mxu0
      %v596 = vadd.f32 0.0, %v595
      %v597 = vpop.f32.mrb[0].mxu0
      %v598 = vpop.f32.mrb[0].mxu0
      %v599 = vadd.f32 0.0, %v598
      %v600 = vpop.f32.mrb[0].mxu0
      %601 = vmatprep.mubr.bf16.mxu0 0
      %602 = vmatmul.mubr.bf16.gmra.mrb[0].mxu0 %v452
      %v603 = vpop.f32.mrb[0].mxu0
      %v604 = vadd.f32 0.0, %v603
      %v605 = vpop.f32.mrb[0].mxu0
      %v606 = vpop.f32.mrb[0].mxu0
      %v607 = vadd.f32 0.0, %v606
      %v608 = vpop.f32.mrb[0].mxu0
      %609 = vmatprep.mubr.bf16.mxu0 0
      %610 = vmatmul.mubr.bf16.gmra.mrb[0].mxu0 %v455
      %v611 = vpop.f32.mrb[0].mxu0
      %v612 = vadd.f32 0.0, %v611
      %v613 = vpop.f32.mrb[0].mxu0
      %v614 = vpop.f32.mrb[0].mxu0
      %v615 = vadd.f32 0.0, %v614
      %v616 = vpop.f32.mrb[0].mxu0
      %617 = vmatprep.mubr.bf16.mxu0 0
      %618 = vmatmul.mubr.bf16.gmra.mrb[0].mxu0 %v458
      %v619 = vpop.f32.mrb[0].mxu0
      %v620 = vadd.f32 0.0, %v619
      %v621 = vpop.f32.mrb[0].mxu0
      %v622 = vpop.f32.mrb[0].mxu0
      %v623 = vadd.f32 0.0, %v622
      %v624 = vpop.f32.mrb[0].mxu0
      %625 = vmatprep.mubr.bf16.mxu0 0
      %626 = vmatmul.mubr.bf16.gmra.mrb[0].mxu0 %v461
      %v627 = vpop.f32.mrb[0].mxu0
      %v628 = vadd.f32 0.0, %v627
      %v629 = vpop.f32.mrb[0].mxu0
      %v630 = vpop.f32.mrb[0].mxu0
      %v631 = vadd.f32 0.0, %v630
      %v632 = vpop.f32.mrb[0].mxu0
      %633 = vmatprep.mubr.bf16.mxu0 0
      %634 = vmatmul.mubr.bf16.gmra.mrb[0].mxu0 %v464
      %v635 = vpop.f32.mrb[0].mxu0
      %v636 = vadd.f32 0.0, %v635
      %v637 = vpop.f32.mrb[0].mxu0
      %v638 = vpop.f32.mrb[0].mxu0
      %v639 = vadd.f32 0.0, %v638
      %v640 = vpop.f32.mrb[0].mxu0
      %641 = vmatprep.mubr.bf16.mxu0 0
      %642 = vmatmul.mubr.bf16.gmra.mrb[0].mxu0 %v467
      %v643 = vpop.f32.mrb[0].mxu0
      %v644 = vadd.f32 0.0, %v643
      %v645 = vpop.f32.mrb[0].mxu0
      %v646 = vpop.f32.mrb[0].mxu0
      %v647 = vadd.f32 0.0, %v646
      %v648 = vpop.f32.mrb[0].mxu0
      %649 = vmatprep.mubr.bf16.mxu0 0
      %650 = vmatmul.mubr.bf16.gmra.mrb[0].mxu0 %v470
      %v651 = vpop.f32.mrb[0].mxu0
      %v652 = vadd.f32 0.0, %v651
      %v653 = vpop.f32.mrb[0].mxu0
      %v654 = vpop.f32.mrb[0].mxu0
      %v655 = vadd.f32 0.0, %v654
      %v656 = vpop.f32.mrb[0].mxu0
      %657 = vmatprep.mubr.bf16.mxu0 0
      %658 = vmatmul.mubr.bf16.gmra.mrb[0].mxu0 %v473
      %v659 = vpop.f32.mrb[0].mxu0
      %v660 = vadd.f32 0.0, %v659
      %v661 = vpop.f32.mrb[0].mxu0
      %v662 = vpop.f32.mrb[0].mxu0
      %v663 = vadd.f32 0.0, %v662
      %v664 = vpop.f32.mrb[0].mxu0
      %665 = vmatprep.mubr.bf16.mxu0 0
      %666 = vmatmul.mubr.bf16.gmra.mrb[0].mxu0 %v476
      %v667 = vpop.f32.mrb[0].mxu0
      %v668 = vadd.f32 0.0, %v667
      %v669 = vpop.f32.mrb[0].mxu0
      %v670 = vpop.f32.mrb[0].mxu0
      %v671 = vadd.f32 0.0, %v670
      %v672 = vpop.f32.mrb[0].mxu0
      %673 = vmatprep.mubr.bf16.mxu0 0
      %674 = vmatmul.mubr.bf16.gmra.mrb[0].mxu0 %v479
      %v675 = vpop.f32.mrb[0].mxu0
      %v676 = vadd.f32 0.0, %v675
      %v677 = vpop.f32.mrb[0].mxu0
      %v678 = vpop.f32.mrb[0].mxu0
      %v679 = vadd.f32 0.0, %v678
      %v680 = vpop.f32.mrb[0].mxu0
      %681 = vmatprep.mubr.bf16.mxu0 0
      %682 = vmatmul.mubr.bf16.gmra.mrb[0].mxu0 %v482
      %v683 = vpop.f32.mrb[0].mxu0
      %v684 = vadd.f32 0.0, %v683
      %v685 = vpop.f32.mrb[0].mxu0
      %v686 = vpop.f32.mrb[0].mxu0
      %v687 = vadd.f32 0.0, %v686
      %v688 = vpop.f32.mrb[0].mxu0
      %689 = vmatprep.mubr.bf16.mxu0 0
      %690 = vmatmul.mubr.bf16.gmra.mrb[0].mxu0 %v485
      %v691 = vpop.f32.mrb[0].mxu0
      %v692 = vadd.f32 0.0, %v691
      %v693 = vpop.f32.mrb[0].mxu0
      %v694 = vpop.f32.mrb[0].mxu0
      %v695 = vadd.f32 0.0, %v694
      %v696 = vpop.f32.mrb[0].mxu0
      %697 = vmatprep.mubr.bf16.mxu0 0
      %698 = vmatmul.mubr.bf16.gmra.mrb[0].mxu0 %v488
      %v699 = vpop.f32.mrb[0].mxu0
      %v700 = vadd.f32 0.0, %v699
      %v701 = vpop.f32.mrb[0].mxu0
      %v702 = vpop.f32.mrb[0].mxu0
      %v703 = vadd.f32 0.0, %v702
      %v704 = vpop.f32.mrb[0].mxu0
      %705 = vmatprep.mubr.bf16.mxu0 0
      %706 = vmatmul.mubr.bf16.gmra.mrb[0].mxu0 %v491
      %v707 = vpop.f32.mrb[0].mxu0
      %v708 = vadd.f32 0.0, %v707
      %v709 = vpop.f32.mrb[0].mxu0
      %v710 = vpop.f32.mrb[0].mxu0
      %v711 = vadd.f32 0.0, %v710
      %v712 = vpop.f32.mrb[0].mxu0
      %713 = vmatprep.mubr.bf16.mxu0 0
      %714 = vmatmul.mubr.bf16.gmra.mrb[0].mxu0 %v494
      %v715 = vpop.f32.mrb[0].mxu0
      %v716 = vadd.f32 0.0, %v715
      %v717 = vpop.f32.mrb[0].mxu0
      %v718 = vpop.f32.mrb[0].mxu0
      %v719 = vadd.f32 0.0, %v718
      %v720 = vpop.f32.mrb[0].mxu0
      %721 = vmatprep.mubr.bf16.mxu0 0
      %722 = vmatmul.mubr.bf16.gmra.mrb[0].mxu0 %v497
      %v723 = vpop.f32.mrb[0].mxu0
      %v724 = vadd.f32 0.0, %v723
      %v725 = vpop.f32.mrb[0].mxu0
      %v726 = vpop.f32.mrb[0].mxu0
      %v727 = vadd.f32 0.0, %v726
      %v728 = vpop.f32.mrb[0].mxu0
      %729 = vmatprep.mubr.bf16.mxu0 0
      %730 = vmatmul.mubr.bf16.gmra.mrb[0].mxu0 %v500
      %v731 = vpop.f32.mrb[0].mxu0
      %v732 = vadd.f32 0.0, %v731
      %v733 = vpop.f32.mrb[0].mxu0
      %v734 = vpop.f32.mrb[0].mxu0
      %v735 = vadd.f32 0.0, %v734
      %v736 = vpop.f32.mrb[0].mxu0
      %737 = vmatprep.mubr.bf16.mxu0 0
      %738 = vmatmul.mubr.bf16.gmra.mrb[0].mxu0 %v503
      %v739 = vpop.f32.mrb[0].mxu0
      %v740 = vadd.f32 0.0, %v739
      %v741 = vpop.f32.mrb[0].mxu0
      %v742 = vpop.f32.mrb[0].mxu0
      %v743 = vadd.f32 0.0, %v742
      %v744 = vpop.f32.mrb[0].mxu0
      %745 = vmatprep.mubr.bf16.mxu0 0
      %746 = vmatmul.mubr.bf16.gmra.mrb[0].mxu0 %v506
      %v747 = vpop.f32.mrb[0].mxu0
      %v748 = vadd.f32 0.0, %v747
      %v749 = vpop.f32.mrb[0].mxu0
      %v750 = vpop.f32.mrb[0].mxu0
      %v751 = vadd.f32 0.0, %v750
      %v752 = vpop.f32.mrb[0].mxu0
      %753 = vmatprep.mubr.bf16.mxu0 0
      %754 = vmatmul.mubr.bf16.gmra.mrb[0].mxu0 %v509
      %v755 = vpop.f32.mrb[0].mxu0
      %v756 = vadd.f32 0.0, %v755
      %v757 = vpop.f32.mrb[0].mxu0
      %v758 = vpop.f32.mrb[0].mxu0
      %v759 = vadd.f32 0.0, %v758
      %v760 = vpop.f32.mrb[0].mxu0
      %761 = vmatprep.mubr.bf16.mxu0 0
      %762 = vmatmul.mubr.bf16.gmra.mrb[0].mxu0 %v512
      %v763 = vpop.f32.mrb[0].mxu0
      %v764 = vadd.f32 0.0, %v763
      %v765 = vpop.f32.mrb[0].mxu0
      %v766 = vpop.f32.mrb[0].mxu0
      %v767 = vadd.f32 0.0, %v766
      %v768 = vpop.f32.mrb[0].mxu0
      %769 = vmatprep.mubr.bf16.mxu0 0
      %770 = vmatmul.mubr.bf16.gmra.mrb[0].mxu0 %v515
      %v771 = vpop.f32.mrb[0].mxu0
      %v772 = vadd.f32 0.0, %v771
      %v773 = vpop.f32.mrb[0].mxu0
      %v774 = vpop.f32.mrb[0].mxu0
      %v775 = vadd.f32 0.0, %v774
      %v776 = vpop.f32.mrb[0].mxu0
      %777 = vmatprep.mubr.bf16.mxu0 0
      %778 = vmatmul.mubr.bf16.gmra.mrb[0].mxu0 %v518
      %v779 = vpop.f32.mrb[0].mxu0
      %v780 = vadd.f32 0.0, %v779
      %v781 = vpop.f32.mrb[0].mxu0
      %v782 = vpop.f32.mrb[0].mxu0
      %v783 = vadd.f32 0.0, %v782
      %v784 = vpop.f32.mrb[0].mxu0
      %785 = vmatprep.mubr.bf16.mxu0 0
      %786 = vmatmul.mubr.bf16.gmra.mrb[0].mxu0 %v521
      %v787 = vpop.f32.mrb[0].mxu0
      %v788 = vadd.f32 0.0, %v787
      %v789 = vpop.f32.mrb[0].mxu0
      %v790 = vpop.f32.mrb[0].mxu0
      %v791 = vadd.f32 0.0, %v790
      %v792 = vpop.f32.mrb[0].mxu0
      %793 = vmatprep.mubr.bf16.mxu0 0
      %794 = vmatmul.mubr.bf16.gmra.mrb[0].mxu0 %v524
      %v795 = vpop.f32.mrb[0].mxu0
      %v796 = vadd.f32 0.0, %v795
      %v797 = vpop.f32.mrb[0].mxu0
      %v798 = vpop.f32.mrb[0].mxu0
      %v799 = vadd.f32 0.0, %v798
      %v800 = vpop.f32.mrb[0].mxu0
      %801 = vmatprep.mubr.bf16.mxu0 0
      %802 = vmatmul.mubr.bf16.gmra.mrb[0].mxu0 %v527
      %v803 = vpop.f32.mrb[0].mxu0
      %v804 = vadd.f32 0.0, %v803
      %v805 = vpop.f32.mrb[0].mxu0
      %v806 = vpop.f32.mrb[0].mxu0
      %v807 = vadd.f32 0.0, %v806
      %v808 = vpop.f32.mrb[0].mxu0
      %809 = vmatprep.mubr.bf16.mxu0 0
      %810 = vmatmul.mubr.bf16.gmra.mrb[0].mxu0 %v530
      %v811 = vpop.f32.mrb[0].mxu0
      %v812 = vadd.f32 0.0, %v811
      %v813 = vpop.f32.mrb[0].mxu0
      %v814 = vpop.f32.mrb[0].mxu0
      %v815 = vadd.f32 0.0, %v814
      %v816 = vpop.f32.mrb[0].mxu0
      %817 = vmatprep.mubr.bf16.mxu0 0
      %818 = vmatmul.mubr.bf16.gmra.mrb[0].mxu0 %v533
      %v819 = vpop.f32.mrb[0].mxu0
      %v820 = vadd.f32 0.0, %v819
      %v821 = vpop.f32.mrb[0].mxu0
      %v822 = vpop.f32.mrb[0].mxu0
      %v823 = vadd.f32 0.0, %v822
      %v824 = vpop.f32.mrb[0].mxu0
      %825 = vmatprep.mubr.bf16.mxu0 0
      %826 = vmatmul.mubr.bf16.gmra.mrb[0].mxu0 %v536
      %v827 = vpop.f32.mrb[0].mxu0
      %v828 = vadd.f32 0.0, %v827
      %v829 = vpop.f32.mrb[0].mxu0
      %v830 = vpop.f32.mrb[0].mxu0
      %v831 = vadd.f32 0.0, %v830
      %v832 = vpop.f32.mrb[0].mxu0
      %833 = vdwg.mxu0
      %v834 = vld [vmem:[%s2] sm:$0x1]
      %v836 = vlaneseq
      %v837 = vshrl.u32 %v836, 7
      %v838 = vsub.s32 0, %v837
      %v839 = vrot.slane %v834, %v838
      %v841 = vmul.f32 %v580, %v839
      %v842 = vmul.f32 %v583, %v839
      %v843 = vmul.f32 %v588, %v839
      %v844 = vmul.f32 %v591, %v839
      %v845 = vmul.f32 %v596, %v839
      %v846 = vmul.f32 %v599, %v839
      %v847 = vmul.f32 %v604, %v839
      %v848 = vmul.f32 %v607, %v839
      %v849 = vmul.f32 %v612, %v839
      %v850 = vmul.f32 %v615, %v839
      %v851 = vmul.f32 %v620, %v839
      %v852 = vmul.f32 %v623, %v839
      %v853 = vmul.f32 %v628, %v839
      %v854 = vmul.f32 %v631, %v839
      %v855 = vmul.f32 %v636, %v839
      %v856 = vmul.f32 %v639, %v839
      %v857 = vmul.f32 %v644, %v839
      %v858 = vmul.f32 %v647, %v839
      %v859 = vmul.f32 %v652, %v839
      %v860 = vmul.f32 %v655, %v839
      %v861 = vmul.f32 %v660, %v839
      %v862 = vmul.f32 %v663, %v839
      %v863 = vmul.f32 %v668, %v839
      %v864 = vmul.f32 %v671, %v839
      %v865 = vmul.f32 %v676, %v839
      %v866 = vmul.f32 %v679, %v839
      %v867 = vmul.f32 %v684, %v839
      %v868 = vmul.f32 %v687, %v839
      %v869 = vmul.f32 %v692, %v839
      %v870 = vmul.f32 %v695, %v839
      %v871 = vmul.f32 %v700, %v839
      %v872 = vmul.f32 %v703, %v839
      %v873 = vmul.f32 %v708, %v839
      %v874 = vmul.f32 %v711, %v839
      %v875 = vmul.f32 %v716, %v839
      %v876 = vmul.f32 %v719, %v839
      %v877 = vmul.f32 %v724, %v839
      %v878 = vmul.f32 %v727, %v839
      %v879 = vmul.f32 %v732, %v839
      %v880 = vmul.f32 %v735, %v839
      %v881 = vmul.f32 %v740, %v839
      %v882 = vmul.f32 %v743, %v839
      %v883 = vmul.f32 %v748, %v839
      %v884 = vmul.f32 %v751, %v839
      %v885 = vmul.f32 %v756, %v839
      %v886 = vmul.f32 %v759, %v839
      %v887 = vmul.f32 %v764, %v839
      %v888 = vmul.f32 %v767, %v839
      %v889 = vmul.f32 %v772, %v839
      %v890 = vmul.f32 %v775, %v839
      %v891 = vmul.f32 %v780, %v839
      %v892 = vmul.f32 %v783, %v839
      %v893 = vmul.f32 %v788, %v839
      %v894 = vmul.f32 %v791, %v839
      %v895 = vmul.f32 %v796, %v839
      %v896 = vmul.f32 %v799, %v839
      %v897 = vmul.f32 %v804, %v839
      %v898 = vmul.f32 %v807, %v839
      %v899 = vmul.f32 %v812, %v839
      %v900 = vmul.f32 %v815, %v839
      %v901 = vmul.f32 %v820, %v839
      %v902 = vmul.f32 %v823, %v839
      %v903 = vmul.f32 %v828, %v839
      %v904 = vmul.f32 %v831, %v839
      %v905 = vld [vmem:[%s3] sm:$0x1]
      %v907 = vlaneseq
      %v908 = vshrl.u32 %v907, 7
      %v909 = vsub.s32 0, %v908
      %v910 = vrot.slane %v905, %v909
      %v912 = vadd.f32 %v841, %v910
      %v913 = vadd.f32 %v842, %v910
      %v914 = vadd.f32 %v843, %v910
      %v915 = vadd.f32 %v844, %v910
      %v916 = vadd.f32 %v845, %v910
      %v917 = vadd.f32 %v846, %v910
      %v918 = vadd.f32 %v847, %v910
      %v919 = vadd.f32 %v848, %v910
      %v920 = vadd.f32 %v849, %v910
      %v921 = vadd.f32 %v850, %v910
      %v922 = vadd.f32 %v851, %v910
      %v923 = vadd.f32 %v852, %v910
      %v924 = vadd.f32 %v853, %v910
      %v925 = vadd.f32 %v854, %v910
      %v926 = vadd.f32 %v855, %v910
      %v927 = vadd.f32 %v856, %v910
      %v928 = vadd.f32 %v857, %v910
      %v929 = vadd.f32 %v858, %v910
      %v930 = vadd.f32 %v859, %v910
      %v931 = vadd.f32 %v860, %v910
      %v932 = vadd.f32 %v861, %v910
      %v933 = vadd.f32 %v862, %v910
      %v934 = vadd.f32 %v863, %v910
      %v935 = vadd.f32 %v864, %v910
      %v936 = vadd.f32 %v865, %v910
      %v937 = vadd.f32 %v866, %v910
      %v938 = vadd.f32 %v867, %v910
      %v939 = vadd.f32 %v868, %v910
      %v940 = vadd.f32 %v869, %v910
      %v941 = vadd.f32 %v870, %v910
      %v942 = vadd.f32 %v871, %v910
      %v943 = vadd.f32 %v872, %v910
      %v944 = vadd.f32 %v873, %v910
      %v945 = vadd.f32 %v874, %v910
      %v946 = vadd.f32 %v875, %v910
      %v947 = vadd.f32 %v876, %v910
      %v948 = vadd.f32 %v877, %v910
      %v949 = vadd.f32 %v878, %v910
      %v950 = vadd.f32 %v879, %v910
      %v951 = vadd.f32 %v880, %v910
      %v952 = vadd.f32 %v881, %v910
      %v953 = vadd.f32 %v882, %v910
      %v954 = vadd.f32 %v883, %v910
      %v955 = vadd.f32 %v884, %v910
      %v956 = vadd.f32 %v885, %v910
      %v957 = vadd.f32 %v886, %v910
      %v958 = vadd.f32 %v887, %v910
      %v959 = vadd.f32 %v888, %v910
      %v960 = vadd.f32 %v889, %v910
      %v961 = vadd.f32 %v890, %v910
      %v962 = vadd.f32 %v891, %v910
      %v963 = vadd.f32 %v892, %v910
      %v964 = vadd.f32 %v893, %v910
      %v965 = vadd.f32 %v894, %v910
      %v966 = vadd.f32 %v895, %v910
      %v967 = vadd.f32 %v896, %v910
      %v968 = vadd.f32 %v897, %v910
      %v969 = vadd.f32 %v898, %v910
      %v970 = vadd.f32 %v899, %v910
      %v971 = vadd.f32 %v900, %v910
      %v972 = vadd.f32 %v901, %v910
      %v973 = vadd.f32 %v902, %v910
      %v974 = vadd.f32 %v903, %v910
      %v975 = vadd.f32 %v904, %v910
      %v976 = vmax.f32 %v912, 0.0
      %v977 = vmax.f32 %v913, 0.0
      %v978 = vmax.f32 %v914, 0.0
      %v979 = vmax.f32 %v915, 0.0
      %v980 = vmax.f32 %v916, 0.0
      %v981 = vmax.f32 %v917, 0.0
      %v982 = vmax.f32 %v918, 0.0
      %v983 = vmax.f32 %v919, 0.0
      %v984 = vmax.f32 %v920, 0.0
      %v985 = vmax.f32 %v921, 0.0
      %v986 = vmax.f32 %v922, 0.0
      %v987 = vmax.f32 %v923, 0.0
      %v988 = vmax.f32 %v924, 0.0
      %v989 = vmax.f32 %v925, 0.0
      %v990 = vmax.f32 %v926, 0.0
      %v991 = vmax.f32 %v927, 0.0
      %v992 = vmax.f32 %v928, 0.0
      %v993 = vmax.f32 %v929, 0.0
      %v994 = vmax.f32 %v930, 0.0
      %v995 = vmax.f32 %v931, 0.0
      %v996 = vmax.f32 %v932, 0.0
      %v997 = vmax.f32 %v933, 0.0
      %v998 = vmax.f32 %v934, 0.0
      %v999 = vmax.f32 %v935, 0.0
      %v1000 = vmax.f32 %v936, 0.0
      %v1001 = vmax.f32 %v937, 0.0
      %v1002 = vmax.f32 %v938, 0.0
      %v1003 = vmax.f32 %v939, 0.0
      %v1004 = vmax.f32 %v940, 0.0
      %v1005 = vmax.f32 %v941, 0.0
      %v1006 = vmax.f32 %v942, 0.0
      %v1007 = vmax.f32 %v943, 0.0
      %v1008 = vmax.f32 %v944, 0.0
      %v1009 = vmax.f32 %v945, 0.0
      %v1010 = vmax.f32 %v946, 0.0
      %v1011 = vmax.f32 %v947, 0.0
      %v1012 = vmax.f32 %v948, 0.0
      %v1013 = vmax.f32 %v949, 0.0
      %v1014 = vmax.f32 %v950, 0.0
      %v1015 = vmax.f32 %v951, 0.0
      %v1016 = vmax.f32 %v952, 0.0
      %v1017 = vmax.f32 %v953, 0.0
      %v1018 = vmax.f32 %v954, 0.0
      %v1019 = vmax.f32 %v955, 0.0
      %v1020 = vmax.f32 %v956, 0.0
      %v1021 = vmax.f32 %v957, 0.0
      %v1022 = vmax.f32 %v958, 0.0
      %v1023 = vmax.f32 %v959, 0.0
      %v1024 = vmax.f32 %v960, 0.0
      %v1025 = vmax.f32 %v961, 0.0
      %v1026 = vmax.f32 %v962, 0.0
      %v1027 = vmax.f32 %v963, 0.0
      %v1028 = vmax.f32 %v964, 0.0
      %v1029 = vmax.f32 %v965, 0.0
      %v1030 = vmax.f32 %v966, 0.0
      %v1031 = vmax.f32 %v967, 0.0
      %v1032 = vmax.f32 %v968, 0.0
      %v1033 = vmax.f32 %v969, 0.0
      %v1034 = vmax.f32 %v970, 0.0
      %v1035 = vmax.f32 %v971, 0.0
      %v1036 = vmax.f32 %v972, 0.0
      %v1037 = vmax.f32 %v973, 0.0
      %v1038 = vmax.f32 %v974, 0.0
      %v1039 = vmax.f32 %v975, 0.0
      %v1040 = vpack.c.bf16 %v977, %v976
      %v1041 = vpack.c.bf16 %v979, %v978
      %v1042 = vpack.c.bf16 %v981, %v980
      %v1043 = vpack.c.bf16 %v983, %v982
      %v1044 = vpack.c.bf16 %v985, %v984
      %v1045 = vpack.c.bf16 %v987, %v986
      %v1046 = vpack.c.bf16 %v989, %v988
      %v1047 = vpack.c.bf16 %v991, %v990
      %v1048 = vpack.c.bf16 %v993, %v992
      %v1049 = vpack.c.bf16 %v995, %v994
      %v1050 = vpack.c.bf16 %v997, %v996
      %v1051 = vpack.c.bf16 %v999, %v998
      %v1052 = vpack.c.bf16 %v1001, %v1000
      %v1053 = vpack.c.bf16 %v1003, %v1002
      %v1054 = vpack.c.bf16 %v1005, %v1004
      %v1055 = vpack.c.bf16 %v1007, %v1006
      %v1056 = vpack.c.bf16 %v1009, %v1008
      %v1057 = vpack.c.bf16 %v1011, %v1010
      %v1058 = vpack.c.bf16 %v1013, %v1012
      %v1059 = vpack.c.bf16 %v1015, %v1014
      %v1060 = vpack.c.bf16 %v1017, %v1016
      %v1061 = vpack.c.bf16 %v1019, %v1018
      %v1062 = vpack.c.bf16 %v1021, %v1020
      %v1063 = vpack.c.bf16 %v1023, %v1022
      %v1064 = vpack.c.bf16 %v1025, %v1024
      %v1065 = vpack.c.bf16 %v1027, %v1026
      %v1066 = vpack.c.bf16 %v1029, %v1028
      %v1067 = vpack.c.bf16 %v1031, %v1030
      %v1068 = vpack.c.bf16 %v1033, %v1032
      %v1069 = vpack.c.bf16 %v1035, %v1034
      %v1070 = vpack.c.bf16 %v1037, %v1036
      %v1071 = vpack.c.bf16 %v1039, %v1038
      %v1104 = vunpack.c.l.b16 %v1040
      %v1105 = vunpack.c.h.b16 %v1040
      %v1106 = vunpack.c.l.b16 %v1041
      %v1107 = vunpack.c.h.b16 %v1041
      %v1108 = vunpack.c.l.b16 %v1042
      %v1109 = vunpack.c.h.b16 %v1042
      %v1110 = vunpack.c.l.b16 %v1043
      %v1111 = vunpack.c.h.b16 %v1043
      %v1112 = vunpack.c.l.b16 %v1044
      %v1113 = vunpack.c.h.b16 %v1044
      %v1114 = vunpack.c.l.b16 %v1045
      %v1115 = vunpack.c.h.b16 %v1045
      %v1116 = vunpack.c.l.b16 %v1046
      %v1117 = vunpack.c.h.b16 %v1046
      %v1118 = vunpack.c.l.b16 %v1047
      %v1119 = vunpack.c.h.b16 %v1047
      %v1120 = vunpack.c.l.b16 %v1048
      %v1121 = vunpack.c.h.b16 %v1048
      %v1122 = vunpack.c.l.b16 %v1049
      %v1123 = vunpack.c.h.b16 %v1049
      %v1124 = vunpack.c.l.b16 %v1050
      %v1125 = vunpack.c.h.b16 %v1050
      %v1126 = vunpack.c.l.b16 %v1051
      %v1127 = vunpack.c.h.b16 %v1051
      %v1128 = vunpack.c.l.b16 %v1052
      %v1129 = vunpack.c.h.b16 %v1052
      %v1130 = vunpack.c.l.b16 %v1053
      %v1131 = vunpack.c.h.b16 %v1053
      %v1132 = vunpack.c.l.b16 %v1054
      %v1133 = vunpack.c.h.b16 %v1054
      %v1134 = vunpack.c.l.b16 %v1055
      %v1135 = vunpack.c.h.b16 %v1055
      %v1136 = vunpack.c.l.b16 %v1056
      %v1137 = vunpack.c.h.b16 %v1056
      %v1138 = vunpack.c.l.b16 %v1057
      %v1139 = vunpack.c.h.b16 %v1057
      %v1140 = vunpack.c.l.b16 %v1058
      %v1141 = vunpack.c.h.b16 %v1058
      %v1142 = vunpack.c.l.b16 %v1059
      %v1143 = vunpack.c.h.b16 %v1059
      %v1144 = vunpack.c.l.b16 %v1060
      %v1145 = vunpack.c.h.b16 %v1060
      %v1146 = vunpack.c.l.b16 %v1061
      %v1147 = vunpack.c.h.b16 %v1061
      %v1148 = vunpack.c.l.b16 %v1062
      %v1149 = vunpack.c.h.b16 %v1062
      %v1150 = vunpack.c.l.b16 %v1063
      %v1151 = vunpack.c.h.b16 %v1063
      %v1152 = vunpack.c.l.b16 %v1064
      %v1153 = vunpack.c.h.b16 %v1064
      %v1154 = vunpack.c.l.b16 %v1065
      %v1155 = vunpack.c.h.b16 %v1065
      %v1156 = vunpack.c.l.b16 %v1066
      %v1157 = vunpack.c.h.b16 %v1066
      %v1158 = vunpack.c.l.b16 %v1067
      %v1159 = vunpack.c.h.b16 %v1067
      %v1160 = vunpack.c.l.b16 %v1068
      %v1161 = vunpack.c.h.b16 %v1068
      %v1162 = vunpack.c.l.b16 %v1069
      %v1163 = vunpack.c.h.b16 %v1069
      %v1164 = vunpack.c.l.b16 %v1070
      %v1165 = vunpack.c.h.b16 %v1070
      %v1166 = vunpack.c.l.b16 %v1071
      %v1167 = vunpack.c.h.b16 %v1071
      %v1168 = vpack.c.b16 %v1104, %v1104
      %v1169 = vpack.c.b16 %v1105, %v1105
      %v1170 = vpack.c.b16 %v1106, %v1106
      %v1171 = vpack.c.b16 %v1107, %v1107
      %v1172 = vpack.c.b16 %v1108, %v1108
      %v1173 = vpack.c.b16 %v1109, %v1109
      %v1174 = vpack.c.b16 %v1110, %v1110
      %v1175 = vpack.c.b16 %v1111, %v1111
      %v1176 = vpack.c.b16 %v1112, %v1112
      %v1177 = vpack.c.b16 %v1113, %v1113
      %v1178 = vpack.c.b16 %v1114, %v1114
      %v1179 = vpack.c.b16 %v1115, %v1115
      %v1180 = vpack.c.b16 %v1116, %v1116
      %v1181 = vpack.c.b16 %v1117, %v1117
      %v1182 = vpack.c.b16 %v1118, %v1118
      %v1183 = vpack.c.b16 %v1119, %v1119
      %v1184 = vpack.c.b16 %v1120, %v1120
      %v1185 = vpack.c.b16 %v1121, %v1121
      %v1186 = vpack.c.b16 %v1122, %v1122
      %v1187 = vpack.c.b16 %v1123, %v1123
      %v1188 = vpack.c.b16 %v1124, %v1124
      %v1189 = vpack.c.b16 %v1125, %v1125
      %v1190 = vpack.c.b16 %v1126, %v1126
      %v1191 = vpack.c.b16 %v1127, %v1127
      %v1192 = vpack.c.b16 %v1128, %v1128
      %v1193 = vpack.c.b16 %v1129, %v1129
      %v1194 = vpack.c.b16 %v1130, %v1130
      %v1195 = vpack.c.b16 %v1131, %v1131
      %v1196 = vpack.c.b16 %v1132, %v1132
      %v1197 = vpack.c.b16 %v1133, %v1133
      %v1198 = vpack.c.b16 %v1134, %v1134
      %v1199 = vpack.c.b16 %v1135, %v1135
      %v1200 = vpack.c.b16 %v1136, %v1136
      %v1201 = vpack.c.b16 %v1137, %v1137
      %v1202 = vpack.c.b16 %v1138, %v1138
      %v1203 = vpack.c.b16 %v1139, %v1139
      %v1204 = vpack.c.b16 %v1140, %v1140
      %v1205 = vpack.c.b16 %v1141, %v1141
      %v1206 = vpack.c.b16 %v1142, %v1142
      %v1207 = vpack.c.b16 %v1143, %v1143
      %v1208 = vpack.c.b16 %v1144, %v1144
      %v1209 = vpack.c.b16 %v1145, %v1145
      %v1210 = vpack.c.b16 %v1146, %v1146
      %v1211 = vpack.c.b16 %v1147, %v1147
      %v1212 = vpack.c.b16 %v1148, %v1148
      %v1213 = vpack.c.b16 %v1149, %v1149
      %v1214 = vpack.c.b16 %v1150, %v1150
      %v1215 = vpack.c.b16 %v1151, %v1151
      %v1216 = vpack.c.b16 %v1152, %v1152
      %v1217 = vpack.c.b16 %v1153, %v1153
      %v1218 = vpack.c.b16 %v1154, %v1154
      %v1219 = vpack.c.b16 %v1155, %v1155
      %v1220 = vpack.c.b16 %v1156, %v1156
      %v1221 = vpack.c.b16 %v1157, %v1157
      %v1222 = vpack.c.b16 %v1158, %v1158
      %v1223 = vpack.c.b16 %v1159, %v1159
      %v1224 = vpack.c.b16 %v1160, %v1160
      %v1225 = vpack.c.b16 %v1161, %v1161
      %v1226 = vpack.c.b16 %v1162, %v1162
      %v1227 = vpack.c.b16 %v1163, %v1163
      %v1228 = vpack.c.b16 %v1164, %v1164
      %v1229 = vpack.c.b16 %v1165, %v1165
      %v1230 = vpack.c.b16 %v1166, %v1166
      %v1231 = vpack.c.b16 %v1167, %v1167
      %vm1296 = vcmask 125952
      %1297 = vst.msk [vmem:[%s199] sm:$0xf] %vm1296, %v1168
      %1298 = vst.msk [vmem:[%s199 + $0x4] sm:$0xf] %vm1296, %v1169
      %1299 = vst.msk [vmem:[%s199 + $0x8] sm:$0xf] %vm1296, %v1170
      %1300 = vst.msk [vmem:[%s199 + $0xc] sm:$0xf] %vm1296, %v1171
      %1301 = vst.msk [vmem:[%s199 + $0x10] sm:$0xf] %vm1296, %v1172
      %1302 = vst.msk [vmem:[%s199 + $0x14] sm:$0xf] %vm1296, %v1173
      %1303 = vst.msk [vmem:[%s199 + $0x18] sm:$0xf] %vm1296, %v1174
      %1304 = vst.msk [vmem:[%s199 + $0x1c] sm:$0xf] %vm1296, %v1175
      %1305 = vst.msk [vmem:[%s199 + $0x20] sm:$0xf] %vm1296, %v1176
      %1306 = vst.msk [vmem:[%s199 + $0x24] sm:$0xf] %vm1296, %v1177
      %1307 = vst.msk [vmem:[%s199 + $0x28] sm:$0xf] %vm1296, %v1178
      %1308 = vst.msk [vmem:[%s199 + $0x2c] sm:$0xf] %vm1296, %v1179
      %1309 = vst.msk [vmem:[%s199 + $0x30] sm:$0xf] %vm1296, %v1180
      %1310 = vst.msk [vmem:[%s199 + $0x34] sm:$0xf] %vm1296, %v1181
      %1311 = vst.msk [vmem:[%s199 + $0x38] sm:$0xf] %vm1296, %v1182
      %1312 = vst.msk [vmem:[%s199 + $0x3c] sm:$0xf] %vm1296, %v1183
      %1313 = vst.msk [vmem:[%s199 + $0x40] sm:$0xf] %vm1296, %v1184
      %1314 = vst.msk [vmem:[%s199 + $0x44] sm:$0xf] %vm1296, %v1185
      %1315 = vst.msk [vmem:[%s199 + $0x48] sm:$0xf] %vm1296, %v1186
      %1316 = vst.msk [vmem:[%s199 + $0x4c] sm:$0xf] %vm1296, %v1187
      %1317 = vst.msk [vmem:[%s199 + $0x50] sm:$0xf] %vm1296, %v1188
      %1318 = vst.msk [vmem:[%s199 + $0x54] sm:$0xf] %vm1296, %v1189
      %1319 = vst.msk [vmem:[%s199 + $0x58] sm:$0xf] %vm1296, %v1190
      %1320 = vst.msk [vmem:[%s199 + $0x5c] sm:$0xf] %vm1296, %v1191
      %1321 = vst.msk [vmem:[%s199 + $0x60] sm:$0xf] %vm1296, %v1192
      %1322 = vst.msk [vmem:[%s199 + $0x64] sm:$0xf] %vm1296, %v1193
      %1323 = vst.msk [vmem:[%s199 + $0x68] sm:$0xf] %vm1296, %v1194
      %1324 = vst.msk [vmem:[%s199 + $0x6c] sm:$0xf] %vm1296, %v1195
      %1325 = vst.msk [vmem:[%s199 + $0x70] sm:$0xf] %vm1296, %v1196
      %1326 = vst.msk [vmem:[%s199 + $0x74] sm:$0xf] %vm1296, %v1197
      %1327 = vst.msk [vmem:[%s199 + $0x78] sm:$0xf] %vm1296, %v1198
      %1328 = vst.msk [vmem:[%s199 + $0x7c] sm:$0xf] %vm1296, %v1199
      %1329 = vst.msk [vmem:[%s199 + $0x80] sm:$0xf] %vm1296, %v1200
      %1330 = vst.msk [vmem:[%s199 + $0x84] sm:$0xf] %vm1296, %v1201
      %1331 = vst.msk [vmem:[%s199 + $0x88] sm:$0xf] %vm1296, %v1202
      %1332 = vst.msk [vmem:[%s199 + $0x8c] sm:$0xf] %vm1296, %v1203
      %1333 = vst.msk [vmem:[%s199 + $0x90] sm:$0xf] %vm1296, %v1204
      %1334 = vst.msk [vmem:[%s199 + $0x94] sm:$0xf] %vm1296, %v1205
      %1335 = vst.msk [vmem:[%s199 + $0x98] sm:$0xf] %vm1296, %v1206
      %1336 = vst.msk [vmem:[%s199 + $0x9c] sm:$0xf] %vm1296, %v1207
      %1337 = vst.msk [vmem:[%s199 + $0xa0] sm:$0xf] %vm1296, %v1208
      %1338 = vst.msk [vmem:[%s199 + $0xa4] sm:$0xf] %vm1296, %v1209
      %1339 = vst.msk [vmem:[%s199 + $0xa8] sm:$0xf] %vm1296, %v1210
      %1340 = vst.msk [vmem:[%s199 + $0xac] sm:$0xf] %vm1296, %v1211
      %1341 = vst.msk [vmem:[%s199 + $0xb0] sm:$0xf] %vm1296, %v1212
      %1342 = vst.msk [vmem:[%s199 + $0xb4] sm:$0xf] %vm1296, %v1213
      %1343 = vst.msk [vmem:[%s199 + $0xb8] sm:$0xf] %vm1296, %v1214
      %1344 = vst.msk [vmem:[%s199 + $0xbc] sm:$0xf] %vm1296, %v1215
      %1345 = vst.msk [vmem:[%s199 + $0xc0] sm:$0xf] %vm1296, %v1216
      %1346 = vst.msk [vmem:[%s199 + $0xc4] sm:$0xf] %vm1296, %v1217
      %1347 = vst.msk [vmem:[%s199 + $0xc8] sm:$0xf] %vm1296, %v1218
      %1348 = vst.msk [vmem:[%s199 + $0xcc] sm:$0xf] %vm1296, %v1219
      %1349 = vst.msk [vmem:[%s199 + $0xd0] sm:$0xf] %vm1296, %v1220
      %1350 = vst.msk [vmem:[%s199 + $0xd4] sm:$0xf] %vm1296, %v1221
      %1351 = vst.msk [vmem:[%s199 + $0xd8] sm:$0xf] %vm1296, %v1222
      %1352 = vst.msk [vmem:[%s199 + $0xdc] sm:$0xf] %vm1296, %v1223
      %1353 = vst.msk [vmem:[%s199 + $0xe0] sm:$0xf] %vm1296, %v1224
      %1354 = vst.msk [vmem:[%s199 + $0xe4] sm:$0xf] %vm1296, %v1225
      %1355 = vst.msk [vmem:[%s199 + $0xe8] sm:$0xf] %vm1296, %v1226
      %1356 = vst.msk [vmem:[%s199 + $0xec] sm:$0xf] %vm1296, %v1227
      %1357 = vst.msk [vmem:[%s199 + $0xf0] sm:$0xf] %vm1296, %v1228
      %1358 = vst.msk [vmem:[%s199 + $0xf4] sm:$0xf] %vm1296, %v1229
      %1359 = vst.msk [vmem:[%s199 + $0xf8] sm:$0xf] %vm1296, %v1230
      %1360 = vst.msk [vmem:[%s199 + $0xfc] sm:$0xf] %vm1296, %v1231
      %s1361 = smul.u32 64, %s15
      %p1362 = scmp.lt.s32.totalorder %s1361, 255
      %s1363 = scalar_select %p1362, %s1361, 255
      %s1364 = smul.addr %s1363, 4
      %s1365 = scalar_lea.vmem %s4, %s1364
      // Predicated region
      $region37: #{kpnet_forward.6} parent=35 // pred_check
        %p1366 = pneg %p122
      $region38: #{kpnet_forward.6} parent=35 // pred_check_branch
        %1368 = sbr.rel (%p1366) target = $region40
      $region39: #{kpnet_forward.6} parent=35 // pred_region
        %s1369 = smul.u32 64, %s15
      $region40: #{kpnet_forward.6} parent=35 // pred_fallthru
        _
    $region36: #{kpnet_forward.6} parent=5 // pred_fallthru
      _
    %p1370 = scmp.le.s32.totalorder 2, %s10
    // Predicated region
    $region41: #{kpnet_forward.6} parent=5 // pred_check
      %p1371 = pneg %p1370
    $region42: #{kpnet_forward.6} parent=5 // pred_check_branch
      %1373 = sbr.rel (%p1371) target = $region44
    $region43: #{kpnet_forward.6} parent=5 // pred_region
      %s1374 = ssub.s32 %s10, 2
      // Predicated region
      $region45: #{kpnet_forward.6} parent=43 // pred_check
        %p1375 = pneg %p128
      $region46: #{kpnet_forward.6} parent=43 // pred_check_branch
        %1377 = sbr.rel (%p1375) target = $region48
      $region47: #{kpnet_forward.6} parent=43 // pred_region
        %s1378 = smul.u32 64, %s16
        %p1379 = scmp.lt.s32.totalorder %s1378, 255
        %s1380 = scalar_select %p1379, %s1378, 255
        %s1381 = smul.addr %s1380, 4
        %s1382 = scalar_lea.vmem %s4, %s1381
      $region48: #{kpnet_forward.6} parent=43 // pred_fallthru
        _
    $region44: #{kpnet_forward.6} parent=5 // pred_fallthru
      _
  $region6: #{kpnet_forward.6} parent=0 // loop_footer
    %s14 = sadd.s32 1, %s10
  $region7: #{kpnet_forward.6} parent=0 // loop_footer_branch
    %9 = sbr.rel target = $region3
  $region8: #{kpnet_forward.6} parent=0 // loop_exit
    _

// kernel: kpnet_forward.7
$region0: #{kpnet_forward.7}
  #allocation0 [shape = 'u32[]', space=smem, size = 0x4, offset = 0x4, fixed_abs, tag = 'smem constant byte address 0x4 - core index']
  #allocation1 [shape = 'u32[144,128]{1,0:T(1,128)}', space=vmem, size = 0x12000, scoped, tag = 'internal scratch']
  %s0 = inlined_call_operand.vmem [shape: bf16[512,144], index: 0, kind: input, shape index: {}]
  %s1 = inlined_call_operand.vmem [shape: bf16[144,32], index: 1, kind: input, shape index: {}]
  %s2 = inlined_call_operand.vmem [shape: f32[1,32], index: 2, kind: input, shape index: {}]
  %s3 = inlined_call_operand.vmem [shape: f32[1,32], index: 3, kind: input, shape index: {}]
  %s4 = inlined_call_operand.vmem [shape: bf16[512,32], index: 4, kind: output, shape index: {}]
  %s5 = sld [smem:[#allocation0]]
  $region26: #{kpnet_forward.7} parent=0
    _
  %s7 = ssub.s32 1, %s5
  %s8 = scalar_select 0, %s7, %s5
  // Predicated region
  $region2: #{kpnet_forward.7} parent=0 // pred_check
    _
  $region3: #{kpnet_forward.7} parent=0 // pred_check_branch
    %10 = sbr.rel (0) target = $region5
  $region4: #{kpnet_forward.7} parent=0 // pred_region
    _
  $region5: #{kpnet_forward.7} parent=0 // pred_fallthru
    _
  // Predicated region
  $region6: #{kpnet_forward.7} parent=0 // pred_check
    _
  $region7: #{kpnet_forward.7} parent=0 // pred_check_branch
    %12 = sbr.rel (0) target = $region9
  $region8: #{kpnet_forward.7} parent=0 // pred_region
    _
  $region9: #{kpnet_forward.7} parent=0 // pred_fallthru
    _
  // Predicated region
  $region10: #{kpnet_forward.7} parent=0 // pred_check
    _
  $region11: #{kpnet_forward.7} parent=0 // pred_check_branch
    %14 = sbr.rel (0) target = $region13
  $region12: #{kpnet_forward.7} parent=0 // pred_region
    _
  $region13: #{kpnet_forward.7} parent=0 // pred_fallthru
    _
  // Predicated region
  $region14: #{kpnet_forward.7} parent=0 // pred_check
    _
  $region15: #{kpnet_forward.7} parent=0 // pred_check_branch
    %16 = sbr.rel (0) target = $region17
  $region16: #{kpnet_forward.7} parent=0 // pred_region
    _
  $region17: #{kpnet_forward.7} parent=0 // pred_fallthru
    _
  %v18 = vld [vmem:[%s0] sm:$0xff]
  %v19 = vld [vmem:[%s0 + $0x8] sm:$0xff]
  %v20 = vld [vmem:[%s0 + $0x10] sm:$0xff]
  %v21 = vld [vmem:[%s0 + $0x18] sm:$0xff]
  %v22 = vld [vmem:[%s0 + $0x20] sm:$0xff]
  %v23 = vld [vmem:[%s0 + $0x28] sm:$0xff]
  %v24 = vld [vmem:[%s0 + $0x30] sm:$0xff]
  %v25 = vld [vmem:[%s0 + $0x38] sm:$0xff]
  %v26 = vld [vmem:[%s0 + $0x40] sm:$0xff]
  %v27 = vld [vmem:[%s0 + $0x48] sm:$0xff]
  %v28 = vld [vmem:[%s0 + $0x50] sm:$0xff]
  %v29 = vld [vmem:[%s0 + $0x58] sm:$0xff]
  %v30 = vld [vmem:[%s0 + $0x60] sm:$0xff]
  %v31 = vld [vmem:[%s0 + $0x68] sm:$0xff]
  %v32 = vld [vmem:[%s0 + $0x70] sm:$0xff]
  %v33 = vld [vmem:[%s0 + $0x78] sm:$0xff]
  %v34 = vld [vmem:[%s0 + $0x80] sm:$0xff]
  %v35 = vld [vmem:[%s0 + $0x88] sm:$0xff]
  %v36 = vld [vmem:[%s0 + $0x90] sm:$0xff]
  %v37 = vld [vmem:[%s0 + $0x98] sm:$0xff]
  %v38 = vld [vmem:[%s0 + $0xa0] sm:$0xff]
  %v39 = vld [vmem:[%s0 + $0xa8] sm:$0xff]
  %v40 = vld [vmem:[%s0 + $0xb0] sm:$0xff]
  %v41 = vld [vmem:[%s0 + $0xb8] sm:$0xff]
  %v42 = vld [vmem:[%s0 + $0xc0] sm:$0xff]
  %v43 = vld [vmem:[%s0 + $0xc8] sm:$0xff]
  %v44 = vld [vmem:[%s0 + $0xd0] sm:$0xff]
  %v45 = vld [vmem:[%s0 + $0xd8] sm:$0xff]
  %v46 = vld [vmem:[%s0 + $0xe0] sm:$0xff]
  %v47 = vld [vmem:[%s0 + $0xe8] sm:$0xff]
  %v48 = vld [vmem:[%s0 + $0xf0] sm:$0xff]
  %v49 = vld [vmem:[%s0 + $0xf8] sm:$0xff]
  %v50 = vld [vmem:[%s0 + $0x100] sm:$0xff]
  %v51 = vld [vmem:[%s0 + $0x108] sm:$0xff]
  %v52 = vld [vmem:[%s0 + $0x110] sm:$0xff]
  %v53 = vld [vmem:[%s0 + $0x118] sm:$0xff]
  %v54 = vld [vmem:[%s0 + $0x120] sm:$0xff]
  %v55 = vld [vmem:[%s0 + $0x128] sm:$0xff]
  %v56 = vld [vmem:[%s0 + $0x130] sm:$0xff]
  %v57 = vld [vmem:[%s0 + $0x138] sm:$0xff]
  %v58 = vld [vmem:[%s0 + $0x140] sm:$0xff]
  %v59 = vld [vmem:[%s0 + $0x148] sm:$0xff]
  %v60 = vld [vmem:[%s0 + $0x150] sm:$0xff]
  %v61 = vld [vmem:[%s0 + $0x158] sm:$0xff]
  %v62 = vld [vmem:[%s0 + $0x160] sm:$0xff]
  %v63 = vld [vmem:[%s0 + $0x168] sm:$0xff]
  %v64 = vld [vmem:[%s0 + $0x170] sm:$0xff]
  %v65 = vld [vmem:[%s0 + $0x178] sm:$0xff]
  %v66 = vld [vmem:[%s0 + $0x180] sm:$0xff]
  %v67 = vld [vmem:[%s0 + $0x188] sm:$0xff]
  %v68 = vld [vmem:[%s0 + $0x190] sm:$0xff]
  %v69 = vld [vmem:[%s0 + $0x198] sm:$0xff]
  %v70 = vld [vmem:[%s0 + $0x1a0] sm:$0xff]
  %v71 = vld [vmem:[%s0 + $0x1a8] sm:$0xff]
  %v72 = vld [vmem:[%s0 + $0x1b0] sm:$0xff]
  %v73 = vld [vmem:[%s0 + $0x1b8] sm:$0xff]
  %v74 = vld [vmem:[%s0 + $0x1c0] sm:$0xff]
  %v75 = vld [vmem:[%s0 + $0x1c8] sm:$0xff]
  %v76 = vld [vmem:[%s0 + $0x1d0] sm:$0xff]
  %v77 = vld [vmem:[%s0 + $0x1d8] sm:$0xff]
  %v78 = vld [vmem:[%s0 + $0x1e0] sm:$0xff]
  %v79 = vld [vmem:[%s0 + $0x1e8] sm:$0xff]
  %v80 = vld [vmem:[%s0 + $0x1f0] sm:$0xff]
  %v81 = vld [vmem:[%s0 + $0x1f8] sm:$0xff]
  %v82 = vld [vmem:[%s1] sm:$0xf]
  %v83 = vld [vmem:[%s1 + $0x4] sm:$0xf]
  %v84 = vld [vmem:[%s1 + $0x8] sm:$0xf]
  %v85 = vld [vmem:[%s1 + $0xc] sm:$0xf]
  %v86 = vld [vmem:[%s1 + $0x10] sm:$0xf]
  %v87 = vld [vmem:[%s1 + $0x14] sm:$0xf]
  %v88 = vld [vmem:[%s1 + $0x18] sm:$0xf]
  %v89 = vld [vmem:[%s1 + $0x1c] sm:$0xf]
  %v90 = vld [vmem:[%s1 + $0x20] sm:$0xf]
  %v91 = vld [vmem:[%s1 + $0x24] sm:$0xf]
  %v92 = vld [vmem:[%s1 + $0x28] sm:$0xf]
  %v93 = vld [vmem:[%s1 + $0x2c] sm:$0xf]
  %v94 = vld [vmem:[%s1 + $0x30] sm:$0xf]
  %v95 = vld [vmem:[%s1 + $0x34] sm:$0xf]
  %v96 = vld [vmem:[%s1 + $0x38] sm:$0xf]
  %v97 = vld [vmem:[%s1 + $0x3c] sm:$0xf]
  %v98 = vld [vmem:[%s1 + $0x40] sm:$0xf]
  %v99 = vld [vmem:[%s1 + $0x44] sm:$0xf]
  %v164 = vunpack.c.l.b16 %v18
  %v165 = vunpack.c.h.b16 %v18
  %v166 = vunpack.c.l.b16 %v19
  %v167 = vunpack.c.h.b16 %v19
  %v168 = vunpack.c.l.b16 %v20
  %v169 = vunpack.c.h.b16 %v20
  %v170 = vunpack.c.l.b16 %v21
  %v171 = vunpack.c.h.b16 %v21
  %v172 = vunpack.c.l.b16 %v22
  %v173 = vunpack.c.h.b16 %v22
  %v174 = vunpack.c.l.b16 %v23
  %v175 = vunpack.c.h.b16 %v23
  %v176 = vunpack.c.l.b16 %v24
  %v177 = vunpack.c.h.b16 %v24
  %v178 = vunpack.c.l.b16 %v25
  %v179 = vunpack.c.h.b16 %v25
  %v180 = vunpack.c.l.b16 %v26
  %v181 = vunpack.c.h.b16 %v26
  %v182 = vunpack.c.l.b16 %v27
  %v183 = vunpack.c.h.b16 %v27
  %v184 = vunpack.c.l.b16 %v28
  %v185 = vunpack.c.h.b16 %v28
  %v186 = vunpack.c.l.b16 %v29
  %v187 = vunpack.c.h.b16 %v29
  %v188 = vunpack.c.l.b16 %v30
  %v189 = vunpack.c.h.b16 %v30
  %v190 = vunpack.c.l.b16 %v31
  %v191 = vunpack.c.h.b16 %v31
  %v192 = vunpack.c.l.b16 %v32
  %v193 = vunpack.c.h.b16 %v32
  %v194 = vunpack.c.l.b16 %v33
  %v195 = vunpack.c.h.b16 %v33
  %v196 = vunpack.c.l.b16 %v34
  %v197 = vunpack.c.h.b16 %v34
  %v198 = vunpack.c.l.b16 %v35
  %v199 = vunpack.c.h.b16 %v35
  %v200 = vunpack.c.l.b16 %v36
  %v201 = vunpack.c.h.b16 %v36
  %v202 = vunpack.c.l.b16 %v37
  %v203 = vunpack.c.h.b16 %v37
  %v204 = vunpack.c.l.b16 %v38
  %v205 = vunpack.c.h.b16 %v38
  %v206 = vunpack.c.l.b16 %v39
  %v207 = vunpack.c.h.b16 %v39
  %v208 = vunpack.c.l.b16 %v40
  %v209 = vunpack.c.h.b16 %v40
  %v210 = vunpack.c.l.b16 %v41
  %v211 = vunpack.c.h.b16 %v41
  %v212 = vunpack.c.l.b16 %v42
  %v213 = vunpack.c.h.b16 %v42
  %v214 = vunpack.c.l.b16 %v43
  %v215 = vunpack.c.h.b16 %v43
  %v216 = vunpack.c.l.b16 %v44
  %v217 = vunpack.c.h.b16 %v44
  %v218 = vunpack.c.l.b16 %v45
  %v219 = vunpack.c.h.b16 %v45
  %v220 = vunpack.c.l.b16 %v46
  %v221 = vunpack.c.h.b16 %v46
  %v222 = vunpack.c.l.b16 %v47
  %v223 = vunpack.c.h.b16 %v47
  %v224 = vunpack.c.l.b16 %v48
  %v225 = vunpack.c.h.b16 %v48
  %v226 = vunpack.c.l.b16 %v49
  %v227 = vunpack.c.h.b16 %v49
  %v228 = vunpack.c.l.b16 %v50
  %v229 = vunpack.c.h.b16 %v50
  %v230 = vunpack.c.l.b16 %v51
  %v231 = vunpack.c.h.b16 %v51
  %v232 = vunpack.c.l.b16 %v52
  %v233 = vunpack.c.h.b16 %v52
  %v234 = vunpack.c.l.b16 %v53
  %v235 = vunpack.c.h.b16 %v53
  %v236 = vunpack.c.l.b16 %v54
  %v237 = vunpack.c.h.b16 %v54
  %v238 = vunpack.c.l.b16 %v55
  %v239 = vunpack.c.h.b16 %v55
  %v240 = vunpack.c.l.b16 %v56
  %v241 = vunpack.c.h.b16 %v56
  %v242 = vunpack.c.l.b16 %v57
  %v243 = vunpack.c.h.b16 %v57
  %v244 = vunpack.c.l.b16 %v58
  %v245 = vunpack.c.h.b16 %v58
  %v246 = vunpack.c.l.b16 %v59
  %v247 = vunpack.c.h.b16 %v59
  %v248 = vunpack.c.l.b16 %v60
  %v249 = vunpack.c.h.b16 %v60
  %v250 = vunpack.c.l.b16 %v61
  %v251 = vunpack.c.h.b16 %v61
  %v252 = vunpack.c.l.b16 %v62
  %v253 = vunpack.c.h.b16 %v62
  %v254 = vunpack.c.l.b16 %v63
  %v255 = vunpack.c.h.b16 %v63
  %v256 = vunpack.c.l.b16 %v64
  %v257 = vunpack.c.h.b16 %v64
  %v258 = vunpack.c.l.b16 %v65
  %v259 = vunpack.c.h.b16 %v65
  %v260 = vunpack.c.l.b16 %v66
  %v261 = vunpack.c.h.b16 %v66
  %v262 = vunpack.c.l.b16 %v67
  %v263 = vunpack.c.h.b16 %v67
  %v264 = vunpack.c.l.b16 %v68
  %v265 = vunpack.c.h.b16 %v68
  %v266 = vunpack.c.l.b16 %v69
  %v267 = vunpack.c.h.b16 %v69
  %v268 = vunpack.c.l.b16 %v70
  %v269 = vunpack.c.h.b16 %v70
  %v270 = vunpack.c.l.b16 %v71
  %v271 = vunpack.c.h.b16 %v71
  %v272 = vunpack.c.l.b16 %v72
  %v273 = vunpack.c.h.b16 %v72
  %v274 = vunpack.c.l.b16 %v73
  %v275 = vunpack.c.h.b16 %v73
  %v276 = vunpack.c.l.b16 %v74
  %v277 = vunpack.c.h.b16 %v74
  %v278 = vunpack.c.l.b16 %v75
  %v279 = vunpack.c.h.b16 %v75
  %v280 = vunpack.c.l.b16 %v76
  %v281 = vunpack.c.h.b16 %v76
  %v282 = vunpack.c.l.b16 %v77
  %v283 = vunpack.c.h.b16 %v77
  %v284 = vunpack.c.l.b16 %v78
  %v285 = vunpack.c.h.b16 %v78
  %v286 = vunpack.c.l.b16 %v79
  %v287 = vunpack.c.h.b16 %v79
  %v288 = vunpack.c.l.b16 %v80
  %v289 = vunpack.c.h.b16 %v80
  %v290 = vunpack.c.l.b16 %v81
  %v291 = vunpack.c.h.b16 %v81
  %v292 = vpack.c.b16 %v166, %v164
  %v293 = vpack.c.b16 %v167, %v165
  %v294 = vpack.c.b16 %v170, %v168
  %v295 = vpack.c.b16 %v171, %v169
  %v296 = vpack.c.b16 %v174, %v172
  %v297 = vpack.c.b16 %v175, %v173
  %v298 = vpack.c.b16 %v178, %v176
  %v299 = vpack.c.b16 %v179, %v177
  %v300 = vpack.c.b16 %v182, %v180
  %v301 = vpack.c.b16 %v183, %v181
  %v302 = vpack.c.b16 %v186, %v184
  %v303 = vpack.c.b16 %v187, %v185
  %v304 = vpack.c.b16 %v190, %v188
  %v305 = vpack.c.b16 %v191, %v189
  %v306 = vpack.c.b16 %v194, %v192
  %v307 = vpack.c.b16 %v195, %v193
  %v308 = vpack.c.b16 %v198, %v196
  %v309 = vpack.c.b16 %v199, %v197
  %v310 = vpack.c.b16 %v202, %v200
  %v311 = vpack.c.b16 %v203, %v201
  %v312 = vpack.c.b16 %v206, %v204
  %v313 = vpack.c.b16 %v207, %v205
  %v314 = vpack.c.b16 %v210, %v208
  %v315 = vpack.c.b16 %v211, %v209
  %v316 = vpack.c.b16 %v214, %v212
  %v317 = vpack.c.b16 %v215, %v213
  %v318 = vpack.c.b16 %v218, %v216
  %v319 = vpack.c.b16 %v219, %v217
  %v320 = vpack.c.b16 %v222, %v220
  %v321 = vpack.c.b16 %v223, %v221
  %v322 = vpack.c.b16 %v226, %v224
  %v323 = vpack.c.b16 %v227, %v225
  %v324 = vpack.c.b16 %v230, %v228
  %v325 = vpack.c.b16 %v231, %v229
  %v326 = vpack.c.b16 %v234, %v232
  %v327 = vpack.c.b16 %v235, %v233
  %v328 = vpack.c.b16 %v238, %v236
  %v329 = vpack.c.b16 %v239, %v237
  %v330 = vpack.c.b16 %v242, %v240
  %v331 = vpack.c.b16 %v243, %v241
  %v332 = vpack.c.b16 %v246, %v244
  %v333 = vpack.c.b16 %v247, %v245
  %v334 = vpack.c.b16 %v250, %v248
  %v335 = vpack.c.b16 %v251, %v249
  %v336 = vpack.c.b16 %v254, %v252
  %v337 = vpack.c.b16 %v255, %v253
  %v338 = vpack.c.b16 %v258, %v256
  %v339 = vpack.c.b16 %v259, %v257
  %v340 = vpack.c.b16 %v262, %v260
  %v341 = vpack.c.b16 %v263, %v261
  %v342 = vpack.c.b16 %v266, %v264
  %v343 = vpack.c.b16 %v267, %v265
  %v344 = vpack.c.b16 %v270, %v268
  %v345 = vpack.c.b16 %v271, %v269
  %v346 = vpack.c.b16 %v274, %v272
  %v347 = vpack.c.b16 %v275, %v273
  %v348 = vpack.c.b16 %v278, %v276
  %v349 = vpack.c.b16 %v279, %v277
  %v350 = vpack.c.b16 %v282, %v280
  %v351 = vpack.c.b16 %v283, %v281
  %v352 = vpack.c.b16 %v286, %v284
  %v353 = vpack.c.b16 %v287, %v285
  %v354 = vpack.c.b16 %v290, %v288
  %v355 = vpack.c.b16 %v291, %v289
  %v406 = vunpack.c.l.b16 %v82
  %v407 = vunpack.c.l.b16 %v83
  %v408 = vunpack.c.l.b16 %v84
  %v409 = vunpack.c.l.b16 %v85
  %v410 = vunpack.c.l.b16 %v86
  %v411 = vunpack.c.l.b16 %v87
  %v412 = vunpack.c.l.b16 %v88
  %v413 = vunpack.c.l.b16 %v89
  %v414 = vunpack.c.l.b16 %v90
  %v415 = vunpack.c.l.b16 %v91
  %v416 = vunpack.c.l.b16 %v92
  %v417 = vunpack.c.l.b16 %v93
  %v418 = vunpack.c.l.b16 %v94
  %v419 = vunpack.c.l.b16 %v95
  %v420 = vunpack.c.l.b16 %v96
  %v421 = vunpack.c.l.b16 %v97
  %v422 = vunpack.c.l.b16 %v98
  %v423 = vunpack.c.l.b16 %v99
  %v424 = vpack.c.b16 %v407, %v406
  %v425 = vpack.c.b16 %v409, %v408
  %v426 = vpack.c.b16 %v411, %v410
  %v427 = vpack.c.b16 %v413, %v412
  %v428 = vpack.c.b16 %v415, %v414
  %v429 = vpack.c.b16 %v417, %v416
  %v430 = vpack.c.b16 %v419, %v418
  %v431 = vpack.c.b16 %v421, %v420
  %v432 = vpack.c.b16 %v423, %v422
  %vm442 = vcmask 130048
  %v444 = vsel %vm442, %v293, 0
  %v447 = vsel %vm442, %v295, 0
  %v450 = vsel %vm442, %v297, 0
  %v453 = vsel %vm442, %v299, 0
  %v456 = vsel %vm442, %v301, 0
  %v459 = vsel %vm442, %v303, 0
  %v462 = vsel %vm442, %v305, 0
  %v465 = vsel %vm442, %v307, 0
  %v468 = vsel %vm442, %v309, 0
  %v471 = vsel %vm442, %v311, 0
  %v474 = vsel %vm442, %v313, 0
  %v477 = vsel %vm442, %v315, 0
  %v480 = vsel %vm442, %v317, 0
  %v483 = vsel %vm442, %v319, 0
  %v486 = vsel %vm442, %v321, 0
  %v489 = vsel %vm442, %v323, 0
  %v492 = vsel %vm442, %v325, 0
  %v495 = vsel %vm442, %v327, 0
  %v498 = vsel %vm442, %v329, 0
  %v501 = vsel %vm442, %v331, 0
  %v504 = vsel %vm442, %v333, 0
  %v507 = vsel %vm442, %v335, 0
  %v510 = vsel %vm442, %v337, 0
  %v513 = vsel %vm442, %v339, 0
  %v516 = vsel %vm442, %v341, 0
  %v519 = vsel %vm442, %v343, 0
  %v522 = vsel %vm442, %v345, 0
  %v525 = vsel %vm442, %v347, 0
  %v528 = vsel %vm442, %v349, 0
  %v531 = vsel %vm442, %v351, 0
  %v534 = vsel %vm442, %v353, 0
  %v537 = vsel %vm442, %v355, 0
  %539 = vmatprep.subr.bf16.mxu0 0
  %540 = vmatpush1.bf16.msra.mxu0 %v424
  %541 = vmatprep.subr.bf16.mxu0 0
  %542 = vmatpush1.bf16.msra.mxu0 %v425
  %543 = vmatprep.subr.bf16.mxu0 0
  %544 = vmatpush1.bf16.msra.mxu0 %v426
  %545 = vmatprep.subr.bf16.mxu0 0
  %546 = vmatpush1.bf16.msra.mxu0 %v427
  %547 = vmatprep.subr.bf16.mxu0 0
  %548 = vmatpush1.bf16.msra.mxu0 %v428
  %549 = vmatprep.subr.bf16.mxu0 0
  %550 = vmatpush1.bf16.msra.mxu0 %v429
  %551 = vmatprep.subr.bf16.mxu0 0
  %552 = vmatpush1.bf16.msra.mxu0 %v430
  %553 = vmatprep.subr.bf16.mxu0 0
  %554 = vmatpush1.bf16.msra.mxu0 %v431
  %555 = vmatprep.subr.bf16.mxu0 0
  %556 = vmatpush1.bf16.msra.mxu0 %v432
  %557 = vmatprep.subr.bf16.mxu0 0
  %558 = vmatpush1.bf16.msra.mxu0 0
  %559 = vmatprep.subr.bf16.mxu0 0
  %560 = vmatpush1.bf16.msra.mxu0 0
  %561 = vmatprep.subr.bf16.mxu0 0
  %562 = vmatpush1.bf16.msra.mxu0 0
  %563 = vmatprep.subr.bf16.mxu0 0
  %564 = vmatpush1.bf16.msra.mxu0 0
  %565 = vmatprep.subr.bf16.mxu0 0
  %566 = vmatpush1.bf16.msra.mxu0 0
  %567 = vmatprep.subr.bf16.mxu0 0
  %568 = vmatpush1.bf16.msra.mxu0 0
  %569 = vmatprep.subr.bf16.mxu0 0
  %570 = vmatpush1.bf16.msra.mxu0 0
  %571 = vmatprep.mubr.bf16.mxu0 %v444
  %572 = vmatmul.mubr.bf16.gmra.mrb[0].mxu0 %v292
  %v573 = vpop.f32.mrb[0].mxu0
  %v574 = vadd.f32 0.0, %v573
  %v575 = vpop.f32.mrb[0].mxu0
  %v576 = vpop.f32.mrb[0].mxu0
  %v577 = vadd.f32 0.0, %v576
  %v578 = vpop.f32.mrb[0].mxu0
  %579 = vmatprep.mubr.bf16.mxu0 %v447
  %580 = vmatmul.mubr.bf16.gmra.mrb[0].mxu0 %v294
  %v581 = vpop.f32.mrb[0].mxu0
  %v582 = vadd.f32 0.0, %v581
  %v583 = vpop.f32.mrb[0].mxu0
  %v584 = vpop.f32.mrb[0].mxu0
  %v585 = vadd.f32 0.0, %v584
  %v586 = vpop.f32.mrb[0].mxu0
  %587 = vmatprep.mubr.bf16.mxu0 %v450
  %588 = vmatmul.mubr.bf16.gmra.mrb[0].mxu0 %v296
  %v589 = vpop.f32.mrb[0].mxu0
  %v590 = vadd.f32 0.0, %v589
  %v591 = vpop.f32.mrb[0].mxu0
  %v592 = vpop.f32.mrb[0].mxu0
  %v593 = vadd.f32 0.0, %v592
  %v594 = vpop.f32.mrb[0].mxu0
  %595 = vmatprep.mubr.bf16.mxu0 %v453
  %596 = vmatmul.mubr.bf16.gmra.mrb[0].mxu0 %v298
  %v597 = vpop.f32.mrb[0].mxu0
  %v598 = vadd.f32 0.0, %v597
  %v599 = vpop.f32.mrb[0].mxu0
  %v600 = vpop.f32.mrb[0].mxu0
  %v601 = vadd.f32 0.0, %v600
  %v602 = vpop.f32.mrb[0].mxu0
  %603 = vmatprep.mubr.bf16.mxu0 %v456
  %604 = vmatmul.mubr.bf16.gmra.mrb[0].mxu0 %v300
  %v605 = vpop.f32.mrb[0].mxu0
  %v606 = vadd.f32 0.0, %v605
  %v607 = vpop.f32.mrb[0].mxu0
  %v608 = vpop.f32.mrb[0].mxu0
  %v609 = vadd.f32 0.0, %v608
  %v610 = vpop.f32.mrb[0].mxu0
  %611 = vmatprep.mubr.bf16.mxu0 %v459
  %612 = vmatmul.mubr.bf16.gmra.mrb[0].mxu0 %v302
  %v613 = vpop.f32.mrb[0].mxu0
  %v614 = vadd.f32 0.0, %v613
  %v615 = vpop.f32.mrb[0].mxu0
  %v616 = vpop.f32.mrb[0].mxu0
  %v617 = vadd.f32 0.0, %v616
  %v618 = vpop.f32.mrb[0].mxu0
  %619 = vmatprep.mubr.bf16.mxu0 %v462
  %620 = vmatmul.mubr.bf16.gmra.mrb[0].mxu0 %v304
  %v621 = vpop.f32.mrb[0].mxu0
  %v622 = vadd.f32 0.0, %v621
  %v623 = vpop.f32.mrb[0].mxu0
  %v624 = vpop.f32.mrb[0].mxu0
  %v625 = vadd.f32 0.0, %v624
  %v626 = vpop.f32.mrb[0].mxu0
  %627 = vmatprep.mubr.bf16.mxu0 %v465
  %628 = vmatmul.mubr.bf16.gmra.mrb[0].mxu0 %v306
  %v629 = vpop.f32.mrb[0].mxu0
  %v630 = vadd.f32 0.0, %v629
  %v631 = vpop.f32.mrb[0].mxu0
  %v632 = vpop.f32.mrb[0].mxu0
  %v633 = vadd.f32 0.0, %v632
  %v634 = vpop.f32.mrb[0].mxu0
  %635 = vmatprep.mubr.bf16.mxu0 %v468
  %636 = vmatmul.mubr.bf16.gmra.mrb[0].mxu0 %v308
  %v637 = vpop.f32.mrb[0].mxu0
  %v638 = vadd.f32 0.0, %v637
  %v639 = vpop.f32.mrb[0].mxu0
  %v640 = vpop.f32.mrb[0].mxu0
  %v641 = vadd.f32 0.0, %v640
  %v642 = vpop.f32.mrb[0].mxu0
  %643 = vmatprep.mubr.bf16.mxu0 %v471
  %644 = vmatmul.mubr.bf16.gmra.mrb[0].mxu0 %v310
  %v645 = vpop.f32.mrb[0].mxu0
  %v646 = vadd.f32 0.0, %v645
  %v647 = vpop.f32.mrb[0].mxu0
  %v648 = vpop.f32.mrb[0].mxu0
  %v649 = vadd.f32 0.0, %v648
  %v650 = vpop.f32.mrb[0].mxu0
  %651 = vmatprep.mubr.bf16.mxu0 %v474
  %652 = vmatmul.mubr.bf16.gmra.mrb[0].mxu0 %v312
  %v653 = vpop.f32.mrb[0].mxu0
  %v654 = vadd.f32 0.0, %v653
  %v655 = vpop.f32.mrb[0].mxu0
  %v656 = vpop.f32.mrb[0].mxu0
  %v657 = vadd.f32 0.0, %v656
  %v658 = vpop.f32.mrb[0].mxu0
  %659 = vmatprep.mubr.bf16.mxu0 %v477
  %660 = vmatmul.mubr.bf16.gmra.mrb[0].mxu0 %v314
  %v661 = vpop.f32.mrb[0].mxu0
  %v662 = vadd.f32 0.0, %v661
  %v663 = vpop.f32.mrb[0].mxu0
  %v664 = vpop.f32.mrb[0].mxu0
  %v665 = vadd.f32 0.0, %v664
  %v666 = vpop.f32.mrb[0].mxu0
  %667 = vmatprep.mubr.bf16.mxu0 %v480
  %668 = vmatmul.mubr.bf16.gmra.mrb[0].mxu0 %v316
  %v669 = vpop.f32.mrb[0].mxu0
  %v670 = vadd.f32 0.0, %v669
  %v671 = vpop.f32.mrb[0].mxu0
  %v672 = vpop.f32.mrb[0].mxu0
  %v673 = vadd.f32 0.0, %v672
  %v674 = vpop.f32.mrb[0].mxu0
  %675 = vmatprep.mubr.bf16.mxu0 %v483
  %676 = vmatmul.mubr.bf16.gmra.mrb[0].mxu0 %v318
  %v677 = vpop.f32.mrb[0].mxu0
  %v678 = vadd.f32 0.0, %v677
  %v679 = vpop.f32.mrb[0].mxu0
  %v680 = vpop.f32.mrb[0].mxu0
  %v681 = vadd.f32 0.0, %v680
  %v682 = vpop.f32.mrb[0].mxu0
  %683 = vmatprep.mubr.bf16.mxu0 %v486
  %684 = vmatmul.mubr.bf16.gmra.mrb[0].mxu0 %v320
  %v685 = vpop.f32.mrb[0].mxu0
  %v686 = vadd.f32 0.0, %v685
  %v687 = vpop.f32.mrb[0].mxu0
  %v688 = vpop.f32.mrb[0].mxu0
  %v689 = vadd.f32 0.0, %v688
  %v690 = vpop.f32.mrb[0].mxu0
  %691 = vmatprep.mubr.bf16.mxu0 %v489
  %692 = vmatmul.mubr.bf16.gmra.mrb[0].mxu0 %v322
  %v693 = vpop.f32.mrb[0].mxu0
  %v694 = vadd.f32 0.0, %v693
  %v695 = vpop.f32.mrb[0].mxu0
  %v696 = vpop.f32.mrb[0].mxu0
  %v697 = vadd.f32 0.0, %v696
  %v698 = vpop.f32.mrb[0].mxu0
  %699 = vmatprep.mubr.bf16.mxu0 %v492
  %700 = vmatmul.mubr.bf16.gmra.mrb[0].mxu0 %v324
  %v701 = vpop.f32.mrb[0].mxu0
  %v702 = vadd.f32 0.0, %v701
  %v703 = vpop.f32.mrb[0].mxu0
  %v704 = vpop.f32.mrb[0].mxu0
  %v705 = vadd.f32 0.0, %v704
  %v706 = vpop.f32.mrb[0].mxu0
  %707 = vmatprep.mubr.bf16.mxu0 %v495
  %708 = vmatmul.mubr.bf16.gmra.mrb[0].mxu0 %v326
  %v709 = vpop.f32.mrb[0].mxu0
  %v710 = vadd.f32 0.0, %v709
  %v711 = vpop.f32.mrb[0].mxu0
  %v712 = vpop.f32.mrb[0].mxu0
  %v713 = vadd.f32 0.0, %v712
  %v714 = vpop.f32.mrb[0].mxu0
  %715 = vmatprep.mubr.bf16.mxu0 %v498
  %716 = vmatmul.mubr.bf16.gmra.mrb[0].mxu0 %v328
  %v717 = vpop.f32.mrb[0].mxu0
  %v718 = vadd.f32 0.0, %v717
  %v719 = vpop.f32.mrb[0].mxu0
  %v720 = vpop.f32.mrb[0].mxu0
  %v721 = vadd.f32 0.0, %v720
  %v722 = vpop.f32.mrb[0].mxu0
  %723 = vmatprep.mubr.bf16.mxu0 %v501
  %724 = vmatmul.mubr.bf16.gmra.mrb[0].mxu0 %v330
  %v725 = vpop.f32.mrb[0].mxu0
  %v726 = vadd.f32 0.0, %v725
  %v727 = vpop.f32.mrb[0].mxu0
  %v728 = vpop.f32.mrb[0].mxu0
  %v729 = vadd.f32 0.0, %v728
  %v730 = vpop.f32.mrb[0].mxu0
  %731 = vmatprep.mubr.bf16.mxu0 %v504
  %732 = vmatmul.mubr.bf16.gmra.mrb[0].mxu0 %v332
  %v733 = vpop.f32.mrb[0].mxu0
  %v734 = vadd.f32 0.0, %v733
  %v735 = vpop.f32.mrb[0].mxu0
  %v736 = vpop.f32.mrb[0].mxu0
  %v737 = vadd.f32 0.0, %v736
  %v738 = vpop.f32.mrb[0].mxu0
  %739 = vmatprep.mubr.bf16.mxu0 %v507
  %740 = vmatmul.mubr.bf16.gmra.mrb[0].mxu0 %v334
  %v741 = vpop.f32.mrb[0].mxu0
  %v742 = vadd.f32 0.0, %v741
  %v743 = vpop.f32.mrb[0].mxu0
  %v744 = vpop.f32.mrb[0].mxu0
  %v745 = vadd.f32 0.0, %v744
  %v746 = vpop.f32.mrb[0].mxu0
  %747 = vmatprep.mubr.bf16.mxu0 %v510
  %748 = vmatmul.mubr.bf16.gmra.mrb[0].mxu0 %v336
  %v749 = vpop.f32.mrb[0].mxu0
  %v750 = vadd.f32 0.0, %v749
  %v751 = vpop.f32.mrb[0].mxu0
  %v752 = vpop.f32.mrb[0].mxu0
  %v753 = vadd.f32 0.0, %v752
  %v754 = vpop.f32.mrb[0].mxu0
  %755 = vmatprep.mubr.bf16.mxu0 %v513
  %756 = vmatmul.mubr.bf16.gmra.mrb[0].mxu0 %v338
  %v757 = vpop.f32.mrb[0].mxu0
  %v758 = vadd.f32 0.0, %v757
  %v759 = vpop.f32.mrb[0].mxu0
  %v760 = vpop.f32.mrb[0].mxu0
  %v761 = vadd.f32 0.0, %v760
  %v762 = vpop.f32.mrb[0].mxu0
  %763 = vmatprep.mubr.bf16.mxu0 %v516
  %764 = vmatmul.mubr.bf16.gmra.mrb[0].mxu0 %v340
  %v765 = vpop.f32.mrb[0].mxu0
  %v766 = vadd.f32 0.0, %v765
  %v767 = vpop.f32.mrb[0].mxu0
  %v768 = vpop.f32.mrb[0].mxu0
  %v769 = vadd.f32 0.0, %v768
  %v770 = vpop.f32.mrb[0].mxu0
  %771 = vmatprep.mubr.bf16.mxu0 %v519
  %772 = vmatmul.mubr.bf16.gmra.mrb[0].mxu0 %v342
  %v773 = vpop.f32.mrb[0].mxu0
  %v774 = vadd.f32 0.0, %v773
  %v775 = vpop.f32.mrb[0].mxu0
  %v776 = vpop.f32.mrb[0].mxu0
  %v777 = vadd.f32 0.0, %v776
  %v778 = vpop.f32.mrb[0].mxu0
  %779 = vmatprep.mubr.bf16.mxu0 %v522
  %780 = vmatmul.mubr.bf16.gmra.mrb[0].mxu0 %v344
  %v781 = vpop.f32.mrb[0].mxu0
  %v782 = vadd.f32 0.0, %v781
  %v783 = vpop.f32.mrb[0].mxu0
  %v784 = vpop.f32.mrb[0].mxu0
  %v785 = vadd.f32 0.0, %v784
  %v786 = vpop.f32.mrb[0].mxu0
  %787 = vmatprep.mubr.bf16.mxu0 %v525
  %788 = vmatmul.mubr.bf16.gmra.mrb[0].mxu0 %v346
  %v789 = vpop.f32.mrb[0].mxu0
  %v790 = vadd.f32 0.0, %v789
  %v791 = vpop.f32.mrb[0].mxu0
  %v792 = vpop.f32.mrb[0].mxu0
  %v793 = vadd.f32 0.0, %v792
  %v794 = vpop.f32.mrb[0].mxu0
  %795 = vmatprep.mubr.bf16.mxu0 %v528
  %796 = vmatmul.mubr.bf16.gmra.mrb[0].mxu0 %v348
  %v797 = vpop.f32.mrb[0].mxu0
  %v798 = vadd.f32 0.0, %v797
  %v799 = vpop.f32.mrb[0].mxu0
  %v800 = vpop.f32.mrb[0].mxu0
  %v801 = vadd.f32 0.0, %v800
  %v802 = vpop.f32.mrb[0].mxu0
  %803 = vmatprep.mubr.bf16.mxu0 %v531
  %804 = vmatmul.mubr.bf16.gmra.mrb[0].mxu0 %v350
  %v805 = vpop.f32.mrb[0].mxu0
  %v806 = vadd.f32 0.0, %v805
  %v807 = vpop.f32.mrb[0].mxu0
  %v808 = vpop.f32.mrb[0].mxu0
  %v809 = vadd.f32 0.0, %v808
  %v810 = vpop.f32.mrb[0].mxu0
  %811 = vmatprep.mubr.bf16.mxu0 %v534
  %812 = vmatmul.mubr.bf16.gmra.mrb[0].mxu0 %v352
  %v813 = vpop.f32.mrb[0].mxu0
  %v814 = vadd.f32 0.0, %v813
  %v815 = vpop.f32.mrb[0].mxu0
  %v816 = vpop.f32.mrb[0].mxu0
  %v817 = vadd.f32 0.0, %v816
  %v818 = vpop.f32.mrb[0].mxu0
  %819 = vmatprep.mubr.bf16.mxu0 %v537
  %820 = vmatmul.mubr.bf16.gmra.mrb[0].mxu0 %v354
  %v821 = vpop.f32.mrb[0].mxu0
  %v822 = vadd.f32 0.0, %v821
  %v823 = vpop.f32.mrb[0].mxu0
  %v824 = vpop.f32.mrb[0].mxu0
  %v825 = vadd.f32 0.0, %v824
  %v826 = vpop.f32.mrb[0].mxu0
  %827 = vdwg.mxu0
  %v828 = vld [vmem:[%s2] sm:$0x1]
  %v830 = vlaneseq
  %v831 = vshrl.u32 %v830, 7
  %v832 = vsub.s32 0, %v831
  %v833 = vrot.slane %v828, %v832
  %v835 = vmul.f32 %v574, %v833
  %v836 = vmul.f32 %v577, %v833
  %v837 = vmul.f32 %v582, %v833
  %v838 = vmul.f32 %v585, %v833
  %v839 = vmul.f32 %v590, %v833
  %v840 = vmul.f32 %v593, %v833
  %v841 = vmul.f32 %v598, %v833
  %v842 = vmul.f32 %v601, %v833
  %v843 = vmul.f32 %v606, %v833
  %v844 = vmul.f32 %v609, %v833
  %v845 = vmul.f32 %v614, %v833
  %v846 = vmul.f32 %v617, %v833
  %v847 = vmul.f32 %v622, %v833
  %v848 = vmul.f32 %v625, %v833
  %v849 = vmul.f32 %v630, %v833
  %v850 = vmul.f32 %v633, %v833
  %v851 = vmul.f32 %v638, %v833
  %v852 = vmul.f32 %v641, %v833
  %v853 = vmul.f32 %v646, %v833
  %v854 = vmul.f32 %v649, %v833
  %v855 = vmul.f32 %v654, %v833
  %v856 = vmul.f32 %v657, %v833
  %v857 = vmul.f32 %v662, %v833
  %v858 = vmul.f32 %v665, %v833
  %v859 = vmul.f32 %v670, %v833
  %v860 = vmul.f32 %v673, %v833
  %v861 = vmul.f32 %v678, %v833
  %v862 = vmul.f32 %v681, %v833
  %v863 = vmul.f32 %v686, %v833
  %v864 = vmul.f32 %v689, %v833
  %v865 = vmul.f32 %v694, %v833
  %v866 = vmul.f32 %v697, %v833
  %v867 = vmul.f32 %v702, %v833
  %v868 = vmul.f32 %v705, %v833
  %v869 = vmul.f32 %v710, %v833
  %v870 = vmul.f32 %v713, %v833
  %v871 = vmul.f32 %v718, %v833
  %v872 = vmul.f32 %v721, %v833
  %v873 = vmul.f32 %v726, %v833
  %v874 = vmul.f32 %v729, %v833
  %v875 = vmul.f32 %v734, %v833
  %v876 = vmul.f32 %v737, %v833
  %v877 = vmul.f32 %v742, %v833
  %v878 = vmul.f32 %v745, %v833
  %v879 = vmul.f32 %v750, %v833
  %v880 = vmul.f32 %v753, %v833
  %v881 = vmul.f32 %v758, %v833
  %v882 = vmul.f32 %v761, %v833
  %v883 = vmul.f32 %v766, %v833
  %v884 = vmul.f32 %v769, %v833
  %v885 = vmul.f32 %v774, %v833
  %v886 = vmul.f32 %v777, %v833
  %v887 = vmul.f32 %v782, %v833
  %v888 = vmul.f32 %v785, %v833
  %v889 = vmul.f32 %v790, %v833
  %v890 = vmul.f32 %v793, %v833
  %v891 = vmul.f32 %v798, %v833
  %v892 = vmul.f32 %v801, %v833
  %v893 = vmul.f32 %v806, %v833
  %v894 = vmul.f32 %v809, %v833
  %v895 = vmul.f32 %v814, %v833
  %v896 = vmul.f32 %v817, %v833
  %v897 = vmul.f32 %v822, %v833
  %v898 = vmul.f32 %v825, %v833
  %v899 = vld [vmem:[%s3] sm:$0x1]
  %v901 = vlaneseq
  %v902 = vshrl.u32 %v901, 7
  %v903 = vsub.s32 0, %v902
  %v904 = vrot.slane %v899, %v903
  %v906 = vadd.f32 %v835, %v904
  %v907 = vadd.f32 %v836, %v904
  %v908 = vadd.f32 %v837, %v904
  %v909 = vadd.f32 %v838, %v904
  %v910 = vadd.f32 %v839, %v904
  %v911 = vadd.f32 %v840, %v904
  %v912 = vadd.f32 %v841, %v904
  %v913 = vadd.f32 %v842, %v904
  %v914 = vadd.f32 %v843, %v904
  %v915 = vadd.f32 %v844, %v904
  %v916 = vadd.f32 %v845, %v904
  %v917 = vadd.f32 %v846, %v904
  %v918 = vadd.f32 %v847, %v904
  %v919 = vadd.f32 %v848, %v904
  %v920 = vadd.f32 %v849, %v904
  %v921 = vadd.f32 %v850, %v904
  %v922 = vadd.f32 %v851, %v904
  %v923 = vadd.f32 %v852, %v904
  %v924 = vadd.f32 %v853, %v904
  %v925 = vadd.f32 %v854, %v904
  %v926 = vadd.f32 %v855, %v904
  %v927 = vadd.f32 %v856, %v904
  %v928 = vadd.f32 %v857, %v904
  %v929 = vadd.f32 %v858, %v904
  %v930 = vadd.f32 %v859, %v904
  %v931 = vadd.f32 %v860, %v904
  %v932 = vadd.f32 %v861, %v904
  %v933 = vadd.f32 %v862, %v904
  %v934 = vadd.f32 %v863, %v904
  %v935 = vadd.f32 %v864, %v904
  %v936 = vadd.f32 %v865, %v904
  %v937 = vadd.f32 %v866, %v904
  %v938 = vadd.f32 %v867, %v904
  %v939 = vadd.f32 %v868, %v904
  %v940 = vadd.f32 %v869, %v904
  %v941 = vadd.f32 %v870, %v904
  %v942 = vadd.f32 %v871, %v904
  %v943 = vadd.f32 %v872, %v904
  %v944 = vadd.f32 %v873, %v904
  %v945 = vadd.f32 %v874, %v904
  %v946 = vadd.f32 %v875, %v904
  %v947 = vadd.f32 %v876, %v904
  %v948 = vadd.f32 %v877, %v904
  %v949 = vadd.f32 %v878, %v904
  %v950 = vadd.f32 %v879, %v904
  %v951 = vadd.f32 %v880, %v904
  %v952 = vadd.f32 %v881, %v904
  %v953 = vadd.f32 %v882, %v904
  %v954 = vadd.f32 %v883, %v904
  %v955 = vadd.f32 %v884, %v904
  %v956 = vadd.f32 %v885, %v904
  %v957 = vadd.f32 %v886, %v904
  %v958 = vadd.f32 %v887, %v904
  %v959 = vadd.f32 %v888, %v904
  %v960 = vadd.f32 %v889, %v904
  %v961 = vadd.f32 %v890, %v904
  %v962 = vadd.f32 %v891, %v904
  %v963 = vadd.f32 %v892, %v904
  %v964 = vadd.f32 %v893, %v904
  %v965 = vadd.f32 %v894, %v904
  %v966 = vadd.f32 %v895, %v904
  %v967 = vadd.f32 %v896, %v904
  %v968 = vadd.f32 %v897, %v904
  %v969 = vadd.f32 %v898, %v904
  %v970 = vmax.f32 %v906, 0.0
  %v971 = vmax.f32 %v907, 0.0
  %v972 = vmax.f32 %v908, 0.0
  %v973 = vmax.f32 %v909, 0.0
  %v974 = vmax.f32 %v910, 0.0
  %v975 = vmax.f32 %v911, 0.0
  %v976 = vmax.f32 %v912, 0.0
  %v977 = vmax.f32 %v913, 0.0
  %v978 = vmax.f32 %v914, 0.0
  %v979 = vmax.f32 %v915, 0.0
  %v980 = vmax.f32 %v916, 0.0
  %v981 = vmax.f32 %v917, 0.0
  %v982 = vmax.f32 %v918, 0.0
  %v983 = vmax.f32 %v919, 0.0
  %v984 = vmax.f32 %v920, 0.0
  %v985 = vmax.f32 %v921, 0.0
  %v986 = vmax.f32 %v922, 0.0
  %v987 = vmax.f32 %v923, 0.0
  %v988 = vmax.f32 %v924, 0.0
  %v989 = vmax.f32 %v925, 0.0
  %v990 = vmax.f32 %v926, 0.0
  %v991 = vmax.f32 %v927, 0.0
  %v992 = vmax.f32 %v928, 0.0
  %v993 = vmax.f32 %v929, 0.0
  %v994 = vmax.f32 %v930, 0.0
  %v995 = vmax.f32 %v931, 0.0
  %v996 = vmax.f32 %v932, 0.0
  %v997 = vmax.f32 %v933, 0.0
  %v998 = vmax.f32 %v934, 0.0
  %v999 = vmax.f32 %v935, 0.0
  %v1000 = vmax.f32 %v936, 0.0
  %v1001 = vmax.f32 %v937, 0.0
  %v1002 = vmax.f32 %v938, 0.0
  %v1003 = vmax.f32 %v939, 0.0
  %v1004 = vmax.f32 %v940, 0.0
  %v1005 = vmax.f32 %v941, 0.0
  %v1006 = vmax.f32 %v942, 0.0
  %v1007 = vmax.f32 %v943, 0.0
  %v1008 = vmax.f32 %v944, 0.0
  %v1009 = vmax.f32 %v945, 0.0
  %v1010 = vmax.f32 %v946, 0.0
  %v1011 = vmax.f32 %v947, 0.0
  %v1012 = vmax.f32 %v948, 0.0
  %v1013 = vmax.f32 %v949, 0.0
  %v1014 = vmax.f32 %v950, 0.0
  %v1015 = vmax.f32 %v951, 0.0
  %v1016 = vmax.f32 %v952, 0.0
  %v1017 = vmax.f32 %v953, 0.0
  %v1018 = vmax.f32 %v954, 0.0
  %v1019 = vmax.f32 %v955, 0.0
  %v1020 = vmax.f32 %v956, 0.0
  %v1021 = vmax.f32 %v957, 0.0
  %v1022 = vmax.f32 %v958, 0.0
  %v1023 = vmax.f32 %v959, 0.0
  %v1024 = vmax.f32 %v960, 0.0
  %v1025 = vmax.f32 %v961, 0.0
  %v1026 = vmax.f32 %v962, 0.0
  %v1027 = vmax.f32 %v963, 0.0
  %v1028 = vmax.f32 %v964, 0.0
  %v1029 = vmax.f32 %v965, 0.0
  %v1030 = vmax.f32 %v966, 0.0
  %v1031 = vmax.f32 %v967, 0.0
  %v1032 = vmax.f32 %v968, 0.0
  %v1033 = vmax.f32 %v969, 0.0
  %v1034 = vpack.c.bf16 %v971, %v970
  %v1035 = vpack.c.bf16 %v973, %v972
  %v1036 = vpack.c.bf16 %v975, %v974
  %v1037 = vpack.c.bf16 %v977, %v976
  %v1038 = vpack.c.bf16 %v979, %v978
  %v1039 = vpack.c.bf16 %v981, %v980
  %v1040 = vpack.c.bf16 %v983, %v982
  %v1041 = vpack.c.bf16 %v985, %v984
  %v1042 = vpack.c.bf16 %v987, %v986
  %v1043 = vpack.c.bf16 %v989, %v988
  %v1044 = vpack.c.bf16 %v991, %v990
  %v1045 = vpack.c.bf16 %v993, %v992
  %v1046 = vpack.c.bf16 %v995, %v994
  %v1047 = vpack.c.bf16 %v997, %v996
  %v1048 = vpack.c.bf16 %v999, %v998
  %v1049 = vpack.c.bf16 %v1001, %v1000
  %v1050 = vpack.c.bf16 %v1003, %v1002
  %v1051 = vpack.c.bf16 %v1005, %v1004
  %v1052 = vpack.c.bf16 %v1007, %v1006
  %v1053 = vpack.c.bf16 %v1009, %v1008
  %v1054 = vpack.c.bf16 %v1011, %v1010
  %v1055 = vpack.c.bf16 %v1013, %v1012
  %v1056 = vpack.c.bf16 %v1015, %v1014
  %v1057 = vpack.c.bf16 %v1017, %v1016
  %v1058 = vpack.c.bf16 %v1019, %v1018
  %v1059 = vpack.c.bf16 %v1021, %v1020
  %v1060 = vpack.c.bf16 %v1023, %v1022
  %v1061 = vpack.c.bf16 %v1025, %v1024
  %v1062 = vpack.c.bf16 %v1027, %v1026
  %v1063 = vpack.c.bf16 %v1029, %v1028
  %v1064 = vpack.c.bf16 %v1031, %v1030
  %v1065 = vpack.c.bf16 %v1033, %v1032
  %v1098 = vunpack.c.l.b16 %v1034
  %v1099 = vunpack.c.h.b16 %v1034
  %v1100 = vunpack.c.l.b16 %v1035
  %v1101 = vunpack.c.h.b16 %v1035
  %v1102 = vunpack.c.l.b16 %v1036
  %v1103 = vunpack.c.h.b16 %v1036
  %v1104 = vunpack.c.l.b16 %v1037
  %v1105 = vunpack.c.h.b16 %v1037
  %v1106 = vunpack.c.l.b16 %v1038
  %v1107 = vunpack.c.h.b16 %v1038
  %v1108 = vunpack.c.l.b16 %v1039
  %v1109 = vunpack.c.h.b16 %v1039
  %v1110 = vunpack.c.l.b16 %v1040
  %v1111 = vunpack.c.h.b16 %v1040
  %v1112 = vunpack.c.l.b16 %v1041
  %v1113 = vunpack.c.h.b16 %v1041
  %v1114 = vunpack.c.l.b16 %v1042
  %v1115 = vunpack.c.h.b16 %v1042
  %v1116 = vunpack.c.l.b16 %v1043
  %v1117 = vunpack.c.h.b16 %v1043
  %v1118 = vunpack.c.l.b16 %v1044
  %v1119 = vunpack.c.h.b16 %v1044
  %v1120 = vunpack.c.l.b16 %v1045
  %v1121 = vunpack.c.h.b16 %v1045
  %v1122 = vunpack.c.l.b16 %v1046
  %v1123 = vunpack.c.h.b16 %v1046
  %v1124 = vunpack.c.l.b16 %v1047
  %v1125 = vunpack.c.h.b16 %v1047
  %v1126 = vunpack.c.l.b16 %v1048
  %v1127 = vunpack.c.h.b16 %v1048
  %v1128 = vunpack.c.l.b16 %v1049
  %v1129 = vunpack.c.h.b16 %v1049
  %v1130 = vunpack.c.l.b16 %v1050
  %v1131 = vunpack.c.h.b16 %v1050
  %v1132 = vunpack.c.l.b16 %v1051
  %v1133 = vunpack.c.h.b16 %v1051
  %v1134 = vunpack.c.l.b16 %v1052
  %v1135 = vunpack.c.h.b16 %v1052
  %v1136 = vunpack.c.l.b16 %v1053
  %v1137 = vunpack.c.h.b16 %v1053
  %v1138 = vunpack.c.l.b16 %v1054
  %v1139 = vunpack.c.h.b16 %v1054
  %v1140 = vunpack.c.l.b16 %v1055
  %v1141 = vunpack.c.h.b16 %v1055
  %v1142 = vunpack.c.l.b16 %v1056
  %v1143 = vunpack.c.h.b16 %v1056
  %v1144 = vunpack.c.l.b16 %v1057
  %v1145 = vunpack.c.h.b16 %v1057
  %v1146 = vunpack.c.l.b16 %v1058
  %v1147 = vunpack.c.h.b16 %v1058
  %v1148 = vunpack.c.l.b16 %v1059
  %v1149 = vunpack.c.h.b16 %v1059
  %v1150 = vunpack.c.l.b16 %v1060
  %v1151 = vunpack.c.h.b16 %v1060
  %v1152 = vunpack.c.l.b16 %v1061
  %v1153 = vunpack.c.h.b16 %v1061
  %v1154 = vunpack.c.l.b16 %v1062
  %v1155 = vunpack.c.h.b16 %v1062
  %v1156 = vunpack.c.l.b16 %v1063
  %v1157 = vunpack.c.h.b16 %v1063
  %v1158 = vunpack.c.l.b16 %v1064
  %v1159 = vunpack.c.h.b16 %v1064
  %v1160 = vunpack.c.l.b16 %v1065
  %v1161 = vunpack.c.h.b16 %v1065
  %v1162 = vpack.c.b16 %v1098, %v1098
  %v1163 = vpack.c.b16 %v1099, %v1099
  %v1164 = vpack.c.b16 %v1100, %v1100
  %v1165 = vpack.c.b16 %v1101, %v1101
  %v1166 = vpack.c.b16 %v1102, %v1102
  %v1167 = vpack.c.b16 %v1103, %v1103
  %v1168 = vpack.c.b16 %v1104, %v1104
  %v1169 = vpack.c.b16 %v1105, %v1105
  %v1170 = vpack.c.b16 %v1106, %v1106
  %v1171 = vpack.c.b16 %v1107, %v1107
  %v1172 = vpack.c.b16 %v1108, %v1108
  %v1173 = vpack.c.b16 %v1109, %v1109
  %v1174 = vpack.c.b16 %v1110, %v1110
  %v1175 = vpack.c.b16 %v1111, %v1111
  %v1176 = vpack.c.b16 %v1112, %v1112
  %v1177 = vpack.c.b16 %v1113, %v1113
  %v1178 = vpack.c.b16 %v1114, %v1114
  %v1179 = vpack.c.b16 %v1115, %v1115
  %v1180 = vpack.c.b16 %v1116, %v1116
  %v1181 = vpack.c.b16 %v1117, %v1117
  %v1182 = vpack.c.b16 %v1118, %v1118
  %v1183 = vpack.c.b16 %v1119, %v1119
  %v1184 = vpack.c.b16 %v1120, %v1120
  %v1185 = vpack.c.b16 %v1121, %v1121
  %v1186 = vpack.c.b16 %v1122, %v1122
  %v1187 = vpack.c.b16 %v1123, %v1123
  %v1188 = vpack.c.b16 %v1124, %v1124
  %v1189 = vpack.c.b16 %v1125, %v1125
  %v1190 = vpack.c.b16 %v1126, %v1126
  %v1191 = vpack.c.b16 %v1127, %v1127
  %v1192 = vpack.c.b16 %v1128, %v1128
  %v1193 = vpack.c.b16 %v1129, %v1129
  %v1194 = vpack.c.b16 %v1130, %v1130
  %v1195 = vpack.c.b16 %v1131, %v1131
  %v1196 = vpack.c.b16 %v1132, %v1132
  %v1197 = vpack.c.b16 %v1133, %v1133
  %v1198 = vpack.c.b16 %v1134, %v1134
  %v1199 = vpack.c.b16 %v1135, %v1135
  %v1200 = vpack.c.b16 %v1136, %v1136
  %v1201 = vpack.c.b16 %v1137, %v1137
  %v1202 = vpack.c.b16 %v1138, %v1138
  %v1203 = vpack.c.b16 %v1139, %v1139
  %v1204 = vpack.c.b16 %v1140, %v1140
  %v1205 = vpack.c.b16 %v1141, %v1141
  %v1206 = vpack.c.b16 %v1142, %v1142
  %v1207 = vpack.c.b16 %v1143, %v1143
  %v1208 = vpack.c.b16 %v1144, %v1144
  %v1209 = vpack.c.b16 %v1145, %v1145
  %v1210 = vpack.c.b16 %v1146, %v1146
  %v1211 = vpack.c.b16 %v1147, %v1147
  %v1212 = vpack.c.b16 %v1148, %v1148
  %v1213 = vpack.c.b16 %v1149, %v1149
  %v1214 = vpack.c.b16 %v1150, %v1150
  %v1215 = vpack.c.b16 %v1151, %v1151
  %v1216 = vpack.c.b16 %v1152, %v1152
  %v1217 = vpack.c.b16 %v1153, %v1153
  %v1218 = vpack.c.b16 %v1154, %v1154
  %v1219 = vpack.c.b16 %v1155, %v1155
  %v1220 = vpack.c.b16 %v1156, %v1156
  %v1221 = vpack.c.b16 %v1157, %v1157
  %v1222 = vpack.c.b16 %v1158, %v1158
  %v1223 = vpack.c.b16 %v1159, %v1159
  %v1224 = vpack.c.b16 %v1160, %v1160
  %v1225 = vpack.c.b16 %v1161, %v1161
  %vm1290 = vcmask 257024
  %1291 = vst.msk [vmem:[%s4] sm:$0xf] %vm1290, %v1162
  %1292 = vst.msk [vmem:[%s4 + $0x4] sm:$0xf] %vm1290, %v1163
  %1293 = vst.msk [vmem:[%s4 + $0x8] sm:$0xf] %vm1290, %v1164
  %1294 = vst.msk [vmem:[%s4 + $0xc] sm:$0xf] %vm1290, %v1165
  %1295 = vst.msk [vmem:[%s4 + $0x10] sm:$0xf] %vm1290, %v1166
  %1296 = vst.msk [vmem:[%s4 + $0x14] sm:$0xf] %vm1290, %v1167
  %1297 = vst.msk [vmem:[%s4 + $0x18] sm:$0xf] %vm1290, %v1168
  %1298 = vst.msk [vmem:[%s4 + $0x1c] sm:$0xf] %vm1290, %v1169
  %1299 = vst.msk [vmem:[%s4 + $0x20] sm:$0xf] %vm1290, %v1170
  %1300 = vst.msk [vmem:[%s4 + $0x24] sm:$0xf] %vm1290, %v1171
  %1301 = vst.msk [vmem:[%s4 + $0x28] sm:$0xf] %vm1290, %v1172
  %1302 = vst.msk [vmem:[%s4 + $0x2c] sm:$0xf] %vm1290, %v1173
  %1303 = vst.msk [vmem:[%s4 + $0x30] sm:$0xf] %vm1290, %v1174
  %1304 = vst.msk [vmem:[%s4 + $0x34] sm:$0xf] %vm1290, %v1175
  %1305 = vst.msk [vmem:[%s4 + $0x38] sm:$0xf] %vm1290, %v1176
  %1306 = vst.msk [vmem:[%s4 + $0x3c] sm:$0xf] %vm1290, %v1177
  %1307 = vst.msk [vmem:[%s4 + $0x40] sm:$0xf] %vm1290, %v1178
  %1308 = vst.msk [vmem:[%s4 + $0x44] sm:$0xf] %vm1290, %v1179
  %1309 = vst.msk [vmem:[%s4 + $0x48] sm:$0xf] %vm1290, %v1180
  %1310 = vst.msk [vmem:[%s4 + $0x4c] sm:$0xf] %vm1290, %v1181
  %1311 = vst.msk [vmem:[%s4 + $0x50] sm:$0xf] %vm1290, %v1182
  %1312 = vst.msk [vmem:[%s4 + $0x54] sm:$0xf] %vm1290, %v1183
  %1313 = vst.msk [vmem:[%s4 + $0x58] sm:$0xf] %vm1290, %v1184
  %1314 = vst.msk [vmem:[%s4 + $0x5c] sm:$0xf] %vm1290, %v1185
  %1315 = vst.msk [vmem:[%s4 + $0x60] sm:$0xf] %vm1290, %v1186
  %1316 = vst.msk [vmem:[%s4 + $0x64] sm:$0xf] %vm1290, %v1187
  %1317 = vst.msk [vmem:[%s4 + $0x68] sm:$0xf] %vm1290, %v1188
  %1318 = vst.msk [vmem:[%s4 + $0x6c] sm:$0xf] %vm1290, %v1189
  %1319 = vst.msk [vmem:[%s4 + $0x70] sm:$0xf] %vm1290, %v1190
  %1320 = vst.msk [vmem:[%s4 + $0x74] sm:$0xf] %vm1290, %v1191
  %1321 = vst.msk [vmem:[%s4 + $0x78] sm:$0xf] %vm1290, %v1192
  %1322 = vst.msk [vmem:[%s4 + $0x7c] sm:$0xf] %vm1290, %v1193
  %1323 = vst.msk [vmem:[%s4 + $0x80] sm:$0xf] %vm1290, %v1194
  %1324 = vst.msk [vmem:[%s4 + $0x84] sm:$0xf] %vm1290, %v1195
  %1325 = vst.msk [vmem:[%s4 + $0x88] sm:$0xf] %vm1290, %v1196
  %1326 = vst.msk [vmem:[%s4 + $0x8c] sm:$0xf] %vm1290, %v1197
  %1327 = vst.msk [vmem:[%s4 + $0x90] sm:$0xf] %vm1290, %v1198
  %1328 = vst.msk [vmem:[%s4 + $0x94] sm:$0xf] %vm1290, %v1199
  %1329 = vst.msk [vmem:[%s4 + $0x98] sm:$0xf] %vm1290, %v1200
  %1330 = vst.msk [vmem:[%s4 + $0x9c] sm:$0xf] %vm1290, %v1201
  %1331 = vst.msk [vmem:[%s4 + $0xa0] sm:$0xf] %vm1290, %v1202
  %1332 = vst.msk [vmem:[%s4 + $0xa4] sm:$0xf] %vm1290, %v1203
  %1333 = vst.msk [vmem:[%s4 + $0xa8] sm:$0xf] %vm1290, %v1204
  %1334 = vst.msk [vmem:[%s4 + $0xac] sm:$0xf] %vm1290, %v1205
  %1335 = vst.msk [vmem:[%s4 + $0xb0] sm:$0xf] %vm1290, %v1206
  %1336 = vst.msk [vmem:[%s4 + $0xb4] sm:$0xf] %vm1290, %v1207
  %1337 = vst.msk [vmem:[%s4 + $0xb8] sm:$0xf] %vm1290, %v1208
  %1338 = vst.msk [vmem:[%s4 + $0xbc] sm:$0xf] %vm1290, %v1209
  %1339 = vst.msk [vmem:[%s4 + $0xc0] sm:$0xf] %vm1290, %v1210
  %1340 = vst.msk [vmem:[%s4 + $0xc4] sm:$0xf] %vm1290, %v1211
  %1341 = vst.msk [vmem:[%s4 + $0xc8] sm:$0xf] %vm1290, %v1212
  %1342 = vst.msk [vmem:[%s4 + $0xcc] sm:$0xf] %vm1290, %v1213
  %1343 = vst.msk [vmem:[%s4 + $0xd0] sm:$0xf] %vm1290, %v1214
  %1344 = vst.msk [vmem:[%s4 + $0xd4] sm:$0xf] %vm1290, %v1215
  %1345 = vst.msk [vmem:[%s4 + $0xd8] sm:$0xf] %vm1290, %v1216
  %1346 = vst.msk [vmem:[%s4 + $0xdc] sm:$0xf] %vm1290, %v1217
  %1347 = vst.msk [vmem:[%s4 + $0xe0] sm:$0xf] %vm1290, %v1218
  %1348 = vst.msk [vmem:[%s4 + $0xe4] sm:$0xf] %vm1290, %v1219
  %1349 = vst.msk [vmem:[%s4 + $0xe8] sm:$0xf] %vm1290, %v1220
  %1350 = vst.msk [vmem:[%s4 + $0xec] sm:$0xf] %vm1290, %v1221
  %1351 = vst.msk [vmem:[%s4 + $0xf0] sm:$0xf] %vm1290, %v1222
  %1352 = vst.msk [vmem:[%s4 + $0xf4] sm:$0xf] %vm1290, %v1223
  %1353 = vst.msk [vmem:[%s4 + $0xf8] sm:$0xf] %vm1290, %v1224
  %1354 = vst.msk [vmem:[%s4 + $0xfc] sm:$0xf] %vm1290, %v1225
  // Predicated region
  $region18: #{kpnet_forward.7} parent=0 // pred_check
    _
  $region19: #{kpnet_forward.7} parent=0 // pred_check_branch
    %1356 = sbr.rel (0) target = $region21
  $region20: #{kpnet_forward.7} parent=0 // pred_region
    _
  $region21: #{kpnet_forward.7} parent=0 // pred_fallthru
    _
  // Predicated region
  $region22: #{kpnet_forward.7} parent=0 // pred_check
    _
  $region23: #{kpnet_forward.7} parent=0 // pred_check_branch
    %1358 = sbr.rel (0) target = $region25
  $region24: #{kpnet_forward.7} parent=0 // pred_region
    _
  $region25: #{kpnet_forward.7} parent=0 // pred_fallthru
    _

// kernel: kpnet_forward.8
$region0: #{kpnet_forward.8}
  #allocation0 [shape = 'u32[]', space=smem, size = 0x4, offset = 0x4, fixed_abs, tag = 'smem constant byte address 0x4 - core index']
  #allocation1 [shape = 'u32[144,128]{1,0:T(1,128)}', space=vmem, size = 0x12000, scoped, tag = 'internal scratch']
  %s0 = inlined_call_operand.vmem [shape: bf16[128,288], index: 0, kind: input, shape index: {}]
  %s1 = inlined_call_operand.vmem [shape: bf16[288,64], index: 1, kind: input, shape index: {}]
  %s2 = inlined_call_operand.vmem [shape: f32[1,64], index: 2, kind: input, shape index: {}]
  %s3 = inlined_call_operand.vmem [shape: f32[1,64], index: 3, kind: input, shape index: {}]
  %s4 = inlined_call_operand.vmem [shape: bf16[128,64], index: 4, kind: output, shape index: {}]
  %s5 = sld [smem:[#allocation0]]
  $region26: #{kpnet_forward.8} parent=0
    _
  %s7 = ssub.s32 1, %s5
  %s8 = scalar_select 0, %s7, %s5
  // Predicated region
  $region2: #{kpnet_forward.8} parent=0 // pred_check
    _
  $region3: #{kpnet_forward.8} parent=0 // pred_check_branch
    %10 = sbr.rel (0) target = $region5
  $region4: #{kpnet_forward.8} parent=0 // pred_region
    _
  $region5: #{kpnet_forward.8} parent=0 // pred_fallthru
    _
  // Predicated region
  $region6: #{kpnet_forward.8} parent=0 // pred_check
    _
  $region7: #{kpnet_forward.8} parent=0 // pred_check_branch
    %12 = sbr.rel (0) target = $region9
  $region8: #{kpnet_forward.8} parent=0 // pred_region
    _
  $region9: #{kpnet_forward.8} parent=0 // pred_fallthru
    _
  // Predicated region
  $region10: #{kpnet_forward.8} parent=0 // pred_check
    _
  $region11: #{kpnet_forward.8} parent=0 // pred_check_branch
    %14 = sbr.rel (0) target = $region13
  $region12: #{kpnet_forward.8} parent=0 // pred_region
    _
  $region13: #{kpnet_forward.8} parent=0 // pred_fallthru
    _
  // Predicated region
  $region14: #{kpnet_forward.8} parent=0 // pred_check
    _
  $region15: #{kpnet_forward.8} parent=0 // pred_check_branch
    %16 = sbr.rel (0) target = $region17
  $region16: #{kpnet_forward.8} parent=0 // pred_region
    _
  $region17: #{kpnet_forward.8} parent=0 // pred_fallthru
    _
  %v18 = vld [vmem:[%s0] sm:$0xff]
  %v19 = vld [vmem:[%s0 + $0x8] sm:$0xf]
  %v20 = vld [vmem:[%s0 + $0xc] sm:$0xff]
  %v21 = vld [vmem:[%s0 + $0x14] sm:$0xf]
  %v22 = vld [vmem:[%s0 + $0x18] sm:$0xff]
  %v23 = vld [vmem:[%s0 + $0x20] sm:$0xf]
  %v24 = vld [vmem:[%s0 + $0x24] sm:$0xff]
  %v25 = vld [vmem:[%s0 + $0x2c] sm:$0xf]
  %v26 = vld [vmem:[%s0 + $0x30] sm:$0xff]
  %v27 = vld [vmem:[%s0 + $0x38] sm:$0xf]
  %v28 = vld [vmem:[%s0 + $0x3c] sm:$0xff]
  %v29 = vld [vmem:[%s0 + $0x44] sm:$0xf]
  %v30 = vld [vmem:[%s0 + $0x48] sm:$0xff]
  %v31 = vld [vmem:[%s0 + $0x50] sm:$0xf]
  %v32 = vld [vmem:[%s0 + $0x54] sm:$0xff]
  %v33 = vld [vmem:[%s0 + $0x5c] sm:$0xf]
  %v34 = vld [vmem:[%s0 + $0x60] sm:$0xff]
  %v35 = vld [vmem:[%s0 + $0x68] sm:$0xf]
  %v36 = vld [vmem:[%s0 + $0x6c] sm:$0xff]
  %v37 = vld [vmem:[%s0 + $0x74] sm:$0xf]
  %v38 = vld [vmem:[%s0 + $0x78] sm:$0xff]
  %v39 = vld [vmem:[%s0 + $0x80] sm:$0xf]
  %v40 = vld [vmem:[%s0 + $0x84] sm:$0xff]
  %v41 = vld [vmem:[%s0 + $0x8c] sm:$0xf]
  %v42 = vld [vmem:[%s0 + $0x90] sm:$0xff]
  %v43 = vld [vmem:[%s0 + $0x98] sm:$0xf]
  %v44 = vld [vmem:[%s0 + $0x9c] sm:$0xff]
  %v45 = vld [vmem:[%s0 + $0xa4] sm:$0xf]
  %v46 = vld [vmem:[%s0 + $0xa8] sm:$0xff]
  %v47 = vld [vmem:[%s0 + $0xb0] sm:$0xf]
  %v48 = vld [vmem:[%s0 + $0xb4] sm:$0xff]
  %v49 = vld [vmem:[%s0 + $0xbc] sm:$0xf]
  %v50 = vld [vmem:[%s1] sm:$0xf]
  %v51 = vld [vmem:[%s1 + $0x4] sm:$0xf]
  %v52 = vld [vmem:[%s1 + $0x8] sm:$0xf]
  %v53 = vld [vmem:[%s1 + $0xc] sm:$0xf]
  %v54 = vld [vmem:[%s1 + $0x10] sm:$0xf]
  %v55 = vld [vmem:[%s1 + $0x14] sm:$0xf]
  %v56 = vld [vmem:[%s1 + $0x18] sm:$0xf]
  %v57 = vld [vmem:[%s1 + $0x1c] sm:$0xf]
  %v58 = vld [vmem:[%s1 + $0x20] sm:$0xf]
  %v59 = vld [vmem:[%s1 + $0x24] sm:$0xf]
  %v60 = vld [vmem:[%s1 + $0x28] sm:$0xf]
  %v61 = vld [vmem:[%s1 + $0x2c] sm:$0xf]
  %v62 = vld [vmem:[%s1 + $0x30] sm:$0xf]
  %v63 = vld [vmem:[%s1 + $0x34] sm:$0xf]
  %v64 = vld [vmem:[%s1 + $0x38] sm:$0xf]
  %v65 = vld [vmem:[%s1 + $0x3c] sm:$0xf]
  %v66 = vld [vmem:[%s1 + $0x40] sm:$0xf]
  %v67 = vld [vmem:[%s1 + $0x44] sm:$0xf]
  %v68 = vld [vmem:[%s1 + $0x48] sm:$0xf]
  %v69 = vld [vmem:[%s1 + $0x4c] sm:$0xf]
  %v70 = vld [vmem:[%s1 + $0x50] sm:$0xf]
  %v71 = vld [vmem:[%s1 + $0x54] sm:$0xf]
  %v72 = vld [vmem:[%s1 + $0x58] sm:$0xf]
  %v73 = vld [vmem:[%s1 + $0x5c] sm:$0xf]
  %v74 = vld [vmem:[%s1 + $0x60] sm:$0xf]
  %v75 = vld [vmem:[%s1 + $0x64] sm:$0xf]
  %v76 = vld [vmem:[%s1 + $0x68] sm:$0xf]
  %v77 = vld [vmem:[%s1 + $0x6c] sm:$0xf]
  %v78 = vld [vmem:[%s1 + $0x70] sm:$0xf]
  %v79 = vld [vmem:[%s1 + $0x74] sm:$0xf]
  %v80 = vld [vmem:[%s1 + $0x78] sm:$0xf]
  %v81 = vld [vmem:[%s1 + $0x7c] sm:$0xf]
  %v82 = vld [vmem:[%s1 + $0x80] sm:$0xf]
  %v83 = vld [vmem:[%s1 + $0x84] sm:$0xf]
  %v84 = vld [vmem:[%s1 + $0x88] sm:$0xf]
  %v85 = vld [vmem:[%s1 + $0x8c] sm:$0xf]
  %v118 = vunpack.c.l.b16 %v18
  %v119 = vunpack.c.h.b16 %v18
  %v120 = vunpack.c.l.b16 %v19
  %v121 = vunpack.c.l.b16 %v20
  %v122 = vunpack.c.h.b16 %v20
  %v123 = vunpack.c.l.b16 %v21
  %v124 = vunpack.c.l.b16 %v22
  %v125 = vunpack.c.h.b16 %v22
  %v126 = vunpack.c.l.b16 %v23
  %v127 = vunpack.c.l.b16 %v24
  %v128 = vunpack.c.h.b16 %v24
  %v129 = vunpack.c.l.b16 %v25
  %v130 = vunpack.c.l.b16 %v26
  %v131 = vunpack.c.h.b16 %v26
  %v132 = vunpack.c.l.b16 %v27
  %v133 = vunpack.c.l.b16 %v28
  %v134 = vunpack.c.h.b16 %v28
  %v135 = vunpack.c.l.b16 %v29
  %v136 = vunpack.c.l.b16 %v30
  %v137 = vunpack.c.h.b16 %v30
  %v138 = vunpack.c.l.b16 %v31
  %v139 = vunpack.c.l.b16 %v32
  %v140 = vunpack.c.h.b16 %v32
  %v141 = vunpack.c.l.b16 %v33
  %v142 = vunpack.c.l.b16 %v34
  %v143 = vunpack.c.h.b16 %v34
  %v144 = vunpack.c.l.b16 %v35
  %v145 = vunpack.c.l.b16 %v36
  %v146 = vunpack.c.h.b16 %v36
  %v147 = vunpack.c.l.b16 %v37
  %v148 = vunpack.c.l.b16 %v38
  %v149 = vunpack.c.h.b16 %v38
  %v150 = vunpack.c.l.b16 %v39
  %v151 = vunpack.c.l.b16 %v40
  %v152 = vunpack.c.h.b16 %v40
  %v153 = vunpack.c.l.b16 %v41
  %v154 = vunpack.c.l.b16 %v42
  %v155 = vunpack.c.h.b16 %v42
  %v156 = vunpack.c.l.b16 %v43
  %v157 = vunpack.c.l.b16 %v44
  %v158 = vunpack.c.h.b16 %v44
  %v159 = vunpack.c.l.b16 %v45
  %v160 = vunpack.c.l.b16 %v46
  %v161 = vunpack.c.h.b16 %v46
  %v162 = vunpack.c.l.b16 %v47
  %v163 = vunpack.c.l.b16 %v48
  %v164 = vunpack.c.h.b16 %v48
  %v165 = vunpack.c.l.b16 %v49
  %v166 = vpack.c.b16 %v121, %v118
  %v167 = vpack.c.b16 %v122, %v119
  %v168 = vpack.c.b16 %v123, %v120
  %v169 = vpack.c.b16 %v127, %v124
  %v170 = vpack.c.b16 %v128, %v125
  %v171 = vpack.c.b16 %v129, %v126
  %v172 = vpack.c.b16 %v133, %v130
  %v173 = vpack.c.b16 %v134, %v131
  %v174 = vpack.c.b16 %v135, %v132
  %v175 = vpack.c.b16 %v139, %v136
  %v176 = vpack.c.b16 %v140, %v137
  %v177 = vpack.c.b16 %v141, %v138
  %v178 = vpack.c.b16 %v145, %v142
  %v179 = vpack.c.b16 %v146, %v143
  %v180 = vpack.c.b16 %v147, %v144
  %v181 = vpack.c.b16 %v151, %v148
  %v182 = vpack.c.b16 %v152, %v149
  %v183 = vpack.c.b16 %v153, %v150
  %v184 = vpack.c.b16 %v157, %v154
  %v185 = vpack.c.b16 %v158, %v155
  %v186 = vpack.c.b16 %v159, %v156
  %v187 = vpack.c.b16 %v163, %v160
  %v188 = vpack.c.b16 %v164, %v161
  %v189 = vpack.c.b16 %v165, %v162
  %v242 = vunpack.c.l.b16 %v50
  %v243 = vunpack.c.l.b16 %v51
  %v244 = vunpack.c.l.b16 %v52
  %v245 = vunpack.c.l.b16 %v53
  %v246 = vunpack.c.l.b16 %v54
  %v247 = vunpack.c.l.b16 %v55
  %v248 = vunpack.c.l.b16 %v56
  %v249 = vunpack.c.l.b16 %v57
  %v250 = vunpack.c.l.b16 %v58
  %v251 = vunpack.c.l.b16 %v59
  %v252 = vunpack.c.l.b16 %v60
  %v253 = vunpack.c.l.b16 %v61
  %v254 = vunpack.c.l.b16 %v62
  %v255 = vunpack.c.l.b16 %v63
  %v256 = vunpack.c.l.b16 %v64
  %v257 = vunpack.c.l.b16 %v65
  %v258 = vunpack.c.l.b16 %v66
  %v259 = vunpack.c.l.b16 %v67
  %v260 = vunpack.c.l.b16 %v68
  %v261 = vunpack.c.l.b16 %v69
  %v262 = vunpack.c.l.b16 %v70
  %v263 = vunpack.c.l.b16 %v71
  %v264 = vunpack.c.l.b16 %v72
  %v265 = vunpack.c.l.b16 %v73
  %v266 = vunpack.c.l.b16 %v74
  %v267 = vunpack.c.l.b16 %v75
  %v268 = vunpack.c.l.b16 %v76
  %v269 = vunpack.c.l.b16 %v77
  %v270 = vunpack.c.l.b16 %v78
  %v271 = vunpack.c.l.b16 %v79
  %v272 = vunpack.c.l.b16 %v80
  %v273 = vunpack.c.l.b16 %v81
  %v274 = vunpack.c.l.b16 %v82
  %v275 = vunpack.c.l.b16 %v83
  %v276 = vunpack.c.l.b16 %v84
  %v277 = vunpack.c.l.b16 %v85
  %v278 = vpack.c.b16 %v243, %v242
  %v279 = vpack.c.b16 %v245, %v244
  %v280 = vpack.c.b16 %v247, %v246
  %v281 = vpack.c.b16 %v249, %v248
  %v282 = vpack.c.b16 %v251, %v250
  %v283 = vpack.c.b16 %v253, %v252
  %v284 = vpack.c.b16 %v255, %v254
  %v285 = vpack.c.b16 %v257, %v256
  %v286 = vpack.c.b16 %v259, %v258
  %v287 = vpack.c.b16 %v261, %v260
  %v288 = vpack.c.b16 %v263, %v262
  %v289 = vpack.c.b16 %v265, %v264
  %v290 = vpack.c.b16 %v267, %v266
  %v291 = vpack.c.b16 %v269, %v268
  %v292 = vpack.c.b16 %v271, %v270
  %v293 = vpack.c.b16 %v273, %v272
  %v294 = vpack.c.b16 %v275, %v274
  %v295 = vpack.c.b16 %v277, %v276
  %vm314 = vcmask 261120
  %v316 = vsel %vm314, %v168, 0
  %v319 = vsel %vm314, %v171, 0
  %v322 = vsel %vm314, %v174, 0
  %v325 = vsel %vm314, %v177, 0
  %v328 = vsel %vm314, %v180, 0
  %v331 = vsel %vm314, %v183, 0
  %v334 = vsel %vm314, %v186, 0
  %v337 = vsel %vm314, %v189, 0
  %339 = vmatprep.subr.bf16.mxu0 0
  %340 = vmatpush1.bf16.msra.mxu0 %v278
  %341 = vmatprep.subr.bf16.mxu0 0
  %342 = vmatpush1.bf16.msra.mxu0 %v279
  %343 = vmatprep.subr.bf16.mxu0 0
  %344 = vmatpush1.bf16.msra.mxu0 %v280
  %345 = vmatprep.subr.bf16.mxu0 0
  %346 = vmatpush1.bf16.msra.mxu0 %v281
  %347 = vmatprep.subr.bf16.mxu0 0
  %348 = vmatpush1.bf16.msra.mxu0 %v282
  %349 = vmatprep.subr.bf16.mxu0 0
  %350 = vmatpush1.bf16.msra.mxu0 %v283
  %351 = vmatprep.subr.bf16.mxu0 0
  %352 = vmatpush1.bf16.msra.mxu0 %v284
  %353 = vmatprep.subr.bf16.mxu0 0
  %354 = vmatpush1.bf16.msra.mxu0 %v285
  %355 = vmatprep.subr.bf16.mxu0 0
  %356 = vmatpush1.bf16.msra.mxu0 %v286
  %357 = vmatprep.subr.bf16.mxu0 0
  %358 = vmatpush1.bf16.msra.mxu0 %v287
  %359 = vmatprep.subr.bf16.mxu0 0
  %360 = vmatpush1.bf16.msra.mxu0 %v288
  %361 = vmatprep.subr.bf16.mxu0 0
  %362 = vmatpush1.bf16.msra.mxu0 %v289
  %363 = vmatprep.subr.bf16.mxu0 0
  %364 = vmatpush1.bf16.msra.mxu0 %v290
  %365 = vmatprep.subr.bf16.mxu0 0
  %366 = vmatpush1.bf16.msra.mxu0 %v291
  %367 = vmatprep.subr.bf16.mxu0 0
  %368 = vmatpush1.bf16.msra.mxu0 %v292
  %369 = vmatprep.subr.bf16.mxu0 0
  %370 = vmatpush1.bf16.msra.mxu0 %v293
  %371 = vmatprep.mubr.bf16.mxu0 %v167
  %372 = vmatmul.mubr.bf16.gmra.mrb[0].mxu0 %v166
  %v373 = vpop.f32.mrb[0].mxu0
  %v374 = vadd.f32 0.0, %v373
  %v375 = vpop.f32.mrb[0].mxu0
  %v376 = vpop.f32.mrb[0].mxu0
  %v377 = vadd.f32 0.0, %v376
  %v378 = vpop.f32.mrb[0].mxu0
  %379 = vmatprep.mubr.bf16.mxu0 %v170
  %380 = vmatmul.mubr.bf16.gmra.mrb[0].mxu0 %v169
  %v381 = vpop.f32.mrb[0].mxu0
  %v382 = vadd.f32 0.0, %v381
  %v383 = vpop.f32.mrb[0].mxu0
  %v384 = vpop.f32.mrb[0].mxu0
  %v385 = vadd.f32 0.0, %v384
  %v386 = vpop.f32.mrb[0].mxu0
  %387 = vmatprep.mubr.bf16.mxu0 %v173
  %388 = vmatmul.mubr.bf16.gmra.mrb[0].mxu0 %v172
  %v389 = vpop.f32.mrb[0].mxu0
  %v390 = vadd.f32 0.0, %v389
  %v391 = vpop.f32.mrb[0].mxu0
  %v392 = vpop.f32.mrb[0].mxu0
  %v393 = vadd.f32 0.0, %v392
  %v394 = vpop.f32.mrb[0].mxu0
  %395 = vmatprep.mubr.bf16.mxu0 %v176
  %396 = vmatmul.mubr.bf16.gmra.mrb[0].mxu0 %v175
  %v397 = vpop.f32.mrb[0].mxu0
  %v398 = vadd.f32 0.0, %v397
  %v399 = vpop.f32.mrb[0].mxu0
  %v400 = vpop.f32.mrb[0].mxu0
  %v401 = vadd.f32 0.0, %v400
  %v402 = vpop.f32.mrb[0].mxu0
  %403 = vmatprep.mubr.bf16.mxu0 %v179
  %404 = vmatmul.mubr.bf16.gmra.mrb[0].mxu0 %v178
  %v405 = vpop.f32.mrb[0].mxu0
  %v406 = vadd.f32 0.0, %v405
  %v407 = vpop.f32.mrb[0].mxu0
  %v408 = vpop.f32.mrb[0].mxu0
  %v409 = vadd.f32 0.0, %v408
  %v410 = vpop.f32.mrb[0].mxu0
  %411 = vmatprep.mubr.bf16.mxu0 %v182
  %412 = vmatmul.mubr.bf16.gmra.mrb[0].mxu0 %v181
  %v413 = vpop.f32.mrb[0].mxu0
  %v414 = vadd.f32 0.0, %v413
  %v415 = vpop.f32.mrb[0].mxu0
  %v416 = vpop.f32.mrb[0].mxu0
  %v417 = vadd.f32 0.0, %v416
  %v418 = vpop.f32.mrb[0].mxu0
  %419 = vmatprep.mubr.bf16.mxu0 %v185
  %420 = vmatmul.mubr.bf16.gmra.mrb[0].mxu0 %v184
  %v421 = vpop.f32.mrb[0].mxu0
  %v422 = vadd.f32 0.0, %v421
  %v423 = vpop.f32.mrb[0].mxu0
  %v424 = vpop.f32.mrb[0].mxu0
  %v425 = vadd.f32 0.0, %v424
  %v426 = vpop.f32.mrb[0].mxu0
  %427 = vmatprep.mubr.bf16.mxu0 %v188
  %428 = vmatmul.mubr.bf16.gmra.mrb[0].mxu0 %v187
  %v429 = vpop.f32.mrb[0].mxu0
  %v430 = vadd.f32 0.0, %v429
  %v431 = vpop.f32.mrb[0].mxu0
  %v432 = vpop.f32.mrb[0].mxu0
  %v433 = vadd.f32 0.0, %v432
  %v434 = vpop.f32.mrb[0].mxu0
  %435 = vdwg.mxu0
  %436 = vmatprep.subr.bf16.mxu0 0
  %437 = vmatpush1.bf16.msra.mxu0 %v294
  %438 = vmatprep.subr.bf16.mxu0 0
  %439 = vmatpush1.bf16.msra.mxu0 %v295
  %440 = vmatprep.subr.bf16.mxu0 0
  %441 = vmatpush1.bf16.msra.mxu0 0
  %442 = vmatprep.subr.bf16.mxu0 0
  %443 = vmatpush1.bf16.msra.mxu0 0
  %444 = vmatprep.subr.bf16.mxu0 0
  %445 = vmatpush1.bf16.msra.mxu0 0
  %446 = vmatprep.subr.bf16.mxu0 0
  %447 = vmatpush1.bf16.msra.mxu0 0
  %448 = vmatprep.subr.bf16.mxu0 0
  %449 = vmatpush1.bf16.msra.mxu0 0
  %450 = vmatprep.subr.bf16.mxu0 0
  %451 = vmatpush1.bf16.msra.mxu0 0
  %452 = vmatprep.subr.bf16.mxu0 0
  %453 = vmatpush1.bf16.msra.mxu0 0
  %454 = vmatprep.subr.bf16.mxu0 0
  %455 = vmatpush1.bf16.msra.mxu0 0
  %456 = vmatprep.subr.bf16.mxu0 0
  %457 = vmatpush1.bf16.msra.mxu0 0
  %458 = vmatprep.subr.bf16.mxu0 0
  %459 = vmatpush1.bf16.msra.mxu0 0
  %460 = vmatprep.subr.bf16.mxu0 0
  %461 = vmatpush1.bf16.msra.mxu0 0
  %462 = vmatprep.subr.bf16.mxu0 0
  %463 = vmatpush1.bf16.msra.mxu0 0
  %464 = vmatprep.subr.bf16.mxu0 0
  %465 = vmatpush1.bf16.msra.mxu0 0
  %466 = vmatprep.subr.bf16.mxu0 0
  %467 = vmatpush1.bf16.msra.mxu0 0
  %468 = vmatprep.mubr.bf16.mxu0 0
  %469 = vmatmul.mubr.bf16.gmra.mrb[0].mxu0 %v316
  %v470 = vpop.f32.mrb[0].mxu0
  %v471 = vadd.f32 %v374, %v470
  %v472 = vpop.f32.mrb[0].mxu0
  %v473 = vpop.f32.mrb[0].mxu0
  %v474 = vadd.f32 %v377, %v473
  %v475 = vpop.f32.mrb[0].mxu0
  %476 = vmatprep.mubr.bf16.mxu0 0
  %477 = vmatmul.mubr.bf16.gmra.mrb[0].mxu0 %v319
  %v478 = vpop.f32.mrb[0].mxu0
  %v479 = vadd.f32 %v382, %v478
  %v480 = vpop.f32.mrb[0].mxu0
  %v481 = vpop.f32.mrb[0].mxu0
  %v482 = vadd.f32 %v385, %v481
  %v483 = vpop.f32.mrb[0].mxu0
  %484 = vmatprep.mubr.bf16.mxu0 0
  %485 = vmatmul.mubr.bf16.gmra.mrb[0].mxu0 %v322
  %v486 = vpop.f32.mrb[0].mxu0
  %v487 = vadd.f32 %v390, %v486
  %v488 = vpop.f32.mrb[0].mxu0
  %v489 = vpop.f32.mrb[0].mxu0
  %v490 = vadd.f32 %v393, %v489
  %v491 = vpop.f32.mrb[0].mxu0
  %492 = vmatprep.mubr.bf16.mxu0 0
  %493 = vmatmul.mubr.bf16.gmra.mrb[0].mxu0 %v325
  %v494 = vpop.f32.mrb[0].mxu0
  %v495 = vadd.f32 %v398, %v494
  %v496 = vpop.f32.mrb[0].mxu0
  %v497 = vpop.f32.mrb[0].mxu0
  %v498 = vadd.f32 %v401, %v497
  %v499 = vpop.f32.mrb[0].mxu0
  %500 = vmatprep.mubr.bf16.mxu0 0
  %501 = vmatmul.mubr.bf16.gmra.mrb[0].mxu0 %v328
  %v502 = vpop.f32.mrb[0].mxu0
  %v503 = vadd.f32 %v406, %v502
  %v504 = vpop.f32.mrb[0].mxu0
  %v505 = vpop.f32.mrb[0].mxu0
  %v506 = vadd.f32 %v409, %v505
  %v507 = vpop.f32.mrb[0].mxu0
  %508 = vmatprep.mubr.bf16.mxu0 0
  %509 = vmatmul.mubr.bf16.gmra.mrb[0].mxu0 %v331
  %v510 = vpop.f32.mrb[0].mxu0
  %v511 = vadd.f32 %v414, %v510
  %v512 = vpop.f32.mrb[0].mxu0
  %v513 = vpop.f32.mrb[0].mxu0
  %v514 = vadd.f32 %v417, %v513
  %v515 = vpop.f32.mrb[0].mxu0
  %516 = vmatprep.mubr.bf16.mxu0 0
  %517 = vmatmul.mubr.bf16.gmra.mrb[0].mxu0 %v334
  %v518 = vpop.f32.mrb[0].mxu0
  %v519 = vadd.f32 %v422, %v518
  %v520 = vpop.f32.mrb[0].mxu0
  %v521 = vpop.f32.mrb[0].mxu0
  %v522 = vadd.f32 %v425, %v521
  %v523 = vpop.f32.mrb[0].mxu0
  %524 = vmatprep.mubr.bf16.mxu0 0
  %525 = vmatmul.mubr.bf16.gmra.mrb[0].mxu0 %v337
  %v526 = vpop.f32.mrb[0].mxu0
  %v527 = vadd.f32 %v430, %v526
  %v528 = vpop.f32.mrb[0].mxu0
  %v529 = vpop.f32.mrb[0].mxu0
  %v530 = vadd.f32 %v433, %v529
  %v531 = vpop.f32.mrb[0].mxu0
  %532 = vdwg.mxu0
  %v533 = vld [vmem:[%s2] sm:$0x1]
  %v535 = vlaneseq
  %v536 = vshrl.u32 %v535, 7
  %v537 = vsub.s32 0, %v536
  %v538 = vrot.slane %v533, %v537
  %v540 = vmul.f32 %v471, %v538
  %v541 = vmul.f32 %v474, %v538
  %v542 = vmul.f32 %v479, %v538
  %v543 = vmul.f32 %v482, %v538
  %v544 = vmul.f32 %v487, %v538
  %v545 = vmul.f32 %v490, %v538
  %v546 = vmul.f32 %v495, %v538
  %v547 = vmul.f32 %v498, %v538
  %v548 = vmul.f32 %v503, %v538
  %v549 = vmul.f32 %v506, %v538
  %v550 = vmul.f32 %v511, %v538
  %v551 = vmul.f32 %v514, %v538
  %v552 = vmul.f32 %v519, %v538
  %v553 = vmul.f32 %v522, %v538
  %v554 = vmul.f32 %v527, %v538
  %v555 = vmul.f32 %v530, %v538
  %v556 = vld [vmem:[%s3] sm:$0x1]
  %v558 = vlaneseq
  %v559 = vshrl.u32 %v558, 7
  %v560 = vsub.s32 0, %v559
  %v561 = vrot.slane %v556, %v560
  %v563 = vadd.f32 %v540, %v561
  %v564 = vadd.f32 %v541, %v561
  %v565 = vadd.f32 %v542, %v561
  %v566 = vadd.f32 %v543, %v561
  %v567 = vadd.f32 %v544, %v561
  %v568 = vadd.f32 %v545, %v561
  %v569 = vadd.f32 %v546, %v561
  %v570 = vadd.f32 %v547, %v561
  %v571 = vadd.f32 %v548, %v561
  %v572 = vadd.f32 %v549, %v561
  %v573 = vadd.f32 %v550, %v561
  %v574 = vadd.f32 %v551, %v561
  %v575 = vadd.f32 %v552, %v561
  %v576 = vadd.f32 %v553, %v561
  %v577 = vadd.f32 %v554, %v561
  %v578 = vadd.f32 %v555, %v561
  %v579 = vmax.f32 %v563, 0.0
  %v580 = vmax.f32 %v564, 0.0
  %v581 = vmax.f32 %v565, 0.0
  %v582 = vmax.f32 %v566, 0.0
  %v583 = vmax.f32 %v567, 0.0
  %v584 = vmax.f32 %v568, 0.0
  %v585 = vmax.f32 %v569, 0.0
  %v586 = vmax.f32 %v570, 0.0
  %v587 = vmax.f32 %v571, 0.0
  %v588 = vmax.f32 %v572, 0.0
  %v589 = vmax.f32 %v573, 0.0
  %v590 = vmax.f32 %v574, 0.0
  %v591 = vmax.f32 %v575, 0.0
  %v592 = vmax.f32 %v576, 0.0
  %v593 = vmax.f32 %v577, 0.0
  %v594 = vmax.f32 %v578, 0.0
  %v595 = vpack.c.bf16 %v580, %v579
  %v596 = vpack.c.bf16 %v582, %v581
  %v597 = vpack.c.bf16 %v584, %v583
  %v598 = vpack.c.bf16 %v586, %v585
  %v599 = vpack.c.bf16 %v588, %v587
  %v600 = vpack.c.bf16 %v590, %v589
  %v601 = vpack.c.bf16 %v592, %v591
  %v602 = vpack.c.bf16 %v594, %v593
  %v611 = vunpack.c.l.b16 %v595
  %v612 = vunpack.c.h.b16 %v595
  %v613 = vunpack.c.l.b16 %v596
  %v614 = vunpack.c.h.b16 %v596
  %v615 = vunpack.c.l.b16 %v597
  %v616 = vunpack.c.h.b16 %v597
  %v617 = vunpack.c.l.b16 %v598
  %v618 = vunpack.c.h.b16 %v598
  %v619 = vunpack.c.l.b16 %v599
  %v620 = vunpack.c.h.b16 %v599
  %v621 = vunpack.c.l.b16 %v600
  %v622 = vunpack.c.h.b16 %v600
  %v623 = vunpack.c.l.b16 %v601
  %v624 = vunpack.c.h.b16 %v601
  %v625 = vunpack.c.l.b16 %v602
  %v626 = vunpack.c.h.b16 %v602
  %v627 = vpack.c.b16 %v611, %v611
  %v628 = vpack.c.b16 %v612, %v612
  %v629 = vpack.c.b16 %v613, %v613
  %v630 = vpack.c.b16 %v614, %v614
  %v631 = vpack.c.b16 %v615, %v615
  %v632 = vpack.c.b16 %v616, %v616
  %v633 = vpack.c.b16 %v617, %v617
  %v634 = vpack.c.b16 %v618, %v618
  %v635 = vpack.c.b16 %v619, %v619
  %v636 = vpack.c.b16 %v620, %v620
  %v637 = vpack.c.b16 %v621, %v621
  %v638 = vpack.c.b16 %v622, %v622
  %v639 = vpack.c.b16 %v623, %v623
  %v640 = vpack.c.b16 %v624, %v624
  %v641 = vpack.c.b16 %v625, %v625
  %v642 = vpack.c.b16 %v626, %v626
  %vm659 = vcmask 519168
  %660 = vst.msk [vmem:[%s4] sm:$0xf] %vm659, %v627
  %661 = vst.msk [vmem:[%s4 + $0x4] sm:$0xf] %vm659, %v628
  %662 = vst.msk [vmem:[%s4 + $0x8] sm:$0xf] %vm659, %v629
  %663 = vst.msk [vmem:[%s4 + $0xc] sm:$0xf] %vm659, %v630
  %664 = vst.msk [vmem:[%s4 + $0x10] sm:$0xf] %vm659, %v631
  %665 = vst.msk [vmem:[%s4 + $0x14] sm:$0xf] %vm659, %v632
  %666 = vst.msk [vmem:[%s4 + $0x18] sm:$0xf] %vm659, %v633
  %667 = vst.msk [vmem:[%s4 + $0x1c] sm:$0xf] %vm659, %v634
  %668 = vst.msk [vmem:[%s4 + $0x20] sm:$0xf] %vm659, %v635
  %669 = vst.msk [vmem:[%s4 + $0x24] sm:$0xf] %vm659, %v636
  %670 = vst.msk [vmem:[%s4 + $0x28] sm:$0xf] %vm659, %v637
  %671 = vst.msk [vmem:[%s4 + $0x2c] sm:$0xf] %vm659, %v638
  %672 = vst.msk [vmem:[%s4 + $0x30] sm:$0xf] %vm659, %v639
  %673 = vst.msk [vmem:[%s4 + $0x34] sm:$0xf] %vm659, %v640
  %674 = vst.msk [vmem:[%s4 + $0x38] sm:$0xf] %vm659, %v641
  %675 = vst.msk [vmem:[%s4 + $0x3c] sm:$0xf] %vm659, %v642
  // Predicated region
  $region18: #{kpnet_forward.8} parent=0 // pred_check
    _
  $region19: #{kpnet_forward.8} parent=0 // pred_check_branch
    %677 = sbr.rel (0) target = $region21
  $region20: #{kpnet_forward.8} parent=0 // pred_region
    _
  $region21: #{kpnet_forward.8} parent=0 // pred_fallthru
    _
  // Predicated region
  $region22: #{kpnet_forward.8} parent=0 // pred_check
    _
  $region23: #{kpnet_forward.8} parent=0 // pred_check_branch
    %679 = sbr.rel (0) target = $region25
  $region24: #{kpnet_forward.8} parent=0 // pred_region
    _
  $region25: #{kpnet_forward.8} parent=0 // pred_fallthru
    _

// kernel: kpnet_forward.9
$region0: #{kpnet_forward.9}
  #allocation0 [shape = 'u32[]', space=smem, size = 0x4, offset = 0x4, fixed_abs, tag = 'smem constant byte address 0x4 - core index']
  #allocation1 [shape = 'u32[144,128]{1,0:T(1,128)}', space=vmem, size = 0x12000, scoped, tag = 'internal scratch']
  %s0 = inlined_call_operand.vmem [shape: bf16[32,576], index: 0, kind: input, shape index: {}]
  %s1 = inlined_call_operand.vmem [shape: bf16[576,128], index: 1, kind: input, shape index: {}]
  %s2 = inlined_call_operand.vmem [shape: f32[1,128], index: 2, kind: input, shape index: {}]
  %s3 = inlined_call_operand.vmem [shape: f32[1,128], index: 3, kind: input, shape index: {}]
  %s4 = inlined_call_operand.vmem [shape: bf16[32,128], index: 4, kind: output, shape index: {}]
  %s5 = sld [smem:[#allocation0]]
  $region26: #{kpnet_forward.9} parent=0
    _
  %s7 = ssub.s32 1, %s5
  %s8 = scalar_select 0, %s7, %s5
  // Predicated region
  $region2: #{kpnet_forward.9} parent=0 // pred_check
    _
  $region3: #{kpnet_forward.9} parent=0 // pred_check_branch
    %10 = sbr.rel (0) target = $region5
  $region4: #{kpnet_forward.9} parent=0 // pred_region
    _
  $region5: #{kpnet_forward.9} parent=0 // pred_fallthru
    _
  // Predicated region
  $region6: #{kpnet_forward.9} parent=0 // pred_check
    _
  $region7: #{kpnet_forward.9} parent=0 // pred_check_branch
    %12 = sbr.rel (0) target = $region9
  $region8: #{kpnet_forward.9} parent=0 // pred_region
    _
  $region9: #{kpnet_forward.9} parent=0 // pred_fallthru
    _
  // Predicated region
  $region10: #{kpnet_forward.9} parent=0 // pred_check
    _
  $region11: #{kpnet_forward.9} parent=0 // pred_check_branch
    %14 = sbr.rel (0) target = $region13
  $region12: #{kpnet_forward.9} parent=0 // pred_region
    _
  $region13: #{kpnet_forward.9} parent=0 // pred_fallthru
    _
  // Predicated region
  $region14: #{kpnet_forward.9} parent=0 // pred_check
    _
  $region15: #{kpnet_forward.9} parent=0 // pred_check_branch
    %16 = sbr.rel (0) target = $region17
  $region16: #{kpnet_forward.9} parent=0 // pred_region
    _
  $region17: #{kpnet_forward.9} parent=0 // pred_fallthru
    _
  %v18 = vld [vmem:[%s0] sm:$0xff]
  %v19 = vld [vmem:[%s0 + $0x8] sm:$0xff]
  %v20 = vld [vmem:[%s0 + $0x10] sm:$0xf]
  %v21 = vld [vmem:[%s0 + $0x14] sm:$0xff]
  %v22 = vld [vmem:[%s0 + $0x1c] sm:$0xff]
  %v23 = vld [vmem:[%s0 + $0x24] sm:$0xf]
  %v24 = vld [vmem:[%s0 + $0x28] sm:$0xff]
  %v25 = vld [vmem:[%s0 + $0x30] sm:$0xff]
  %v26 = vld [vmem:[%s0 + $0x38] sm:$0xf]
  %v27 = vld [vmem:[%s0 + $0x3c] sm:$0xff]
  %v28 = vld [vmem:[%s0 + $0x44] sm:$0xff]
  %v29 = vld [vmem:[%s0 + $0x4c] sm:$0xf]
  %v30 = vld [vmem:[%s1] sm:$0xf]
  %v31 = vld [vmem:[%s1 + $0x4] sm:$0xf]
  %v32 = vld [vmem:[%s1 + $0x8] sm:$0xf]
  %v33 = vld [vmem:[%s1 + $0xc] sm:$0xf]
  %v34 = vld [vmem:[%s1 + $0x10] sm:$0xf]
  %v35 = vld [vmem:[%s1 + $0x14] sm:$0xf]
  %v36 = vld [vmem:[%s1 + $0x18] sm:$0xf]
  %v37 = vld [vmem:[%s1 + $0x1c] sm:$0xf]
  %v38 = vld [vmem:[%s1 + $0x20] sm:$0xf]
  %v39 = vld [vmem:[%s1 + $0x24] sm:$0xf]
  %v40 = vld [vmem:[%s1 + $0x28] sm:$0xf]
  %v41 = vld [vmem:[%s1 + $0x2c] sm:$0xf]
  %v42 = vld [vmem:[%s1 + $0x30] sm:$0xf]
  %v43 = vld [vmem:[%s1 + $0x34] sm:$0xf]
  %v44 = vld [vmem:[%s1 + $0x38] sm:$0xf]
  %v45 = vld [vmem:[%s1 + $0x3c] sm:$0xf]
  %v46 = vld [vmem:[%s1 + $0x40] sm:$0xf]
  %v47 = vld [vmem:[%s1 + $0x44] sm:$0xf]
  %v48 = vld [vmem:[%s1 + $0x48] sm:$0xf]
  %v49 = vld [vmem:[%s1 + $0x4c] sm:$0xf]
  %v50 = vld [vmem:[%s1 + $0x50] sm:$0xf]
  %v51 = vld [vmem:[%s1 + $0x54] sm:$0xf]
  %v52 = vld [vmem:[%s1 + $0x58] sm:$0xf]
  %v53 = vld [vmem:[%s1 + $0x5c] sm:$0xf]
  %v54 = vld [vmem:[%s1 + $0x60] sm:$0xf]
  %v55 = vld [vmem:[%s1 + $0x64] sm:$0xf]
  %v56 = vld [vmem:[%s1 + $0x68] sm:$0xf]
  %v57 = vld [vmem:[%s1 + $0x6c] sm:$0xf]
  %v58 = vld [vmem:[%s1 + $0x70] sm:$0xf]
  %v59 = vld [vmem:[%s1 + $0x74] sm:$0xf]
  %v60 = vld [vmem:[%s1 + $0x78] sm:$0xf]
  %v61 = vld [vmem:[%s1 + $0x7c] sm:$0xf]
  %v62 = vld [vmem:[%s1 + $0x80] sm:$0xf]
  %v63 = vld [vmem:[%s1 + $0x84] sm:$0xf]
  %v64 = vld [vmem:[%s1 + $0x88] sm:$0xf]
  %v65 = vld [vmem:[%s1 + $0x8c] sm:$0xf]
  %v66 = vld [vmem:[%s1 + $0x90] sm:$0xf]
  %v67 = vld [vmem:[%s1 + $0x94] sm:$0xf]
  %v68 = vld [vmem:[%s1 + $0x98] sm:$0xf]
  %v69 = vld [vmem:[%s1 + $0x9c] sm:$0xf]
  %v70 = vld [vmem:[%s1 + $0xa0] sm:$0xf]
  %v71 = vld [vmem:[%s1 + $0xa4] sm:$0xf]
  %v72 = vld [vmem:[%s1 + $0xa8] sm:$0xf]
  %v73 = vld [vmem:[%s1 + $0xac] sm:$0xf]
  %v74 = vld [vmem:[%s1 + $0xb0] sm:$0xf]
  %v75 = vld [vmem:[%s1 + $0xb4] sm:$0xf]
  %v76 = vld [vmem:[%s1 + $0xb8] sm:$0xf]
  %v77 = vld [vmem:[%s1 + $0xbc] sm:$0xf]
  %v78 = vld [vmem:[%s1 + $0xc0] sm:$0xf]
  %v79 = vld [vmem:[%s1 + $0xc4] sm:$0xf]
  %v80 = vld [vmem:[%s1 + $0xc8] sm:$0xf]
  %v81 = vld [vmem:[%s1 + $0xcc] sm:$0xf]
  %v82 = vld [vmem:[%s1 + $0xd0] sm:$0xf]
  %v83 = vld [vmem:[%s1 + $0xd4] sm:$0xf]
  %v84 = vld [vmem:[%s1 + $0xd8] sm:$0xf]
  %v85 = vld [vmem:[%s1 + $0xdc] sm:$0xf]
  %v86 = vld [vmem:[%s1 + $0xe0] sm:$0xf]
  %v87 = vld [vmem:[%s1 + $0xe4] sm:$0xf]
  %v88 = vld [vmem:[%s1 + $0xe8] sm:$0xf]
  %v89 = vld [vmem:[%s1 + $0xec] sm:$0xf]
  %v90 = vld [vmem:[%s1 + $0xf0] sm:$0xf]
  %v91 = vld [vmem:[%s1 + $0xf4] sm:$0xf]
  %v92 = vld [vmem:[%s1 + $0xf8] sm:$0xf]
  %v93 = vld [vmem:[%s1 + $0xfc] sm:$0xf]
  %v94 = vld [vmem:[%s1 + $0x100] sm:$0xf]
  %v95 = vld [vmem:[%s1 + $0x104] sm:$0xf]
  %v96 = vld [vmem:[%s1 + $0x108] sm:$0xf]
  %v97 = vld [vmem:[%s1 + $0x10c] sm:$0xf]
  %v98 = vld [vmem:[%s1 + $0x110] sm:$0xf]
  %v99 = vld [vmem:[%s1 + $0x114] sm:$0xf]
  %v100 = vld [vmem:[%s1 + $0x118] sm:$0xf]
  %v101 = vld [vmem:[%s1 + $0x11c] sm:$0xf]
  %v114 = vunpack.c.l.b16 %v18
  %v115 = vunpack.c.h.b16 %v18
  %v116 = vunpack.c.l.b16 %v19
  %v117 = vunpack.c.h.b16 %v19
  %v118 = vunpack.c.l.b16 %v20
  %v119 = vunpack.c.l.b16 %v21
  %v120 = vunpack.c.h.b16 %v21
  %v121 = vunpack.c.l.b16 %v22
  %v122 = vunpack.c.h.b16 %v22
  %v123 = vunpack.c.l.b16 %v23
  %v124 = vunpack.c.l.b16 %v24
  %v125 = vunpack.c.h.b16 %v24
  %v126 = vunpack.c.l.b16 %v25
  %v127 = vunpack.c.h.b16 %v25
  %v128 = vunpack.c.l.b16 %v26
  %v129 = vunpack.c.l.b16 %v27
  %v130 = vunpack.c.h.b16 %v27
  %v131 = vunpack.c.l.b16 %v28
  %v132 = vunpack.c.h.b16 %v28
  %v133 = vunpack.c.l.b16 %v29
  %v134 = vpack.c.b16 %v119, %v114
  %v135 = vpack.c.b16 %v120, %v115
  %v136 = vpack.c.b16 %v121, %v116
  %v137 = vpack.c.b16 %v122, %v117
  %v138 = vpack.c.b16 %v123, %v118
  %v139 = vpack.c.b16 %v129, %v124
  %v140 = vpack.c.b16 %v130, %v125
  %v141 = vpack.c.b16 %v131, %v126
  %v142 = vpack.c.b16 %v132, %v127
  %v143 = vpack.c.b16 %v133, %v128
  %v224 = vunpack.c.l.b16 %v30
  %v225 = vunpack.c.l.b16 %v31
  %v226 = vunpack.c.l.b16 %v32
  %v227 = vunpack.c.l.b16 %v33
  %v228 = vunpack.c.l.b16 %v34
  %v229 = vunpack.c.l.b16 %v35
  %v230 = vunpack.c.l.b16 %v36
  %v231 = vunpack.c.l.b16 %v37
  %v232 = vunpack.c.l.b16 %v38
  %v233 = vunpack.c.l.b16 %v39
  %v234 = vunpack.c.l.b16 %v40
  %v235 = vunpack.c.l.b16 %v41
  %v236 = vunpack.c.l.b16 %v42
  %v237 = vunpack.c.l.b16 %v43
  %v238 = vunpack.c.l.b16 %v44
  %v239 = vunpack.c.l.b16 %v45
  %v240 = vunpack.c.l.b16 %v46
  %v241 = vunpack.c.l.b16 %v47
  %v242 = vunpack.c.l.b16 %v48
  %v243 = vunpack.c.l.b16 %v49
  %v244 = vunpack.c.l.b16 %v50
  %v245 = vunpack.c.l.b16 %v51
  %v246 = vunpack.c.l.b16 %v52
  %v247 = vunpack.c.l.b16 %v53
  %v248 = vunpack.c.l.b16 %v54
  %v249 = vunpack.c.l.b16 %v55
  %v250 = vunpack.c.l.b16 %v56
  %v251 = vunpack.c.l.b16 %v57
  %v252 = vunpack.c.l.b16 %v58
  %v253 = vunpack.c.l.b16 %v59
  %v254 = vunpack.c.l.b16 %v60
  %v255 = vunpack.c.l.b16 %v61
  %v256 = vunpack.c.l.b16 %v62
  %v257 = vunpack.c.l.b16 %v63
  %v258 = vunpack.c.l.b16 %v64
  %v259 = vunpack.c.l.b16 %v65
  %v260 = vunpack.c.l.b16 %v66
  %v261 = vunpack.c.l.b16 %v67
  %v262 = vunpack.c.l.b16 %v68
  %v263 = vunpack.c.l.b16 %v69
  %v264 = vunpack.c.l.b16 %v70
  %v265 = vunpack.c.l.b16 %v71
  %v266 = vunpack.c.l.b16 %v72
  %v267 = vunpack.c.l.b16 %v73
  %v268 = vunpack.c.l.b16 %v74
  %v269 = vunpack.c.l.b16 %v75
  %v270 = vunpack.c.l.b16 %v76
  %v271 = vunpack.c.l.b16 %v77
  %v272 = vunpack.c.l.b16 %v78
  %v273 = vunpack.c.l.b16 %v79
  %v274 = vunpack.c.l.b16 %v80
  %v275 = vunpack.c.l.b16 %v81
  %v276 = vunpack.c.l.b16 %v82
  %v277 = vunpack.c.l.b16 %v83
  %v278 = vunpack.c.l.b16 %v84
  %v279 = vunpack.c.l.b16 %v85
  %v280 = vunpack.c.l.b16 %v86
  %v281 = vunpack.c.l.b16 %v87
  %v282 = vunpack.c.l.b16 %v88
  %v283 = vunpack.c.l.b16 %v89
  %v284 = vunpack.c.l.b16 %v90
  %v285 = vunpack.c.l.b16 %v91
  %v286 = vunpack.c.l.b16 %v92
  %v287 = vunpack.c.l.b16 %v93
  %v288 = vunpack.c.l.b16 %v94
  %v289 = vunpack.c.l.b16 %v95
  %v290 = vunpack.c.l.b16 %v96
  %v291 = vunpack.c.l.b16 %v97
  %v292 = vunpack.c.l.b16 %v98
  %v293 = vunpack.c.l.b16 %v99
  %v294 = vunpack.c.l.b16 %v100
  %v295 = vunpack.c.l.b16 %v101
  %v296 = vpack.c.b16 %v225, %v224
  %v297 = vpack.c.b16 %v227, %v226
  %v298 = vpack.c.b16 %v229, %v228
  %v299 = vpack.c.b16 %v231, %v230
  %v300 = vpack.c.b16 %v233, %v232
  %v301 = vpack.c.b16 %v235, %v234
  %v302 = vpack.c.b16 %v237, %v236
  %v303 = vpack.c.b16 %v239, %v238
  %v304 = vpack.c.b16 %v241, %v240
  %v305 = vpack.c.b16 %v243, %v242
  %v306 = vpack.c.b16 %v245, %v244
  %v307 = vpack.c.b16 %v247, %v246
  %v308 = vpack.c.b16 %v249, %v248
  %v309 = vpack.c.b16 %v251, %v250
  %v310 = vpack.c.b16 %v253, %v252
  %v311 = vpack.c.b16 %v255, %v254
  %v312 = vpack.c.b16 %v257, %v256
  %v313 = vpack.c.b16 %v259, %v258
  %v314 = vpack.c.b16 %v261, %v260
  %v315 = vpack.c.b16 %v263, %v262
  %v316 = vpack.c.b16 %v265, %v264
  %v317 = vpack.c.b16 %v267, %v266
  %v318 = vpack.c.b16 %v269, %v268
  %v319 = vpack.c.b16 %v271, %v270
  %v320 = vpack.c.b16 %v273, %v272
  %v321 = vpack.c.b16 %v275, %v274
  %v322 = vpack.c.b16 %v277, %v276
  %v323 = vpack.c.b16 %v279, %v278
  %v324 = vpack.c.b16 %v281, %v280
  %v325 = vpack.c.b16 %v283, %v282
  %v326 = vpack.c.b16 %v285, %v284
  %v327 = vpack.c.b16 %v287, %v286
  %v328 = vpack.c.b16 %v289, %v288
  %v329 = vpack.c.b16 %v291, %v290
  %v330 = vpack.c.b16 %v293, %v292
  %v331 = vpack.c.b16 %v295, %v294
  %vm368 = vcmask 523264
  %v370 = vsel %vm368, %v138, 0
  %v373 = vsel %vm368, %v143, 0
  %375 = vmatprep.subr.bf16.mxu0 0
  %376 = vmatpush1.bf16.msra.mxu0 %v296
  %377 = vmatprep.subr.bf16.mxu0 0
  %378 = vmatpush1.bf16.msra.mxu0 %v297
  %379 = vmatprep.subr.bf16.mxu0 0
  %380 = vmatpush1.bf16.msra.mxu0 %v298
  %381 = vmatprep.subr.bf16.mxu0 0
  %382 = vmatpush1.bf16.msra.mxu0 %v299
  %383 = vmatprep.subr.bf16.mxu0 0
  %384 = vmatpush1.bf16.msra.mxu0 %v300
  %385 = vmatprep.subr.bf16.mxu0 0
  %386 = vmatpush1.bf16.msra.mxu0 %v301
  %387 = vmatprep.subr.bf16.mxu0 0
  %388 = vmatpush1.bf16.msra.mxu0 %v302
  %389 = vmatprep.subr.bf16.mxu0 0
  %390 = vmatpush1.bf16.msra.mxu0 %v303
  %391 = vmatprep.subr.bf16.mxu0 0
  %392 = vmatpush1.bf16.msra.mxu0 %v304
  %393 = vmatprep.subr.bf16.mxu0 0
  %394 = vmatpush1.bf16.msra.mxu0 %v305
  %395 = vmatprep.subr.bf16.mxu0 0
  %396 = vmatpush1.bf16.msra.mxu0 %v306
  %397 = vmatprep.subr.bf16.mxu0 0
  %398 = vmatpush1.bf16.msra.mxu0 %v307
  %399 = vmatprep.subr.bf16.mxu0 0
  %400 = vmatpush1.bf16.msra.mxu0 %v308
  %401 = vmatprep.subr.bf16.mxu0 0
  %402 = vmatpush1.bf16.msra.mxu0 %v309
  %403 = vmatprep.subr.bf16.mxu0 0
  %404 = vmatpush1.bf16.msra.mxu0 %v310
  %405 = vmatprep.subr.bf16.mxu0 0
  %406 = vmatpush1.bf16.msra.mxu0 %v311
  %407 = vmatprep.mubr.bf16.mxu0 %v135
  %408 = vmatmul.mubr.bf16.gmra.mrb[0].mxu0 %v134
  %v409 = vpop.f32.mrb[0].mxu0
  %v410 = vadd.f32 0.0, %v409
  %v411 = vpop.f32.mrb[0].mxu0
  %v412 = vpop.f32.mrb[0].mxu0
  %v413 = vadd.f32 0.0, %v412
  %v414 = vpop.f32.mrb[0].mxu0
  %415 = vmatprep.mubr.bf16.mxu0 %v140
  %416 = vmatmul.mubr.bf16.gmra.mrb[0].mxu0 %v139
  %v417 = vpop.f32.mrb[0].mxu0
  %v418 = vadd.f32 0.0, %v417
  %v419 = vpop.f32.mrb[0].mxu0
  %v420 = vpop.f32.mrb[0].mxu0
  %v421 = vadd.f32 0.0, %v420
  %v422 = vpop.f32.mrb[0].mxu0
  %423 = vdwg.mxu0
  %424 = vmatprep.subr.bf16.mxu0 0
  %425 = vmatpush1.bf16.msra.mxu0 %v312
  %426 = vmatprep.subr.bf16.mxu0 0
  %427 = vmatpush1.bf16.msra.mxu0 %v313
  %428 = vmatprep.subr.bf16.mxu0 0
  %429 = vmatpush1.bf16.msra.mxu0 %v314
  %430 = vmatprep.subr.bf16.mxu0 0
  %431 = vmatpush1.bf16.msra.mxu0 %v315
  %432 = vmatprep.subr.bf16.mxu0 0
  %433 = vmatpush1.bf16.msra.mxu0 %v316
  %434 = vmatprep.subr.bf16.mxu0 0
  %435 = vmatpush1.bf16.msra.mxu0 %v317
  %436 = vmatprep.subr.bf16.mxu0 0
  %437 = vmatpush1.bf16.msra.mxu0 %v318
  %438 = vmatprep.subr.bf16.mxu0 0
  %439 = vmatpush1.bf16.msra.mxu0 %v319
  %440 = vmatprep.subr.bf16.mxu0 0
  %441 = vmatpush1.bf16.msra.mxu0 %v320
  %442 = vmatprep.subr.bf16.mxu0 0
  %443 = vmatpush1.bf16.msra.mxu0 %v321
  %444 = vmatprep.subr.bf16.mxu0 0
  %445 = vmatpush1.bf16.msra.mxu0 %v322
  %446 = vmatprep.subr.bf16.mxu0 0
  %447 = vmatpush1.bf16.msra.mxu0 %v323
  %448 = vmatprep.subr.bf16.mxu0 0
  %449 = vmatpush1.bf16.msra.mxu0 %v324
  %450 = vmatprep.subr.bf16.mxu0 0
  %451 = vmatpush1.bf16.msra.mxu0 %v325
  %452 = vmatprep.subr.bf16.mxu0 0
  %453 = vmatpush1.bf16.msra.mxu0 %v326
  %454 = vmatprep.subr.bf16.mxu0 0
  %455 = vmatpush1.bf16.msra.mxu0 %v327
  %456 = vmatprep.mubr.bf16.mxu0 %v137
  %457 = vmatmul.mubr.bf16.gmra.mrb[0].mxu0 %v136
  %v458 = vpop.f32.mrb[0].mxu0
  %v459 = vadd.f32 %v410, %v458
  %v460 = vpop.f32.mrb[0].mxu0
  %v461 = vpop.f32.mrb[0].mxu0
  %v462 = vadd.f32 %v413, %v461
  %v463 = vpop.f32.mrb[0].mxu0
  %464 = vmatprep.mubr.bf16.mxu0 %v142
  %465 = vmatmul.mubr.bf16.gmra.mrb[0].mxu0 %v141
  %v466 = vpop.f32.mrb[0].mxu0
  %v467 = vadd.f32 %v418, %v466
  %v468 = vpop.f32.mrb[0].mxu0
  %v469 = vpop.f32.mrb[0].mxu0
  %v470 = vadd.f32 %v421, %v469
  %v471 = vpop.f32.mrb[0].mxu0
  %472 = vdwg.mxu0
  %473 = vmatprep.subr.bf16.mxu0 0
  %474 = vmatpush1.bf16.msra.mxu0 %v328
  %475 = vmatprep.subr.bf16.mxu0 0
  %476 = vmatpush1.bf16.msra.mxu0 %v329
  %477 = vmatprep.subr.bf16.mxu0 0
  %478 = vmatpush1.bf16.msra.mxu0 %v330
  %479 = vmatprep.subr.bf16.mxu0 0
  %480 = vmatpush1.bf16.msra.mxu0 %v331
  %481 = vmatprep.subr.bf16.mxu0 0
  %482 = vmatpush1.bf16.msra.mxu0 0
  %483 = vmatprep.subr.bf16.mxu0 0
  %484 = vmatpush1.bf16.msra.mxu0 0
  %485 = vmatprep.subr.bf16.mxu0 0
  %486 = vmatpush1.bf16.msra.mxu0 0
  %487 = vmatprep.subr.bf16.mxu0 0
  %488 = vmatpush1.bf16.msra.mxu0 0
  %489 = vmatprep.subr.bf16.mxu0 0
  %490 = vmatpush1.bf16.msra.mxu0 0
  %491 = vmatprep.subr.bf16.mxu0 0
  %492 = vmatpush1.bf16.msra.mxu0 0
  %493 = vmatprep.subr.bf16.mxu0 0
  %494 = vmatpush1.bf16.msra.mxu0 0
  %495 = vmatprep.subr.bf16.mxu0 0
  %496 = vmatpush1.bf16.msra.mxu0 0
  %497 = vmatprep.subr.bf16.mxu0 0
  %498 = vmatpush1.bf16.msra.mxu0 0
  %499 = vmatprep.subr.bf16.mxu0 0
  %500 = vmatpush1.bf16.msra.mxu0 0
  %501 = vmatprep.subr.bf16.mxu0 0
  %502 = vmatpush1.bf16.msra.mxu0 0
  %503 = vmatprep.subr.bf16.mxu0 0
  %504 = vmatpush1.bf16.msra.mxu0 0
  %505 = vmatprep.mubr.bf16.mxu0 0
  %506 = vmatmul.mubr.bf16.gmra.mrb[0].mxu0 %v370
  %v507 = vpop.f32.mrb[0].mxu0
  %v508 = vadd.f32 %v459, %v507
  %v509 = vpop.f32.mrb[0].mxu0
  %v510 = vpop.f32.mrb[0].mxu0
  %v511 = vadd.f32 %v462, %v510
  %v512 = vpop.f32.mrb[0].mxu0
  %513 = vmatprep.mubr.bf16.mxu0 0
  %514 = vmatmul.mubr.bf16.gmra.mrb[0].mxu0 %v373
  %v515 = vpop.f32.mrb[0].mxu0
  %v516 = vadd.f32 %v467, %v515
  %v517 = vpop.f32.mrb[0].mxu0
  %v518 = vpop.f32.mrb[0].mxu0
  %v519 = vadd.f32 %v470, %v518
  %v520 = vpop.f32.mrb[0].mxu0
  %521 = vdwg.mxu0
  %v522 = vld [vmem:[%s2] sm:$0x1]
  %v524 = vlaneseq
  %v525 = vshrl.u32 %v524, 7
  %v526 = vsub.s32 0, %v525
  %v527 = vrot.slane %v522, %v526
  %v529 = vmul.f32 %v508, %v527
  %v530 = vmul.f32 %v511, %v527
  %v531 = vmul.f32 %v516, %v527
  %v532 = vmul.f32 %v519, %v527
  %v533 = vld [vmem:[%s3] sm:$0x1]
  %v535 = vlaneseq
  %v536 = vshrl.u32 %v535, 7
  %v537 = vsub.s32 0, %v536
  %v538 = vrot.slane %v533, %v537
  %v540 = vadd.f32 %v529, %v538
  %v541 = vadd.f32 %v530, %v538
  %v542 = vadd.f32 %v531, %v538
  %v543 = vadd.f32 %v532, %v538
  %v544 = vmax.f32 %v540, 0.0
  %v545 = vmax.f32 %v541, 0.0
  %v546 = vmax.f32 %v542, 0.0
  %v547 = vmax.f32 %v543, 0.0
  %v548 = vpack.c.bf16 %v545, %v544
  %v549 = vpack.c.bf16 %v547, %v546
  %v552 = vunpack.c.l.b16 %v548
  %v553 = vunpack.c.h.b16 %v548
  %v554 = vunpack.c.l.b16 %v549
  %v555 = vunpack.c.h.b16 %v549
  %v556 = vpack.c.b16 %v552, %v552
  %v557 = vpack.c.b16 %v553, %v553
  %v558 = vpack.c.b16 %v554, %v554
  %v559 = vpack.c.b16 %v555, %v555
  %564 = vst [vmem:[%s4] sm:$0xf] %v556
  %565 = vst [vmem:[%s4 + $0x4] sm:$0xf] %v557
  %566 = vst [vmem:[%s4 + $0x8] sm:$0xf] %v558
  %567 = vst [vmem:[%s4 + $0xc] sm:$0xf] %v559
  // Predicated region
  $region18: #{kpnet_forward.9} parent=0 // pred_check
    _
  $region19: #{kpnet_forward.9} parent=0 // pred_check_branch
    %569 = sbr.rel (0) target = $region21
  $region20: #{kpnet_forward.9} parent=0 // pred_region
    _
  $region21: #{kpnet_forward.9} parent=0 // pred_fallthru
    _
  // Predicated region
  $region22: #{kpnet_forward.9} parent=0 // pred_check
    _
  $region23: #{kpnet_forward.9} parent=0 // pred_check_branch
    %571 = sbr.rel (0) target = $region25
  $region24: #{kpnet_forward.9} parent=0 // pred_region
    _
  $region25: #{kpnet_forward.9} parent=0 // pred_fallthru
    _

// kernel: kpnet_forward.10
$region0: #{kpnet_forward.10}
  #allocation0 [shape = 'u32[]', space=smem, size = 0x4, offset = 0x4, fixed_abs, tag = 'smem constant byte address 0x4 - core index']
  #allocation1 [shape = 'u32[144,128]{1,0:T(1,128)}', space=vmem, size = 0x12000, scoped, tag = 'internal scratch']
  %s0 = inlined_call_operand.vmem [shape: bf16[8,1152], index: 0, kind: input, shape index: {}]
  %s1 = inlined_call_operand.vmem [shape: bf16[1152,256], index: 1, kind: input, shape index: {}]
  %s2 = inlined_call_operand.vmem [shape: f32[1,256], index: 2, kind: input, shape index: {}]
  %s3 = inlined_call_operand.vmem [shape: f32[1,256], index: 3, kind: input, shape index: {}]
  %s4 = inlined_call_operand.vmem [shape: bf16[8,256], index: 4, kind: output, shape index: {}]
  %s5 = sld [smem:[#allocation0]]
  $region26: #{kpnet_forward.10} parent=0
    _
  %s7 = ssub.s32 1, %s5
  %s8 = scalar_select 0, %s7, %s5
  // Predicated region
  $region2: #{kpnet_forward.10} parent=0 // pred_check
    _
  $region3: #{kpnet_forward.10} parent=0 // pred_check_branch
    %10 = sbr.rel (0) target = $region5
  $region4: #{kpnet_forward.10} parent=0 // pred_region
    _
  $region5: #{kpnet_forward.10} parent=0 // pred_fallthru
    _
  // Predicated region
  $region6: #{kpnet_forward.10} parent=0 // pred_check
    _
  $region7: #{kpnet_forward.10} parent=0 // pred_check_branch
    %12 = sbr.rel (0) target = $region9
  $region8: #{kpnet_forward.10} parent=0 // pred_region
    _
  $region9: #{kpnet_forward.10} parent=0 // pred_fallthru
    _
  // Predicated region
  $region10: #{kpnet_forward.10} parent=0 // pred_check
    _
  $region11: #{kpnet_forward.10} parent=0 // pred_check_branch
    %14 = sbr.rel (0) target = $region13
  $region12: #{kpnet_forward.10} parent=0 // pred_region
    _
  $region13: #{kpnet_forward.10} parent=0 // pred_fallthru
    _
  // Predicated region
  $region14: #{kpnet_forward.10} parent=0 // pred_check
    _
  $region15: #{kpnet_forward.10} parent=0 // pred_check_branch
    %16 = sbr.rel (0) target = $region17
  $region16: #{kpnet_forward.10} parent=0 // pred_region
    _
  $region17: #{kpnet_forward.10} parent=0 // pred_fallthru
    _
  %v18 = vld [vmem:[%s0] sm:$0xff]
  %v19 = vld [vmem:[%s0 + $0x8] sm:$0xff]
  %v20 = vld [vmem:[%s0 + $0x10] sm:$0xff]
  %v21 = vld [vmem:[%s0 + $0x18] sm:$0xff]
  %v22 = vld [vmem:[%s0 + $0x20] sm:$0xf]
  %v23 = vld [vmem:[%s1] sm:$0xff]
  %v24 = vld [vmem:[%s1 + $0x8] sm:$0xff]
  %v25 = vld [vmem:[%s1 + $0x10] sm:$0xff]
  %v26 = vld [vmem:[%s1 + $0x18] sm:$0xff]
  %v27 = vld [vmem:[%s1 + $0x20] sm:$0xff]
  %v28 = vld [vmem:[%s1 + $0x28] sm:$0xff]
  %v29 = vld [vmem:[%s1 + $0x30] sm:$0xff]
  %v30 = vld [vmem:[%s1 + $0x38] sm:$0xff]
  %v31 = vld [vmem:[%s1 + $0x40] sm:$0xff]
  %v32 = vld [vmem:[%s1 + $0x48] sm:$0xff]
  %v33 = vld [vmem:[%s1 + $0x50] sm:$0xff]
  %v34 = vld [vmem:[%s1 + $0x58] sm:$0xff]
  %v35 = vld [vmem:[%s1 + $0x60] sm:$0xff]
  %v36 = vld [vmem:[%s1 + $0x68] sm:$0xff]
  %v37 = vld [vmem:[%s1 + $0x70] sm:$0xff]
  %v38 = vld [vmem:[%s1 + $0x78] sm:$0xff]
  %v39 = vld [vmem:[%s1 + $0x80] sm:$0xff]
  %v40 = vld [vmem:[%s1 + $0x88] sm:$0xff]
  %v41 = vld [vmem:[%s1 + $0x90] sm:$0xff]
  %v42 = vld [vmem:[%s1 + $0x98] sm:$0xff]
  %v43 = vld [vmem:[%s1 + $0xa0] sm:$0xff]
  %v44 = vld [vmem:[%s1 + $0xa8] sm:$0xff]
  %v45 = vld [vmem:[%s1 + $0xb0] sm:$0xff]
  %v46 = vld [vmem:[%s1 + $0xb8] sm:$0xff]
  %v47 = vld [vmem:[%s1 + $0xc0] sm:$0xff]
  %v48 = vld [vmem:[%s1 + $0xc8] sm:$0xff]
  %v49 = vld [vmem:[%s1 + $0xd0] sm:$0xff]
  %v50 = vld [vmem:[%s1 + $0xd8] sm:$0xff]
  %v51 = vld [vmem:[%s1 + $0xe0] sm:$0xff]
  %v52 = vld [vmem:[%s1 + $0xe8] sm:$0xff]
  %v53 = vld [vmem:[%s1 + $0xf0] sm:$0xff]
  %v54 = vld [vmem:[%s1 + $0xf8] sm:$0xff]
  %v55 = vld [vmem:[%s1 + $0x100] sm:$0xff]
  %v56 = vld [vmem:[%s1 + $0x108] sm:$0xff]
  %v57 = vld [vmem:[%s1 + $0x110] sm:$0xff]
  %v58 = vld [vmem:[%s1 + $0x118] sm:$0xff]
  %v59 = vld [vmem:[%s1 + $0x120] sm:$0xff]
  %v60 = vld [vmem:[%s1 + $0x128] sm:$0xff]
  %v61 = vld [vmem:[%s1 + $0x130] sm:$0xff]
  %v62 = vld [vmem:[%s1 + $0x138] sm:$0xff]
  %v63 = vld [vmem:[%s1 + $0x140] sm:$0xff]
  %v64 = vld [vmem:[%s1 + $0x148] sm:$0xff]
  %v65 = vld [vmem:[%s1 + $0x150] sm:$0xff]
  %v66 = vld [vmem:[%s1 + $0x158] sm:$0xff]
  %v67 = vld [vmem:[%s1 + $0x160] sm:$0xff]
  %v68 = vld [vmem:[%s1 + $0x168] sm:$0xff]
  %v69 = vld [vmem:[%s1 + $0x170] sm:$0xff]
  %v70 = vld [vmem:[%s1 + $0x178] sm:$0xff]
  %v71 = vld [vmem:[%s1 + $0x180] sm:$0xff]
  %v72 = vld [vmem:[%s1 + $0x188] sm:$0xff]
  %v73 = vld [vmem:[%s1 + $0x190] sm:$0xff]
  %v74 = vld [vmem:[%s1 + $0x198] sm:$0xff]
  %v75 = vld [vmem:[%s1 + $0x1a0] sm:$0xff]
  %v76 = vld [vmem:[%s1 + $0x1a8] sm:$0xff]
  %v77 = vld [vmem:[%s1 + $0x1b0] sm:$0xff]
  %v78 = vld [vmem:[%s1 + $0x1b8] sm:$0xff]
  %v79 = vld [vmem:[%s1 + $0x1c0] sm:$0xff]
  %v80 = vld [vmem:[%s1 + $0x1c8] sm:$0xff]
  %v81 = vld [vmem:[%s1 + $0x1d0] sm:$0xff]
  %v82 = vld [vmem:[%s1 + $0x1d8] sm:$0xff]
  %v83 = vld [vmem:[%s1 + $0x1e0] sm:$0xff]
  %v84 = vld [vmem:[%s1 + $0x1e8] sm:$0xff]
  %v85 = vld [vmem:[%s1 + $0x1f0] sm:$0xff]
  %v86 = vld [vmem:[%s1 + $0x1f8] sm:$0xff]
  %v87 = vld [vmem:[%s1 + $0x200] sm:$0xff]
  %v88 = vld [vmem:[%s1 + $0x208] sm:$0xff]
  %v89 = vld [vmem:[%s1 + $0x210] sm:$0xff]
  %v90 = vld [vmem:[%s1 + $0x218] sm:$0xff]
  %v91 = vld [vmem:[%s1 + $0x220] sm:$0xff]
  %v92 = vld [vmem:[%s1 + $0x228] sm:$0xff]
  %v93 = vld [vmem:[%s1 + $0x230] sm:$0xff]
  %v94 = vld [vmem:[%s1 + $0x238] sm:$0xff]
  %v95 = vld [vmem:[%s1 + $0x240] sm:$0xff]
  %v96 = vld [vmem:[%s1 + $0x248] sm:$0xff]
  %v97 = vld [vmem:[%s1 + $0x250] sm:$0xff]
  %v98 = vld [vmem:[%s1 + $0x258] sm:$0xff]
  %v99 = vld [vmem:[%s1 + $0x260] sm:$0xff]
  %v100 = vld [vmem:[%s1 + $0x268] sm:$0xff]
  %v101 = vld [vmem:[%s1 + $0x270] sm:$0xff]
  %v102 = vld [vmem:[%s1 + $0x278] sm:$0xff]
  %v103 = vld [vmem:[%s1 + $0x280] sm:$0xff]
  %v104 = vld [vmem:[%s1 + $0x288] sm:$0xff]
  %v105 = vld [vmem:[%s1 + $0x290] sm:$0xff]
  %v106 = vld [vmem:[%s1 + $0x298] sm:$0xff]
  %v107 = vld [vmem:[%s1 + $0x2a0] sm:$0xff]
  %v108 = vld [vmem:[%s1 + $0x2a8] sm:$0xff]
  %v109 = vld [vmem:[%s1 + $0x2b0] sm:$0xff]
  %v110 = vld [vmem:[%s1 + $0x2b8] sm:$0xff]
  %v111 = vld [vmem:[%s1 + $0x2c0] sm:$0xff]
  %v112 = vld [vmem:[%s1 + $0x2c8] sm:$0xff]
  %v113 = vld [vmem:[%s1 + $0x2d0] sm:$0xff]
  %v114 = vld [vmem:[%s1 + $0x2d8] sm:$0xff]
  %v115 = vld [vmem:[%s1 + $0x2e0] sm:$0xff]
  %v116 = vld [vmem:[%s1 + $0x2e8] sm:$0xff]
  %v117 = vld [vmem:[%s1 + $0x2f0] sm:$0xff]
  %v118 = vld [vmem:[%s1 + $0x2f8] sm:$0xff]
  %v119 = vld [vmem:[%s1 + $0x300] sm:$0xff]
  %v120 = vld [vmem:[%s1 + $0x308] sm:$0xff]
  %v121 = vld [vmem:[%s1 + $0x310] sm:$0xff]
  %v122 = vld [vmem:[%s1 + $0x318] sm:$0xff]
  %v123 = vld [vmem:[%s1 + $0x320] sm:$0xff]
  %v124 = vld [vmem:[%s1 + $0x328] sm:$0xff]
  %v125 = vld [vmem:[%s1 + $0x330] sm:$0xff]
  %v126 = vld [vmem:[%s1 + $0x338] sm:$0xff]
  %v127 = vld [vmem:[%s1 + $0x340] sm:$0xff]
  %v128 = vld [vmem:[%s1 + $0x348] sm:$0xff]
  %v129 = vld [vmem:[%s1 + $0x350] sm:$0xff]
  %v130 = vld [vmem:[%s1 + $0x358] sm:$0xff]
  %v131 = vld [vmem:[%s1 + $0x360] sm:$0xff]
  %v132 = vld [vmem:[%s1 + $0x368] sm:$0xff]
  %v133 = vld [vmem:[%s1 + $0x370] sm:$0xff]
  %v134 = vld [vmem:[%s1 + $0x378] sm:$0xff]
  %v135 = vld [vmem:[%s1 + $0x380] sm:$0xff]
  %v136 = vld [vmem:[%s1 + $0x388] sm:$0xff]
  %v137 = vld [vmem:[%s1 + $0x390] sm:$0xff]
  %v138 = vld [vmem:[%s1 + $0x398] sm:$0xff]
  %v139 = vld [vmem:[%s1 + $0x3a0] sm:$0xff]
  %v140 = vld [vmem:[%s1 + $0x3a8] sm:$0xff]
  %v141 = vld [vmem:[%s1 + $0x3b0] sm:$0xff]
  %v142 = vld [vmem:[%s1 + $0x3b8] sm:$0xff]
  %v143 = vld [vmem:[%s1 + $0x3c0] sm:$0xff]
  %v144 = vld [vmem:[%s1 + $0x3c8] sm:$0xff]
  %v145 = vld [vmem:[%s1 + $0x3d0] sm:$0xff]
  %v146 = vld [vmem:[%s1 + $0x3d8] sm:$0xff]
  %v147 = vld [vmem:[%s1 + $0x3e0] sm:$0xff]
  %v148 = vld [vmem:[%s1 + $0x3e8] sm:$0xff]
  %v149 = vld [vmem:[%s1 + $0x3f0] sm:$0xff]
  %v150 = vld [vmem:[%s1 + $0x3f8] sm:$0xff]
  %v151 = vld [vmem:[%s1 + $0x400] sm:$0xff]
  %v152 = vld [vmem:[%s1 + $0x408] sm:$0xff]
  %v153 = vld [vmem:[%s1 + $0x410] sm:$0xff]
  %v154 = vld [vmem:[%s1 + $0x418] sm:$0xff]
  %v155 = vld [vmem:[%s1 + $0x420] sm:$0xff]
  %v156 = vld [vmem:[%s1 + $0x428] sm:$0xff]
  %v157 = vld [vmem:[%s1 + $0x430] sm:$0xff]
  %v158 = vld [vmem:[%s1 + $0x438] sm:$0xff]
  %v159 = vld [vmem:[%s1 + $0x440] sm:$0xff]
  %v160 = vld [vmem:[%s1 + $0x448] sm:$0xff]
  %v161 = vld [vmem:[%s1 + $0x450] sm:$0xff]
  %v162 = vld [vmem:[%s1 + $0x458] sm:$0xff]
  %v163 = vld [vmem:[%s1 + $0x460] sm:$0xff]
  %v164 = vld [vmem:[%s1 + $0x468] sm:$0xff]
  %v165 = vld [vmem:[%s1 + $0x470] sm:$0xff]
  %v166 = vld [vmem:[%s1 + $0x478] sm:$0xff]
  %v172 = vunpack.c.l.b16 %v18
  %v173 = vunpack.c.h.b16 %v18
  %v174 = vunpack.c.l.b16 %v19
  %v175 = vunpack.c.h.b16 %v19
  %v176 = vunpack.c.l.b16 %v20
  %v177 = vunpack.c.h.b16 %v20
  %v178 = vunpack.c.l.b16 %v21
  %v179 = vunpack.c.h.b16 %v21
  %v180 = vunpack.c.l.b16 %v22
  %v181 = vpack.c.b16 %v172, %v172
  %v182 = vpack.c.b16 %v173, %v173
  %v183 = vpack.c.b16 %v174, %v174
  %v184 = vpack.c.b16 %v175, %v175
  %v185 = vpack.c.b16 %v176, %v176
  %v186 = vpack.c.b16 %v177, %v177
  %v187 = vpack.c.b16 %v178, %v178
  %v188 = vpack.c.b16 %v179, %v179
  %v189 = vpack.c.b16 %v180, %v180
  %v343 = vunpack.c.l.b16 %v23
  %v344 = vunpack.c.h.b16 %v23
  %v345 = vunpack.c.l.b16 %v24
  %v346 = vunpack.c.h.b16 %v24
  %v347 = vunpack.c.l.b16 %v25
  %v348 = vunpack.c.h.b16 %v25
  %v349 = vunpack.c.l.b16 %v26
  %v350 = vunpack.c.h.b16 %v26
  %v351 = vunpack.c.l.b16 %v27
  %v352 = vunpack.c.h.b16 %v27
  %v353 = vunpack.c.l.b16 %v28
  %v354 = vunpack.c.h.b16 %v28
  %v355 = vunpack.c.l.b16 %v29
  %v356 = vunpack.c.h.b16 %v29
  %v357 = vunpack.c.l.b16 %v30
  %v358 = vunpack.c.h.b16 %v30
  %v359 = vunpack.c.l.b16 %v31
  %v360 = vunpack.c.h.b16 %v31
  %v361 = vunpack.c.l.b16 %v32
  %v362 = vunpack.c.h.b16 %v32
  %v363 = vunpack.c.l.b16 %v33
  %v364 = vunpack.c.h.b16 %v33
  %v365 = vunpack.c.l.b16 %v34
  %v366 = vunpack.c.h.b16 %v34
  %v367 = vunpack.c.l.b16 %v35
  %v368 = vunpack.c.h.b16 %v35
  %v369 = vunpack.c.l.b16 %v36
  %v370 = vunpack.c.h.b16 %v36
  %v371 = vunpack.c.l.b16 %v37
  %v372 = vunpack.c.h.b16 %v37
  %v373 = vunpack.c.l.b16 %v38
  %v374 = vunpack.c.h.b16 %v38
  %v375 = vunpack.c.l.b16 %v39
  %v376 = vunpack.c.h.b16 %v39
  %v377 = vunpack.c.l.b16 %v40
  %v378 = vunpack.c.h.b16 %v40
  %v379 = vunpack.c.l.b16 %v41
  %v380 = vunpack.c.h.b16 %v41
  %v381 = vunpack.c.l.b16 %v42
  %v382 = vunpack.c.h.b16 %v42
  %v383 = vunpack.c.l.b16 %v43
  %v384 = vunpack.c.h.b16 %v43
  %v385 = vunpack.c.l.b16 %v44
  %v386 = vunpack.c.h.b16 %v44
  %v387 = vunpack.c.l.b16 %v45
  %v388 = vunpack.c.h.b16 %v45
  %v389 = vunpack.c.l.b16 %v46
  %v390 = vunpack.c.h.b16 %v46
  %v391 = vunpack.c.l.b16 %v47
  %v392 = vunpack.c.h.b16 %v47
  %v393 = vunpack.c.l.b16 %v48
  %v394 = vunpack.c.h.b16 %v48
  %v395 = vunpack.c.l.b16 %v49
  %v396 = vunpack.c.h.b16 %v49
  %v397 = vunpack.c.l.b16 %v50
  %v398 = vunpack.c.h.b16 %v50
  %v399 = vunpack.c.l.b16 %v51
  %v400 = vunpack.c.h.b16 %v51
  %v401 = vunpack.c.l.b16 %v52
  %v402 = vunpack.c.h.b16 %v52
  %v403 = vunpack.c.l.b16 %v53
  %v404 = vunpack.c.h.b16 %v53
  %v405 = vunpack.c.l.b16 %v54
  %v406 = vunpack.c.h.b16 %v54
  %v407 = vunpack.c.l.b16 %v55
  %v408 = vunpack.c.h.b16 %v55
  %v409 = vunpack.c.l.b16 %v56
  %v410 = vunpack.c.h.b16 %v56
  %v411 = vunpack.c.l.b16 %v57
  %v412 = vunpack.c.h.b16 %v57
  %v413 = vunpack.c.l.b16 %v58
  %v414 = vunpack.c.h.b16 %v58
  %v415 = vunpack.c.l.b16 %v59
  %v416 = vunpack.c.h.b16 %v59
  %v417 = vunpack.c.l.b16 %v60
  %v418 = vunpack.c.h.b16 %v60
  %v419 = vunpack.c.l.b16 %v61
  %v420 = vunpack.c.h.b16 %v61
  %v421 = vunpack.c.l.b16 %v62
  %v422 = vunpack.c.h.b16 %v62
  %v423 = vunpack.c.l.b16 %v63
  %v424 = vunpack.c.h.b16 %v63
  %v425 = vunpack.c.l.b16 %v64
  %v426 = vunpack.c.h.b16 %v64
  %v427 = vunpack.c.l.b16 %v65
  %v428 = vunpack.c.h.b16 %v65
  %v429 = vunpack.c.l.b16 %v66
  %v430 = vunpack.c.h.b16 %v66
  %v431 = vunpack.c.l.b16 %v67
  %v432 = vunpack.c.h.b16 %v67
  %v433 = vunpack.c.l.b16 %v68
  %v434 = vunpack.c.h.b16 %v68
  %v435 = vunpack.c.l.b16 %v69
  %v436 = vunpack.c.h.b16 %v69
  %v437 = vunpack.c.l.b16 %v70
  %v438 = vunpack.c.h.b16 %v70
  %v439 = vunpack.c.l.b16 %v71
  %v440 = vunpack.c.h.b16 %v71
  %v441 = vunpack.c.l.b16 %v72
  %v442 = vunpack.c.h.b16 %v72
  %v443 = vunpack.c.l.b16 %v73
  %v444 = vunpack.c.h.b16 %v73
  %v445 = vunpack.c.l.b16 %v74
  %v446 = vunpack.c.h.b16 %v74
  %v447 = vunpack.c.l.b16 %v75
  %v448 = vunpack.c.h.b16 %v75
  %v449 = vunpack.c.l.b16 %v76
  %v450 = vunpack.c.h.b16 %v76
  %v451 = vunpack.c.l.b16 %v77
  %v452 = vunpack.c.h.b16 %v77
  %v453 = vunpack.c.l.b16 %v78
  %v454 = vunpack.c.h.b16 %v78
  %v455 = vunpack.c.l.b16 %v79
  %v456 = vunpack.c.h.b16 %v79
  %v457 = vunpack.c.l.b16 %v80
  %v458 = vunpack.c.h.b16 %v80
  %v459 = vunpack.c.l.b16 %v81
  %v460 = vunpack.c.h.b16 %v81
  %v461 = vunpack.c.l.b16 %v82
  %v462 = vunpack.c.h.b16 %v82
  %v463 = vunpack.c.l.b16 %v83
  %v464 = vunpack.c.h.b16 %v83
  %v465 = vunpack.c.l.b16 %v84
  %v466 = vunpack.c.h.b16 %v84
  %v467 = vunpack.c.l.b16 %v85
  %v468 = vunpack.c.h.b16 %v85
  %v469 = vunpack.c.l.b16 %v86
  %v470 = vunpack.c.h.b16 %v86
  %v471 = vunpack.c.l.b16 %v87
  %v472 = vunpack.c.h.b16 %v87
  %v473 = vunpack.c.l.b16 %v88
  %v474 = vunpack.c.h.b16 %v88
  %v475 = vunpack.c.l.b16 %v89
  %v476 = vunpack.c.h.b16 %v89
  %v477 = vunpack.c.l.b16 %v90
  %v478 = vunpack.c.h.b16 %v90
  %v479 = vunpack.c.l.b16 %v91
  %v480 = vunpack.c.h.b16 %v91
  %v481 = vunpack.c.l.b16 %v92
  %v482 = vunpack.c.h.b16 %v92
  %v483 = vunpack.c.l.b16 %v93
  %v484 = vunpack.c.h.b16 %v93
  %v485 = vunpack.c.l.b16 %v94
  %v486 = vunpack.c.h.b16 %v94
  %v487 = vunpack.c.l.b16 %v95
  %v488 = vunpack.c.h.b16 %v95
  %v489 = vunpack.c.l.b16 %v96
  %v490 = vunpack.c.h.b16 %v96
  %v491 = vunpack.c.l.b16 %v97
  %v492 = vunpack.c.h.b16 %v97
  %v493 = vunpack.c.l.b16 %v98
  %v494 = vunpack.c.h.b16 %v98
  %v495 = vunpack.c.l.b16 %v99
  %v496 = vunpack.c.h.b16 %v99
  %v497 = vunpack.c.l.b16 %v100
  %v498 = vunpack.c.h.b16 %v100
  %v499 = vunpack.c.l.b16 %v101
  %v500 = vunpack.c.h.b16 %v101
  %v501 = vunpack.c.l.b16 %v102
  %v502 = vunpack.c.h.b16 %v102
  %v503 = vunpack.c.l.b16 %v103
  %v504 = vunpack.c.h.b16 %v103
  %v505 = vunpack.c.l.b16 %v104
  %v506 = vunpack.c.h.b16 %v104
  %v507 = vunpack.c.l.b16 %v105
  %v508 = vunpack.c.h.b16 %v105
  %v509 = vunpack.c.l.b16 %v106
  %v510 = vunpack.c.h.b16 %v106
  %v511 = vunpack.c.l.b16 %v107
  %v512 = vunpack.c.h.b16 %v107
  %v513 = vunpack.c.l.b16 %v108
  %v514 = vunpack.c.h.b16 %v108
  %v515 = vunpack.c.l.b16 %v109
  %v516 = vunpack.c.h.b16 %v109
  %v517 = vunpack.c.l.b16 %v110
  %v518 = vunpack.c.h.b16 %v110
  %v519 = vunpack.c.l.b16 %v111
  %v520 = vunpack.c.h.b16 %v111
  %v521 = vunpack.c.l.b16 %v112
  %v522 = vunpack.c.h.b16 %v112
  %v523 = vunpack.c.l.b16 %v113
  %v524 = vunpack.c.h.b16 %v113
  %v525 = vunpack.c.l.b16 %v114
  %v526 = vunpack.c.h.b16 %v114
  %v527 = vunpack.c.l.b16 %v115
  %v528 = vunpack.c.h.b16 %v115
  %v529 = vunpack.c.l.b16 %v116
  %v530 = vunpack.c.h.b16 %v116
  %v531 = vunpack.c.l.b16 %v117
  %v532 = vunpack.c.h.b16 %v117
  %v533 = vunpack.c.l.b16 %v118
  %v534 = vunpack.c.h.b16 %v118
  %v535 = vunpack.c.l.b16 %v119
  %v536 = vunpack.c.h.b16 %v119
  %v537 = vunpack.c.l.b16 %v120
  %v538 = vunpack.c.h.b16 %v120
  %v539 = vunpack.c.l.b16 %v121
  %v540 = vunpack.c.h.b16 %v121
  %v541 = vunpack.c.l.b16 %v122
  %v542 = vunpack.c.h.b16 %v122
  %v543 = vunpack.c.l.b16 %v123
  %v544 = vunpack.c.h.b16 %v123
  %v545 = vunpack.c.l.b16 %v124
  %v546 = vunpack.c.h.b16 %v124
  %v547 = vunpack.c.l.b16 %v125
  %v548 = vunpack.c.h.b16 %v125
  %v549 = vunpack.c.l.b16 %v126
  %v550 = vunpack.c.h.b16 %v126
  %v551 = vunpack.c.l.b16 %v127
  %v552 = vunpack.c.h.b16 %v127
  %v553 = vunpack.c.l.b16 %v128
  %v554 = vunpack.c.h.b16 %v128
  %v555 = vunpack.c.l.b16 %v129
  %v556 = vunpack.c.h.b16 %v129
  %v557 = vunpack.c.l.b16 %v130
  %v558 = vunpack.c.h.b16 %v130
  %v559 = vunpack.c.l.b16 %v131
  %v560 = vunpack.c.h.b16 %v131
  %v561 = vunpack.c.l.b16 %v132
  %v562 = vunpack.c.h.b16 %v132
  %v563 = vunpack.c.l.b16 %v133
  %v564 = vunpack.c.h.b16 %v133
  %v565 = vunpack.c.l.b16 %v134
  %v566 = vunpack.c.h.b16 %v134
  %v567 = vunpack.c.l.b16 %v135
  %v568 = vunpack.c.h.b16 %v135
  %v569 = vunpack.c.l.b16 %v136
  %v570 = vunpack.c.h.b16 %v136
  %v571 = vunpack.c.l.b16 %v137
  %v572 = vunpack.c.h.b16 %v137
  %v573 = vunpack.c.l.b16 %v138
  %v574 = vunpack.c.h.b16 %v138
  %v575 = vunpack.c.l.b16 %v139
  %v576 = vunpack.c.h.b16 %v139
  %v577 = vunpack.c.l.b16 %v140
  %v578 = vunpack.c.h.b16 %v140
  %v579 = vunpack.c.l.b16 %v141
  %v580 = vunpack.c.h.b16 %v141
  %v581 = vunpack.c.l.b16 %v142
  %v582 = vunpack.c.h.b16 %v142
  %v583 = vunpack.c.l.b16 %v143
  %v584 = vunpack.c.h.b16 %v143
  %v585 = vunpack.c.l.b16 %v144
  %v586 = vunpack.c.h.b16 %v144
  %v587 = vunpack.c.l.b16 %v145
  %v588 = vunpack.c.h.b16 %v145
  %v589 = vunpack.c.l.b16 %v146
  %v590 = vunpack.c.h.b16 %v146
  %v591 = vunpack.c.l.b16 %v147
  %v592 = vunpack.c.h.b16 %v147
  %v593 = vunpack.c.l.b16 %v148
  %v594 = vunpack.c.h.b16 %v148
  %v595 = vunpack.c.l.b16 %v149
  %v596 = vunpack.c.h.b16 %v149
  %v597 = vunpack.c.l.b16 %v150
  %v598 = vunpack.c.h.b16 %v150
  %v599 = vunpack.c.l.b16 %v151
  %v600 = vunpack.c.h.b16 %v151
  %v601 = vunpack.c.l.b16 %v152
  %v602 = vunpack.c.h.b16 %v152
  %v603 = vunpack.c.l.b16 %v153
  %v604 = vunpack.c.h.b16 %v153
  %v605 = vunpack.c.l.b16 %v154
  %v606 = vunpack.c.h.b16 %v154
  %v607 = vunpack.c.l.b16 %v155
  %v608 = vunpack.c.h.b16 %v155
  %v609 = vunpack.c.l.b16 %v156
  %v610 = vunpack.c.h.b16 %v156
  %v611 = vunpack.c.l.b16 %v157
  %v612 = vunpack.c.h.b16 %v157
  %v613 = vunpack.c.l.b16 %v158
  %v614 = vunpack.c.h.b16 %v158
  %v615 = vunpack.c.l.b16 %v159
  %v616 = vunpack.c.h.b16 %v159
  %v617 = vunpack.c.l.b16 %v160
  %v618 = vunpack.c.h.b16 %v160
  %v619 = vunpack.c.l.b16 %v161
  %v620 = vunpack.c.h.b16 %v161
  %v621 = vunpack.c.l.b16 %v162
  %v622 = vunpack.c.h.b16 %v162
  %v623 = vunpack.c.l.b16 %v163
  %v624 = vunpack.c.h.b16 %v163
  %v625 = vunpack.c.l.b16 %v164
  %v626 = vunpack.c.h.b16 %v164
  %v627 = vunpack.c.l.b16 %v165
  %v628 = vunpack.c.h.b16 %v165
  %v629 = vunpack.c.l.b16 %v166
  %v630 = vunpack.c.h.b16 %v166
  %v631 = vpack.c.b16 %v345, %v343
  %v632 = vpack.c.b16 %v346, %v344
  %v633 = vpack.c.b16 %v349, %v347
  %v634 = vpack.c.b16 %v350, %v348
  %v635 = vpack.c.b16 %v353, %v351
  %v636 = vpack.c.b16 %v354, %v352
  %v637 = vpack.c.b16 %v357, %v355
  %v638 = vpack.c.b16 %v358, %v356
  %v639 = vpack.c.b16 %v361, %v359
  %v640 = vpack.c.b16 %v362, %v360
  %v641 = vpack.c.b16 %v365, %v363
  %v642 = vpack.c.b16 %v366, %v364
  %v643 = vpack.c.b16 %v369, %v367
  %v644 = vpack.c.b16 %v370, %v368
  %v645 = vpack.c.b16 %v373, %v371
  %v646 = vpack.c.b16 %v374, %v372
  %v647 = vpack.c.b16 %v377, %v375
  %v648 = vpack.c.b16 %v378, %v376
  %v649 = vpack.c.b16 %v381, %v379
  %v650 = vpack.c.b16 %v382, %v380
  %v651 = vpack.c.b16 %v385, %v383
  %v652 = vpack.c.b16 %v386, %v384
  %v653 = vpack.c.b16 %v389, %v387
  %v654 = vpack.c.b16 %v390, %v388
  %v655 = vpack.c.b16 %v393, %v391
  %v656 = vpack.c.b16 %v394, %v392
  %v657 = vpack.c.b16 %v397, %v395
  %v658 = vpack.c.b16 %v398, %v396
  %v659 = vpack.c.b16 %v401, %v399
  %v660 = vpack.c.b16 %v402, %v400
  %v661 = vpack.c.b16 %v405, %v403
  %v662 = vpack.c.b16 %v406, %v404
  %v663 = vpack.c.b16 %v409, %v407
  %v664 = vpack.c.b16 %v410, %v408
  %v665 = vpack.c.b16 %v413, %v411
  %v666 = vpack.c.b16 %v414, %v412
  %v667 = vpack.c.b16 %v417, %v415
  %v668 = vpack.c.b16 %v418, %v416
  %v669 = vpack.c.b16 %v421, %v419
  %v670 = vpack.c.b16 %v422, %v420
  %v671 = vpack.c.b16 %v425, %v423
  %v672 = vpack.c.b16 %v426, %v424
  %v673 = vpack.c.b16 %v429, %v427
  %v674 = vpack.c.b16 %v430, %v428
  %v675 = vpack.c.b16 %v433, %v431
  %v676 = vpack.c.b16 %v434, %v432
  %v677 = vpack.c.b16 %v437, %v435
  %v678 = vpack.c.b16 %v438, %v436
  %v679 = vpack.c.b16 %v441, %v439
  %v680 = vpack.c.b16 %v442, %v440
  %v681 = vpack.c.b16 %v445, %v443
  %v682 = vpack.c.b16 %v446, %v444
  %v683 = vpack.c.b16 %v449, %v447
  %v684 = vpack.c.b16 %v450, %v448
  %v685 = vpack.c.b16 %v453, %v451
  %v686 = vpack.c.b16 %v454, %v452
  %v687 = vpack.c.b16 %v457, %v455
  %v688 = vpack.c.b16 %v458, %v456
  %v689 = vpack.c.b16 %v461, %v459
  %v690 = vpack.c.b16 %v462, %v460
  %v691 = vpack.c.b16 %v465, %v463
  %v692 = vpack.c.b16 %v466, %v464
  %v693 = vpack.c.b16 %v469, %v467
  %v694 = vpack.c.b16 %v470, %v468
  %v695 = vpack.c.b16 %v473, %v471
  %v696 = vpack.c.b16 %v474, %v472
  %v697 = vpack.c.b16 %v477, %v475
  %v698 = vpack.c.b16 %v478, %v476
  %v699 = vpack.c.b16 %v481, %v479
  %v700 = vpack.c.b16 %v482, %v480
  %v701 = vpack.c.b16 %v485, %v483
  %v702 = vpack.c.b16 %v486, %v484
  %v703 = vpack.c.b16 %v489, %v487
  %v704 = vpack.c.b16 %v490, %v488
  %v705 = vpack.c.b16 %v493, %v491
  %v706 = vpack.c.b16 %v494, %v492
  %v707 = vpack.c.b16 %v497, %v495
  %v708 = vpack.c.b16 %v498, %v496
  %v709 = vpack.c.b16 %v501, %v499
  %v710 = vpack.c.b16 %v502, %v500
  %v711 = vpack.c.b16 %v505, %v503
  %v712 = vpack.c.b16 %v506, %v504
  %v713 = vpack.c.b16 %v509, %v507
  %v714 = vpack.c.b16 %v510, %v508
  %v715 = vpack.c.b16 %v513, %v511
  %v716 = vpack.c.b16 %v514, %v512
  %v717 = vpack.c.b16 %v517, %v515
  %v718 = vpack.c.b16 %v518, %v516
  %v719 = vpack.c.b16 %v521, %v519
  %v720 = vpack.c.b16 %v522, %v520
  %v721 = vpack.c.b16 %v525, %v523
  %v722 = vpack.c.b16 %v526, %v524
  %v723 = vpack.c.b16 %v529, %v527
  %v724 = vpack.c.b16 %v530, %v528
  %v725 = vpack.c.b16 %v533, %v531
  %v726 = vpack.c.b16 %v534, %v532
  %v727 = vpack.c.b16 %v537, %v535
  %v728 = vpack.c.b16 %v538, %v536
  %v729 = vpack.c.b16 %v541, %v539
  %v730 = vpack.c.b16 %v542, %v540
  %v731 = vpack.c.b16 %v545, %v543
  %v732 = vpack.c.b16 %v546, %v544
  %v733 = vpack.c.b16 %v549, %v547
  %v734 = vpack.c.b16 %v550, %v548
  %v735 = vpack.c.b16 %v553, %v551
  %v736 = vpack.c.b16 %v554, %v552
  %v737 = vpack.c.b16 %v557, %v555
  %v738 = vpack.c.b16 %v558, %v556
  %v739 = vpack.c.b16 %v561, %v559
  %v740 = vpack.c.b16 %v562, %v560
  %v741 = vpack.c.b16 %v565, %v563
  %v742 = vpack.c.b16 %v566, %v564
  %v743 = vpack.c.b16 %v569, %v567
  %v744 = vpack.c.b16 %v570, %v568
  %v745 = vpack.c.b16 %v573, %v571
  %v746 = vpack.c.b16 %v574, %v572
  %v747 = vpack.c.b16 %v577, %v575
  %v748 = vpack.c.b16 %v578, %v576
  %v749 = vpack.c.b16 %v581, %v579
  %v750 = vpack.c.b16 %v582, %v580
  %v751 = vpack.c.b16 %v585, %v583
  %v752 = vpack.c.b16 %v586, %v584
  %v753 = vpack.c.b16 %v589, %v587
  %v754 = vpack.c.b16 %v590, %v588
  %v755 = vpack.c.b16 %v593, %v591
  %v756 = vpack.c.b16 %v594, %v592
  %v757 = vpack.c.b16 %v597, %v595
  %v758 = vpack.c.b16 %v598, %v596
  %v759 = vpack.c.b16 %v601, %v599
  %v760 = vpack.c.b16 %v602, %v600
  %v761 = vpack.c.b16 %v605, %v603
  %v762 = vpack.c.b16 %v606, %v604
  %v763 = vpack.c.b16 %v609, %v607
  %v764 = vpack.c.b16 %v610, %v608
  %v765 = vpack.c.b16 %v613, %v611
  %v766 = vpack.c.b16 %v614, %v612
  %v767 = vpack.c.b16 %v617, %v615
  %v768 = vpack.c.b16 %v618, %v616
  %v769 = vpack.c.b16 %v621, %v619
  %v770 = vpack.c.b16 %v622, %v620
  %v771 = vpack.c.b16 %v625, %v623
  %v772 = vpack.c.b16 %v626, %v624
  %v773 = vpack.c.b16 %v629, %v627
  %v774 = vpack.c.b16 %v630, %v628
  %919 = vmatprep.subr.bf16.mxu0 %v632
  %920 = vmatpush1.bf16.msra.mxu0 %v631
  %921 = vmatprep.subr.bf16.mxu0 %v634
  %922 = vmatpush1.bf16.msra.mxu0 %v633
  %923 = vmatprep.subr.bf16.mxu0 %v636
  %924 = vmatpush1.bf16.msra.mxu0 %v635
  %925 = vmatprep.subr.bf16.mxu0 %v638
  %926 = vmatpush1.bf16.msra.mxu0 %v637
  %927 = vmatprep.subr.bf16.mxu0 %v640
  %928 = vmatpush1.bf16.msra.mxu0 %v639
  %929 = vmatprep.subr.bf16.mxu0 %v642
  %930 = vmatpush1.bf16.msra.mxu0 %v641
  %931 = vmatprep.subr.bf16.mxu0 %v644
  %932 = vmatpush1.bf16.msra.mxu0 %v643
  %933 = vmatprep.subr.bf16.mxu0 %v646
  %934 = vmatpush1.bf16.msra.mxu0 %v645
  %935 = vmatprep.subr.bf16.mxu0 %v648
  %936 = vmatpush1.bf16.msra.mxu0 %v647
  %937 = vmatprep.subr.bf16.mxu0 %v650
  %938 = vmatpush1.bf16.msra.mxu0 %v649
  %939 = vmatprep.subr.bf16.mxu0 %v652
  %940 = vmatpush1.bf16.msra.mxu0 %v651
  %941 = vmatprep.subr.bf16.mxu0 %v654
  %942 = vmatpush1.bf16.msra.mxu0 %v653
  %943 = vmatprep.subr.bf16.mxu0 %v656
  %944 = vmatpush1.bf16.msra.mxu0 %v655
  %945 = vmatprep.subr.bf16.mxu0 %v658
  %946 = vmatpush1.bf16.msra.mxu0 %v657
  %947 = vmatprep.subr.bf16.mxu0 %v660
  %948 = vmatpush1.bf16.msra.mxu0 %v659
  %949 = vmatprep.subr.bf16.mxu0 %v662
  %950 = vmatpush1.bf16.msra.mxu0 %v661
  %951 = vmatprep.mubr.bf16.mxu0 %v182
  %952 = vmatmul.mubr.bf16.gmra.mrb[0].mxu0 %v181
  %v953 = vpop.f32.mrb[0].mxu0
  %v954 = vadd.f32 0.0, %v953
  %v955 = vpop.f32.mrb[0].mxu0
  %v956 = vadd.f32 0.0, %v955
  %v957 = vpop.f32.mrb[0].mxu0
  %v958 = vpop.f32.mrb[0].mxu0
  %959 = vdwg.mxu0
  %960 = vmatprep.subr.bf16.mxu0 %v664
  %961 = vmatpush1.bf16.msra.mxu0 %v663
  %962 = vmatprep.subr.bf16.mxu0 %v666
  %963 = vmatpush1.bf16.msra.mxu0 %v665
  %964 = vmatprep.subr.bf16.mxu0 %v668
  %965 = vmatpush1.bf16.msra.mxu0 %v667
  %966 = vmatprep.subr.bf16.mxu0 %v670
  %967 = vmatpush1.bf16.msra.mxu0 %v669
  %968 = vmatprep.subr.bf16.mxu0 %v672
  %969 = vmatpush1.bf16.msra.mxu0 %v671
  %970 = vmatprep.subr.bf16.mxu0 %v674
  %971 = vmatpush1.bf16.msra.mxu0 %v673
  %972 = vmatprep.subr.bf16.mxu0 %v676
  %973 = vmatpush1.bf16.msra.mxu0 %v675
  %974 = vmatprep.subr.bf16.mxu0 %v678
  %975 = vmatpush1.bf16.msra.mxu0 %v677
  %976 = vmatprep.subr.bf16.mxu0 %v680
  %977 = vmatpush1.bf16.msra.mxu0 %v679
  %978 = vmatprep.subr.bf16.mxu0 %v682
  %979 = vmatpush1.bf16.msra.mxu0 %v681
  %980 = vmatprep.subr.bf16.mxu0 %v684
  %981 = vmatpush1.bf16.msra.mxu0 %v683
  %982 = vmatprep.subr.bf16.mxu0 %v686
  %983 = vmatpush1.bf16.msra.mxu0 %v685
  %984 = vmatprep.subr.bf16.mxu0 %v688
  %985 = vmatpush1.bf16.msra.mxu0 %v687
  %986 = vmatprep.subr.bf16.mxu0 %v690
  %987 = vmatpush1.bf16.msra.mxu0 %v689
  %988 = vmatprep.subr.bf16.mxu0 %v692
  %989 = vmatpush1.bf16.msra.mxu0 %v691
  %990 = vmatprep.subr.bf16.mxu0 %v694
  %991 = vmatpush1.bf16.msra.mxu0 %v693
  %992 = vmatprep.mubr.bf16.mxu0 %v184
  %993 = vmatmul.mubr.bf16.gmra.mrb[0].mxu0 %v183
  %v994 = vpop.f32.mrb[0].mxu0
  %v995 = vadd.f32 %v954, %v994
  %v996 = vpop.f32.mrb[0].mxu0
  %v997 = vadd.f32 %v956, %v996
  %v998 = vpop.f32.mrb[0].mxu0
  %v999 = vpop.f32.mrb[0].mxu0
  %1000 = vdwg.mxu0
  %1001 = vmatprep.subr.bf16.mxu0 %v696
  %1002 = vmatpush1.bf16.msra.mxu0 %v695
  %1003 = vmatprep.subr.bf16.mxu0 %v698
  %1004 = vmatpush1.bf16.msra.mxu0 %v697
  %1005 = vmatprep.subr.bf16.mxu0 %v700
  %1006 = vmatpush1.bf16.msra.mxu0 %v699
  %1007 = vmatprep.subr.bf16.mxu0 %v702
  %1008 = vmatpush1.bf16.msra.mxu0 %v701
  %1009 = vmatprep.subr.bf16.mxu0 %v704
  %1010 = vmatpush1.bf16.msra.mxu0 %v703
  %1011 = vmatprep.subr.bf16.mxu0 %v706
  %1012 = vmatpush1.bf16.msra.mxu0 %v705
  %1013 = vmatprep.subr.bf16.mxu0 %v708
  %1014 = vmatpush1.bf16.msra.mxu0 %v707
  %1015 = vmatprep.subr.bf16.mxu0 %v710
  %1016 = vmatpush1.bf16.msra.mxu0 %v709
  %1017 = vmatprep.subr.bf16.mxu0 %v712
  %1018 = vmatpush1.bf16.msra.mxu0 %v711
  %1019 = vmatprep.subr.bf16.mxu0 %v714
  %1020 = vmatpush1.bf16.msra.mxu0 %v713
  %1021 = vmatprep.subr.bf16.mxu0 %v716
  %1022 = vmatpush1.bf16.msra.mxu0 %v715
  %1023 = vmatprep.subr.bf16.mxu0 %v718
  %1024 = vmatpush1.bf16.msra.mxu0 %v717
  %1025 = vmatprep.subr.bf16.mxu0 %v720
  %1026 = vmatpush1.bf16.msra.mxu0 %v719
  %1027 = vmatprep.subr.bf16.mxu0 %v722
  %1028 = vmatpush1.bf16.msra.mxu0 %v721
  %1029 = vmatprep.subr.bf16.mxu0 %v724
  %1030 = vmatpush1.bf16.msra.mxu0 %v723
  %1031 = vmatprep.subr.bf16.mxu0 %v726
  %1032 = vmatpush1.bf16.msra.mxu0 %v725
  %1033 = vmatprep.mubr.bf16.mxu0 %v186
  %1034 = vmatmul.mubr.bf16.gmra.mrb[0].mxu0 %v185
  %v1035 = vpop.f32.mrb[0].mxu0
  %v1036 = vadd.f32 %v995, %v1035
  %v1037 = vpop.f32.mrb[0].mxu0
  %v1038 = vadd.f32 %v997, %v1037
  %v1039 = vpop.f32.mrb[0].mxu0
  %v1040 = vpop.f32.mrb[0].mxu0
  %1041 = vdwg.mxu0
  %1042 = vmatprep.subr.bf16.mxu0 %v728
  %1043 = vmatpush1.bf16.msra.mxu0 %v727
  %1044 = vmatprep.subr.bf16.mxu0 %v730
  %1045 = vmatpush1.bf16.msra.mxu0 %v729
  %1046 = vmatprep.subr.bf16.mxu0 %v732
  %1047 = vmatpush1.bf16.msra.mxu0 %v731
  %1048 = vmatprep.subr.bf16.mxu0 %v734
  %1049 = vmatpush1.bf16.msra.mxu0 %v733
  %1050 = vmatprep.subr.bf16.mxu0 %v736
  %1051 = vmatpush1.bf16.msra.mxu0 %v735
  %1052 = vmatprep.subr.bf16.mxu0 %v738
  %1053 = vmatpush1.bf16.msra.mxu0 %v737
  %1054 = vmatprep.subr.bf16.mxu0 %v740
  %1055 = vmatpush1.bf16.msra.mxu0 %v739
  %1056 = vmatprep.subr.bf16.mxu0 %v742
  %1057 = vmatpush1.bf16.msra.mxu0 %v741
  %1058 = vmatprep.subr.bf16.mxu0 %v744
  %1059 = vmatpush1.bf16.msra.mxu0 %v743
  %1060 = vmatprep.subr.bf16.mxu0 %v746
  %1061 = vmatpush1.bf16.msra.mxu0 %v745
  %1062 = vmatprep.subr.bf16.mxu0 %v748
  %1063 = vmatpush1.bf16.msra.mxu0 %v747
  %1064 = vmatprep.subr.bf16.mxu0 %v750
  %1065 = vmatpush1.bf16.msra.mxu0 %v749
  %1066 = vmatprep.subr.bf16.mxu0 %v752
  %1067 = vmatpush1.bf16.msra.mxu0 %v751
  %1068 = vmatprep.subr.bf16.mxu0 %v754
  %1069 = vmatpush1.bf16.msra.mxu0 %v753
  %1070 = vmatprep.subr.bf16.mxu0 %v756
  %1071 = vmatpush1.bf16.msra.mxu0 %v755
  %1072 = vmatprep.subr.bf16.mxu0 %v758
  %1073 = vmatpush1.bf16.msra.mxu0 %v757
  %1074 = vmatprep.mubr.bf16.mxu0 %v188
  %1075 = vmatmul.mubr.bf16.gmra.mrb[0].mxu0 %v187
  %v1076 = vpop.f32.mrb[0].mxu0
  %v1077 = vadd.f32 %v1036, %v1076
  %v1078 = vpop.f32.mrb[0].mxu0
  %v1079 = vadd.f32 %v1038, %v1078
  %v1080 = vpop.f32.mrb[0].mxu0
  %v1081 = vpop.f32.mrb[0].mxu0
  %1082 = vdwg.mxu0
  %1083 = vmatprep.subr.bf16.mxu0 %v760
  %1084 = vmatpush1.bf16.msra.mxu0 %v759
  %1085 = vmatprep.subr.bf16.mxu0 %v762
  %1086 = vmatpush1.bf16.msra.mxu0 %v761
  %1087 = vmatprep.subr.bf16.mxu0 %v764
  %1088 = vmatpush1.bf16.msra.mxu0 %v763
  %1089 = vmatprep.subr.bf16.mxu0 %v766
  %1090 = vmatpush1.bf16.msra.mxu0 %v765
  %1091 = vmatprep.subr.bf16.mxu0 %v768
  %1092 = vmatpush1.bf16.msra.mxu0 %v767
  %1093 = vmatprep.subr.bf16.mxu0 %v770
  %1094 = vmatpush1.bf16.msra.mxu0 %v769
  %1095 = vmatprep.subr.bf16.mxu0 %v772
  %1096 = vmatpush1.bf16.msra.mxu0 %v771
  %1097 = vmatprep.subr.bf16.mxu0 %v774
  %1098 = vmatpush1.bf16.msra.mxu0 %v773
  %1099 = vmatprep.subr.bf16.mxu0 0
  %1100 = vmatpush1.bf16.msra.mxu0 0
  %1101 = vmatprep.subr.bf16.mxu0 0
  %1102 = vmatpush1.bf16.msra.mxu0 0
  %1103 = vmatprep.subr.bf16.mxu0 0
  %1104 = vmatpush1.bf16.msra.mxu0 0
  %1105 = vmatprep.subr.bf16.mxu0 0
  %1106 = vmatpush1.bf16.msra.mxu0 0
  %1107 = vmatprep.subr.bf16.mxu0 0
  %1108 = vmatpush1.bf16.msra.mxu0 0
  %1109 = vmatprep.subr.bf16.mxu0 0
  %1110 = vmatpush1.bf16.msra.mxu0 0
  %1111 = vmatprep.subr.bf16.mxu0 0
  %1112 = vmatpush1.bf16.msra.mxu0 0
  %1113 = vmatprep.subr.bf16.mxu0 0
  %1114 = vmatpush1.bf16.msra.mxu0 0
  %1115 = vmatprep.mubr.bf16.mxu0 0
  %1116 = vmatmul.mubr.bf16.gmra.mrb[0].mxu0 %v189
  %v1117 = vpop.f32.mrb[0].mxu0
  %v1118 = vadd.f32 %v1077, %v1117
  %v1119 = vpop.f32.mrb[0].mxu0
  %v1120 = vadd.f32 %v1079, %v1119
  %v1121 = vpop.f32.mrb[0].mxu0
  %v1122 = vpop.f32.mrb[0].mxu0
  %1123 = vdwg.mxu0
  %v1124 = vld [vmem:[%s2] sm:$0x3]
  %v1126 = vlaneseq
  %v1127 = vshrl.u32 %v1126, 7
  %v1128 = vsub.s32 0, %v1127
  %v1129 = vrot.slane %v1124, %v1128
  %v1130 = vlaneseq
  %v1131 = vshrl.u32 %v1130, 7
  %v1132 = vsub.s32 1, %v1131
  %v1133 = vrot.slane %v1124, %v1132
  %v1136 = vmul.f32 %v1118, %v1129
  %v1137 = vmul.f32 %v1120, %v1133
  %v1138 = vld [vmem:[%s3] sm:$0x3]
  %v1140 = vlaneseq
  %v1141 = vshrl.u32 %v1140, 7
  %v1142 = vsub.s32 0, %v1141
  %v1143 = vrot.slane %v1138, %v1142
  %v1144 = vlaneseq
  %v1145 = vshrl.u32 %v1144, 7
  %v1146 = vsub.s32 1, %v1145
  %v1147 = vrot.slane %v1138, %v1146
  %v1150 = vadd.f32 %v1136, %v1143
  %v1151 = vadd.f32 %v1137, %v1147
  %v1152 = vmax.f32 %v1150, 0.0
  %v1153 = vmax.f32 %v1151, 0.0
  %v1154 = vpack.c.bf16 %v1152, %v1152
  %v1155 = vpack.c.bf16 %v1153, %v1153
  %v1158 = vunpack.c.l.b16 %v1154
  %v1159 = vunpack.c.l.b16 %v1155
  %v1160 = vpack.c.b16 %v1159, %v1158
  %1162 = vst [vmem:[%s4] sm:$0xff] %v1160
  // Predicated region
  $region18: #{kpnet_forward.10} parent=0 // pred_check
    _
  $region19: #{kpnet_forward.10} parent=0 // pred_check_branch
    %1164 = sbr.rel (0) target = $region21
  $region20: #{kpnet_forward.10} parent=0 // pred_region
    _
  $region21: #{kpnet_forward.10} parent=0 // pred_fallthru
    _
  // Predicated region
  $region22: #{kpnet_forward.10} parent=0 // pred_check
    _
  $region23: #{kpnet_forward.10} parent=0 // pred_check_branch
    %1166 = sbr.rel (0) target = $region25
  $region24: #{kpnet_forward.10} parent=0 // pred_region
    _
  $region25: #{kpnet_forward.10} parent=0 // pred_fallthru
    _

// kernel: kpnet_forward.11
$region0: #{kpnet_forward.11}
  #allocation0 [shape = 'u32[]', space=smem, size = 0x4, offset = 0x4, fixed_abs, tag = 'smem constant byte address 0x4 - core index']
  #allocation1 [shape = 'u32[144,128]{1,0:T(1,128)}', space=vmem, size = 0x12000, scoped, tag = 'internal scratch']
  %s0 = inlined_call_operand.vmem [shape: bf16[8,2304], index: 0, kind: input, shape index: {}]
  %s1 = inlined_call_operand.vmem [shape: bf16[2304,256], index: 1, kind: input, shape index: {}]
  %s2 = inlined_call_operand.vmem [shape: f32[1,256], index: 2, kind: input, shape index: {}]
  %s3 = inlined_call_operand.vmem [shape: f32[1,256], index: 3, kind: input, shape index: {}]
  %s4 = inlined_call_operand.vmem [shape: bf16[256,512], index: 4, kind: input, shape index: {}]
  %s5 = inlined_call_operand.vmem [shape: f32[1,512], index: 5, kind: input, shape index: {}]
  %s6 = inlined_call_operand.vmem [shape: f32[1,512], index: 6, kind: input, shape index: {}]
  %s7 = inlined_call_operand.vmem [shape: bf16[512,15], index: 7, kind: input, shape index: {}]
  %s8 = inlined_call_operand.vmem [shape: f32[1,15], index: 8, kind: input, shape index: {}]
  %s9 = inlined_call_operand.vmem [shape: f32[1,15], index: 9, kind: input, shape index: {}]
  %s10 = inlined_call_operand.hbm [shape: f32[8,15], index: 10, kind: output, shape index: {}]
  %s11 = sld [smem:[#allocation0]]
  $region50: #{kpnet_forward.11} parent=0
    _
  %s13 = ssub.s32 1, %s11
  %s14 = scalar_select 0, %s13, %s11
  $region1: #{kpnet_forward.11} parent=0
    #allocation2 [shape = 'u8[4096]{0}', space=vmem, size = 0x1000, scoped, tag = 'output window, operand 0, single buffered']
    #allocation3 [shape = 's32[1]{0}', space=sflag, size = 0x4, scoped, tag = 'scoped memory for kpnet_forward.11']
    %15 = vsyncpa [#allocation3], 0
    // Predicated region
    $region2: #{kpnet_forward.11} parent=1 // pred_check
      _
    $region3: #{kpnet_forward.11} parent=1 // pred_check_branch
      %17 = sbr.rel (0) target = $region5
    $region4: #{kpnet_forward.11} parent=1 // pred_region
      _
    $region5: #{kpnet_forward.11} parent=1 // pred_fallthru
      _
    // Predicated region
    $region6: #{kpnet_forward.11} parent=1 // pred_check
      _
    $region7: #{kpnet_forward.11} parent=1 // pred_check_branch
      %19 = sbr.rel (0) target = $region9
    $region8: #{kpnet_forward.11} parent=1 // pred_region
      _
    $region9: #{kpnet_forward.11} parent=1 // pred_fallthru
      _
    // Predicated region
    $region10: #{kpnet_forward.11} parent=1 // pred_check
      _
    $region11: #{kpnet_forward.11} parent=1 // pred_check_branch
      %21 = sbr.rel (0) target = $region13
    $region12: #{kpnet_forward.11} parent=1 // pred_region
      _
    $region13: #{kpnet_forward.11} parent=1 // pred_fallthru
      _
    // Predicated region
    $region14: #{kpnet_forward.11} parent=1 // pred_check
      _
    $region15: #{kpnet_forward.11} parent=1 // pred_check_branch
      %23 = sbr.rel (0) target = $region17
    $region16: #{kpnet_forward.11} parent=1 // pred_region
      _
    $region17: #{kpnet_forward.11} parent=1 // pred_fallthru
      _
    // Predicated region
    $region18: #{kpnet_forward.11} parent=1 // pred_check
      _
    $region19: #{kpnet_forward.11} parent=1 // pred_check_branch
      %25 = sbr.rel (0) target = $region21
    $region20: #{kpnet_forward.11} parent=1 // pred_region
      _
    $region21: #{kpnet_forward.11} parent=1 // pred_fallthru
      _
    // Predicated region
    $region22: #{kpnet_forward.11} parent=1 // pred_check
      _
    $region23: #{kpnet_forward.11} parent=1 // pred_check_branch
      %27 = sbr.rel (0) target = $region25
    $region24: #{kpnet_forward.11} parent=1 // pred_region
      _
    $region25: #{kpnet_forward.11} parent=1 // pred_fallthru
      _
    // Predicated region
    $region26: #{kpnet_forward.11} parent=1 // pred_check
      _
    $region27: #{kpnet_forward.11} parent=1 // pred_check_branch
      %29 = sbr.rel (0) target = $region29
    $region28: #{kpnet_forward.11} parent=1 // pred_region
      _
    $region29: #{kpnet_forward.11} parent=1 // pred_fallthru
      _
    // Predicated region
    $region30: #{kpnet_forward.11} parent=1 // pred_check
      _
    $region31: #{kpnet_forward.11} parent=1 // pred_check_branch
      %31 = sbr.rel (0) target = $region33
    $region32: #{kpnet_forward.11} parent=1 // pred_region
      _
    $region33: #{kpnet_forward.11} parent=1 // pred_fallthru
      _
    // Predicated region
    $region34: #{kpnet_forward.11} parent=1 // pred_check
      _
    $region35: #{kpnet_forward.11} parent=1 // pred_check_branch
      %33 = sbr.rel (0) target = $region37
    $region36: #{kpnet_forward.11} parent=1 // pred_region
      _
    $region37: #{kpnet_forward.11} parent=1 // pred_fallthru
      _
    // Predicated region
    $region38: #{kpnet_forward.11} parent=1 // pred_check
      _
    $region39: #{kpnet_forward.11} parent=1 // pred_check_branch
      %35 = sbr.rel (0) target = $region41
    $region40: #{kpnet_forward.11} parent=1 // pred_region
      _
    $region41: #{kpnet_forward.11} parent=1 // pred_fallthru
      _
    %v37 = vld [vmem:[%s0] sm:$0xff]
    %v38 = vld [vmem:[%s0 + $0x8] sm:$0xff]
    %v39 = vld [vmem:[%s0 + $0x10] sm:$0xff]
    %v40 = vld [vmem:[%s0 + $0x18] sm:$0xff]
    %v41 = vld [vmem:[%s0 + $0x20] sm:$0xff]
    %v42 = vld [vmem:[%s0 + $0x28] sm:$0xff]
    %v43 = vld [vmem:[%s0 + $0x30] sm:$0xff]
    %v44 = vld [vmem:[%s0 + $0x38] sm:$0xff]
    %v45 = vld [vmem:[%s0 + $0x40] sm:$0xff]
    %v46 = vld [vmem:[%s1] sm:$0xff]
    %v47 = vld [vmem:[%s1 + $0x8] sm:$0xff]
    %v48 = vld [vmem:[%s1 + $0x10] sm:$0xff]
    %v49 = vld [vmem:[%s1 + $0x18] sm:$0xff]
    %v50 = vld [vmem:[%s1 + $0x20] sm:$0xff]
    %v51 = vld [vmem:[%s1 + $0x28] sm:$0xff]
    %v52 = vld [vmem:[%s1 + $0x30] sm:$0xff]
    %v53 = vld [vmem:[%s1 + $0x38] sm:$0xff]
    %v54 = vld [vmem:[%s1 + $0x40] sm:$0xff]
    %v55 = vld [vmem:[%s1 + $0x48] sm:$0xff]
    %v56 = vld [vmem:[%s1 + $0x50] sm:$0xff]
    %v57 = vld [vmem:[%s1 + $0x58] sm:$0xff]
    %v58 = vld [vmem:[%s1 + $0x60] sm:$0xff]
    %v59 = vld [vmem:[%s1 + $0x68] sm:$0xff]
    %v60 = vld [vmem:[%s1 + $0x70] sm:$0xff]
    %v61 = vld [vmem:[%s1 + $0x78] sm:$0xff]
    %v62 = vld [vmem:[%s1 + $0x80] sm:$0xff]
    %v63 = vld [vmem:[%s1 + $0x88] sm:$0xff]
    %v64 = vld [vmem:[%s1 + $0x90] sm:$0xff]
    %v65 = vld [vmem:[%s1 + $0x98] sm:$0xff]
    %v66 = vld [vmem:[%s1 + $0xa0] sm:$0xff]
    %v67 = vld [vmem:[%s1 + $0xa8] sm:$0xff]
    %v68 = vld [vmem:[%s1 + $0xb0] sm:$0xff]
    %v69 = vld [vmem:[%s1 + $0xb8] sm:$0xff]
    %v70 = vld [vmem:[%s1 + $0xc0] sm:$0xff]
    %v71 = vld [vmem:[%s1 + $0xc8] sm:$0xff]
    %v72 = vld [vmem:[%s1 + $0xd0] sm:$0xff]
    %v73 = vld [vmem:[%s1 + $0xd8] sm:$0xff]
    %v74 = vld [vmem:[%s1 + $0xe0] sm:$0xff]
    %v75 = vld [vmem:[%s1 + $0xe8] sm:$0xff]
    %v76 = vld [vmem:[%s1 + $0xf0] sm:$0xff]
    %v77 = vld [vmem:[%s1 + $0xf8] sm:$0xff]
    %v78 = vld [vmem:[%s1 + $0x100] sm:$0xff]
    %v79 = vld [vmem:[%s1 + $0x108] sm:$0xff]
    %v80 = vld [vmem:[%s1 + $0x110] sm:$0xff]
    %v81 = vld [vmem:[%s1 + $0x118] sm:$0xff]
    %v82 = vld [vmem:[%s1 + $0x120] sm:$0xff]
    %v83 = vld [vmem:[%s1 + $0x128] sm:$0xff]
    %v84 = vld [vmem:[%s1 + $0x130] sm:$0xff]
    %v85 = vld [vmem:[%s1 + $0x138] sm:$0xff]
    %v86 = vld [vmem:[%s1 + $0x140] sm:$0xff]
    %v87 = vld [vmem:[%s1 + $0x148] sm:$0xff]
    %v88 = vld [vmem:[%s1 + $0x150] sm:$0xff]
    %v89 = vld [vmem:[%s1 + $0x158] sm:$0xff]
    %v90 = vld [vmem:[%s1 + $0x160] sm:$0xff]
    %v91 = vld [vmem:[%s1 + $0x168] sm:$0xff]
    %v92 = vld [vmem:[%s1 + $0x170] sm:$0xff]
    %v93 = vld [vmem:[%s1 + $0x178] sm:$0xff]
    %v94 = vld [vmem:[%s1 + $0x180] sm:$0xff]
    %v95 = vld [vmem:[%s1 + $0x188] sm:$0xff]
    %v96 = vld [vmem:[%s1 + $0x190] sm:$0xff]
    %v97 = vld [vmem:[%s1 + $0x198] sm:$0xff]
    %v98 = vld [vmem:[%s1 + $0x1a0] sm:$0xff]
    %v99 = vld [vmem:[%s1 + $0x1a8] sm:$0xff]
    %v100 = vld [vmem:[%s1 + $0x1b0] sm:$0xff]
    %v101 = vld [vmem:[%s1 + $0x1b8] sm:$0xff]
    %v102 = vld [vmem:[%s1 + $0x1c0] sm:$0xff]
    %v103 = vld [vmem:[%s1 + $0x1c8] sm:$0xff]
    %v104 = vld [vmem:[%s1 + $0x1d0] sm:$0xff]
    %v105 = vld [vmem:[%s1 + $0x1d8] sm:$0xff]
    %v106 = vld [vmem:[%s1 + $0x1e0] sm:$0xff]
    %v107 = vld [vmem:[%s1 + $0x1e8] sm:$0xff]
    %v108 = vld [vmem:[%s1 + $0x1f0] sm:$0xff]
    %v109 = vld [vmem:[%s1 + $0x1f8] sm:$0xff]
    %v110 = vld [vmem:[%s1 + $0x200] sm:$0xff]
    %v111 = vld [vmem:[%s1 + $0x208] sm:$0xff]
    %v112 = vld [vmem:[%s1 + $0x210] sm:$0xff]
    %v113 = vld [vmem:[%s1 + $0x218] sm:$0xff]
    %v114 = vld [vmem:[%s1 + $0x220] sm:$0xff]
    %v115 = vld [vmem:[%s1 + $0x228] sm:$0xff]
    %v116 = vld [vmem:[%s1 + $0x230] sm:$0xff]
    %v117 = vld [vmem:[%s1 + $0x238] sm:$0xff]
    %v118 = vld [vmem:[%s1 + $0x240] sm:$0xff]
    %v119 = vld [vmem:[%s1 + $0x248] sm:$0xff]
    %v120 = vld [vmem:[%s1 + $0x250] sm:$0xff]
    %v121 = vld [vmem:[%s1 + $0x258] sm:$0xff]
    %v122 = vld [vmem:[%s1 + $0x260] sm:$0xff]
    %v123 = vld [vmem:[%s1 + $0x268] sm:$0xff]
    %v124 = vld [vmem:[%s1 + $0x270] sm:$0xff]
    %v125 = vld [vmem:[%s1 + $0x278] sm:$0xff]
    %v126 = vld [vmem:[%s1 + $0x280] sm:$0xff]
    %v127 = vld [vmem:[%s1 + $0x288] sm:$0xff]
    %v128 = vld [vmem:[%s1 + $0x290] sm:$0xff]
    %v129 = vld [vmem:[%s1 + $0x298] sm:$0xff]
    %v130 = vld [vmem:[%s1 + $0x2a0] sm:$0xff]
    %v131 = vld [vmem:[%s1 + $0x2a8] sm:$0xff]
    %v132 = vld [vmem:[%s1 + $0x2b0] sm:$0xff]
    %v133 = vld [vmem:[%s1 + $0x2b8] sm:$0xff]
    %v134 = vld [vmem:[%s1 + $0x2c0] sm:$0xff]
    %v135 = vld [vmem:[%s1 + $0x2c8] sm:$0xff]
    %v136 = vld [vmem:[%s1 + $0x2d0] sm:$0xff]
    %v137 = vld [vmem:[%s1 + $0x2d8] sm:$0xff]
    %v138 = vld [vmem:[%s1 + $0x2e0] sm:$0xff]
    %v139 = vld [vmem:[%s1 + $0x2e8] sm:$0xff]
    %v140 = vld [vmem:[%s1 + $0x2f0] sm:$0xff]
    %v141 = vld [vmem:[%s1 + $0x2f8] sm:$0xff]
    %v142 = vld [vmem:[%s1 + $0x300] sm:$0xff]
    %v143 = vld [vmem:[%s1 + $0x308] sm:$0xff]
    %v144 = vld [vmem:[%s1 + $0x310] sm:$0xff]
    %v145 = vld [vmem:[%s1 + $0x318] sm:$0xff]
    %v146 = vld [vmem:[%s1 + $0x320] sm:$0xff]
    %v147 = vld [vmem:[%s1 + $0x328] sm:$0xff]
    %v148 = vld [vmem:[%s1 + $0x330] sm:$0xff]
    %v149 = vld [vmem:[%s1 + $0x338] sm:$0xff]
    %v150 = vld [vmem:[%s1 + $0x340] sm:$0xff]
    %v151 = vld [vmem:[%s1 + $0x348] sm:$0xff]
    %v152 = vld [vmem:[%s1 + $0x350] sm:$0xff]
    %v153 = vld [vmem:[%s1 + $0x358] sm:$0xff]
    %v154 = vld [vmem:[%s1 + $0x360] sm:$0xff]
    %v155 = vld [vmem:[%s1 + $0x368] sm:$0xff]
    %v156 = vld [vmem:[%s1 + $0x370] sm:$0xff]
    %v157 = vld [vmem:[%s1 + $0x378] sm:$0xff]
    %v158 = vld [vmem:[%s1 + $0x380] sm:$0xff]
    %v159 = vld [vmem:[%s1 + $0x388] sm:$0xff]
    %v160 = vld [vmem:[%s1 + $0x390] sm:$0xff]
    %v161 = vld [vmem:[%s1 + $0x398] sm:$0xff]
    %v162 = vld [vmem:[%s1 + $0x3a0] sm:$0xff]
    %v163 = vld [vmem:[%s1 + $0x3a8] sm:$0xff]
    %v164 = vld [vmem:[%s1 + $0x3b0] sm:$0xff]
    %v165 = vld [vmem:[%s1 + $0x3b8] sm:$0xff]
    %v166 = vld [vmem:[%s1 + $0x3c0] sm:$0xff]
    %v167 = vld [vmem:[%s1 + $0x3c8] sm:$0xff]
    %v168 = vld [vmem:[%s1 + $0x3d0] sm:$0xff]
    %v169 = vld [vmem:[%s1 + $0x3d8] sm:$0xff]
    %v170 = vld [vmem:[%s1 + $0x3e0] sm:$0xff]
    %v171 = vld [vmem:[%s1 + $0x3e8] sm:$0xff]
    %v172 = vld [vmem:[%s1 + $0x3f0] sm:$0xff]
    %v173 = vld [vmem:[%s1 + $0x3f8] sm:$0xff]
    %v174 = vld [vmem:[%s1 + $0x400] sm:$0xff]
    %v175 = vld [vmem:[%s1 + $0x408] sm:$0xff]
    %v176 = vld [vmem:[%s1 + $0x410] sm:$0xff]
    %v177 = vld [vmem:[%s1 + $0x418] sm:$0xff]
    %v178 = vld [vmem:[%s1 + $0x420] sm:$0xff]
    %v179 = vld [vmem:[%s1 + $0x428] sm:$0xff]
    %v180 = vld [vmem:[%s1 + $0x430] sm:$0xff]
    %v181 = vld [vmem:[%s1 + $0x438] sm:$0xff]
    %v182 = vld [vmem:[%s1 + $0x440] sm:$0xff]
    %v183 = vld [vmem:[%s1 + $0x448] sm:$0xff]
    %v184 = vld [vmem:[%s1 + $0x450] sm:$0xff]
    %v185 = vld [vmem:[%s1 + $0x458] sm:$0xff]
    %v186 = vld [vmem:[%s1 + $0x460] sm:$0xff]
    %v187 = vld [vmem:[%s1 + $0x468] sm:$0xff]
    %v188 = vld [vmem:[%s1 + $0x470] sm:$0xff]
    %v189 = vld [vmem:[%s1 + $0x478] sm:$0xff]
    %v190 = vld [vmem:[%s1 + $0x480] sm:$0xff]
    %v191 = vld [vmem:[%s1 + $0x488] sm:$0xff]
    %v192 = vld [vmem:[%s1 + $0x490] sm:$0xff]
    %v193 = vld [vmem:[%s1 + $0x498] sm:$0xff]
    %v194 = vld [vmem:[%s1 + $0x4a0] sm:$0xff]
    %v195 = vld [vmem:[%s1 + $0x4a8] sm:$0xff]
    %v196 = vld [vmem:[%s1 + $0x4b0] sm:$0xff]
    %v197 = vld [vmem:[%s1 + $0x4b8] sm:$0xff]
    %v198 = vld [vmem:[%s1 + $0x4c0] sm:$0xff]
    %v199 = vld [vmem:[%s1 + $0x4c8] sm:$0xff]
    %v200 = vld [vmem:[%s1 + $0x4d0] sm:$0xff]
    %v201 = vld [vmem:[%s1 + $0x4d8] sm:$0xff]
    %v202 = vld [vmem:[%s1 + $0x4e0] sm:$0xff]
    %v203 = vld [vmem:[%s1 + $0x4e8] sm:$0xff]
    %v204 = vld [vmem:[%s1 + $0x4f0] sm:$0xff]
    %v205 = vld [vmem:[%s1 + $0x4f8] sm:$0xff]
    %v206 = vld [vmem:[%s1 + $0x500] sm:$0xff]
    %v207 = vld [vmem:[%s1 + $0x508] sm:$0xff]
    %v208 = vld [vmem:[%s1 + $0x510] sm:$0xff]
    %v209 = vld [vmem:[%s1 + $0x518] sm:$0xff]
    %v210 = vld [vmem:[%s1 + $0x520] sm:$0xff]
    %v211 = vld [vmem:[%s1 + $0x528] sm:$0xff]
    %v212 = vld [vmem:[%s1 + $0x530] sm:$0xff]
    %v213 = vld [vmem:[%s1 + $0x538] sm:$0xff]
    %v214 = vld [vmem:[%s1 + $0x540] sm:$0xff]
    %v215 = vld [vmem:[%s1 + $0x548] sm:$0xff]
    %v216 = vld [vmem:[%s1 + $0x550] sm:$0xff]
    %v217 = vld [vmem:[%s1 + $0x558] sm:$0xff]
    %v218 = vld [vmem:[%s1 + $0x560] sm:$0xff]
    %v219 = vld [vmem:[%s1 + $0x568] sm:$0xff]
    %v220 = vld [vmem:[%s1 + $0x570] sm:$0xff]
    %v221 = vld [vmem:[%s1 + $0x578] sm:$0xff]
    %v222 = vld [vmem:[%s1 + $0x580] sm:$0xff]
    %v223 = vld [vmem:[%s1 + $0x588] sm:$0xff]
    %v224 = vld [vmem:[%s1 + $0x590] sm:$0xff]
    %v225 = vld [vmem:[%s1 + $0x598] sm:$0xff]
    %v226 = vld [vmem:[%s1 + $0x5a0] sm:$0xff]
    %v227 = vld [vmem:[%s1 + $0x5a8] sm:$0xff]
    %v228 = vld [vmem:[%s1 + $0x5b0] sm:$0xff]
    %v229 = vld [vmem:[%s1 + $0x5b8] sm:$0xff]
    %v230 = vld [vmem:[%s1 + $0x5c0] sm:$0xff]
    %v231 = vld [vmem:[%s1 + $0x5c8] sm:$0xff]
    %v232 = vld [vmem:[%s1 + $0x5d0] sm:$0xff]
    %v233 = vld [vmem:[%s1 + $0x5d8] sm:$0xff]
    %v234 = vld [vmem:[%s1 + $0x5e0] sm:$0xff]
    %v235 = vld [vmem:[%s1 + $0x5e8] sm:$0xff]
    %v236 = vld [vmem:[%s1 + $0x5f0] sm:$0xff]
    %v237 = vld [vmem:[%s1 + $0x5f8] sm:$0xff]
    %v238 = vld [vmem:[%s1 + $0x600] sm:$0xff]
    %v239 = vld [vmem:[%s1 + $0x608] sm:$0xff]
    %v240 = vld [vmem:[%s1 + $0x610] sm:$0xff]
    %v241 = vld [vmem:[%s1 + $0x618] sm:$0xff]
    %v242 = vld [vmem:[%s1 + $0x620] sm:$0xff]
    %v243 = vld [vmem:[%s1 + $0x628] sm:$0xff]
    %v244 = vld [vmem:[%s1 + $0x630] sm:$0xff]
    %v245 = vld [vmem:[%s1 + $0x638] sm:$0xff]
    %v246 = vld [vmem:[%s1 + $0x640] sm:$0xff]
    %v247 = vld [vmem:[%s1 + $0x648] sm:$0xff]
    %v248 = vld [vmem:[%s1 + $0x650] sm:$0xff]
    %v249 = vld [vmem:[%s1 + $0x658] sm:$0xff]
    %v250 = vld [vmem:[%s1 + $0x660] sm:$0xff]
    %v251 = vld [vmem:[%s1 + $0x668] sm:$0xff]
    %v252 = vld [vmem:[%s1 + $0x670] sm:$0xff]
    %v253 = vld [vmem:[%s1 + $0x678] sm:$0xff]
    %v254 = vld [vmem:[%s1 + $0x680] sm:$0xff]
    %v255 = vld [vmem:[%s1 + $0x688] sm:$0xff]
    %v256 = vld [vmem:[%s1 + $0x690] sm:$0xff]
    %v257 = vld [vmem:[%s1 + $0x698] sm:$0xff]
    %v258 = vld [vmem:[%s1 + $0x6a0] sm:$0xff]
    %v259 = vld [vmem:[%s1 + $0x6a8] sm:$0xff]
    %v260 = vld [vmem:[%s1 + $0x6b0] sm:$0xff]
    %v261 = vld [vmem:[%s1 + $0x6b8] sm:$0xff]
    %v262 = vld [vmem:[%s1 + $0x6c0] sm:$0xff]
    %v263 = vld [vmem:[%s1 + $0x6c8] sm:$0xff]
    %v264 = vld [vmem:[%s1 + $0x6d0] sm:$0xff]
    %v265 = vld [vmem:[%s1 + $0x6d8] sm:$0xff]
    %v266 = vld [vmem:[%s1 + $0x6e0] sm:$0xff]
    %v267 = vld [vmem:[%s1 + $0x6e8] sm:$0xff]
    %v268 = vld [vmem:[%s1 + $0x6f0] sm:$0xff]
    %v269 = vld [vmem:[%s1 + $0x6f8] sm:$0xff]
    %v270 = vld [vmem:[%s1 + $0x700] sm:$0xff]
    %v271 = vld [vmem:[%s1 + $0x708] sm:$0xff]
    %v272 = vld [vmem:[%s1 + $0x710] sm:$0xff]
    %v273 = vld [vmem:[%s1 + $0x718] sm:$0xff]
    %v274 = vld [vmem:[%s1 + $0x720] sm:$0xff]
    %v275 = vld [vmem:[%s1 + $0x728] sm:$0xff]
    %v276 = vld [vmem:[%s1 + $0x730] sm:$0xff]
    %v277 = vld [vmem:[%s1 + $0x738] sm:$0xff]
    %v278 = vld [vmem:[%s1 + $0x740] sm:$0xff]
    %v279 = vld [vmem:[%s1 + $0x748] sm:$0xff]
    %v280 = vld [vmem:[%s1 + $0x750] sm:$0xff]
    %v281 = vld [vmem:[%s1 + $0x758] sm:$0xff]
    %v282 = vld [vmem:[%s1 + $0x760] sm:$0xff]
    %v283 = vld [vmem:[%s1 + $0x768] sm:$0xff]
    %v284 = vld [vmem:[%s1 + $0x770] sm:$0xff]
    %v285 = vld [vmem:[%s1 + $0x778] sm:$0xff]
    %v286 = vld [vmem:[%s1 + $0x780] sm:$0xff]
    %v287 = vld [vmem:[%s1 + $0x788] sm:$0xff]
    %v288 = vld [vmem:[%s1 + $0x790] sm:$0xff]
    %v289 = vld [vmem:[%s1 + $0x798] sm:$0xff]
    %v290 = vld [vmem:[%s1 + $0x7a0] sm:$0xff]
    %v291 = vld [vmem:[%s1 + $0x7a8] sm:$0xff]
    %v292 = vld [vmem:[%s1 + $0x7b0] sm:$0xff]
    %v293 = vld [vmem:[%s1 + $0x7b8] sm:$0xff]
    %v294 = vld [vmem:[%s1 + $0x7c0] sm:$0xff]
    %v295 = vld [vmem:[%s1 + $0x7c8] sm:$0xff]
    %v296 = vld [vmem:[%s1 + $0x7d0] sm:$0xff]
    %v297 = vld [vmem:[%s1 + $0x7d8] sm:$0xff]
    %v298 = vld [vmem:[%s1 + $0x7e0] sm:$0xff]
    %v299 = vld [vmem:[%s1 + $0x7e8] sm:$0xff]
    %v300 = vld [vmem:[%s1 + $0x7f0] sm:$0xff]
    %v301 = vld [vmem:[%s1 + $0x7f8] sm:$0xff]
    %v302 = vld [vmem:[%s1 + $0x800] sm:$0xff]
    %v303 = vld [vmem:[%s1 + $0x808] sm:$0xff]
    %v304 = vld [vmem:[%s1 + $0x810] sm:$0xff]
    %v305 = vld [vmem:[%s1 + $0x818] sm:$0xff]
    %v306 = vld [vmem:[%s1 + $0x820] sm:$0xff]
    %v307 = vld [vmem:[%s1 + $0x828] sm:$0xff]
    %v308 = vld [vmem:[%s1 + $0x830] sm:$0xff]
    %v309 = vld [vmem:[%s1 + $0x838] sm:$0xff]
    %v310 = vld [vmem:[%s1 + $0x840] sm:$0xff]
    %v311 = vld [vmem:[%s1 + $0x848] sm:$0xff]
    %v312 = vld [vmem:[%s1 + $0x850] sm:$0xff]
    %v313 = vld [vmem:[%s1 + $0x858] sm:$0xff]
    %v314 = vld [vmem:[%s1 + $0x860] sm:$0xff]
    %v315 = vld [vmem:[%s1 + $0x868] sm:$0xff]
    %v316 = vld [vmem:[%s1 + $0x870] sm:$0xff]
    %v317 = vld [vmem:[%s1 + $0x878] sm:$0xff]
    %v318 = vld [vmem:[%s1 + $0x880] sm:$0xff]
    %v319 = vld [vmem:[%s1 + $0x888] sm:$0xff]
    %v320 = vld [vmem:[%s1 + $0x890] sm:$0xff]
    %v321 = vld [vmem:[%s1 + $0x898] sm:$0xff]
    %v322 = vld [vmem:[%s1 + $0x8a0] sm:$0xff]
    %v323 = vld [vmem:[%s1 + $0x8a8] sm:$0xff]
    %v324 = vld [vmem:[%s1 + $0x8b0] sm:$0xff]
    %v325 = vld [vmem:[%s1 + $0x8b8] sm:$0xff]
    %v326 = vld [vmem:[%s1 + $0x8c0] sm:$0xff]
    %v327 = vld [vmem:[%s1 + $0x8c8] sm:$0xff]
    %v328 = vld [vmem:[%s1 + $0x8d0] sm:$0xff]
    %v329 = vld [vmem:[%s1 + $0x8d8] sm:$0xff]
    %v330 = vld [vmem:[%s1 + $0x8e0] sm:$0xff]
    %v331 = vld [vmem:[%s1 + $0x8e8] sm:$0xff]
    %v332 = vld [vmem:[%s1 + $0x8f0] sm:$0xff]
    %v333 = vld [vmem:[%s1 + $0x8f8] sm:$0xff]
    %v343 = vunpack.c.l.b16 %v37
    %v344 = vunpack.c.h.b16 %v37
    %v345 = vunpack.c.l.b16 %v38
    %v346 = vunpack.c.h.b16 %v38
    %v347 = vunpack.c.l.b16 %v39
    %v348 = vunpack.c.h.b16 %v39
    %v349 = vunpack.c.l.b16 %v40
    %v350 = vunpack.c.h.b16 %v40
    %v351 = vunpack.c.l.b16 %v41
    %v352 = vunpack.c.h.b16 %v41
    %v353 = vunpack.c.l.b16 %v42
    %v354 = vunpack.c.h.b16 %v42
    %v355 = vunpack.c.l.b16 %v43
    %v356 = vunpack.c.h.b16 %v43
    %v357 = vunpack.c.l.b16 %v44
    %v358 = vunpack.c.h.b16 %v44
    %v359 = vunpack.c.l.b16 %v45
    %v360 = vunpack.c.h.b16 %v45
    %v361 = vpack.c.b16 %v343, %v343
    %v362 = vpack.c.b16 %v344, %v344
    %v363 = vpack.c.b16 %v345, %v345
    %v364 = vpack.c.b16 %v346, %v346
    %v365 = vpack.c.b16 %v347, %v347
    %v366 = vpack.c.b16 %v348, %v348
    %v367 = vpack.c.b16 %v349, %v349
    %v368 = vpack.c.b16 %v350, %v350
    %v369 = vpack.c.b16 %v351, %v351
    %v370 = vpack.c.b16 %v352, %v352
    %v371 = vpack.c.b16 %v353, %v353
    %v372 = vpack.c.b16 %v354, %v354
    %v373 = vpack.c.b16 %v355, %v355
    %v374 = vpack.c.b16 %v356, %v356
    %v375 = vpack.c.b16 %v357, %v357
    %v376 = vpack.c.b16 %v358, %v358
    %v377 = vpack.c.b16 %v359, %v359
    %v378 = vpack.c.b16 %v360, %v360
    %v685 = vunpack.c.l.b16 %v46
    %v686 = vunpack.c.h.b16 %v46
    %v687 = vunpack.c.l.b16 %v47
    %v688 = vunpack.c.h.b16 %v47
    %v689 = vunpack.c.l.b16 %v48
    %v690 = vunpack.c.h.b16 %v48
    %v691 = vunpack.c.l.b16 %v49
    %v692 = vunpack.c.h.b16 %v49
    %v693 = vunpack.c.l.b16 %v50
    %v694 = vunpack.c.h.b16 %v50
    %v695 = vunpack.c.l.b16 %v51
    %v696 = vunpack.c.h.b16 %v51
    %v697 = vunpack.c.l.b16 %v52
    %v698 = vunpack.c.h.b16 %v52
    %v699 = vunpack.c.l.b16 %v53
    %v700 = vunpack.c.h.b16 %v53
    %v701 = vunpack.c.l.b16 %v54
    %v702 = vunpack.c.h.b16 %v54
    %v703 = vunpack.c.l.b16 %v55
    %v704 = vunpack.c.h.b16 %v55
    %v705 = vunpack.c.l.b16 %v56
    %v706 = vunpack.c.h.b16 %v56
    %v707 = vunpack.c.l.b16 %v57
    %v708 = vunpack.c.h.b16 %v57
    %v709 = vunpack.c.l.b16 %v58
    %v710 = vunpack.c.h.b16 %v58
    %v711 = vunpack.c.l.b16 %v59
    %v712 = vunpack.c.h.b16 %v59
    %v713 = vunpack.c.l.b16 %v60
    %v714 = vunpack.c.h.b16 %v60
    %v715 = vunpack.c.l.b16 %v61
    %v716 = vunpack.c.h.b16 %v61
    %v717 = vunpack.c.l.b16 %v62
    %v718 = vunpack.c.h.b16 %v62
    %v719 = vunpack.c.l.b16 %v63
    %v720 = vunpack.c.h.b16 %v63
    %v721 = vunpack.c.l.b16 %v64
    %v722 = vunpack.c.h.b16 %v64
    %v723 = vunpack.c.l.b16 %v65
    %v724 = vunpack.c.h.b16 %v65
    %v725 = vunpack.c.l.b16 %v66
    %v726 = vunpack.c.h.b16 %v66
    %v727 = vunpack.c.l.b16 %v67
    %v728 = vunpack.c.h.b16 %v67
    %v729 = vunpack.c.l.b16 %v68
    %v730 = vunpack.c.h.b16 %v68
    %v731 = vunpack.c.l.b16 %v69
    %v732 = vunpack.c.h.b16 %v69
    %v733 = vunpack.c.l.b16 %v70
    %v734 = vunpack.c.h.b16 %v70
    %v735 = vunpack.c.l.b16 %v71
    %v736 = vunpack.c.h.b16 %v71
    %v737 = vunpack.c.l.b16 %v72
    %v738 = vunpack.c.h.b16 %v72
    %v739 = vunpack.c.l.b16 %v73
    %v740 = vunpack.c.h.b16 %v73
    %v741 = vunpack.c.l.b16 %v74
    %v742 = vunpack.c.h.b16 %v74
    %v743 = vunpack.c.l.b16 %v75
    %v744 = vunpack.c.h.b16 %v75
    %v745 = vunpack.c.l.b16 %v76
    %v746 = vunpack.c.h.b16 %v76
    %v747 = vunpack.c.l.b16 %v77
    %v748 = vunpack.c.h.b16 %v77
    %v749 = vunpack.c.l.b16 %v78
    %v750 = vunpack.c.h.b16 %v78
    %v751 = vunpack.c.l.b16 %v79
    %v752 = vunpack.c.h.b16 %v79
    %v753 = vunpack.c.l.b16 %v80
    %v754 = vunpack.c.h.b16 %v80
    %v755 = vunpack.c.l.b16 %v81
    %v756 = vunpack.c.h.b16 %v81
    %v757 = vunpack.c.l.b16 %v82
    %v758 = vunpack.c.h.b16 %v82
    %v759 = vunpack.c.l.b16 %v83
    %v760 = vunpack.c.h.b16 %v83
    %v761 = vunpack.c.l.b16 %v84
    %v762 = vunpack.c.h.b16 %v84
    %v763 = vunpack.c.l.b16 %v85
    %v764 = vunpack.c.h.b16 %v85
    %v765 = vunpack.c.l.b16 %v86
    %v766 = vunpack.c.h.b16 %v86
    %v767 = vunpack.c.l.b16 %v87
    %v768 = vunpack.c.h.b16 %v87
    %v769 = vunpack.c.l.b16 %v88
    %v770 = vunpack.c.h.b16 %v88
    %v771 = vunpack.c.l.b16 %v89
    %v772 = vunpack.c.h.b16 %v89
    %v773 = vunpack.c.l.b16 %v90
    %v774 = vunpack.c.h.b16 %v90
    %v775 = vunpack.c.l.b16 %v91
    %v776 = vunpack.c.h.b16 %v91
    %v777 = vunpack.c.l.b16 %v92
    %v778 = vunpack.c.h.b16 %v92
    %v779 = vunpack.c.l.b16 %v93
    %v780 = vunpack.c.h.b16 %v93
    %v781 = vunpack.c.l.b16 %v94
    %v782 = vunpack.c.h.b16 %v94
    %v783 = vunpack.c.l.b16 %v95
    %v784 = vunpack.c.h.b16 %v95
    %v785 = vunpack.c.l.b16 %v96
    %v786 = vunpack.c.h.b16 %v96
    %v787 = vunpack.c.l.b16 %v97
    %v788 = vunpack.c.h.b16 %v97
    %v789 = vunpack.c.l.b16 %v98
    %v790 = vunpack.c.h.b16 %v98
    %v791 = vunpack.c.l.b16 %v99
    %v792 = vunpack.c.h.b16 %v99
    %v793 = vunpack.c.l.b16 %v100
    %v794 = vunpack.c.h.b16 %v100
    %v795 = vunpack.c.l.b16 %v101
    %v796 = vunpack.c.h.b16 %v101
    %v797 = vunpack.c.l.b16 %v102
    %v798 = vunpack.c.h.b16 %v102
    %v799 = vunpack.c.l.b16 %v103
    %v800 = vunpack.c.h.b16 %v103
    %v801 = vunpack.c.l.b16 %v104
    %v802 = vunpack.c.h.b16 %v104
    %v803 = vunpack.c.l.b16 %v105
    %v804 = vunpack.c.h.b16 %v105
    %v805 = vunpack.c.l.b16 %v106
    %v806 = vunpack.c.h.b16 %v106
    %v807 = vunpack.c.l.b16 %v107
    %v808 = vunpack.c.h.b16 %v107
    %v809 = vunpack.c.l.b16 %v108
    %v810 = vunpack.c.h.b16 %v108
    %v811 = vunpack.c.l.b16 %v109
    %v812 = vunpack.c.h.b16 %v109
    %v813 = vunpack.c.l.b16 %v110
    %v814 = vunpack.c.h.b16 %v110
    %v815 = vunpack.c.l.b16 %v111
    %v816 = vunpack.c.h.b16 %v111
    %v817 = vunpack.c.l.b16 %v112
    %v818 = vunpack.c.h.b16 %v112
    %v819 = vunpack.c.l.b16 %v113
    %v820 = vunpack.c.h.b16 %v113
    %v821 = vunpack.c.l.b16 %v114
    %v822 = vunpack.c.h.b16 %v114
    %v823 = vunpack.c.l.b16 %v115
    %v824 = vunpack.c.h.b16 %v115
    %v825 = vunpack.c.l.b16 %v116
    %v826 = vunpack.c.h.b16 %v116
    %v827 = vunpack.c.l.b16 %v117
    %v828 = vunpack.c.h.b16 %v117
    %v829 = vunpack.c.l.b16 %v118
    %v830 = vunpack.c.h.b16 %v118
    %v831 = vunpack.c.l.b16 %v119
    %v832 = vunpack.c.h.b16 %v119
    %v833 = vunpack.c.l.b16 %v120
    %v834 = vunpack.c.h.b16 %v120
    %v835 = vunpack.c.l.b16 %v121
    %v836 = vunpack.c.h.b16 %v121
    %v837 = vunpack.c.l.b16 %v122
    %v838 = vunpack.c.h.b16 %v122
    %v839 = vunpack.c.l.b16 %v123
    %v840 = vunpack.c.h.b16 %v123
    %v841 = vunpack.c.l.b16 %v124
    %v842 = vunpack.c.h.b16 %v124
    %v843 = vunpack.c.l.b16 %v125
    %v844 = vunpack.c.h.b16 %v125
    %v845 = vunpack.c.l.b16 %v126
    %v846 = vunpack.c.h.b16 %v126
    %v847 = vunpack.c.l.b16 %v127
    %v848 = vunpack.c.h.b16 %v127
    %v849 = vunpack.c.l.b16 %v128
    %v850 = vunpack.c.h.b16 %v128
    %v851 = vunpack.c.l.b16 %v129
    %v852 = vunpack.c.h.b16 %v129
    %v853 = vunpack.c.l.b16 %v130
    %v854 = vunpack.c.h.b16 %v130
    %v855 = vunpack.c.l.b16 %v131
    %v856 = vunpack.c.h.b16 %v131
    %v857 = vunpack.c.l.b16 %v132
    %v858 = vunpack.c.h.b16 %v132
    %v859 = vunpack.c.l.b16 %v133
    %v860 = vunpack.c.h.b16 %v133
    %v861 = vunpack.c.l.b16 %v134
    %v862 = vunpack.c.h.b16 %v134
    %v863 = vunpack.c.l.b16 %v135
    %v864 = vunpack.c.h.b16 %v135
    %v865 = vunpack.c.l.b16 %v136
    %v866 = vunpack.c.h.b16 %v136
    %v867 = vunpack.c.l.b16 %v137
    %v868 = vunpack.c.h.b16 %v137
    %v869 = vunpack.c.l.b16 %v138
    %v870 = vunpack.c.h.b16 %v138
    %v871 = vunpack.c.l.b16 %v139
    %v872 = vunpack.c.h.b16 %v139
    %v873 = vunpack.c.l.b16 %v140
    %v874 = vunpack.c.h.b16 %v140
    %v875 = vunpack.c.l.b16 %v141
    %v876 = vunpack.c.h.b16 %v141
    %v877 = vunpack.c.l.b16 %v142
    %v878 = vunpack.c.h.b16 %v142
    %v879 = vunpack.c.l.b16 %v143
    %v880 = vunpack.c.h.b16 %v143
    %v881 = vunpack.c.l.b16 %v144
    %v882 = vunpack.c.h.b16 %v144
    %v883 = vunpack.c.l.b16 %v145
    %v884 = vunpack.c.h.b16 %v145
    %v885 = vunpack.c.l.b16 %v146
    %v886 = vunpack.c.h.b16 %v146
    %v887 = vunpack.c.l.b16 %v147
    %v888 = vunpack.c.h.b16 %v147
    %v889 = vunpack.c.l.b16 %v148
    %v890 = vunpack.c.h.b16 %v148
    %v891 = vunpack.c.l.b16 %v149
    %v892 = vunpack.c.h.b16 %v149
    %v893 = vunpack.c.l.b16 %v150
    %v894 = vunpack.c.h.b16 %v150
    %v895 = vunpack.c.l.b16 %v151
    %v896 = vunpack.c.h.b16 %v151
    %v897 = vunpack.c.l.b16 %v152
    %v898 = vunpack.c.h.b16 %v152
    %v899 = vunpack.c.l.b16 %v153
    %v900 = vunpack.c.h.b16 %v153
    %v901 = vunpack.c.l.b16 %v154
    %v902 = vunpack.c.h.b16 %v154
    %v903 = vunpack.c.l.b16 %v155
    %v904 = vunpack.c.h.b16 %v155
    %v905 = vunpack.c.l.b16 %v156
    %v906 = vunpack.c.h.b16 %v156
    %v907 = vunpack.c.l.b16 %v157
    %v908 = vunpack.c.h.b16 %v157
    %v909 = vunpack.c.l.b16 %v158
    %v910 = vunpack.c.h.b16 %v158
    %v911 = vunpack.c.l.b16 %v159
    %v912 = vunpack.c.h.b16 %v159
    %v913 = vunpack.c.l.b16 %v160
    %v914 = vunpack.c.h.b16 %v160
    %v915 = vunpack.c.l.b16 %v161
    %v916 = vunpack.c.h.b16 %v161
    %v917 = vunpack.c.l.b16 %v162
    %v918 = vunpack.c.h.b16 %v162
    %v919 = vunpack.c.l.b16 %v163
    %v920 = vunpack.c.h.b16 %v163
    %v921 = vunpack.c.l.b16 %v164
    %v922 = vunpack.c.h.b16 %v164
    %v923 = vunpack.c.l.b16 %v165
    %v924 = vunpack.c.h.b16 %v165
    %v925 = vunpack.c.l.b16 %v166
    %v926 = vunpack.c.h.b16 %v166
    %v927 = vunpack.c.l.b16 %v167
    %v928 = vunpack.c.h.b16 %v167
    %v929 = vunpack.c.l.b16 %v168
    %v930 = vunpack.c.h.b16 %v168
    %v931 = vunpack.c.l.b16 %v169
    %v932 = vunpack.c.h.b16 %v169
    %v933 = vunpack.c.l.b16 %v170
    %v934 = vunpack.c.h.b16 %v170
    %v935 = vunpack.c.l.b16 %v171
    %v936 = vunpack.c.h.b16 %v171
    %v937 = vunpack.c.l.b16 %v172
    %v938 = vunpack.c.h.b16 %v172
    %v939 = vunpack.c.l.b16 %v173
    %v940 = vunpack.c.h.b16 %v173
    %v941 = vunpack.c.l.b16 %v174
    %v942 = vunpack.c.h.b16 %v174
    %v943 = vunpack.c.l.b16 %v175
    %v944 = vunpack.c.h.b16 %v175
    %v945 = vunpack.c.l.b16 %v176
    %v946 = vunpack.c.h.b16 %v176
    %v947 = vunpack.c.l.b16 %v177
    %v948 = vunpack.c.h.b16 %v177
    %v949 = vunpack.c.l.b16 %v178
    %v950 = vunpack.c.h.b16 %v178
    %v951 = vunpack.c.l.b16 %v179
    %v952 = vunpack.c.h.b16 %v179
    %v953 = vunpack.c.l.b16 %v180
    %v954 = vunpack.c.h.b16 %v180
    %v955 = vunpack.c.l.b16 %v181
    %v956 = vunpack.c.h.b16 %v181
    %v957 = vunpack.c.l.b16 %v182
    %v958 = vunpack.c.h.b16 %v182
    %v959 = vunpack.c.l.b16 %v183
    %v960 = vunpack.c.h.b16 %v183
    %v961 = vunpack.c.l.b16 %v184
    %v962 = vunpack.c.h.b16 %v184
    %v963 = vunpack.c.l.b16 %v185
    %v964 = vunpack.c.h.b16 %v185
    %v965 = vunpack.c.l.b16 %v186
    %v966 = vunpack.c.h.b16 %v186
    %v967 = vunpack.c.l.b16 %v187
    %v968 = vunpack.c.h.b16 %v187
    %v969 = vunpack.c.l.b16 %v188
    %v970 = vunpack.c.h.b16 %v188
    %v971 = vunpack.c.l.b16 %v189
    %v972 = vunpack.c.h.b16 %v189
    %v973 = vunpack.c.l.b16 %v190
    %v974 = vunpack.c.h.b16 %v190
    %v975 = vunpack.c.l.b16 %v191
    %v976 = vunpack.c.h.b16 %v191
    %v977 = vunpack.c.l.b16 %v192
    %v978 = vunpack.c.h.b16 %v192
    %v979 = vunpack.c.l.b16 %v193
    %v980 = vunpack.c.h.b16 %v193
    %v981 = vunpack.c.l.b16 %v194
    %v982 = vunpack.c.h.b16 %v194
    %v983 = vunpack.c.l.b16 %v195
    %v984 = vunpack.c.h.b16 %v195
    %v985 = vunpack.c.l.b16 %v196
    %v986 = vunpack.c.h.b16 %v196
    %v987 = vunpack.c.l.b16 %v197
    %v988 = vunpack.c.h.b16 %v197
    %v989 = vunpack.c.l.b16 %v198
    %v990 = vunpack.c.h.b16 %v198
    %v991 = vunpack.c.l.b16 %v199
    %v992 = vunpack.c.h.b16 %v199
    %v993 = vunpack.c.l.b16 %v200
    %v994 = vunpack.c.h.b16 %v200
    %v995 = vunpack.c.l.b16 %v201
    %v996 = vunpack.c.h.b16 %v201
    %v997 = vunpack.c.l.b16 %v202
    %v998 = vunpack.c.h.b16 %v202
    %v999 = vunpack.c.l.b16 %v203
    %v1000 = vunpack.c.h.b16 %v203
    %v1001 = vunpack.c.l.b16 %v204
    %v1002 = vunpack.c.h.b16 %v204
    %v1003 = vunpack.c.l.b16 %v205
    %v1004 = vunpack.c.h.b16 %v205
    %v1005 = vunpack.c.l.b16 %v206
    %v1006 = vunpack.c.h.b16 %v206
    %v1007 = vunpack.c.l.b16 %v207
    %v1008 = vunpack.c.h.b16 %v207
    %v1009 = vunpack.c.l.b16 %v208
    %v1010 = vunpack.c.h.b16 %v208
    %v1011 = vunpack.c.l.b16 %v209
    %v1012 = vunpack.c.h.b16 %v209
    %v1013 = vunpack.c.l.b16 %v210
    %v1014 = vunpack.c.h.b16 %v210
    %v1015 = vunpack.c.l.b16 %v211
    %v1016 = vunpack.c.h.b16 %v211
    %v1017 = vunpack.c.l.b16 %v212
    %v1018 = vunpack.c.h.b16 %v212
    %v1019 = vunpack.c.l.b16 %v213
    %v1020 = vunpack.c.h.b16 %v213
    %v1021 = vunpack.c.l.b16 %v214
    %v1022 = vunpack.c.h.b16 %v214
    %v1023 = vunpack.c.l.b16 %v215
    %v1024 = vunpack.c.h.b16 %v215
    %v1025 = vunpack.c.l.b16 %v216
    %v1026 = vunpack.c.h.b16 %v216
    %v1027 = vunpack.c.l.b16 %v217
    %v1028 = vunpack.c.h.b16 %v217
    %v1029 = vunpack.c.l.b16 %v218
    %v1030 = vunpack.c.h.b16 %v218
    %v1031 = vunpack.c.l.b16 %v219
    %v1032 = vunpack.c.h.b16 %v219
    %v1033 = vunpack.c.l.b16 %v220
    %v1034 = vunpack.c.h.b16 %v220
    %v1035 = vunpack.c.l.b16 %v221
    %v1036 = vunpack.c.h.b16 %v221
    %v1037 = vunpack.c.l.b16 %v222
    %v1038 = vunpack.c.h.b16 %v222
    %v1039 = vunpack.c.l.b16 %v223
    %v1040 = vunpack.c.h.b16 %v223
    %v1041 = vunpack.c.l.b16 %v224
    %v1042 = vunpack.c.h.b16 %v224
    %v1043 = vunpack.c.l.b16 %v225
    %v1044 = vunpack.c.h.b16 %v225
    %v1045 = vunpack.c.l.b16 %v226
    %v1046 = vunpack.c.h.b16 %v226
    %v1047 = vunpack.c.l.b16 %v227
    %v1048 = vunpack.c.h.b16 %v227
    %v1049 = vunpack.c.l.b16 %v228
    %v1050 = vunpack.c.h.b16 %v228
    %v1051 = vunpack.c.l.b16 %v229
    %v1052 = vunpack.c.h.b16 %v229
    %v1053 = vunpack.c.l.b16 %v230
    %v1054 = vunpack.c.h.b16 %v230
    %v1055 = vunpack.c.l.b16 %v231
    %v1056 = vunpack.c.h.b16 %v231
    %v1057 = vunpack.c.l.b16 %v232
    %v1058 = vunpack.c.h.b16 %v232
    %v1059 = vunpack.c.l.b16 %v233
    %v1060 = vunpack.c.h.b16 %v233
    %v1061 = vunpack.c.l.b16 %v234
    %v1062 = vunpack.c.h.b16 %v234
    %v1063 = vunpack.c.l.b16 %v235
    %v1064 = vunpack.c.h.b16 %v235
    %v1065 = vunpack.c.l.b16 %v236
    %v1066 = vunpack.c.h.b16 %v236
    %v1067 = vunpack.c.l.b16 %v237
    %v1068 = vunpack.c.h.b16 %v237
    %v1069 = vunpack.c.l.b16 %v238
    %v1070 = vunpack.c.h.b16 %v238
    %v1071 = vunpack.c.l.b16 %v239
    %v1072 = vunpack.c.h.b16 %v239
    %v1073 = vunpack.c.l.b16 %v240
    %v1074 = vunpack.c.h.b16 %v240
    %v1075 = vunpack.c.l.b16 %v241
    %v1076 = vunpack.c.h.b16 %v241
    %v1077 = vunpack.c.l.b16 %v242
    %v1078 = vunpack.c.h.b16 %v242
    %v1079 = vunpack.c.l.b16 %v243
    %v1080 = vunpack.c.h.b16 %v243
    %v1081 = vunpack.c.l.b16 %v244
    %v1082 = vunpack.c.h.b16 %v244
    %v1083 = vunpack.c.l.b16 %v245
    %v1084 = vunpack.c.h.b16 %v245
    %v1085 = vunpack.c.l.b16 %v246
    %v1086 = vunpack.c.h.b16 %v246
    %v1087 = vunpack.c.l.b16 %v247
    %v1088 = vunpack.c.h.b16 %v247
    %v1089 = vunpack.c.l.b16 %v248
    %v1090 = vunpack.c.h.b16 %v248
    %v1091 = vunpack.c.l.b16 %v249
    %v1092 = vunpack.c.h.b16 %v249
    %v1093 = vunpack.c.l.b16 %v250
    %v1094 = vunpack.c.h.b16 %v250
    %v1095 = vunpack.c.l.b16 %v251
    %v1096 = vunpack.c.h.b16 %v251
    %v1097 = vunpack.c.l.b16 %v252
    %v1098 = vunpack.c.h.b16 %v252
    %v1099 = vunpack.c.l.b16 %v253
    %v1100 = vunpack.c.h.b16 %v253
    %v1101 = vunpack.c.l.b16 %v254
    %v1102 = vunpack.c.h.b16 %v254
    %v1103 = vunpack.c.l.b16 %v255
    %v1104 = vunpack.c.h.b16 %v255
    %v1105 = vunpack.c.l.b16 %v256
    %v1106 = vunpack.c.h.b16 %v256
    %v1107 = vunpack.c.l.b16 %v257
    %v1108 = vunpack.c.h.b16 %v257
    %v1109 = vunpack.c.l.b16 %v258
    %v1110 = vunpack.c.h.b16 %v258
    %v1111 = vunpack.c.l.b16 %v259
    %v1112 = vunpack.c.h.b16 %v259
    %v1113 = vunpack.c.l.b16 %v260
    %v1114 = vunpack.c.h.b16 %v260
    %v1115 = vunpack.c.l.b16 %v261
    %v1116 = vunpack.c.h.b16 %v261
    %v1117 = vunpack.c.l.b16 %v262
    %v1118 = vunpack.c.h.b16 %v262
    %v1119 = vunpack.c.l.b16 %v263
    %v1120 = vunpack.c.h.b16 %v263
    %v1121 = vunpack.c.l.b16 %v264
    %v1122 = vunpack.c.h.b16 %v264
    %v1123 = vunpack.c.l.b16 %v265
    %v1124 = vunpack.c.h.b16 %v265
    %v1125 = vunpack.c.l.b16 %v266
    %v1126 = vunpack.c.h.b16 %v266
    %v1127 = vunpack.c.l.b16 %v267
    %v1128 = vunpack.c.h.b16 %v267
    %v1129 = vunpack.c.l.b16 %v268
    %v1130 = vunpack.c.h.b16 %v268
    %v1131 = vunpack.c.l.b16 %v269
    %v1132 = vunpack.c.h.b16 %v269
    %v1133 = vunpack.c.l.b16 %v270
    %v1134 = vunpack.c.h.b16 %v270
    %v1135 = vunpack.c.l.b16 %v271
    %v1136 = vunpack.c.h.b16 %v271
    %v1137 = vunpack.c.l.b16 %v272
    %v1138 = vunpack.c.h.b16 %v272
    %v1139 = vunpack.c.l.b16 %v273
    %v1140 = vunpack.c.h.b16 %v273
    %v1141 = vunpack.c.l.b16 %v274
    %v1142 = vunpack.c.h.b16 %v274
    %v1143 = vunpack.c.l.b16 %v275
    %v1144 = vunpack.c.h.b16 %v275
    %v1145 = vunpack.c.l.b16 %v276
    %v1146 = vunpack.c.h.b16 %v276
    %v1147 = vunpack.c.l.b16 %v277
    %v1148 = vunpack.c.h.b16 %v277
    %v1149 = vunpack.c.l.b16 %v278
    %v1150 = vunpack.c.h.b16 %v278
    %v1151 = vunpack.c.l.b16 %v279
    %v1152 = vunpack.c.h.b16 %v279
    %v1153 = vunpack.c.l.b16 %v280
    %v1154 = vunpack.c.h.b16 %v280
    %v1155 = vunpack.c.l.b16 %v281
    %v1156 = vunpack.c.h.b16 %v281
    %v1157 = vunpack.c.l.b16 %v282
    %v1158 = vunpack.c.h.b16 %v282
    %v1159 = vunpack.c.l.b16 %v283
    %v1160 = vunpack.c.h.b16 %v283
    %v1161 = vunpack.c.l.b16 %v284
    %v1162 = vunpack.c.h.b16 %v284
    %v1163 = vunpack.c.l.b16 %v285
    %v1164 = vunpack.c.h.b16 %v285
    %v1165 = vunpack.c.l.b16 %v286
    %v1166 = vunpack.c.h.b16 %v286
    %v1167 = vunpack.c.l.b16 %v287
    %v1168 = vunpack.c.h.b16 %v287
    %v1169 = vunpack.c.l.b16 %v288
    %v1170 = vunpack.c.h.b16 %v288
    %v1171 = vunpack.c.l.b16 %v289
    %v1172 = vunpack.c.h.b16 %v289
    %v1173 = vunpack.c.l.b16 %v290
    %v1174 = vunpack.c.h.b16 %v290
    %v1175 = vunpack.c.l.b16 %v291
    %v1176 = vunpack.c.h.b16 %v291
    %v1177 = vunpack.c.l.b16 %v292
    %v1178 = vunpack.c.h.b16 %v292
    %v1179 = vunpack.c.l.b16 %v293
    %v1180 = vunpack.c.h.b16 %v293
    %v1181 = vunpack.c.l.b16 %v294
    %v1182 = vunpack.c.h.b16 %v294
    %v1183 = vunpack.c.l.b16 %v295
    %v1184 = vunpack.c.h.b16 %v295
    %v1185 = vunpack.c.l.b16 %v296
    %v1186 = vunpack.c.h.b16 %v296
    %v1187 = vunpack.c.l.b16 %v297
    %v1188 = vunpack.c.h.b16 %v297
    %v1189 = vunpack.c.l.b16 %v298
    %v1190 = vunpack.c.h.b16 %v298
    %v1191 = vunpack.c.l.b16 %v299
    %v1192 = vunpack.c.h.b16 %v299
    %v1193 = vunpack.c.l.b16 %v300
    %v1194 = vunpack.c.h.b16 %v300
    %v1195 = vunpack.c.l.b16 %v301
    %v1196 = vunpack.c.h.b16 %v301
    %v1197 = vunpack.c.l.b16 %v302
    %v1198 = vunpack.c.h.b16 %v302
    %v1199 = vunpack.c.l.b16 %v303
    %v1200 = vunpack.c.h.b16 %v303
    %v1201 = vunpack.c.l.b16 %v304
    %v1202 = vunpack.c.h.b16 %v304
    %v1203 = vunpack.c.l.b16 %v305
    %v1204 = vunpack.c.h.b16 %v305
    %v1205 = vunpack.c.l.b16 %v306
    %v1206 = vunpack.c.h.b16 %v306
    %v1207 = vunpack.c.l.b16 %v307
    %v1208 = vunpack.c.h.b16 %v307
    %v1209 = vunpack.c.l.b16 %v308
    %v1210 = vunpack.c.h.b16 %v308
    %v1211 = vunpack.c.l.b16 %v309
    %v1212 = vunpack.c.h.b16 %v309
    %v1213 = vunpack.c.l.b16 %v310
    %v1214 = vunpack.c.h.b16 %v310
    %v1215 = vunpack.c.l.b16 %v311
    %v1216 = vunpack.c.h.b16 %v311
    %v1217 = vunpack.c.l.b16 %v312
    %v1218 = vunpack.c.h.b16 %v312
    %v1219 = vunpack.c.l.b16 %v313
    %v1220 = vunpack.c.h.b16 %v313
    %v1221 = vunpack.c.l.b16 %v314
    %v1222 = vunpack.c.h.b16 %v314
    %v1223 = vunpack.c.l.b16 %v315
    %v1224 = vunpack.c.h.b16 %v315
    %v1225 = vunpack.c.l.b16 %v316
    %v1226 = vunpack.c.h.b16 %v316
    %v1227 = vunpack.c.l.b16 %v317
    %v1228 = vunpack.c.h.b16 %v317
    %v1229 = vunpack.c.l.b16 %v318
    %v1230 = vunpack.c.h.b16 %v318
    %v1231 = vunpack.c.l.b16 %v319
    %v1232 = vunpack.c.h.b16 %v319
    %v1233 = vunpack.c.l.b16 %v320
    %v1234 = vunpack.c.h.b16 %v320
    %v1235 = vunpack.c.l.b16 %v321
    %v1236 = vunpack.c.h.b16 %v321
    %v1237 = vunpack.c.l.b16 %v322
    %v1238 = vunpack.c.h.b16 %v322
    %v1239 = vunpack.c.l.b16 %v323
    %v1240 = vunpack.c.h.b16 %v323
    %v1241 = vunpack.c.l.b16 %v324
    %v1242 = vunpack.c.h.b16 %v324
    %v1243 = vunpack.c.l.b16 %v325
    %v1244 = vunpack.c.h.b16 %v325
    %v1245 = vunpack.c.l.b16 %v326
    %v1246 = vunpack.c.h.b16 %v326
    %v1247 = vunpack.c.l.b16 %v327
    %v1248 = vunpack.c.h.b16 %v327
    %v1249 = vunpack.c.l.b16 %v328
    %v1250 = vunpack.c.h.b16 %v328
    %v1251 = vunpack.c.l.b16 %v329
    %v1252 = vunpack.c.h.b16 %v329
    %v1253 = vunpack.c.l.b16 %v330
    %v1254 = vunpack.c.h.b16 %v330
    %v1255 = vunpack.c.l.b16 %v331
    %v1256 = vunpack.c.h.b16 %v331
    %v1257 = vunpack.c.l.b16 %v332
    %v1258 = vunpack.c.h.b16 %v332
    %v1259 = vunpack.c.l.b16 %v333
    %v1260 = vunpack.c.h.b16 %v333
    %v1261 = vpack.c.b16 %v687, %v685
    %v1262 = vpack.c.b16 %v688, %v686
    %v1263 = vpack.c.b16 %v691, %v689
    %v1264 = vpack.c.b16 %v692, %v690
    %v1265 = vpack.c.b16 %v695, %v693
    %v1266 = vpack.c.b16 %v696, %v694
    %v1267 = vpack.c.b16 %v699, %v697
    %v1268 = vpack.c.b16 %v700, %v698
    %v1269 = vpack.c.b16 %v703, %v701
    %v1270 = vpack.c.b16 %v704, %v702
    %v1271 = vpack.c.b16 %v707, %v705
    %v1272 = vpack.c.b16 %v708, %v706
    %v1273 = vpack.c.b16 %v711, %v709
    %v1274 = vpack.c.b16 %v712, %v710
    %v1275 = vpack.c.b16 %v715, %v713
    %v1276 = vpack.c.b16 %v716, %v714
    %v1277 = vpack.c.b16 %v719, %v717
    %v1278 = vpack.c.b16 %v720, %v718
    %v1279 = vpack.c.b16 %v723, %v721
    %v1280 = vpack.c.b16 %v724, %v722
    %v1281 = vpack.c.b16 %v727, %v725
    %v1282 = vpack.c.b16 %v728, %v726
    %v1283 = vpack.c.b16 %v731, %v729
    %v1284 = vpack.c.b16 %v732, %v730
    %v1285 = vpack.c.b16 %v735, %v733
    %v1286 = vpack.c.b16 %v736, %v734
    %v1287 = vpack.c.b16 %v739, %v737
    %v1288 = vpack.c.b16 %v740, %v738
    %v1289 = vpack.c.b16 %v743, %v741
    %v1290 = vpack.c.b16 %v744, %v742
    %v1291 = vpack.c.b16 %v747, %v745
    %v1292 = vpack.c.b16 %v748, %v746
    %v1293 = vpack.c.b16 %v751, %v749
    %v1294 = vpack.c.b16 %v752, %v750
    %v1295 = vpack.c.b16 %v755, %v753
    %v1296 = vpack.c.b16 %v756, %v754
    %v1297 = vpack.c.b16 %v759, %v757
    %v1298 = vpack.c.b16 %v760, %v758
    %v1299 = vpack.c.b16 %v763, %v761
    %v1300 = vpack.c.b16 %v764, %v762
    %v1301 = vpack.c.b16 %v767, %v765
    %v1302 = vpack.c.b16 %v768, %v766
    %v1303 = vpack.c.b16 %v771, %v769
    %v1304 = vpack.c.b16 %v772, %v770
    %v1305 = vpack.c.b16 %v775, %v773
    %v1306 = vpack.c.b16 %v776, %v774
    %v1307 = vpack.c.b16 %v779, %v777
    %v1308 = vpack.c.b16 %v780, %v778
    %v1309 = vpack.c.b16 %v783, %v781
    %v1310 = vpack.c.b16 %v784, %v782
    %v1311 = vpack.c.b16 %v787, %v785
    %v1312 = vpack.c.b16 %v788, %v786
    %v1313 = vpack.c.b16 %v791, %v789
    %v1314 = vpack.c.b16 %v792, %v790
    %v1315 = vpack.c.b16 %v795, %v793
    %v1316 = vpack.c.b16 %v796, %v794
    %v1317 = vpack.c.b16 %v799, %v797
    %v1318 = vpack.c.b16 %v800, %v798
    %v1319 = vpack.c.b16 %v803, %v801
    %v1320 = vpack.c.b16 %v804, %v802
    %v1321 = vpack.c.b16 %v807, %v805
    %v1322 = vpack.c.b16 %v808, %v806
    %v1323 = vpack.c.b16 %v811, %v809
    %v1324 = vpack.c.b16 %v812, %v810
    %v1325 = vpack.c.b16 %v815, %v813
    %v1326 = vpack.c.b16 %v816, %v814
    %v1327 = vpack.c.b16 %v819, %v817
    %v1328 = vpack.c.b16 %v820, %v818
    %v1329 = vpack.c.b16 %v823, %v821
    %v1330 = vpack.c.b16 %v824, %v822
    %v1331 = vpack.c.b16 %v827, %v825
    %v1332 = vpack.c.b16 %v828, %v826
    %v1333 = vpack.c.b16 %v831, %v829
    %v1334 = vpack.c.b16 %v832, %v830
    %v1335 = vpack.c.b16 %v835, %v833
    %v1336 = vpack.c.b16 %v836, %v834
    %v1337 = vpack.c.b16 %v839, %v837
    %v1338 = vpack.c.b16 %v840, %v838
    %v1339 = vpack.c.b16 %v843, %v841
    %v1340 = vpack.c.b16 %v844, %v842
    %v1341 = vpack.c.b16 %v847, %v845
    %v1342 = vpack.c.b16 %v848, %v846
    %v1343 = vpack.c.b16 %v851, %v849
    %v1344 = vpack.c.b16 %v852, %v850
    %v1345 = vpack.c.b16 %v855, %v853
    %v1346 = vpack.c.b16 %v856, %v854
    %v1347 = vpack.c.b16 %v859, %v857
    %v1348 = vpack.c.b16 %v860, %v858
    %v1349 = vpack.c.b16 %v863, %v861
    %v1350 = vpack.c.b16 %v864, %v862
    %v1351 = vpack.c.b16 %v867, %v865
    %v1352 = vpack.c.b16 %v868, %v866
    %v1353 = vpack.c.b16 %v871, %v869
    %v1354 = vpack.c.b16 %v872, %v870
    %v1355 = vpack.c.b16 %v875, %v873
    %v1356 = vpack.c.b16 %v876, %v874
    %v1357 = vpack.c.b16 %v879, %v877
    %v1358 = vpack.c.b16 %v880, %v878
    %v1359 = vpack.c.b16 %v883, %v881
    %v1360 = vpack.c.b16 %v884, %v882
    %v1361 = vpack.c.b16 %v887, %v885
    %v1362 = vpack.c.b16 %v888, %v886
    %v1363 = vpack.c.b16 %v891, %v889
    %v1364 = vpack.c.b16 %v892, %v890
    %v1365 = vpack.c.b16 %v895, %v893
    %v1366 = vpack.c.b16 %v896, %v894
    %v1367 = vpack.c.b16 %v899, %v897
    %v1368 = vpack.c.b16 %v900, %v898
    %v1369 = vpack.c.b16 %v903, %v901
    %v1370 = vpack.c.b16 %v904, %v902
    %v1371 = vpack.c.b16 %v907, %v905
    %v1372 = vpack.c.b16 %v908, %v906
    %v1373 = vpack.c.b16 %v911, %v909
    %v1374 = vpack.c.b16 %v912, %v910
    %v1375 = vpack.c.b16 %v915, %v913
    %v1376 = vpack.c.b16 %v916, %v914
    %v1377 = vpack.c.b16 %v919, %v917
    %v1378 = vpack.c.b16 %v920, %v918
    %v1379 = vpack.c.b16 %v923, %v921
    %v1380 = vpack.c.b16 %v924, %v922
    %v1381 = vpack.c.b16 %v927, %v925
    %v1382 = vpack.c.b16 %v928, %v926
    %v1383 = vpack.c.b16 %v931, %v929
    %v1384 = vpack.c.b16 %v932, %v930
    %v1385 = vpack.c.b16 %v935, %v933
    %v1386 = vpack.c.b16 %v936, %v934
    %v1387 = vpack.c.b16 %v939, %v937
    %v1388 = vpack.c.b16 %v940, %v938
    %v1389 = vpack.c.b16 %v943, %v941
    %v1390 = vpack.c.b16 %v944, %v942
    %v1391 = vpack.c.b16 %v947, %v945
    %v1392 = vpack.c.b16 %v948, %v946
    %v1393 = vpack.c.b16 %v951, %v949
    %v1394 = vpack.c.b16 %v952, %v950
    %v1395 = vpack.c.b16 %v955, %v953
    %v1396 = vpack.c.b16 %v956, %v954
    %v1397 = vpack.c.b16 %v959, %v957
    %v1398 = vpack.c.b16 %v960, %v958
    %v1399 = vpack.c.b16 %v963, %v961
    %v1400 = vpack.c.b16 %v964, %v962
    %v1401 = vpack.c.b16 %v967, %v965
    %v1402 = vpack.c.b16 %v968, %v966
    %v1403 = vpack.c.b16 %v971, %v969
    %v1404 = vpack.c.b16 %v972, %v970
    %v1405 = vpack.c.b16 %v975, %v973
    %v1406 = vpack.c.b16 %v976, %v974
    %v1407 = vpack.c.b16 %v979, %v977
    %v1408 = vpack.c.b16 %v980, %v978
    %v1409 = vpack.c.b16 %v983, %v981
    %v1410 = vpack.c.b16 %v984, %v982
    %v1411 = vpack.c.b16 %v987, %v985
    %v1412 = vpack.c.b16 %v988, %v986
    %v1413 = vpack.c.b16 %v991, %v989
    %v1414 = vpack.c.b16 %v992, %v990
    %v1415 = vpack.c.b16 %v995, %v993
    %v1416 = vpack.c.b16 %v996, %v994
    %v1417 = vpack.c.b16 %v999, %v997
    %v1418 = vpack.c.b16 %v1000, %v998
    %v1419 = vpack.c.b16 %v1003, %v1001
    %v1420 = vpack.c.b16 %v1004, %v1002
    %v1421 = vpack.c.b16 %v1007, %v1005
    %v1422 = vpack.c.b16 %v1008, %v1006
    %v1423 = vpack.c.b16 %v1011, %v1009
    %v1424 = vpack.c.b16 %v1012, %v1010
    %v1425 = vpack.c.b16 %v1015, %v1013
    %v1426 = vpack.c.b16 %v1016, %v1014
    %v1427 = vpack.c.b16 %v1019, %v1017
    %v1428 = vpack.c.b16 %v1020, %v1018
    %v1429 = vpack.c.b16 %v1023, %v1021
    %v1430 = vpack.c.b16 %v1024, %v1022
    %v1431 = vpack.c.b16 %v1027, %v1025
    %v1432 = vpack.c.b16 %v1028, %v1026
    %v1433 = vpack.c.b16 %v1031, %v1029
    %v1434 = vpack.c.b16 %v1032, %v1030
    %v1435 = vpack.c.b16 %v1035, %v1033
    %v1436 = vpack.c.b16 %v1036, %v1034
    %v1437 = vpack.c.b16 %v1039, %v1037
    %v1438 = vpack.c.b16 %v1040, %v1038
    %v1439 = vpack.c.b16 %v1043, %v1041
    %v1440 = vpack.c.b16 %v1044, %v1042
    %v1441 = vpack.c.b16 %v1047, %v1045
    %v1442 = vpack.c.b16 %v1048, %v1046
    %v1443 = vpack.c.b16 %v1051, %v1049
    %v1444 = vpack.c.b16 %v1052, %v1050
    %v1445 = vpack.c.b16 %v1055, %v1053
    %v1446 = vpack.c.b16 %v1056, %v1054
    %v1447 = vpack.c.b16 %v1059, %v1057
    %v1448 = vpack.c.b16 %v1060, %v1058
    %v1449 = vpack.c.b16 %v1063, %v1061
    %v1450 = vpack.c.b16 %v1064, %v1062
    %v1451 = vpack.c.b16 %v1067, %v1065
    %v1452 = vpack.c.b16 %v1068, %v1066
    %v1453 = vpack.c.b16 %v1071, %v1069
    %v1454 = vpack.c.b16 %v1072, %v1070
    %v1455 = vpack.c.b16 %v1075, %v1073
    %v1456 = vpack.c.b16 %v1076, %v1074
    %v1457 = vpack.c.b16 %v1079, %v1077
    %v1458 = vpack.c.b16 %v1080, %v1078
    %v1459 = vpack.c.b16 %v1083, %v1081
    %v1460 = vpack.c.b16 %v1084, %v1082
    %v1461 = vpack.c.b16 %v1087, %v1085
    %v1462 = vpack.c.b16 %v1088, %v1086
    %v1463 = vpack.c.b16 %v1091, %v1089
    %v1464 = vpack.c.b16 %v1092, %v1090
    %v1465 = vpack.c.b16 %v1095, %v1093
    %v1466 = vpack.c.b16 %v1096, %v1094
    %v1467 = vpack.c.b16 %v1099, %v1097
    %v1468 = vpack.c.b16 %v1100, %v1098
    %v1469 = vpack.c.b16 %v1103, %v1101
    %v1470 = vpack.c.b16 %v1104, %v1102
    %v1471 = vpack.c.b16 %v1107, %v1105
    %v1472 = vpack.c.b16 %v1108, %v1106
    %v1473 = vpack.c.b16 %v1111, %v1109
    %v1474 = vpack.c.b16 %v1112, %v1110
    %v1475 = vpack.c.b16 %v1115, %v1113
    %v1476 = vpack.c.b16 %v1116, %v1114
    %v1477 = vpack.c.b16 %v1119, %v1117
    %v1478 = vpack.c.b16 %v1120, %v1118
    %v1479 = vpack.c.b16 %v1123, %v1121
    %v1480 = vpack.c.b16 %v1124, %v1122
    %v1481 = vpack.c.b16 %v1127, %v1125
    %v1482 = vpack.c.b16 %v1128, %v1126
    %v1483 = vpack.c.b16 %v1131, %v1129
    %v1484 = vpack.c.b16 %v1132, %v1130
    %v1485 = vpack.c.b16 %v1135, %v1133
    %v1486 = vpack.c.b16 %v1136, %v1134
    %v1487 = vpack.c.b16 %v1139, %v1137
    %v1488 = vpack.c.b16 %v1140, %v1138
    %v1489 = vpack.c.b16 %v1143, %v1141
    %v1490 = vpack.c.b16 %v1144, %v1142
    %v1491 = vpack.c.b16 %v1147, %v1145
    %v1492 = vpack.c.b16 %v1148, %v1146
    %v1493 = vpack.c.b16 %v1151, %v1149
    %v1494 = vpack.c.b16 %v1152, %v1150
    %v1495 = vpack.c.b16 %v1155, %v1153
    %v1496 = vpack.c.b16 %v1156, %v1154
    %v1497 = vpack.c.b16 %v1159, %v1157
    %v1498 = vpack.c.b16 %v1160, %v1158
    %v1499 = vpack.c.b16 %v1163, %v1161
    %v1500 = vpack.c.b16 %v1164, %v1162
    %v1501 = vpack.c.b16 %v1167, %v1165
    %v1502 = vpack.c.b16 %v1168, %v1166
    %v1503 = vpack.c.b16 %v1171, %v1169
    %v1504 = vpack.c.b16 %v1172, %v1170
    %v1505 = vpack.c.b16 %v1175, %v1173
    %v1506 = vpack.c.b16 %v1176, %v1174
    %v1507 = vpack.c.b16 %v1179, %v1177
    %v1508 = vpack.c.b16 %v1180, %v1178
    %v1509 = vpack.c.b16 %v1183, %v1181
    %v1510 = vpack.c.b16 %v1184, %v1182
    %v1511 = vpack.c.b16 %v1187, %v1185
    %v1512 = vpack.c.b16 %v1188, %v1186
    %v1513 = vpack.c.b16 %v1191, %v1189
    %v1514 = vpack.c.b16 %v1192, %v1190
    %v1515 = vpack.c.b16 %v1195, %v1193
    %v1516 = vpack.c.b16 %v1196, %v1194
    %v1517 = vpack.c.b16 %v1199, %v1197
    %v1518 = vpack.c.b16 %v1200, %v1198
    %v1519 = vpack.c.b16 %v1203, %v1201
    %v1520 = vpack.c.b16 %v1204, %v1202
    %v1521 = vpack.c.b16 %v1207, %v1205
    %v1522 = vpack.c.b16 %v1208, %v1206
    %v1523 = vpack.c.b16 %v1211, %v1209
    %v1524 = vpack.c.b16 %v1212, %v1210
    %v1525 = vpack.c.b16 %v1215, %v1213
    %v1526 = vpack.c.b16 %v1216, %v1214
    %v1527 = vpack.c.b16 %v1219, %v1217
    %v1528 = vpack.c.b16 %v1220, %v1218
    %v1529 = vpack.c.b16 %v1223, %v1221
    %v1530 = vpack.c.b16 %v1224, %v1222
    %v1531 = vpack.c.b16 %v1227, %v1225
    %v1532 = vpack.c.b16 %v1228, %v1226
    %v1533 = vpack.c.b16 %v1231, %v1229
    %v1534 = vpack.c.b16 %v1232, %v1230
    %v1535 = vpack.c.b16 %v1235, %v1233
    %v1536 = vpack.c.b16 %v1236, %v1234
    %v1537 = vpack.c.b16 %v1239, %v1237
    %v1538 = vpack.c.b16 %v1240, %v1238
    %v1539 = vpack.c.b16 %v1243, %v1241
    %v1540 = vpack.c.b16 %v1244, %v1242
    %v1541 = vpack.c.b16 %v1247, %v1245
    %v1542 = vpack.c.b16 %v1248, %v1246
    %v1543 = vpack.c.b16 %v1251, %v1249
    %v1544 = vpack.c.b16 %v1252, %v1250
    %v1545 = vpack.c.b16 %v1255, %v1253
    %v1546 = vpack.c.b16 %v1256, %v1254
    %v1547 = vpack.c.b16 %v1259, %v1257
    %v1548 = vpack.c.b16 %v1260, %v1258
    %1837 = vmatprep.subr.bf16.mxu0 %v1262
    %1838 = vmatpush1.bf16.msra.mxu0 %v1261
    %1839 = vmatprep.subr.bf16.mxu0 %v1264
    %1840 = vmatpush1.bf16.msra.mxu0 %v1263
    %1841 = vmatprep.subr.bf16.mxu0 %v1266
    %1842 = vmatpush1.bf16.msra.mxu0 %v1265
    %1843 = vmatprep.subr.bf16.mxu0 %v1268
    %1844 = vmatpush1.bf16.msra.mxu0 %v1267
    %1845 = vmatprep.subr.bf16.mxu0 %v1270
    %1846 = vmatpush1.bf16.msra.mxu0 %v1269
    %1847 = vmatprep.subr.bf16.mxu0 %v1272
    %1848 = vmatpush1.bf16.msra.mxu0 %v1271
    %1849 = vmatprep.subr.bf16.mxu0 %v1274
    %1850 = vmatpush1.bf16.msra.mxu0 %v1273
    %1851 = vmatprep.subr.bf16.mxu0 %v1276
    %1852 = vmatpush1.bf16.msra.mxu0 %v1275
    %1853 = vmatprep.subr.bf16.mxu0 %v1278
    %1854 = vmatpush1.bf16.msra.mxu0 %v1277
    %1855 = vmatprep.subr.bf16.mxu0 %v1280
    %1856 = vmatpush1.bf16.msra.mxu0 %v1279
    %1857 = vmatprep.subr.bf16.mxu0 %v1282
    %1858 = vmatpush1.bf16.msra.mxu0 %v1281
    %1859 = vmatprep.subr.bf16.mxu0 %v1284
    %1860 = vmatpush1.bf16.msra.mxu0 %v1283
    %1861 = vmatprep.subr.bf16.mxu0 %v1286
    %1862 = vmatpush1.bf16.msra.mxu0 %v1285
    %1863 = vmatprep.subr.bf16.mxu0 %v1288
    %1864 = vmatpush1.bf16.msra.mxu0 %v1287
    %1865 = vmatprep.subr.bf16.mxu0 %v1290
    %1866 = vmatpush1.bf16.msra.mxu0 %v1289
    %1867 = vmatprep.subr.bf16.mxu0 %v1292
    %1868 = vmatpush1.bf16.msra.mxu0 %v1291
    %1869 = vmatprep.mubr.bf16.mxu0 %v362
    %1870 = vmatmul.mubr.bf16.gmra.mrb[0].mxu0 %v361
    %v1871 = vpop.f32.mrb[0].mxu0
    %v1872 = vadd.f32 0.0, %v1871
    %v1873 = vpop.f32.mrb[0].mxu0
    %v1874 = vadd.f32 0.0, %v1873
    %v1875 = vpop.f32.mrb[0].mxu0
    %v1876 = vpop.f32.mrb[0].mxu0
    %1877 = vdwg.mxu0
    %1878 = vmatprep.subr.bf16.mxu0 %v1294
    %1879 = vmatpush1.bf16.msra.mxu0 %v1293
    %1880 = vmatprep.subr.bf16.mxu0 %v1296
    %1881 = vmatpush1.bf16.msra.mxu0 %v1295
    %1882 = vmatprep.subr.bf16.mxu0 %v1298
    %1883 = vmatpush1.bf16.msra.mxu0 %v1297
    %1884 = vmatprep.subr.bf16.mxu0 %v1300
    %1885 = vmatpush1.bf16.msra.mxu0 %v1299
    %1886 = vmatprep.subr.bf16.mxu0 %v1302
    %1887 = vmatpush1.bf16.msra.mxu0 %v1301
    %1888 = vmatprep.subr.bf16.mxu0 %v1304
    %1889 = vmatpush1.bf16.msra.mxu0 %v1303
    %1890 = vmatprep.subr.bf16.mxu0 %v1306
    %1891 = vmatpush1.bf16.msra.mxu0 %v1305
    %1892 = vmatprep.subr.bf16.mxu0 %v1308
    %1893 = vmatpush1.bf16.msra.mxu0 %v1307
    %1894 = vmatprep.subr.bf16.mxu0 %v1310
    %1895 = vmatpush1.bf16.msra.mxu0 %v1309
    %1896 = vmatprep.subr.bf16.mxu0 %v1312
    %1897 = vmatpush1.bf16.msra.mxu0 %v1311
    %1898 = vmatprep.subr.bf16.mxu0 %v1314
    %1899 = vmatpush1.bf16.msra.mxu0 %v1313
    %1900 = vmatprep.subr.bf16.mxu0 %v1316
    %1901 = vmatpush1.bf16.msra.mxu0 %v1315
    %1902 = vmatprep.subr.bf16.mxu0 %v1318
    %1903 = vmatpush1.bf16.msra.mxu0 %v1317
    %1904 = vmatprep.subr.bf16.mxu0 %v1320
    %1905 = vmatpush1.bf16.msra.mxu0 %v1319
    %1906 = vmatprep.subr.bf16.mxu0 %v1322
    %1907 = vmatpush1.bf16.msra.mxu0 %v1321
    %1908 = vmatprep.subr.bf16.mxu0 %v1324
    %1909 = vmatpush1.bf16.msra.mxu0 %v1323
    %1910 = vmatprep.mubr.bf16.mxu0 %v364
    %1911 = vmatmul.mubr.bf16.gmra.mrb[0].mxu0 %v363
    %v1912 = vpop.f32.mrb[0].mxu0
    %v1913 = vadd.f32 %v1872, %v1912
    %v1914 = vpop.f32.mrb[0].mxu0
    %v1915 = vadd.f32 %v1874, %v1914
    %v1916 = vpop.f32.mrb[0].mxu0
    %v1917 = vpop.f32.mrb[0].mxu0
    %1918 = vdwg.mxu0
    %1919 = vmatprep.subr.bf16.mxu0 %v1326
    %1920 = vmatpush1.bf16.msra.mxu0 %v1325
    %1921 = vmatprep.subr.bf16.mxu0 %v1328
    %1922 = vmatpush1.bf16.msra.mxu0 %v1327
    %1923 = vmatprep.subr.bf16.mxu0 %v1330
    %1924 = vmatpush1.bf16.msra.mxu0 %v1329
    %1925 = vmatprep.subr.bf16.mxu0 %v1332
    %1926 = vmatpush1.bf16.msra.mxu0 %v1331
    %1927 = vmatprep.subr.bf16.mxu0 %v1334
    %1928 = vmatpush1.bf16.msra.mxu0 %v1333
    %1929 = vmatprep.subr.bf16.mxu0 %v1336
    %1930 = vmatpush1.bf16.msra.mxu0 %v1335
    %1931 = vmatprep.subr.bf16.mxu0 %v1338
    %1932 = vmatpush1.bf16.msra.mxu0 %v1337
    %1933 = vmatprep.subr.bf16.mxu0 %v1340
    %1934 = vmatpush1.bf16.msra.mxu0 %v1339
    %1935 = vmatprep.subr.bf16.mxu0 %v1342
    %1936 = vmatpush1.bf16.msra.mxu0 %v1341
    %1937 = vmatprep.subr.bf16.mxu0 %v1344
    %1938 = vmatpush1.bf16.msra.mxu0 %v1343
    %1939 = vmatprep.subr.bf16.mxu0 %v1346
    %1940 = vmatpush1.bf16.msra.mxu0 %v1345
    %1941 = vmatprep.subr.bf16.mxu0 %v1348
    %1942 = vmatpush1.bf16.msra.mxu0 %v1347
    %1943 = vmatprep.subr.bf16.mxu0 %v1350
    %1944 = vmatpush1.bf16.msra.mxu0 %v1349
    %1945 = vmatprep.subr.bf16.mxu0 %v1352
    %1946 = vmatpush1.bf16.msra.mxu0 %v1351
    %1947 = vmatprep.subr.bf16.mxu0 %v1354
    %1948 = vmatpush1.bf16.msra.mxu0 %v1353
    %1949 = vmatprep.subr.bf16.mxu0 %v1356
    %1950 = vmatpush1.bf16.msra.mxu0 %v1355
    %1951 = vmatprep.mubr.bf16.mxu0 %v366
    %1952 = vmatmul.mubr.bf16.gmra.mrb[0].mxu0 %v365
    %v1953 = vpop.f32.mrb[0].mxu0
    %v1954 = vadd.f32 %v1913, %v1953
    %v1955 = vpop.f32.mrb[0].mxu0
    %v1956 = vadd.f32 %v1915, %v1955
    %v1957 = vpop.f32.mrb[0].mxu0
    %v1958 = vpop.f32.mrb[0].mxu0
    %1959 = vdwg.mxu0
    %1960 = vmatprep.subr.bf16.mxu0 %v1358
    %1961 = vmatpush1.bf16.msra.mxu0 %v1357
    %1962 = vmatprep.subr.bf16.mxu0 %v1360
    %1963 = vmatpush1.bf16.msra.mxu0 %v1359
    %1964 = vmatprep.subr.bf16.mxu0 %v1362
    %1965 = vmatpush1.bf16.msra.mxu0 %v1361
    %1966 = vmatprep.subr.bf16.mxu0 %v1364
    %1967 = vmatpush1.bf16.msra.mxu0 %v1363
    %1968 = vmatprep.subr.bf16.mxu0 %v1366
    %1969 = vmatpush1.bf16.msra.mxu0 %v1365
    %1970 = vmatprep.subr.bf16.mxu0 %v1368
    %1971 = vmatpush1.bf16.msra.mxu0 %v1367
    %1972 = vmatprep.subr.bf16.mxu0 %v1370
    %1973 = vmatpush1.bf16.msra.mxu0 %v1369
    %1974 = vmatprep.subr.bf16.mxu0 %v1372
    %1975 = vmatpush1.bf16.msra.mxu0 %v1371
    %1976 = vmatprep.subr.bf16.mxu0 %v1374
    %1977 = vmatpush1.bf16.msra.mxu0 %v1373
    %1978 = vmatprep.subr.bf16.mxu0 %v1376
    %1979 = vmatpush1.bf16.msra.mxu0 %v1375
    %1980 = vmatprep.subr.bf16.mxu0 %v1378
    %1981 = vmatpush1.bf16.msra.mxu0 %v1377
    %1982 = vmatprep.subr.bf16.mxu0 %v1380
    %1983 = vmatpush1.bf16.msra.mxu0 %v1379
    %1984 = vmatprep.subr.bf16.mxu0 %v1382
    %1985 = vmatpush1.bf16.msra.mxu0 %v1381
    %1986 = vmatprep.subr.bf16.mxu0 %v1384
    %1987 = vmatpush1.bf16.msra.mxu0 %v1383
    %1988 = vmatprep.subr.bf16.mxu0 %v1386
    %1989 = vmatpush1.bf16.msra.mxu0 %v1385
    %1990 = vmatprep.subr.bf16.mxu0 %v1388
    %1991 = vmatpush1.bf16.msra.mxu0 %v1387
    %1992 = vmatprep.mubr.bf16.mxu0 %v368
    %1993 = vmatmul.mubr.bf16.gmra.mrb[0].mxu0 %v367
    %v1994 = vpop.f32.mrb[0].mxu0
    %v1995 = vadd.f32 %v1954, %v1994
    %v1996 = vpop.f32.mrb[0].mxu0
    %v1997 = vadd.f32 %v1956, %v1996
    %v1998 = vpop.f32.mrb[0].mxu0
    %v1999 = vpop.f32.mrb[0].mxu0
    %2000 = vdwg.mxu0
    %2001 = vmatprep.subr.bf16.mxu0 %v1390
    %2002 = vmatpush1.bf16.msra.mxu0 %v1389
    %2003 = vmatprep.subr.bf16.mxu0 %v1392
    %2004 = vmatpush1.bf16.msra.mxu0 %v1391
    %2005 = vmatprep.subr.bf16.mxu0 %v1394
    %2006 = vmatpush1.bf16.msra.mxu0 %v1393
    %2007 = vmatprep.subr.bf16.mxu0 %v1396
    %2008 = vmatpush1.bf16.msra.mxu0 %v1395
    %2009 = vmatprep.subr.bf16.mxu0 %v1398
    %2010 = vmatpush1.bf16.msra.mxu0 %v1397
    %2011 = vmatprep.subr.bf16.mxu0 %v1400
    %2012 = vmatpush1.bf16.msra.mxu0 %v1399
    %2013 = vmatprep.subr.bf16.mxu0 %v1402
    %2014 = vmatpush1.bf16.msra.mxu0 %v1401
    %2015 = vmatprep.subr.bf16.mxu0 %v1404
    %2016 = vmatpush1.bf16.msra.mxu0 %v1403
    %2017 = vmatprep.subr.bf16.mxu0 %v1406
    %2018 = vmatpush1.bf16.msra.mxu0 %v1405
    %2019 = vmatprep.subr.bf16.mxu0 %v1408
    %2020 = vmatpush1.bf16.msra.mxu0 %v1407
    %2021 = vmatprep.subr.bf16.mxu0 %v1410
    %2022 = vmatpush1.bf16.msra.mxu0 %v1409
    %2023 = vmatprep.subr.bf16.mxu0 %v1412
    %2024 = vmatpush1.bf16.msra.mxu0 %v1411
    %2025 = vmatprep.subr.bf16.mxu0 %v1414
    %2026 = vmatpush1.bf16.msra.mxu0 %v1413
    %2027 = vmatprep.subr.bf16.mxu0 %v1416
    %2028 = vmatpush1.bf16.msra.mxu0 %v1415
    %2029 = vmatprep.subr.bf16.mxu0 %v1418
    %2030 = vmatpush1.bf16.msra.mxu0 %v1417
    %2031 = vmatprep.subr.bf16.mxu0 %v1420
    %2032 = vmatpush1.bf16.msra.mxu0 %v1419
    %2033 = vmatprep.mubr.bf16.mxu0 %v370
    %2034 = vmatmul.mubr.bf16.gmra.mrb[0].mxu0 %v369
    %v2035 = vpop.f32.mrb[0].mxu0
    %v2036 = vadd.f32 %v1995, %v2035
    %v2037 = vpop.f32.mrb[0].mxu0
    %v2038 = vadd.f32 %v1997, %v2037
    %v2039 = vpop.f32.mrb[0].mxu0
    %v2040 = vpop.f32.mrb[0].mxu0
    %2041 = vdwg.mxu0
    %2042 = vmatprep.subr.bf16.mxu0 %v1422
    %2043 = vmatpush1.bf16.msra.mxu0 %v1421
    %2044 = vmatprep.subr.bf16.mxu0 %v1424
    %2045 = vmatpush1.bf16.msra.mxu0 %v1423
    %2046 = vmatprep.subr.bf16.mxu0 %v1426
    %2047 = vmatpush1.bf16.msra.mxu0 %v1425
    %2048 = vmatprep.subr.bf16.mxu0 %v1428
    %2049 = vmatpush1.bf16.msra.mxu0 %v1427
    %2050 = vmatprep.subr.bf16.mxu0 %v1430
    %2051 = vmatpush1.bf16.msra.mxu0 %v1429
    %2052 = vmatprep.subr.bf16.mxu0 %v1432
    %2053 = vmatpush1.bf16.msra.mxu0 %v1431
    %2054 = vmatprep.subr.bf16.mxu0 %v1434
    %2055 = vmatpush1.bf16.msra.mxu0 %v1433
    %2056 = vmatprep.subr.bf16.mxu0 %v1436
    %2057 = vmatpush1.bf16.msra.mxu0 %v1435
    %2058 = vmatprep.subr.bf16.mxu0 %v1438
    %2059 = vmatpush1.bf16.msra.mxu0 %v1437
    %2060 = vmatprep.subr.bf16.mxu0 %v1440
    %2061 = vmatpush1.bf16.msra.mxu0 %v1439
    %2062 = vmatprep.subr.bf16.mxu0 %v1442
    %2063 = vmatpush1.bf16.msra.mxu0 %v1441
    %2064 = vmatprep.subr.bf16.mxu0 %v1444
    %2065 = vmatpush1.bf16.msra.mxu0 %v1443
    %2066 = vmatprep.subr.bf16.mxu0 %v1446
    %2067 = vmatpush1.bf16.msra.mxu0 %v1445
    %2068 = vmatprep.subr.bf16.mxu0 %v1448
    %2069 = vmatpush1.bf16.msra.mxu0 %v1447
    %2070 = vmatprep.subr.bf16.mxu0 %v1450
    %2071 = vmatpush1.bf16.msra.mxu0 %v1449
    %2072 = vmatprep.subr.bf16.mxu0 %v1452
    %2073 = vmatpush1.bf16.msra.mxu0 %v1451
    %2074 = vmatprep.mubr.bf16.mxu0 %v372
    %2075 = vmatmul.mubr.bf16.gmra.mrb[0].mxu0 %v371
    %v2076 = vpop.f32.mrb[0].mxu0
    %v2077 = vadd.f32 %v2036, %v2076
    %v2078 = vpop.f32.mrb[0].mxu0
    %v2079 = vadd.f32 %v2038, %v2078
    %v2080 = vpop.f32.mrb[0].mxu0
    %v2081 = vpop.f32.mrb[0].mxu0
    %2082 = vdwg.mxu0
    %2083 = vmatprep.subr.bf16.mxu0 %v1454
    %2084 = vmatpush1.bf16.msra.mxu0 %v1453
    %2085 = vmatprep.subr.bf16.mxu0 %v1456
    %2086 = vmatpush1.bf16.msra.mxu0 %v1455
    %2087 = vmatprep.subr.bf16.mxu0 %v1458
    %2088 = vmatpush1.bf16.msra.mxu0 %v1457
    %2089 = vmatprep.subr.bf16.mxu0 %v1460
    %2090 = vmatpush1.bf16.msra.mxu0 %v1459
    %2091 = vmatprep.subr.bf16.mxu0 %v1462
    %2092 = vmatpush1.bf16.msra.mxu0 %v1461
    %2093 = vmatprep.subr.bf16.mxu0 %v1464
    %2094 = vmatpush1.bf16.msra.mxu0 %v1463
    %2095 = vmatprep.subr.bf16.mxu0 %v1466
    %2096 = vmatpush1.bf16.msra.mxu0 %v1465
    %2097 = vmatprep.subr.bf16.mxu0 %v1468
    %2098 = vmatpush1.bf16.msra.mxu0 %v1467
    %2099 = vmatprep.subr.bf16.mxu0 %v1470
    %2100 = vmatpush1.bf16.msra.mxu0 %v1469
    %2101 = vmatprep.subr.bf16.mxu0 %v1472
    %2102 = vmatpush1.bf16.msra.mxu0 %v1471
    %2103 = vmatprep.subr.bf16.mxu0 %v1474
    %2104 = vmatpush1.bf16.msra.mxu0 %v1473
    %2105 = vmatprep.subr.bf16.mxu0 %v1476
    %2106 = vmatpush1.bf16.msra.mxu0 %v1475
    %2107 = vmatprep.subr.bf16.mxu0 %v1478
    %2108 = vmatpush1.bf16.msra.mxu0 %v1477
    %2109 = vmatprep.subr.bf16.mxu0 %v1480
    %2110 = vmatpush1.bf16.msra.mxu0 %v1479
    %2111 = vmatprep.subr.bf16.mxu0 %v1482
    %2112 = vmatpush1.bf16.msra.mxu0 %v1481
    %2113 = vmatprep.subr.bf16.mxu0 %v1484
    %2114 = vmatpush1.bf16.msra.mxu0 %v1483
    %2115 = vmatprep.mubr.bf16.mxu0 %v374
    %2116 = vmatmul.mubr.bf16.gmra.mrb[0].mxu0 %v373
    %v2117 = vpop.f32.mrb[0].mxu0
    %v2118 = vadd.f32 %v2077, %v2117
    %v2119 = vpop.f32.mrb[0].mxu0
    %v2120 = vadd.f32 %v2079, %v2119
    %v2121 = vpop.f32.mrb[0].mxu0
    %v2122 = vpop.f32.mrb[0].mxu0
    %2123 = vdwg.mxu0
    %2124 = vmatprep.subr.bf16.mxu0 %v1486
    %2125 = vmatpush1.bf16.msra.mxu0 %v1485
    %2126 = vmatprep.subr.bf16.mxu0 %v1488
    %2127 = vmatpush1.bf16.msra.mxu0 %v1487
    %2128 = vmatprep.subr.bf16.mxu0 %v1490
    %2129 = vmatpush1.bf16.msra.mxu0 %v1489
    %2130 = vmatprep.subr.bf16.mxu0 %v1492
    %2131 = vmatpush1.bf16.msra.mxu0 %v1491
    %2132 = vmatprep.subr.bf16.mxu0 %v1494
    %2133 = vmatpush1.bf16.msra.mxu0 %v1493
    %2134 = vmatprep.subr.bf16.mxu0 %v1496
    %2135 = vmatpush1.bf16.msra.mxu0 %v1495
    %2136 = vmatprep.subr.bf16.mxu0 %v1498
    %2137 = vmatpush1.bf16.msra.mxu0 %v1497
    %2138 = vmatprep.subr.bf16.mxu0 %v1500
    %2139 = vmatpush1.bf16.msra.mxu0 %v1499
    %2140 = vmatprep.subr.bf16.mxu0 %v1502
    %2141 = vmatpush1.bf16.msra.mxu0 %v1501
    %2142 = vmatprep.subr.bf16.mxu0 %v1504
    %2143 = vmatpush1.bf16.msra.mxu0 %v1503
    %2144 = vmatprep.subr.bf16.mxu0 %v1506
    %2145 = vmatpush1.bf16.msra.mxu0 %v1505
    %2146 = vmatprep.subr.bf16.mxu0 %v1508
    %2147 = vmatpush1.bf16.msra.mxu0 %v1507
    %2148 = vmatprep.subr.bf16.mxu0 %v1510
    %2149 = vmatpush1.bf16.msra.mxu0 %v1509
    %2150 = vmatprep.subr.bf16.mxu0 %v1512
    %2151 = vmatpush1.bf16.msra.mxu0 %v1511
    %2152 = vmatprep.subr.bf16.mxu0 %v1514
    %2153 = vmatpush1.bf16.msra.mxu0 %v1513
    %2154 = vmatprep.subr.bf16.mxu0 %v1516
    %2155 = vmatpush1.bf16.msra.mxu0 %v1515
    %2156 = vmatprep.mubr.bf16.mxu0 %v376
    %2157 = vmatmul.mubr.bf16.gmra.mrb[0].mxu0 %v375
    %v2158 = vpop.f32.mrb[0].mxu0
    %v2159 = vadd.f32 %v2118, %v2158
    %v2160 = vpop.f32.mrb[0].mxu0
    %v2161 = vadd.f32 %v2120, %v2160
    %v2162 = vpop.f32.mrb[0].mxu0
    %v2163 = vpop.f32.mrb[0].mxu0
    %2164 = vdwg.mxu0
    %2165 = vmatprep.subr.bf16.mxu0 %v1518
    %2166 = vmatpush1.bf16.msra.mxu0 %v1517
    %2167 = vmatprep.subr.bf16.mxu0 %v1520
    %2168 = vmatpush1.bf16.msra.mxu0 %v1519
    %2169 = vmatprep.subr.bf16.mxu0 %v1522
    %2170 = vmatpush1.bf16.msra.mxu0 %v1521
    %2171 = vmatprep.subr.bf16.mxu0 %v1524
    %2172 = vmatpush1.bf16.msra.mxu0 %v1523
    %2173 = vmatprep.subr.bf16.mxu0 %v1526
    %2174 = vmatpush1.bf16.msra.mxu0 %v1525
    %2175 = vmatprep.subr.bf16.mxu0 %v1528
    %2176 = vmatpush1.bf16.msra.mxu0 %v1527
    %2177 = vmatprep.subr.bf16.mxu0 %v1530
    %2178 = vmatpush1.bf16.msra.mxu0 %v1529
    %2179 = vmatprep.subr.bf16.mxu0 %v1532
    %2180 = vmatpush1.bf16.msra.mxu0 %v1531
    %2181 = vmatprep.subr.bf16.mxu0 %v1534
    %2182 = vmatpush1.bf16.msra.mxu0 %v1533
    %2183 = vmatprep.subr.bf16.mxu0 %v1536
    %2184 = vmatpush1.bf16.msra.mxu0 %v1535
    %2185 = vmatprep.subr.bf16.mxu0 %v1538
    %2186 = vmatpush1.bf16.msra.mxu0 %v1537
    %2187 = vmatprep.subr.bf16.mxu0 %v1540
    %2188 = vmatpush1.bf16.msra.mxu0 %v1539
    %2189 = vmatprep.subr.bf16.mxu0 %v1542
    %2190 = vmatpush1.bf16.msra.mxu0 %v1541
    %2191 = vmatprep.subr.bf16.mxu0 %v1544
    %2192 = vmatpush1.bf16.msra.mxu0 %v1543
    %2193 = vmatprep.subr.bf16.mxu0 %v1546
    %2194 = vmatpush1.bf16.msra.mxu0 %v1545
    %2195 = vmatprep.subr.bf16.mxu0 %v1548
    %2196 = vmatpush1.bf16.msra.mxu0 %v1547
    %2197 = vmatprep.mubr.bf16.mxu0 %v378
    %2198 = vmatmul.mubr.bf16.gmra.mrb[0].mxu0 %v377
    %v2199 = vpop.f32.mrb[0].mxu0
    %v2200 = vadd.f32 %v2159, %v2199
    %v2201 = vpop.f32.mrb[0].mxu0
    %v2202 = vadd.f32 %v2161, %v2201
    %v2203 = vpop.f32.mrb[0].mxu0
    %v2204 = vpop.f32.mrb[0].mxu0
    %2205 = vdwg.mxu0
    %v2206 = vld [vmem:[%s2] sm:$0x3]
    %v2208 = vlaneseq
    %v2209 = vshrl.u32 %v2208, 7
    %v2210 = vsub.s32 0, %v2209
    %v2211 = vrot.slane %v2206, %v2210
    %v2212 = vlaneseq
    %v2213 = vshrl.u32 %v2212, 7
    %v2214 = vsub.s32 1, %v2213
    %v2215 = vrot.slane %v2206, %v2214
    %v2218 = vmul.f32 %v2200, %v2211
    %v2219 = vmul.f32 %v2202, %v2215
    %v2220 = vld [vmem:[%s3] sm:$0x3]
    %v2222 = vlaneseq
    %v2223 = vshrl.u32 %v2222, 7
    %v2224 = vsub.s32 0, %v2223
    %v2225 = vrot.slane %v2220, %v2224
    %v2226 = vlaneseq
    %v2227 = vshrl.u32 %v2226, 7
    %v2228 = vsub.s32 1, %v2227
    %v2229 = vrot.slane %v2220, %v2228
    %v2232 = vadd.f32 %v2218, %v2225
    %v2233 = vadd.f32 %v2219, %v2229
    %v2234 = vmax.f32 %v2232, 0.0
    %v2235 = vmax.f32 %v2233, 0.0
    %v2236 = vpack.c.bf16 %v2234, %v2234
    %v2237 = vpack.c.bf16 %v2235, %v2235
    %v2238 = vld [vmem:[%s4] sm:$0xff]
    %v2239 = vld [vmem:[%s4 + $0x8] sm:$0xff]
    %v2240 = vld [vmem:[%s4 + $0x10] sm:$0xff]
    %v2241 = vld [vmem:[%s4 + $0x18] sm:$0xff]
    %v2242 = vld [vmem:[%s4 + $0x20] sm:$0xff]
    %v2243 = vld [vmem:[%s4 + $0x28] sm:$0xff]
    %v2244 = vld [vmem:[%s4 + $0x30] sm:$0xff]
    %v2245 = vld [vmem:[%s4 + $0x38] sm:$0xff]
    %v2246 = vld [vmem:[%s4 + $0x40] sm:$0xff]
    %v2247 = vld [vmem:[%s4 + $0x48] sm:$0xff]
    %v2248 = vld [vmem:[%s4 + $0x50] sm:$0xff]
    %v2249 = vld [vmem:[%s4 + $0x58] sm:$0xff]
    %v2250 = vld [vmem:[%s4 + $0x60] sm:$0xff]
    %v2251 = vld [vmem:[%s4 + $0x68] sm:$0xff]
    %v2252 = vld [vmem:[%s4 + $0x70] sm:$0xff]
    %v2253 = vld [vmem:[%s4 + $0x78] sm:$0xff]
    %v2254 = vld [vmem:[%s4 + $0x80] sm:$0xff]
    %v2255 = vld [vmem:[%s4 + $0x88] sm:$0xff]
    %v2256 = vld [vmem:[%s4 + $0x90] sm:$0xff]
    %v2257 = vld [vmem:[%s4 + $0x98] sm:$0xff]
    %v2258 = vld [vmem:[%s4 + $0xa0] sm:$0xff]
    %v2259 = vld [vmem:[%s4 + $0xa8] sm:$0xff]
    %v2260 = vld [vmem:[%s4 + $0xb0] sm:$0xff]
    %v2261 = vld [vmem:[%s4 + $0xb8] sm:$0xff]
    %v2262 = vld [vmem:[%s4 + $0xc0] sm:$0xff]
    %v2263 = vld [vmem:[%s4 + $0xc8] sm:$0xff]
    %v2264 = vld [vmem:[%s4 + $0xd0] sm:$0xff]
    %v2265 = vld [vmem:[%s4 + $0xd8] sm:$0xff]
    %v2266 = vld [vmem:[%s4 + $0xe0] sm:$0xff]
    %v2267 = vld [vmem:[%s4 + $0xe8] sm:$0xff]
    %v2268 = vld [vmem:[%s4 + $0xf0] sm:$0xff]
    %v2269 = vld [vmem:[%s4 + $0xf8] sm:$0xff]
    %v2270 = vld [vmem:[%s4 + $0x100] sm:$0xff]
    %v2271 = vld [vmem:[%s4 + $0x108] sm:$0xff]
    %v2272 = vld [vmem:[%s4 + $0x110] sm:$0xff]
    %v2273 = vld [vmem:[%s4 + $0x118] sm:$0xff]
    %v2274 = vld [vmem:[%s4 + $0x120] sm:$0xff]
    %v2275 = vld [vmem:[%s4 + $0x128] sm:$0xff]
    %v2276 = vld [vmem:[%s4 + $0x130] sm:$0xff]
    %v2277 = vld [vmem:[%s4 + $0x138] sm:$0xff]
    %v2278 = vld [vmem:[%s4 + $0x140] sm:$0xff]
    %v2279 = vld [vmem:[%s4 + $0x148] sm:$0xff]
    %v2280 = vld [vmem:[%s4 + $0x150] sm:$0xff]
    %v2281 = vld [vmem:[%s4 + $0x158] sm:$0xff]
    %v2282 = vld [vmem:[%s4 + $0x160] sm:$0xff]
    %v2283 = vld [vmem:[%s4 + $0x168] sm:$0xff]
    %v2284 = vld [vmem:[%s4 + $0x170] sm:$0xff]
    %v2285 = vld [vmem:[%s4 + $0x178] sm:$0xff]
    %v2286 = vld [vmem:[%s4 + $0x180] sm:$0xff]
    %v2287 = vld [vmem:[%s4 + $0x188] sm:$0xff]
    %v2288 = vld [vmem:[%s4 + $0x190] sm:$0xff]
    %v2289 = vld [vmem:[%s4 + $0x198] sm:$0xff]
    %v2290 = vld [vmem:[%s4 + $0x1a0] sm:$0xff]
    %v2291 = vld [vmem:[%s4 + $0x1a8] sm:$0xff]
    %v2292 = vld [vmem:[%s4 + $0x1b0] sm:$0xff]
    %v2293 = vld [vmem:[%s4 + $0x1b8] sm:$0xff]
    %v2294 = vld [vmem:[%s4 + $0x1c0] sm:$0xff]
    %v2295 = vld [vmem:[%s4 + $0x1c8] sm:$0xff]
    %v2296 = vld [vmem:[%s4 + $0x1d0] sm:$0xff]
    %v2297 = vld [vmem:[%s4 + $0x1d8] sm:$0xff]
    %v2298 = vld [vmem:[%s4 + $0x1e0] sm:$0xff]
    %v2299 = vld [vmem:[%s4 + $0x1e8] sm:$0xff]
    %v2300 = vld [vmem:[%s4 + $0x1f0] sm:$0xff]
    %v2301 = vld [vmem:[%s4 + $0x1f8] sm:$0xff]
    %v2366 = vunpack.c.l.b16 %v2238
    %v2367 = vunpack.c.h.b16 %v2238
    %v2368 = vunpack.c.l.b16 %v2239
    %v2369 = vunpack.c.h.b16 %v2239
    %v2370 = vunpack.c.l.b16 %v2240
    %v2371 = vunpack.c.h.b16 %v2240
    %v2372 = vunpack.c.l.b16 %v2241
    %v2373 = vunpack.c.h.b16 %v2241
    %v2374 = vunpack.c.l.b16 %v2242
    %v2375 = vunpack.c.h.b16 %v2242
    %v2376 = vunpack.c.l.b16 %v2243
    %v2377 = vunpack.c.h.b16 %v2243
    %v2378 = vunpack.c.l.b16 %v2244
    %v2379 = vunpack.c.h.b16 %v2244
    %v2380 = vunpack.c.l.b16 %v2245
    %v2381 = vunpack.c.h.b16 %v2245
    %v2382 = vunpack.c.l.b16 %v2246
    %v2383 = vunpack.c.h.b16 %v2246
    %v2384 = vunpack.c.l.b16 %v2247
    %v2385 = vunpack.c.h.b16 %v2247
    %v2386 = vunpack.c.l.b16 %v2248
    %v2387 = vunpack.c.h.b16 %v2248
    %v2388 = vunpack.c.l.b16 %v2249
    %v2389 = vunpack.c.h.b16 %v2249
    %v2390 = vunpack.c.l.b16 %v2250
    %v2391 = vunpack.c.h.b16 %v2250
    %v2392 = vunpack.c.l.b16 %v2251
    %v2393 = vunpack.c.h.b16 %v2251
    %v2394 = vunpack.c.l.b16 %v2252
    %v2395 = vunpack.c.h.b16 %v2252
    %v2396 = vunpack.c.l.b16 %v2253
    %v2397 = vunpack.c.h.b16 %v2253
    %v2398 = vunpack.c.l.b16 %v2254
    %v2399 = vunpack.c.h.b16 %v2254
    %v2400 = vunpack.c.l.b16 %v2255
    %v2401 = vunpack.c.h.b16 %v2255
    %v2402 = vunpack.c.l.b16 %v2256
    %v2403 = vunpack.c.h.b16 %v2256
    %v2404 = vunpack.c.l.b16 %v2257
    %v2405 = vunpack.c.h.b16 %v2257
    %v2406 = vunpack.c.l.b16 %v2258
    %v2407 = vunpack.c.h.b16 %v2258
    %v2408 = vunpack.c.l.b16 %v2259
    %v2409 = vunpack.c.h.b16 %v2259
    %v2410 = vunpack.c.l.b16 %v2260
    %v2411 = vunpack.c.h.b16 %v2260
    %v2412 = vunpack.c.l.b16 %v2261
    %v2413 = vunpack.c.h.b16 %v2261
    %v2414 = vunpack.c.l.b16 %v2262
    %v2415 = vunpack.c.h.b16 %v2262
    %v2416 = vunpack.c.l.b16 %v2263
    %v2417 = vunpack.c.h.b16 %v2263
    %v2418 = vunpack.c.l.b16 %v2264
    %v2419 = vunpack.c.h.b16 %v2264
    %v2420 = vunpack.c.l.b16 %v2265
    %v2421 = vunpack.c.h.b16 %v2265
    %v2422 = vunpack.c.l.b16 %v2266
    %v2423 = vunpack.c.h.b16 %v2266
    %v2424 = vunpack.c.l.b16 %v2267
    %v2425 = vunpack.c.h.b16 %v2267
    %v2426 = vunpack.c.l.b16 %v2268
    %v2427 = vunpack.c.h.b16 %v2268
    %v2428 = vunpack.c.l.b16 %v2269
    %v2429 = vunpack.c.h.b16 %v2269
    %v2430 = vunpack.c.l.b16 %v2270
    %v2431 = vunpack.c.h.b16 %v2270
    %v2432 = vunpack.c.l.b16 %v2271
    %v2433 = vunpack.c.h.b16 %v2271
    %v2434 = vunpack.c.l.b16 %v2272
    %v2435 = vunpack.c.h.b16 %v2272
    %v2436 = vunpack.c.l.b16 %v2273
    %v2437 = vunpack.c.h.b16 %v2273
    %v2438 = vunpack.c.l.b16 %v2274
    %v2439 = vunpack.c.h.b16 %v2274
    %v2440 = vunpack.c.l.b16 %v2275
    %v2441 = vunpack.c.h.b16 %v2275
    %v2442 = vunpack.c.l.b16 %v2276
    %v2443 = vunpack.c.h.b16 %v2276
    %v2444 = vunpack.c.l.b16 %v2277
    %v2445 = vunpack.c.h.b16 %v2277
    %v2446 = vunpack.c.l.b16 %v2278
    %v2447 = vunpack.c.h.b16 %v2278
    %v2448 = vunpack.c.l.b16 %v2279
    %v2449 = vunpack.c.h.b16 %v2279
    %v2450 = vunpack.c.l.b16 %v2280
    %v2451 = vunpack.c.h.b16 %v2280
    %v2452 = vunpack.c.l.b16 %v2281
    %v2453 = vunpack.c.h.b16 %v2281
    %v2454 = vunpack.c.l.b16 %v2282
    %v2455 = vunpack.c.h.b16 %v2282
    %v2456 = vunpack.c.l.b16 %v2283
    %v2457 = vunpack.c.h.b16 %v2283
    %v2458 = vunpack.c.l.b16 %v2284
    %v2459 = vunpack.c.h.b16 %v2284
    %v2460 = vunpack.c.l.b16 %v2285
    %v2461 = vunpack.c.h.b16 %v2285
    %v2462 = vunpack.c.l.b16 %v2286
    %v2463 = vunpack.c.h.b16 %v2286
    %v2464 = vunpack.c.l.b16 %v2287
    %v2465 = vunpack.c.h.b16 %v2287
    %v2466 = vunpack.c.l.b16 %v2288
    %v2467 = vunpack.c.h.b16 %v2288
    %v2468 = vunpack.c.l.b16 %v2289
    %v2469 = vunpack.c.h.b16 %v2289
    %v2470 = vunpack.c.l.b16 %v2290
    %v2471 = vunpack.c.h.b16 %v2290
    %v2472 = vunpack.c.l.b16 %v2291
    %v2473 = vunpack.c.h.b16 %v2291
    %v2474 = vunpack.c.l.b16 %v2292
    %v2475 = vunpack.c.h.b16 %v2292
    %v2476 = vunpack.c.l.b16 %v2293
    %v2477 = vunpack.c.h.b16 %v2293
    %v2478 = vunpack.c.l.b16 %v2294
    %v2479 = vunpack.c.h.b16 %v2294
    %v2480 = vunpack.c.l.b16 %v2295
    %v2481 = vunpack.c.h.b16 %v2295
    %v2482 = vunpack.c.l.b16 %v2296
    %v2483 = vunpack.c.h.b16 %v2296
    %v2484 = vunpack.c.l.b16 %v2297
    %v2485 = vunpack.c.h.b16 %v2297
    %v2486 = vunpack.c.l.b16 %v2298
    %v2487 = vunpack.c.h.b16 %v2298
    %v2488 = vunpack.c.l.b16 %v2299
    %v2489 = vunpack.c.h.b16 %v2299
    %v2490 = vunpack.c.l.b16 %v2300
    %v2491 = vunpack.c.h.b16 %v2300
    %v2492 = vunpack.c.l.b16 %v2301
    %v2493 = vunpack.c.h.b16 %v2301
    %v2494 = vpack.c.b16 %v2370, %v2366
    %v2495 = vpack.c.b16 %v2371, %v2367
    %v2496 = vpack.c.b16 %v2372, %v2368
    %v2497 = vpack.c.b16 %v2373, %v2369
    %v2498 = vpack.c.b16 %v2378, %v2374
    %v2499 = vpack.c.b16 %v2379, %v2375
    %v2500 = vpack.c.b16 %v2380, %v2376
    %v2501 = vpack.c.b16 %v2381, %v2377
    %v2502 = vpack.c.b16 %v2386, %v2382
    %v2503 = vpack.c.b16 %v2387, %v2383
    %v2504 = vpack.c.b16 %v2388, %v2384
    %v2505 = vpack.c.b16 %v2389, %v2385
    %v2506 = vpack.c.b16 %v2394, %v2390
    %v2507 = vpack.c.b16 %v2395, %v2391
    %v2508 = vpack.c.b16 %v2396, %v2392
    %v2509 = vpack.c.b16 %v2397, %v2393
    %v2510 = vpack.c.b16 %v2402, %v2398
    %v2511 = vpack.c.b16 %v2403, %v2399
    %v2512 = vpack.c.b16 %v2404, %v2400
    %v2513 = vpack.c.b16 %v2405, %v2401
    %v2514 = vpack.c.b16 %v2410, %v2406
    %v2515 = vpack.c.b16 %v2411, %v2407
    %v2516 = vpack.c.b16 %v2412, %v2408
    %v2517 = vpack.c.b16 %v2413, %v2409
    %v2518 = vpack.c.b16 %v2418, %v2414
    %v2519 = vpack.c.b16 %v2419, %v2415
    %v2520 = vpack.c.b16 %v2420, %v2416
    %v2521 = vpack.c.b16 %v2421, %v2417
    %v2522 = vpack.c.b16 %v2426, %v2422
    %v2523 = vpack.c.b16 %v2427, %v2423
    %v2524 = vpack.c.b16 %v2428, %v2424
    %v2525 = vpack.c.b16 %v2429, %v2425
    %v2526 = vpack.c.b16 %v2434, %v2430
    %v2527 = vpack.c.b16 %v2435, %v2431
    %v2528 = vpack.c.b16 %v2436, %v2432
    %v2529 = vpack.c.b16 %v2437, %v2433
    %v2530 = vpack.c.b16 %v2442, %v2438
    %v2531 = vpack.c.b16 %v2443, %v2439
    %v2532 = vpack.c.b16 %v2444, %v2440
    %v2533 = vpack.c.b16 %v2445, %v2441
    %v2534 = vpack.c.b16 %v2450, %v2446
    %v2535 = vpack.c.b16 %v2451, %v2447
    %v2536 = vpack.c.b16 %v2452, %v2448
    %v2537 = vpack.c.b16 %v2453, %v2449
    %v2538 = vpack.c.b16 %v2458, %v2454
    %v2539 = vpack.c.b16 %v2459, %v2455
    %v2540 = vpack.c.b16 %v2460, %v2456
    %v2541 = vpack.c.b16 %v2461, %v2457
    %v2542 = vpack.c.b16 %v2466, %v2462
    %v2543 = vpack.c.b16 %v2467, %v2463
    %v2544 = vpack.c.b16 %v2468, %v2464
    %v2545 = vpack.c.b16 %v2469, %v2465
    %v2546 = vpack.c.b16 %v2474, %v2470
    %v2547 = vpack.c.b16 %v2475, %v2471
    %v2548 = vpack.c.b16 %v2476, %v2472
    %v2549 = vpack.c.b16 %v2477, %v2473
    %v2550 = vpack.c.b16 %v2482, %v2478
    %v2551 = vpack.c.b16 %v2483, %v2479
    %v2552 = vpack.c.b16 %v2484, %v2480
    %v2553 = vpack.c.b16 %v2485, %v2481
    %v2554 = vpack.c.b16 %v2490, %v2486
    %v2555 = vpack.c.b16 %v2491, %v2487
    %v2556 = vpack.c.b16 %v2492, %v2488
    %v2557 = vpack.c.b16 %v2493, %v2489
    %2622 = vmatprep.subr.bf16.mxu0 %v2495
    %2623 = vmatpush1.bf16.msra.mxu0 %v2494
    %2624 = vmatprep.subr.bf16.mxu0 %v2499
    %2625 = vmatpush1.bf16.msra.mxu0 %v2498
    %2626 = vmatprep.subr.bf16.mxu0 %v2503
    %2627 = vmatpush1.bf16.msra.mxu0 %v2502
    %2628 = vmatprep.subr.bf16.mxu0 %v2507
    %2629 = vmatpush1.bf16.msra.mxu0 %v2506
    %2630 = vmatprep.subr.bf16.mxu0 %v2511
    %2631 = vmatpush1.bf16.msra.mxu0 %v2510
    %2632 = vmatprep.subr.bf16.mxu0 %v2515
    %2633 = vmatpush1.bf16.msra.mxu0 %v2514
    %2634 = vmatprep.subr.bf16.mxu0 %v2519
    %2635 = vmatpush1.bf16.msra.mxu0 %v2518
    %2636 = vmatprep.subr.bf16.mxu0 %v2523
    %2637 = vmatpush1.bf16.msra.mxu0 %v2522
    %2638 = vmatprep.subr.bf16.mxu0 %v2527
    %2639 = vmatpush1.bf16.msra.mxu0 %v2526
    %2640 = vmatprep.subr.bf16.mxu0 %v2531
    %2641 = vmatpush1.bf16.msra.mxu0 %v2530
    %2642 = vmatprep.subr.bf16.mxu0 %v2535
    %2643 = vmatpush1.bf16.msra.mxu0 %v2534
    %2644 = vmatprep.subr.bf16.mxu0 %v2539
    %2645 = vmatpush1.bf16.msra.mxu0 %v2538
    %2646 = vmatprep.subr.bf16.mxu0 %v2543
    %2647 = vmatpush1.bf16.msra.mxu0 %v2542
    %2648 = vmatprep.subr.bf16.mxu0 %v2547
    %2649 = vmatpush1.bf16.msra.mxu0 %v2546
    %2650 = vmatprep.subr.bf16.mxu0 %v2551
    %2651 = vmatpush1.bf16.msra.mxu0 %v2550
    %2652 = vmatprep.subr.bf16.mxu0 %v2555
    %2653 = vmatpush1.bf16.msra.mxu0 %v2554
    %2654 = vmatprep.mubr.bf16.mxu0 %v2237
    %2655 = vmatmul.mubr.bf16.gmra.mrb[0].mxu0 %v2236
    %v2656 = vpop.f32.mrb[0].mxu0
    %v2657 = vadd.f32 0.0, %v2656
    %v2658 = vpop.f32.mrb[0].mxu0
    %v2659 = vadd.f32 0.0, %v2658
    %v2660 = vpop.f32.mrb[0].mxu0
    %v2661 = vpop.f32.mrb[0].mxu0
    %2662 = vdwg.mxu0
    %2663 = vmatprep.subr.bf16.mxu0 %v2497
    %2664 = vmatpush1.bf16.msra.mxu0 %v2496
    %2665 = vmatprep.subr.bf16.mxu0 %v2501
    %2666 = vmatpush1.bf16.msra.mxu0 %v2500
    %2667 = vmatprep.subr.bf16.mxu0 %v2505
    %2668 = vmatpush1.bf16.msra.mxu0 %v2504
    %2669 = vmatprep.subr.bf16.mxu0 %v2509
    %2670 = vmatpush1.bf16.msra.mxu0 %v2508
    %2671 = vmatprep.subr.bf16.mxu0 %v2513
    %2672 = vmatpush1.bf16.msra.mxu0 %v2512
    %2673 = vmatprep.subr.bf16.mxu0 %v2517
    %2674 = vmatpush1.bf16.msra.mxu0 %v2516
    %2675 = vmatprep.subr.bf16.mxu0 %v2521
    %2676 = vmatpush1.bf16.msra.mxu0 %v2520
    %2677 = vmatprep.subr.bf16.mxu0 %v2525
    %2678 = vmatpush1.bf16.msra.mxu0 %v2524
    %2679 = vmatprep.subr.bf16.mxu0 %v2529
    %2680 = vmatpush1.bf16.msra.mxu0 %v2528
    %2681 = vmatprep.subr.bf16.mxu0 %v2533
    %2682 = vmatpush1.bf16.msra.mxu0 %v2532
    %2683 = vmatprep.subr.bf16.mxu0 %v2537
    %2684 = vmatpush1.bf16.msra.mxu0 %v2536
    %2685 = vmatprep.subr.bf16.mxu0 %v2541
    %2686 = vmatpush1.bf16.msra.mxu0 %v2540
    %2687 = vmatprep.subr.bf16.mxu0 %v2545
    %2688 = vmatpush1.bf16.msra.mxu0 %v2544
    %2689 = vmatprep.subr.bf16.mxu0 %v2549
    %2690 = vmatpush1.bf16.msra.mxu0 %v2548
    %2691 = vmatprep.subr.bf16.mxu0 %v2553
    %2692 = vmatpush1.bf16.msra.mxu0 %v2552
    %2693 = vmatprep.subr.bf16.mxu0 %v2557
    %2694 = vmatpush1.bf16.msra.mxu0 %v2556
    %2695 = vmatprep.mubr.bf16.mxu0 %v2237
    %2696 = vmatmul.mubr.bf16.gmra.mrb[0].mxu0 %v2236
    %v2697 = vpop.f32.mrb[0].mxu0
    %v2698 = vadd.f32 0.0, %v2697
    %v2699 = vpop.f32.mrb[0].mxu0
    %v2700 = vadd.f32 0.0, %v2699
    %v2701 = vpop.f32.mrb[0].mxu0
    %v2702 = vpop.f32.mrb[0].mxu0
    %2703 = vdwg.mxu0
    %v2704 = vld [vmem:[%s5] sm:$0xf]
    %v2706 = vlaneseq
    %v2707 = vshrl.u32 %v2706, 7
    %v2708 = vsub.s32 0, %v2707
    %v2709 = vrot.slane %v2704, %v2708
    %v2710 = vlaneseq
    %v2711 = vshrl.u32 %v2710, 7
    %v2712 = vsub.s32 1, %v2711
    %v2713 = vrot.slane %v2704, %v2712
    %v2714 = vlaneseq
    %v2715 = vshrl.u32 %v2714, 7
    %v2716 = vsub.s32 2, %v2715
    %v2717 = vrot.slane %v2704, %v2716
    %v2718 = vlaneseq
    %v2719 = vshrl.u32 %v2718, 7
    %v2720 = vsub.s32 3, %v2719
    %v2721 = vrot.slane %v2704, %v2720
    %v2726 = vmul.f32 %v2657, %v2709
    %v2727 = vmul.f32 %v2659, %v2713
    %v2728 = vmul.f32 %v2698, %v2717
    %v2729 = vmul.f32 %v2700, %v2721
    %v2730 = vld [vmem:[%s6] sm:$0xf]
    %v2732 = vlaneseq
    %v2733 = vshrl.u32 %v2732, 7
    %v2734 = vsub.s32 0, %v2733
    %v2735 = vrot.slane %v2730, %v2734
    %v2736 = vlaneseq
    %v2737 = vshrl.u32 %v2736, 7
    %v2738 = vsub.s32 1, %v2737
    %v2739 = vrot.slane %v2730, %v2738
    %v2740 = vlaneseq
    %v2741 = vshrl.u32 %v2740, 7
    %v2742 = vsub.s32 2, %v2741
    %v2743 = vrot.slane %v2730, %v2742
    %v2744 = vlaneseq
    %v2745 = vshrl.u32 %v2744, 7
    %v2746 = vsub.s32 3, %v2745
    %v2747 = vrot.slane %v2730, %v2746
    %v2752 = vadd.f32 %v2726, %v2735
    %v2753 = vadd.f32 %v2727, %v2739
    %v2754 = vadd.f32 %v2728, %v2743
    %v2755 = vadd.f32 %v2729, %v2747
    %v2756 = vmax.f32 %v2752, 0.0
    %v2757 = vmax.f32 %v2753, 0.0
    %v2758 = vmax.f32 %v2754, 0.0
    %v2759 = vmax.f32 %v2755, 0.0
    %v2760 = vpack.c.bf16 %v2756, %v2756
    %v2761 = vpack.c.bf16 %v2757, %v2757
    %v2762 = vpack.c.bf16 %v2758, %v2758
    %v2763 = vpack.c.bf16 %v2759, %v2759
    %v2764 = vld [vmem:[%s7] sm:$0xf]
    %v2765 = vld [vmem:[%s7 + $0x4] sm:$0xf]
    %v2766 = vld [vmem:[%s7 + $0x8] sm:$0xf]
    %v2767 = vld [vmem:[%s7 + $0xc] sm:$0xf]
    %v2768 = vld [vmem:[%s7 + $0x10] sm:$0xf]
    %v2769 = vld [vmem:[%s7 + $0x14] sm:$0xf]
    %v2770 = vld [vmem:[%s7 + $0x18] sm:$0xf]
    %v2771 = vld [vmem:[%s7 + $0x1c] sm:$0xf]
    %v2772 = vld [vmem:[%s7 + $0x20] sm:$0xf]
    %v2773 = vld [vmem:[%s7 + $0x24] sm:$0xf]
    %v2774 = vld [vmem:[%s7 + $0x28] sm:$0xf]
    %v2775 = vld [vmem:[%s7 + $0x2c] sm:$0xf]
    %v2776 = vld [vmem:[%s7 + $0x30] sm:$0xf]
    %v2777 = vld [vmem:[%s7 + $0x34] sm:$0xf]
    %v2778 = vld [vmem:[%s7 + $0x38] sm:$0xf]
    %v2779 = vld [vmem:[%s7 + $0x3c] sm:$0xf]
    %v2780 = vld [vmem:[%s7 + $0x40] sm:$0xf]
    %v2781 = vld [vmem:[%s7 + $0x44] sm:$0xf]
    %v2782 = vld [vmem:[%s7 + $0x48] sm:$0xf]
    %v2783 = vld [vmem:[%s7 + $0x4c] sm:$0xf]
    %v2784 = vld [vmem:[%s7 + $0x50] sm:$0xf]
    %v2785 = vld [vmem:[%s7 + $0x54] sm:$0xf]
    %v2786 = vld [vmem:[%s7 + $0x58] sm:$0xf]
    %v2787 = vld [vmem:[%s7 + $0x5c] sm:$0xf]
    %v2788 = vld [vmem:[%s7 + $0x60] sm:$0xf]
    %v2789 = vld [vmem:[%s7 + $0x64] sm:$0xf]
    %v2790 = vld [vmem:[%s7 + $0x68] sm:$0xf]
    %v2791 = vld [vmem:[%s7 + $0x6c] sm:$0xf]
    %v2792 = vld [vmem:[%s7 + $0x70] sm:$0xf]
    %v2793 = vld [vmem:[%s7 + $0x74] sm:$0xf]
    %v2794 = vld [vmem:[%s7 + $0x78] sm:$0xf]
    %v2795 = vld [vmem:[%s7 + $0x7c] sm:$0xf]
    %v2796 = vld [vmem:[%s7 + $0x80] sm:$0xf]
    %v2797 = vld [vmem:[%s7 + $0x84] sm:$0xf]
    %v2798 = vld [vmem:[%s7 + $0x88] sm:$0xf]
    %v2799 = vld [vmem:[%s7 + $0x8c] sm:$0xf]
    %v2800 = vld [vmem:[%s7 + $0x90] sm:$0xf]
    %v2801 = vld [vmem:[%s7 + $0x94] sm:$0xf]
    %v2802 = vld [vmem:[%s7 + $0x98] sm:$0xf]
    %v2803 = vld [vmem:[%s7 + $0x9c] sm:$0xf]
    %v2804 = vld [vmem:[%s7 + $0xa0] sm:$0xf]
    %v2805 = vld [vmem:[%s7 + $0xa4] sm:$0xf]
    %v2806 = vld [vmem:[%s7 + $0xa8] sm:$0xf]
    %v2807 = vld [vmem:[%s7 + $0xac] sm:$0xf]
    %v2808 = vld [vmem:[%s7 + $0xb0] sm:$0xf]
    %v2809 = vld [vmem:[%s7 + $0xb4] sm:$0xf]
    %v2810 = vld [vmem:[%s7 + $0xb8] sm:$0xf]
    %v2811 = vld [vmem:[%s7 + $0xbc] sm:$0xf]
    %v2812 = vld [vmem:[%s7 + $0xc0] sm:$0xf]
    %v2813 = vld [vmem:[%s7 + $0xc4] sm:$0xf]
    %v2814 = vld [vmem:[%s7 + $0xc8] sm:$0xf]
    %v2815 = vld [vmem:[%s7 + $0xcc] sm:$0xf]
    %v2816 = vld [vmem:[%s7 + $0xd0] sm:$0xf]
    %v2817 = vld [vmem:[%s7 + $0xd4] sm:$0xf]
    %v2818 = vld [vmem:[%s7 + $0xd8] sm:$0xf]
    %v2819 = vld [vmem:[%s7 + $0xdc] sm:$0xf]
    %v2820 = vld [vmem:[%s7 + $0xe0] sm:$0xf]
    %v2821 = vld [vmem:[%s7 + $0xe4] sm:$0xf]
    %v2822 = vld [vmem:[%s7 + $0xe8] sm:$0xf]
    %v2823 = vld [vmem:[%s7 + $0xec] sm:$0xf]
    %v2824 = vld [vmem:[%s7 + $0xf0] sm:$0xf]
    %v2825 = vld [vmem:[%s7 + $0xf4] sm:$0xf]
    %v2826 = vld [vmem:[%s7 + $0xf8] sm:$0xf]
    %v2827 = vld [vmem:[%s7 + $0xfc] sm:$0xf]
    %v2892 = vunpack.c.l.b16 %v2764
    %v2893 = vunpack.c.l.b16 %v2765
    %v2894 = vunpack.c.l.b16 %v2766
    %v2895 = vunpack.c.l.b16 %v2767
    %v2896 = vunpack.c.l.b16 %v2768
    %v2897 = vunpack.c.l.b16 %v2769
    %v2898 = vunpack.c.l.b16 %v2770
    %v2899 = vunpack.c.l.b16 %v2771
    %v2900 = vunpack.c.l.b16 %v2772
    %v2901 = vunpack.c.l.b16 %v2773
    %v2902 = vunpack.c.l.b16 %v2774
    %v2903 = vunpack.c.l.b16 %v2775
    %v2904 = vunpack.c.l.b16 %v2776
    %v2905 = vunpack.c.l.b16 %v2777
    %v2906 = vunpack.c.l.b16 %v2778
    %v2907 = vunpack.c.l.b16 %v2779
    %v2908 = vunpack.c.l.b16 %v2780
    %v2909 = vunpack.c.l.b16 %v2781
    %v2910 = vunpack.c.l.b16 %v2782
    %v2911 = vunpack.c.l.b16 %v2783
    %v2912 = vunpack.c.l.b16 %v2784
    %v2913 = vunpack.c.l.b16 %v2785
    %v2914 = vunpack.c.l.b16 %v2786
    %v2915 = vunpack.c.l.b16 %v2787
    %v2916 = vunpack.c.l.b16 %v2788
    %v2917 = vunpack.c.l.b16 %v2789
    %v2918 = vunpack.c.l.b16 %v2790
    %v2919 = vunpack.c.l.b16 %v2791
    %v2920 = vunpack.c.l.b16 %v2792
    %v2921 = vunpack.c.l.b16 %v2793
    %v2922 = vunpack.c.l.b16 %v2794
    %v2923 = vunpack.c.l.b16 %v2795
    %v2924 = vunpack.c.l.b16 %v2796
    %v2925 = vunpack.c.l.b16 %v2797
    %v2926 = vunpack.c.l.b16 %v2798
    %v2927 = vunpack.c.l.b16 %v2799
    %v2928 = vunpack.c.l.b16 %v2800
    %v2929 = vunpack.c.l.b16 %v2801
    %v2930 = vunpack.c.l.b16 %v2802
    %v2931 = vunpack.c.l.b16 %v2803
    %v2932 = vunpack.c.l.b16 %v2804
    %v2933 = vunpack.c.l.b16 %v2805
    %v2934 = vunpack.c.l.b16 %v2806
    %v2935 = vunpack.c.l.b16 %v2807
    %v2936 = vunpack.c.l.b16 %v2808
    %v2937 = vunpack.c.l.b16 %v2809
    %v2938 = vunpack.c.l.b16 %v2810
    %v2939 = vunpack.c.l.b16 %v2811
    %v2940 = vunpack.c.l.b16 %v2812
    %v2941 = vunpack.c.l.b16 %v2813
    %v2942 = vunpack.c.l.b16 %v2814
    %v2943 = vunpack.c.l.b16 %v2815
    %v2944 = vunpack.c.l.b16 %v2816
    %v2945 = vunpack.c.l.b16 %v2817
    %v2946 = vunpack.c.l.b16 %v2818
    %v2947 = vunpack.c.l.b16 %v2819
    %v2948 = vunpack.c.l.b16 %v2820
    %v2949 = vunpack.c.l.b16 %v2821
    %v2950 = vunpack.c.l.b16 %v2822
    %v2951 = vunpack.c.l.b16 %v2823
    %v2952 = vunpack.c.l.b16 %v2824
    %v2953 = vunpack.c.l.b16 %v2825
    %v2954 = vunpack.c.l.b16 %v2826
    %v2955 = vunpack.c.l.b16 %v2827
    %v2956 = vpack.c.b16 %v2893, %v2892
    %v2957 = vpack.c.b16 %v2895, %v2894
    %v2958 = vpack.c.b16 %v2897, %v2896
    %v2959 = vpack.c.b16 %v2899, %v2898
    %v2960 = vpack.c.b16 %v2901, %v2900
    %v2961 = vpack.c.b16 %v2903, %v2902
    %v2962 = vpack.c.b16 %v2905, %v2904
    %v2963 = vpack.c.b16 %v2907, %v2906
    %v2964 = vpack.c.b16 %v2909, %v2908
    %v2965 = vpack.c.b16 %v2911, %v2910
    %v2966 = vpack.c.b16 %v2913, %v2912
    %v2967 = vpack.c.b16 %v2915, %v2914
    %v2968 = vpack.c.b16 %v2917, %v2916
    %v2969 = vpack.c.b16 %v2919, %v2918
    %v2970 = vpack.c.b16 %v2921, %v2920
    %v2971 = vpack.c.b16 %v2923, %v2922
    %v2972 = vpack.c.b16 %v2925, %v2924
    %v2973 = vpack.c.b16 %v2927, %v2926
    %v2974 = vpack.c.b16 %v2929, %v2928
    %v2975 = vpack.c.b16 %v2931, %v2930
    %v2976 = vpack.c.b16 %v2933, %v2932
    %v2977 = vpack.c.b16 %v2935, %v2934
    %v2978 = vpack.c.b16 %v2937, %v2936
    %v2979 = vpack.c.b16 %v2939, %v2938
    %v2980 = vpack.c.b16 %v2941, %v2940
    %v2981 = vpack.c.b16 %v2943, %v2942
    %v2982 = vpack.c.b16 %v2945, %v2944
    %v2983 = vpack.c.b16 %v2947, %v2946
    %v2984 = vpack.c.b16 %v2949, %v2948
    %v2985 = vpack.c.b16 %v2951, %v2950
    %v2986 = vpack.c.b16 %v2953, %v2952
    %v2987 = vpack.c.b16 %v2955, %v2954
    %3020 = vmatprep.subr.bf16.mxu0 0
    %3021 = vmatpush1.bf16.msra.mxu0 %v2956
    %3022 = vmatprep.subr.bf16.mxu0 0
    %3023 = vmatpush1.bf16.msra.mxu0 %v2957
    %3024 = vmatprep.subr.bf16.mxu0 0
    %3025 = vmatpush1.bf16.msra.mxu0 %v2958
    %3026 = vmatprep.subr.bf16.mxu0 0
    %3027 = vmatpush1.bf16.msra.mxu0 %v2959
    %3028 = vmatprep.subr.bf16.mxu0 0
    %3029 = vmatpush1.bf16.msra.mxu0 %v2960
    %3030 = vmatprep.subr.bf16.mxu0 0
    %3031 = vmatpush1.bf16.msra.mxu0 %v2961
    %3032 = vmatprep.subr.bf16.mxu0 0
    %3033 = vmatpush1.bf16.msra.mxu0 %v2962
    %3034 = vmatprep.subr.bf16.mxu0 0
    %3035 = vmatpush1.bf16.msra.mxu0 %v2963
    %3036 = vmatprep.subr.bf16.mxu0 0
    %3037 = vmatpush1.bf16.msra.mxu0 %v2964
    %3038 = vmatprep.subr.bf16.mxu0 0
    %3039 = vmatpush1.bf16.msra.mxu0 %v2965
    %3040 = vmatprep.subr.bf16.mxu0 0
    %3041 = vmatpush1.bf16.msra.mxu0 %v2966
    %3042 = vmatprep.subr.bf16.mxu0 0
    %3043 = vmatpush1.bf16.msra.mxu0 %v2967
    %3044 = vmatprep.subr.bf16.mxu0 0
    %3045 = vmatpush1.bf16.msra.mxu0 %v2968
    %3046 = vmatprep.subr.bf16.mxu0 0
    %3047 = vmatpush1.bf16.msra.mxu0 %v2969
    %3048 = vmatprep.subr.bf16.mxu0 0
    %3049 = vmatpush1.bf16.msra.mxu0 %v2970
    %3050 = vmatprep.subr.bf16.mxu0 0
    %3051 = vmatpush1.bf16.msra.mxu0 %v2971
    %3052 = vmatprep.mubr.bf16.mxu0 %v2761
    %3053 = vmatmul.mubr.bf16.gmra.mrb[0].mxu0 %v2760
    %v3054 = vpop.f32.mrb[0].mxu0
    %v3055 = vadd.f32 0.0, %v3054
    %v3056 = vpop.f32.mrb[0].mxu0
    %v3057 = vpop.f32.mrb[0].mxu0
    %v3058 = vpop.f32.mrb[0].mxu0
    %3059 = vdwg.mxu0
    %3060 = vmatprep.subr.bf16.mxu0 0
    %3061 = vmatpush1.bf16.msra.mxu0 %v2972
    %3062 = vmatprep.subr.bf16.mxu0 0
    %3063 = vmatpush1.bf16.msra.mxu0 %v2973
    %3064 = vmatprep.subr.bf16.mxu0 0
    %3065 = vmatpush1.bf16.msra.mxu0 %v2974
    %3066 = vmatprep.subr.bf16.mxu0 0
    %3067 = vmatpush1.bf16.msra.mxu0 %v2975
    %3068 = vmatprep.subr.bf16.mxu0 0
    %3069 = vmatpush1.bf16.msra.mxu0 %v2976
    %3070 = vmatprep.subr.bf16.mxu0 0
    %3071 = vmatpush1.bf16.msra.mxu0 %v2977
    %3072 = vmatprep.subr.bf16.mxu0 0
    %3073 = vmatpush1.bf16.msra.mxu0 %v2978
    %3074 = vmatprep.subr.bf16.mxu0 0
    %3075 = vmatpush1.bf16.msra.mxu0 %v2979
    %3076 = vmatprep.subr.bf16.mxu0 0
    %3077 = vmatpush1.bf16.msra.mxu0 %v2980
    %3078 = vmatprep.subr.bf16.mxu0 0
    %3079 = vmatpush1.bf16.msra.mxu0 %v2981
    %3080 = vmatprep.subr.bf16.mxu0 0
    %3081 = vmatpush1.bf16.msra.mxu0 %v2982
    %3082 = vmatprep.subr.bf16.mxu0 0
    %3083 = vmatpush1.bf16.msra.mxu0 %v2983
    %3084 = vmatprep.subr.bf16.mxu0 0
    %3085 = vmatpush1.bf16.msra.mxu0 %v2984
    %3086 = vmatprep.subr.bf16.mxu0 0
    %3087 = vmatpush1.bf16.msra.mxu0 %v2985
    %3088 = vmatprep.subr.bf16.mxu0 0
    %3089 = vmatpush1.bf16.msra.mxu0 %v2986
    %3090 = vmatprep.subr.bf16.mxu0 0
    %3091 = vmatpush1.bf16.msra.mxu0 %v2987
    %3092 = vmatprep.mubr.bf16.mxu0 %v2763
    %3093 = vmatmul.mubr.bf16.gmra.mrb[0].mxu0 %v2762
    %v3094 = vpop.f32.mrb[0].mxu0
    %v3095 = vadd.f32 %v3055, %v3094
    %v3096 = vpop.f32.mrb[0].mxu0
    %v3097 = vpop.f32.mrb[0].mxu0
    %v3098 = vpop.f32.mrb[0].mxu0
    %3099 = vdwg.mxu0
    %v3100 = vld [vmem:[%s8] sm:$0x1]
    %v3102 = vlaneseq
    %v3103 = vshrl.u32 %v3102, 7
    %v3104 = vsub.s32 0, %v3103
    %v3105 = vrot.slane %v3100, %v3104
    %v3107 = vmul.f32 %v3095, %v3105
    %v3108 = vld [vmem:[%s9] sm:$0x1]
    %v3110 = vlaneseq
    %v3111 = vshrl.u32 %v3110, 7
    %v3112 = vsub.s32 0, %v3111
    %v3113 = vrot.slane %v3108, %v3112
    %v3115 = vadd.f32 %v3107, %v3113
    %v3116 = vxor.u32 %v3115, 2147483648
    %v3117 = vmul.f32 %v3116, 1.442695
    %v3118 = vpow.pop %v3117
    %v3119 = vadd.f32 %v3118, 1.0
    %v3120 = vrcp.pop %v3119
    %v3121 = vmul.f32 1.0, %v3120
    %vm3122 = vcmask 121856
    %3123 = vst.msk [vmem:[#allocation2] sm:$0xff] %vm3122, %v3121
    // Predicated region
    $region42: #{kpnet_forward.11} parent=1 // pred_check
      _
    $region43: #{kpnet_forward.11} parent=1 // pred_check_branch
      %3125 = sbr.rel (0) target = $region45
    $region44: #{kpnet_forward.11} parent=1 // pred_region
      %s3127 = ssub.s32 128, 128
      %3128 = vsyncadd [#allocation3], %s3127
      %s3130 = sshll.u32 [#allocation2], 4
      %s3131 = int_to_ptr.vmem [resolvable:$true] %s3130
      %3133 = dma.vmem_to_hbm [thread:$0]  %s3131, 128, %s10, [#allocation3]
    $region45: #{kpnet_forward.11} parent=1 // pred_fallthru
      _
    // Predicated region
    $region46: #{kpnet_forward.11} parent=1 // pred_check
      _
    $region47: #{kpnet_forward.11} parent=1 // pred_check_branch
      %3135 = sbr.rel (0) target = $region49
    $region48: #{kpnet_forward.11} parent=1 // pred_region
      %3136 = dma.done [#allocation3], 128
    $region49: #{kpnet_forward.11} parent=1 // pred_fallthru
      _
    %3137 = vsyncpa [#allocation3], 1

</llo_original>
